<compile_context>
chip_gen: v6e
topology: v6e:2x2x1
jax: 0.10.0
libtpu: 0.0.40
codegen_flags: <defaults>
</compile_context>

<pallas_src>
import math

import jax
import jax.numpy as jnp
from jax.experimental import pallas as pl
from jax.experimental.pallas import tpu as pltpu


def _round_up(x, m):
    return ((x + m - 1) // m) * m


# ----------------------------------------------------------------------------
# Generic row-tiled matmul (+ bias) kernel
# ----------------------------------------------------------------------------
def _matmul_bias_kernel(a_ref, b_ref, bias_ref, o_ref):
    acc = jnp.dot(a_ref[...], b_ref[...], preferred_element_type=jnp.float32)
    o_ref[...] = (acc + bias_ref[...]).astype(o_ref.dtype)


def tiled_matmul(a, b, bias, out_dtype=jnp.float32, tr=1024):
    """a: (R, K), b: (K, N), bias: (N,) f32 -> (R, N). Row-tiled & pipelined."""
    R, K = a.shape
    N = b.shape[1]
    # row tile: multiple of 32; >= 2 grid steps when possible (v7x megacore).
    tr = max(32, min(_round_up(tr, 32), _round_up(max(1, (R + 1) // 2), 32)))
    Rp = _round_up(R, tr)
    if Rp != R:
        a = jnp.pad(a, ((0, Rp - R), (0, 0)))
    out = pl.pallas_call(
        _matmul_bias_kernel,
        out_shape=jax.ShapeDtypeStruct((Rp, N), out_dtype),
        grid=(Rp // tr,),
        in_specs=[
            pl.BlockSpec((tr, K), lambda i: (i, 0)),
            pl.BlockSpec((K, N), lambda i: (0, 0)),
            pl.BlockSpec((1, N), lambda i: (0, 0)),
        ],
        out_specs=pl.BlockSpec((tr, N), lambda i: (i, 0)),
        compiler_params=pltpu.CompilerParams(dimension_semantics=("parallel",)),
    )(a, b, bias.reshape(1, N))
    return out[:R] if Rp != R else out


# ----------------------------------------------------------------------------
# skips_3: Conv2d(k=3, stride=2, dilation=2, padding=2) without im2col
# ----------------------------------------------------------------------------
def _skips3_kernel(x_ref, w_ref, b_ref, o_ref):
    # x_ref: (1, th, w3s+2, 3*ch) bf16 -- the 3 kh-shifted decimated views
    #        concatenated along channels, so each kw tap is one K=3*ch matmul.
    # w_ref: (3, 3*ch, cout) bf16 (indexed by kw), b_ref: (1, cout) f32.
    _, th, wp2, kc = x_ref.shape
    w3s = wp2 - 2
    cout = w_ref.shape[-1]
    acc = jnp.zeros((th * w3s, cout), jnp.float32)
    for kw in range(3):
        patch = x_ref[0, :, kw:kw + w3s, :].reshape(th * w3s, kc)
        acc = acc + jnp.dot(patch, w_ref[kw], preferred_element_type=jnp.float32)
    acc = (acc + b_ref[...]).astype(o_ref.dtype)
    o_ref[...] = acc.reshape(th, w3s, cout)[None]


def skips_3_conv(x_high, w3, b3, th_target=32):
    """NCHW x_high (n, ch, H2, W2) -> channels-last bf16 (n, ceil(H2/2), ceil(W2/2), cout)."""
    n, ch, H2, W2 = x_high.shape
    cout = w3.shape[0]
    h3 = (H2 + 1) // 2
    w3s = (W2 + 1) // 2
    # stride == dilation == 2: every tap lands on an even padded index, so
    # decimating FIRST (4x less XLA copy traffic) and padding by 1 is exact.
    xd = jnp.transpose(x_high[:, :, ::2, ::2].astype(jnp.bfloat16), (0, 2, 3, 1))
    xe = jnp.pad(xd, ((0, 0), (1, 1), (1, 1), (0, 0)))            # (n, h3+2, w3s+2, ch)
    # fold the kh taps into the MXU K dimension (3 matmuls of K=3*ch, not 9 of K=ch)
    xcat = jnp.concatenate([xe[:, k:k + h3, :, :] for k in range(3)], axis=-1)

    th = min(th_target, h3)
    if n == 1 and h3 >= 16:
        th = min(th, (h3 + 1) // 2)        # >= 2 row tiles so both v7x cores get work
    th = _round_up(max(th, 1), 8)
    hp = _round_up(h3, th)
    if hp != h3:
        xcat = jnp.pad(xcat, ((0, 0), (0, hp - h3), (0, 0), (0, 0)))
    wk = jnp.transpose(w3, (3, 2, 1, 0)).reshape(3, 3 * ch, cout).astype(jnp.bfloat16)

    out = pl.pallas_call(
        _skips3_kernel,
        out_shape=jax.ShapeDtypeStruct((n, hp, w3s, cout), jnp.bfloat16),
        grid=(n, hp // th),
        in_specs=[
            pl.BlockSpec((1, th, w3s + 2, 3 * ch), lambda b, r: (b, r, 0, 0)),
            pl.BlockSpec((3, 3 * ch, cout), lambda b, r: (0, 0, 0)),
            pl.BlockSpec((1, cout), lambda b, r: (0, 0)),
        ],
        out_specs=pl.BlockSpec((1, th, w3s, cout), lambda b, r: (b, r, 0, 0)),
        compiler_params=pltpu.CompilerParams(
            dimension_semantics=("parallel", "parallel")),
    )(xcat, wk, b3.reshape(1, cout))
    if hp != h3:
        out = out[:, :h3]
    return out


# ----------------------------------------------------------------------------
# skips_2: 1x1 conv applied directly on the NCHW layout (no transpose needed)
# ----------------------------------------------------------------------------
def _skips2_nchw_kernel(x_ref, w_ref, b_ref, o_ref):
    # x_ref: (1, c2, tp) bf16; w_ref: (cout, c2) bf16; b_ref: (cout, 1) f32
    acc = jnp.dot(w_ref[...], x_ref[0], preferred_element_type=jnp.float32)
    o_ref[...] = (acc + b_ref[...])[None].astype(o_ref.dtype)


def skips_2_nchw(x_low, w2, b2):
    """(n, c2, h2, w2) f32 -> (n, cout, h2*w2) bf16 (channel contraction on NCHW)."""
    n, c2, h2, w2s = x_low.shape
    cout = w2.shape[0]
    P = h2 * w2s
    Pp = _round_up(P, 128)
    xf = x_low.astype(jnp.bfloat16).reshape(n, c2, P)
    if Pp != P:
        xf = jnp.pad(xf, ((0, 0), (0, 0), (0, Pp - P)))
    tp = Pp
    for cand in (512, 256, 128):                 # >= 2 lane tiles when possible
        if Pp % cand == 0 and Pp // cand >= 2:
            tp = cand
            break
    out = pl.pallas_call(
        _skips2_nchw_kernel,
        out_shape=jax.ShapeDtypeStruct((n, cout, Pp), jnp.bfloat16),
        grid=(n, Pp // tp),
        in_specs=[
            pl.BlockSpec((1, c2, tp), lambda b, j: (b, 0, j)),
            pl.BlockSpec((cout, c2), lambda b, j: (0, 0)),
            pl.BlockSpec((cout, 1), lambda b, j: (0, 0)),
        ],
        out_specs=pl.BlockSpec((1, cout, tp), lambda b, j: (b, 0, j)),
        compiler_params=pltpu.CompilerParams(
            dimension_semantics=("parallel", "parallel")),
    )(xf, w2.astype(jnp.bfloat16), b2.reshape(cout, 1))
    return out[:, :, :P] if Pp != P else out


# ----------------------------------------------------------------------------
# W-axis bilinear interpolation (align_corners) on the NCHW-flat layout
# ----------------------------------------------------------------------------
def w_interp(xl1, mw, h2, w2s):
    """xl1: (n, cout, h2*w2) bf16, mw: (w, w2) f32 -> (n, cout, h2, w) bf16."""
    n, cout, _ = xl1.shape
    w = mw.shape[0]
    rows = n * cout * h2
    a = xl1.reshape(rows, w2s)
    # pack consecutive rows so the output trailing dim is a multiple of 128 lanes
    p = 1
    if w < 128:
        cand = 128 // math.gcd(w, 128)
        if rows % cand == 0 and (cand * w2s) * (cand * w) * 4 <= (4 << 20):
            p = cand
    if p > 1:
        a = a.reshape(rows // p, p * w2s)
        op = jnp.kron(jnp.eye(p, dtype=jnp.float32), mw.T)      # (p*w2, p*w)
        bias = jnp.zeros((p * w,), jnp.float32)
    else:
        op = mw.T
        bias = jnp.zeros((w,), jnp.float32)
    out = tiled_matmul(a, op, bias, out_dtype=jnp.bfloat16)
    return out.reshape(n, cout, h2, w)


# ----------------------------------------------------------------------------
# H-axis bilinear interpolation (align_corners) as a per-image matmul
# ----------------------------------------------------------------------------
def _uph_kernel(x_ref, mh_ref, o_ref):
    y = jnp.dot(mh_ref[...], x_ref[0].astype(jnp.float32),
                preferred_element_type=jnp.float32)
    o_ref[...] = y[None].astype(o_ref.dtype)


def upsample_h(x, mh):
    """x: (n, h2, wc) bf16 -> (n, h, wc) bf16 (lane-dense, >= 2 lane tiles)."""
    n, h2, wc = x.shape
    h = mh.shape[0]
    wcp = _round_up(wc, 128)
    if wcp != wc:
        x = jnp.pad(x, ((0, 0), (0, 0), (0, wcp - wc)))
    twc = wcp
    for cand in (2048, 1024, 512, 256, 128):
        if wcp % cand == 0 and wcp // cand >= 2:
            twc = cand
            break
    out = pl.pallas_call(
        _uph_kernel,
        out_shape=jax.ShapeDtypeStruct((n, h, wcp), jnp.bfloat16),
        grid=(n, wcp // twc),
        in_specs=[
            pl.BlockSpec((1, h2, twc), lambda b, j: (b, 0, j)),
            pl.BlockSpec((h, h2), lambda b, j: (0, 0)),
        ],
        out_specs=pl.BlockSpec((1, h, twc), lambda b, j: (b, 0, j)),
        compiler_params=pltpu.CompilerParams(
            dimension_semantics=("parallel", "parallel")),
    )(x, mh)
    return out[:, :, :wc] if wcp != wc else out


# ----------------------------------------------------------------------------
# Fused: skips(x) + Bag + tail_conv + residual + BatchNorm(eval) + ReLU
# (lane-packed (rows, 128) tiles; the 1x1 convs are block-diagonal matmuls)
# ----------------------------------------------------------------------------
def _dasi_fused_kernel(x_ref, xl_ref, xh_ref, ws_ref, bs_ref, wt_ref, bt_ref,
                       scale_ref, shift_ref, o_ref):
    xs = jnp.dot(x_ref[...], ws_ref[...],
                 preferred_element_type=jnp.float32) + bs_ref[...]      # skips(x)
    gate = jax.nn.sigmoid(xs)                                           # Bag attention
    bag = gate * xl_ref[...].astype(jnp.float32) \
        + (1.0 - gate) * xh_ref[...].astype(jnp.float32)
    y = jnp.dot(bag.astype(jnp.bfloat16), wt_ref[...],
                preferred_element_type=jnp.float32) + bt_ref[...]       # tail_conv
    y = y + xs                                                          # + x_skip
    y = y * scale_ref[...] + shift_ref[...]                             # eval-mode BN
    o_ref[...] = jnp.maximum(y, 0.0).astype(o_ref.dtype)                # ReLU, bf16 out


def dasi_fused(xp, xlp, xhp, ws_blk, bs, wt_blk, bt, scale, shift, tm):
    Mp, Kx = xp.shape
    P = xlp.shape[1]
    row = lambda i: (i, 0)
    full = lambda i: (0, 0)
    return pl.pallas_call(
        _dasi_fused_kernel,
        out_shape=jax.ShapeDtypeStruct((Mp, P), jnp.bfloat16),
        grid=(Mp // tm,),
        in_specs=[
            pl.BlockSpec((tm, Kx), row),
            pl.BlockSpec((tm, P), row),
            pl.BlockSpec((tm, P), row),
            pl.BlockSpec((Kx, P), full),
            pl.BlockSpec((1, P), full),
            pl.BlockSpec((P, P), full),
            pl.BlockSpec((1, P), full),
            pl.BlockSpec((1, P), full),
            pl.BlockSpec((1, P), full),
        ],
        out_specs=pl.BlockSpec((tm, P), row),
        compiler_params=pltpu.CompilerParams(dimension_semantics=("parallel",)),
    )(xp, xlp, xhp, ws_blk, bs, wt_blk, bt, scale, shift)


# ----------------------------------------------------------------------------
# Plain-JAX glue
# ----------------------------------------------------------------------------
def bilinear_matrix(out_size, in_size):
    """align_corners=True 1-D interpolation matrix (out_size, in_size), f32."""
    if in_size == 1:
        return jnp.ones((out_size, 1), jnp.float32)
    if out_size == 1:
        return jnp.zeros((1, in_size), jnp.float32).at[0, 0].set(1.0)
    scale = (in_size - 1) / (out_size - 1)
    src = jnp.arange(out_size, dtype=jnp.float32) * scale
    lo = jnp.clip(jnp.floor(src).astype(jnp.int32), 0, in_size - 2)
    frac = src - lo.astype(jnp.float32)
    rows = jnp.arange(out_size)
    m = jnp.zeros((out_size, in_size), jnp.float32)
    m = m.at[rows, lo].add(1.0 - frac)
    m = m.at[rows, lo + 1].add(frac)
    return m


def init_params(key, in_features, out_features):
    ks = jax.random.split(key, 12)
    def nrm(k, shape, s=0.1):
        return s * jax.random.normal(k, shape, dtype=jnp.float32)
    p = {}
    p["skips_w"] = nrm(ks[0], (out_features, in_features, 1, 1))
    p["skips_b"] = nrm(ks[1], (out_features,))
    p["skips2_w"] = nrm(ks[2], (out_features, in_features * 2, 1, 1))
    p["skips2_b"] = nrm(ks[3], (out_features,))
    p["skips3_w"] = nrm(ks[4], (out_features, in_features // 2, 3, 3))
    p["skips3_b"] = nrm(ks[5], (out_features,))
    p["tail_w"] = nrm(ks[6], (out_features, out_features, 1, 1))
    p["tail_b"] = nrm(ks[7], (out_features,))
    p["bn_gamma"] = 1.0 + nrm(ks[8], (out_features,))
    p["bn_beta"] = nrm(ks[9], (out_features,))
    p["bn_mean"] = nrm(ks[10], (out_features,))
    p["bn_var"] = 0.5 + jnp.abs(nrm(ks[11], (out_features,)))
    return p


# ----------------------------------------------------------------------------
# Full DASI forward (x, x_low, x_high all present)
# ----------------------------------------------------------------------------
def dasi_forward(params, x, x_low, x_high, *, tm=1024):
    n, cin, h, w = x.shape
    cout = params["skips_w"].shape[0]
    eps = 1e-5

    # lane-dense packing for the fused kernel: group `pack` consecutive pixels
    # so the channel axis is pack*cout (= 128) lanes; the 1x1 convs become
    # block-diagonal 128-deep matmuls.
    pack = 128 // cout if (cout <= 128 and 128 % cout == 0) else 1

    # ---------------- x_high path: skips_3 ----------------------------------
    xh = skips_3_conv(x_high, params["skips3_w"], params["skips3_b"])
    assert xh.shape[1] == h and xh.shape[2] == w, \
        "skips_3(x_high) must match x's spatial size"

    # ---------------- x_low path: skips_2 -> W-interp -> H-interp ------------
    _, c2, h2, w2s = x_low.shape
    mh = bilinear_matrix(h, h2)      # kept f32 for accuracy (cheap)
    mw = bilinear_matrix(w, w2s)
    xl1 = skips_2_nchw(x_low, params["skips2_w"][:, :, 0, 0], params["skips2_b"])
    xlw = w_interp(xl1, mw, h2, w2s)                                  # (n, cout, h2, w)
    # single (half-height, cout-channel) layout change to channels-last:
    xlw = jnp.transpose(xlw, (0, 2, 3, 1)).reshape(n, h2, w * cout)
    xl = upsample_h(xlw, mh)                                          # (n, h, w*cout) bf16

    # ---------------- fused: skips(x) + Bag + tail + residual + BN + ReLU ----
    M = n * h * w
    x_flat = jnp.transpose(x.astype(jnp.bfloat16), (0, 2, 3, 1)).reshape(M, cin)
    xl_flat = xl.reshape(M, cout)
    xh_flat = xh.reshape(M, cout)

    rows = -(-M // pack)
    tm_eff = max(32, min(_round_up(tm, 32), _round_up(max(1, (rows + 1) // 2), 32)))
    Rp = _round_up(rows, tm_eff)
    Mtarget = Rp * pack

    def pad_pack(a):
        if Mtarget != M:
            a = jnp.pad(a, ((0, Mtarget - M), (0, 0)))
        return a.reshape(Rp, pack * a.shape[1])

    ws = params["skips_w"][:, :, 0, 0].T                              # (cin, cout)
    wt = params["tail_w"][:, :, 0, 0].T                               # (cout, cout)
    eye = jnp.eye(pack, dtype=jnp.float32)
    ws_blk = jnp.kron(eye, ws).astype(jnp.bfloat16)                   # (pack*cin, pack*cout)
    wt_blk = jnp.kron(eye, wt).astype(jnp.bfloat16)                   # (pack*cout, pack*cout)
    bs = jnp.tile(params["skips_b"], pack).reshape(1, -1)
    bt = jnp.tile(params["tail_b"], pack).reshape(1, -1)
    bn_scale = params["bn_gamma"] / jnp.sqrt(params["bn_var"] + eps)
    bn_shift = params["bn_beta"] - params["bn_mean"] * bn_scale
    scale_t = jnp.tile(bn_scale, pack).reshape(1, -1)
    shift_t = jnp.tile(bn_shift, pack).reshape(1, -1)

    out_p = dasi_fused(pad_pack(x_flat), pad_pack(xl_flat), pad_pack(xh_flat),
                       ws_blk, bs, wt_blk, bt, scale_t, shift_t, tm_eff)
    out = out_p.reshape(Mtarget, cout)[:M].reshape(n, h, w, cout)
    return jnp.transpose(out, (0, 3, 1, 2)).astype(jnp.float32)       # NCHW f32


# ----------------------------------------------------------------------------
if __name__ == "__main__":
    key = jax.random.PRNGKey(0)
    kp, kx, kl, khg = jax.random.split(key, 4)

    N, IN_F, OUT_F, H, W = 2, 32, 32, 32, 32
    params = init_params(kp, IN_F, OUT_F)

    x = jax.random.normal(kx, (N, IN_F, H, W), dtype=jnp.float32)
    x_low = jax.random.normal(kl, (N, IN_F * 2, H // 2, W // 2), dtype=jnp.float32)
    x_high = jax.random.normal(khg, (N, IN_F // 2, 2 * H, 2 * W), dtype=jnp.float32)

    fwd = jax.jit(dasi_forward)
    out = fwd(params, x, x_low, x_high)
    jax.block_until_ready(out)
    assert out.shape == (N, OUT_F, H, W)
    assert bool(jnp.all(jnp.isfinite(out)))
    print("KERNEL_OK")
</pallas_src>

<mosaic_0001>
module attributes {stable_mosaic.version = 11 : i64} {
  func.func private @main(%arg0: i32) attributes {dimension_semantics = [#tpu.dimension_semantics<core_parallel>], iteration_bounds = array<i64: 2>, tpu.core_type = #tpu.core_type<sc_scalar_subcore>, window_params = []} {
    return
  }
}

module attributes {stable_mosaic.version = 11 : i64} {
  func.func private @main(%arg0: i32) attributes {dimension_semantics = [#tpu.dimension_semantics<core_parallel>], iteration_bounds = array<i64: 2>, tpu.core_type = #tpu.core_type<sc_scalar_subcore>, window_params = []} {
    return
  }
}

module attributes {stable_mosaic.version = 11 : i64} {
  func.func @_skips2_nchw_kernel(%arg0: i32, %arg1: i32, %arg2: memref<1x64x128xbf16, #tpu.memory_space<vmem>>, %arg3: memref<32x64xbf16, #tpu.memory_space<vmem>>, %arg4: memref<32x1xf32, #tpu.memory_space<vmem>>, %arg5: memref<1x32x128xbf16, #tpu.memory_space<vmem>>) attributes {dimension_semantics = [#tpu.dimension_semantics<parallel>, #tpu.dimension_semantics<parallel>], iteration_bounds = array<i64: 2, 2>, scalar_prefetch = 0 : i64, scratch_operands = 0 : i64, tpu.core_type = #tpu.core_type<tc>, window_params = [{transform_indices = @transform_0, window_bounds = array<i64: 1, 64, 128>}, {pipeline_mode = #tpu.pipeline_mode<synchronous>, transform_indices = @transform_1, window_bounds = array<i64: 32, 64>}, {pipeline_mode = #tpu.pipeline_mode<synchronous>, transform_indices = @transform_2, window_bounds = array<i64: 32, 1>}, {transform_indices = @transform_3, window_bounds = array<i64: 1, 32, 128>}]} {
    %c0 = arith.constant 0 : index
    %c0_0 = arith.constant 0 : index
    %0 = vector.load %arg3[%c0, %c0_0] : memref<32x64xbf16, #tpu.memory_space<vmem>>, vector<32x64xbf16>
    %c0_1 = arith.constant 0 : index
    %c0_2 = arith.constant 0 : index
    %c0_3 = arith.constant 0 : index
    %1 = vector.load %arg2[%c0_1, %c0_2, %c0_3] : memref<1x64x128xbf16, #tpu.memory_space<vmem>>, vector<1x64x128xbf16>
    %2 = vector.shape_cast %1 : vector<1x64x128xbf16> to vector<64x128xbf16>
    %cst = arith.constant dense<0.000000e+00> : vector<32x128xf32>
    %3 = tpu.matmul %0, %2, %cst {dimension_numbers = #tpu.dot_dimension_numbers<[1], [0], [0], [1], [0, 0, 1, 1], [], []>} : vector<32x64xbf16>, vector<64x128xbf16>, vector<32x128xf32> -> vector<32x128xf32>
    %c0_4 = arith.constant 0 : index
    %c0_5 = arith.constant 0 : index
    %4 = vector.load %arg4[%c0_4, %c0_5] : memref<32x1xf32, #tpu.memory_space<vmem>>, vector<32x1xf32>
    %5 = vector.broadcast %4 : vector<32x1xf32> to vector<32x128xf32>
    %6 = arith.addf %3, %5 : vector<32x128xf32>
    %7 = vector.shape_cast %6 : vector<32x128xf32> to vector<1x32x128xf32>
    %8 = arith.truncf %7 : vector<1x32x128xf32> to vector<1x32x128xbf16>
    %c0_6 = arith.constant 0 : index
    %c0_7 = arith.constant 0 : index
    %c0_8 = arith.constant 0 : index
    %9 = vector.load %arg5[%c0_6, %c0_7, %c0_8] : memref<1x32x128xbf16, #tpu.memory_space<vmem>>, vector<1x32x128xbf16>
    tpu.vector_store %arg5[%c0_6, %c0_7, %c0_8], %8 {strides = array<i32>} : memref<1x32x128xbf16, #tpu.memory_space<vmem>>, vector<1x32x128xbf16>,
    return
  }
  func.func @transform_0(%arg0: i32, %arg1: i32) -> (i32, i32, i32) {
    %c0_i32 = arith.constant 0 : i32
    %c0_i32_0 = arith.constant 0 : i32
    return %arg0, %c0_i32, %arg1 : i32, i32, i32
  }
  func.func @transform_1(%arg0: i32, %arg1: i32) -> (i32, i32) {
    %c0_i32 = arith.constant 0 : i32
    %c0_i32_0 = arith.constant 0 : i32
    %c0_i32_1 = arith.constant 0 : i32
    return %c0_i32, %c0_i32_0 : i32, i32
  }
  func.func @transform_2(%arg0: i32, %arg1: i32) -> (i32, i32) {
    %c0_i32 = arith.constant 0 : i32
    %c0_i32_0 = arith.constant 0 : i32
    %c0_i32_1 = arith.constant 0 : i32
    return %c0_i32, %c0_i32_0 : i32, i32
  }
  func.func @transform_3(%arg0: i32, %arg1: i32) -> (i32, i32, i32) {
    %c0_i32 = arith.constant 0 : i32
    %c0_i32_0 = arith.constant 0 : i32
    return %arg0, %c0_i32, %arg1 : i32, i32, i32
  }
}

module attributes {stable_mosaic.version = 11 : i64} {
  func.func @_skips3_kernel(%arg0: i32, %arg1: i32, %arg2: memref<1x32x34x48xbf16, #tpu.memory_space<vmem>>, %arg3: memref<3x48x32xbf16, #tpu.memory_space<vmem>>, %arg4: memref<1x32xf32, #tpu.memory_space<vmem>>, %arg5: memref<1x32x32x32xbf16, #tpu.memory_space<vmem>>) attributes {dimension_semantics = [#tpu.dimension_semantics<parallel>, #tpu.dimension_semantics<parallel>], iteration_bounds = array<i64: 2, 1>, scalar_prefetch = 0 : i64, scratch_operands = 0 : i64, tpu.core_type = #tpu.core_type<tc>, window_params = [{transform_indices = @transform_0, window_bounds = array<i64: 1, 32, 34, 48>}, {pipeline_mode = #tpu.pipeline_mode<synchronous>, transform_indices = @transform_1, window_bounds = array<i64: 3, 48, 32>}, {pipeline_mode = #tpu.pipeline_mode<synchronous>, transform_indices = @transform_2, window_bounds = array<i64: 1, 32>}, {transform_indices = @transform_3, window_bounds = array<i64: 1, 32, 32, 32>}]} {
    %cst = arith.constant 0.000000e+00 : f32
    %0 = vector.broadcast %cst : f32 to vector<1024x32xf32>
    %c0 = arith.constant 0 : index
    %c0_0 = arith.constant 0 : index
    %c0_1 = arith.constant 0 : index
    %c0_2 = arith.constant 0 : index
    %1 = vector.load %arg2[%c0, %c0_0, %c0_1, %c0_2] : memref<1x32x34x48xbf16, #tpu.memory_space<vmem>>, vector<1x32x32x48xbf16>
    %2 = vector.shape_cast %1 : vector<1x32x32x48xbf16> to vector<32x32x48xbf16>
    %3 = vector.shape_cast %2 : vector<32x32x48xbf16> to vector<1024x48xbf16>
    %c0_3 = arith.constant 0 : index
    %c0_4 = arith.constant 0 : index
    %c0_5 = arith.constant 0 : index
    %4 = vector.load %arg3[%c0_3, %c0_4, %c0_5] : memref<3x48x32xbf16, #tpu.memory_space<vmem>>, vector<1x48x32xbf16>
    %5 = vector.shape_cast %4 : vector<1x48x32xbf16> to vector<48x32xbf16>
    %cst_6 = arith.constant dense<0.000000e+00> : vector<1024x32xf32>
    %6 = tpu.matmul %3, %5, %cst_6 {dimension_numbers = #tpu.dot_dimension_numbers<[1], [0], [0], [1], [0, 0, 1, 1], [], []>} : vector<1024x48xbf16>, vector<48x32xbf16>, vector<1024x32xf32> -> vector<1024x32xf32>
    %7 = arith.addf %0, %6 : vector<1024x32xf32>
    %c0_7 = arith.constant 0 : index
    %c0_8 = arith.constant 0 : index
    %c1 = arith.constant 1 : index
    %c0_9 = arith.constant 0 : index
    %8 = vector.load %arg2[%c0_7, %c0_8, %c1, %c0_9] : memref<1x32x34x48xbf16, #tpu.memory_space<vmem>>, vector<1x32x32x48xbf16>
    %9 = vector.shape_cast %8 : vector<1x32x32x48xbf16> to vector<32x32x48xbf16>
    %10 = vector.shape_cast %9 : vector<32x32x48xbf16> to vector<1024x48xbf16>
    %c1_10 = arith.constant 1 : index
    %c0_11 = arith.constant 0 : index
    %c0_12 = arith.constant 0 : index
    %11 = vector.load %arg3[%c1_10, %c0_11, %c0_12] : memref<3x48x32xbf16, #tpu.memory_space<vmem>>, vector<1x48x32xbf16>
    %12 = vector.shape_cast %11 : vector<1x48x32xbf16> to vector<48x32xbf16>
    %cst_13 = arith.constant dense<0.000000e+00> : vector<1024x32xf32>
    %13 = tpu.matmul %10, %12, %cst_13 {dimension_numbers = #tpu.dot_dimension_numbers<[1], [0], [0], [1], [0, 0, 1, 1], [], []>} : vector<1024x48xbf16>, vector<48x32xbf16>, vector<1024x32xf32> -> vector<1024x32xf32>
    %14 = arith.addf %7, %13 : vector<1024x32xf32>
    %c0_14 = arith.constant 0 : index
    %c0_15 = arith.constant 0 : index
    %c2 = arith.constant 2 : index
    %c0_16 = arith.constant 0 : index
    %15 = vector.load %arg2[%c0_14, %c0_15, %c2, %c0_16] : memref<1x32x34x48xbf16, #tpu.memory_space<vmem>>, vector<1x32x32x48xbf16>
    %16 = vector.shape_cast %15 : vector<1x32x32x48xbf16> to vector<32x32x48xbf16>
    %17 = vector.shape_cast %16 : vector<32x32x48xbf16> to vector<1024x48xbf16>
    %c2_17 = arith.constant 2 : index
    %c0_18 = arith.constant 0 : index
    %c0_19 = arith.constant 0 : index
    %18 = vector.load %arg3[%c2_17, %c0_18, %c0_19] : memref<3x48x32xbf16, #tpu.memory_space<vmem>>, vector<1x48x32xbf16>
    %19 = vector.shape_cast %18 : vector<1x48x32xbf16> to vector<48x32xbf16>
    %cst_20 = arith.constant dense<0.000000e+00> : vector<1024x32xf32>
    %20 = tpu.matmul %17, %19, %cst_20 {dimension_numbers = #tpu.dot_dimension_numbers<[1], [0], [0], [1], [0, 0, 1, 1], [], []>} : vector<1024x48xbf16>, vector<48x32xbf16>, vector<1024x32xf32> -> vector<1024x32xf32>
    %21 = arith.addf %14, %20 : vector<1024x32xf32>
    %c0_21 = arith.constant 0 : index
    %c0_22 = arith.constant 0 : index
    %22 = vector.load %arg4[%c0_21, %c0_22] : memref<1x32xf32, #tpu.memory_space<vmem>>, vector<1x32xf32>
    %23 = vector.broadcast %22 : vector<1x32xf32> to vector<1024x32xf32>
    %24 = arith.addf %21, %23 : vector<1024x32xf32>
    %25 = arith.truncf %24 : vector<1024x32xf32> to vector<1024x32xbf16>
    %26 = vector.shape_cast %25 : vector<1024x32xbf16> to vector<32x32x32xbf16>
    %27 = vector.shape_cast %26 : vector<32x32x32xbf16> to vector<1x32x32x32xbf16>
    %c0_23 = arith.constant 0 : index
    %c0_24 = arith.constant 0 : index
    %c0_25 = arith.constant 0 : index
    %c0_26 = arith.constant 0 : index
    %28 = vector.load %arg5[%c0_23, %c0_24, %c0_25, %c0_26] : memref<1x32x32x32xbf16, #tpu.memory_space<vmem>>, vector<1x32x32x32xbf16>
    tpu.vector_store %arg5[%c0_23, %c0_24, %c0_25, %c0_26], %27 {strides = array<i32>} : memref<1x32x32x32xbf16, #tpu.memory_space<vmem>>, vector<1x32x32x32xbf16>,
    return
  }
  func.func @transform_0(%arg0: i32, %arg1: i32) -> (i32, i32, i32, i32) {
    %c0_i32 = arith.constant 0 : i32
    %c0_i32_0 = arith.constant 0 : i32
    %c0_i32_1 = arith.constant 0 : i32
    return %arg0, %arg1, %c0_i32, %c0_i32_0 : i32, i32, i32, i32
  }
  func.func @transform_1(%arg0: i32, %arg1: i32) -> (i32, i32, i32) {
    %c0_i32 = arith.constant 0 : i32
    %c0_i32_0 = arith.constant 0 : i32
    %c0_i32_1 = arith.constant 0 : i32
    %c0_i32_2 = arith.constant 0 : i32
    return %c0_i32, %c0_i32_0, %c0_i32_1 : i32, i32, i32
  }
  func.func @transform_2(%arg0: i32, %arg1: i32) -> (i32, i32) {
    %c0_i32 = arith.constant 0 : i32
    %c0_i32_0 = arith.constant 0 : i32
    %c0_i32_1 = arith.constant 0 : i32
    return %c0_i32, %c0_i32_0 : i32, i32
  }
  func.func @transform_3(%arg0: i32, %arg1: i32) -> (i32, i32, i32, i32) {
    %c0_i32 = arith.constant 0 : i32
    %c0_i32_0 = arith.constant 0 : i32
    %c0_i32_1 = arith.constant 0 : i32
    return %arg0, %arg1, %c0_i32, %c0_i32_0 : i32, i32, i32, i32
  }
}

module attributes {stable_mosaic.version = 11 : i64} {
  func.func @_matmul_bias_kernel(%arg0: i32, %arg1: memref<128x64xbf16, #tpu.memory_space<vmem>>, %arg2: memref<64x128xf32, #tpu.memory_space<vmem>>, %arg3: memref<1x128xf32, #tpu.memory_space<vmem>>, %arg4: memref<128x128xbf16, #tpu.memory_space<vmem>>) attributes {dimension_semantics = [#tpu.dimension_semantics<parallel>], iteration_bounds = array<i64: 2>, scalar_prefetch = 0 : i64, scratch_operands = 0 : i64, tpu.core_type = #tpu.core_type<tc>, window_params = [{transform_indices = @transform_0, window_bounds = array<i64: 128, 64>}, {pipeline_mode = #tpu.pipeline_mode<synchronous>, transform_indices = @transform_1, window_bounds = array<i64: 64, 128>}, {pipeline_mode = #tpu.pipeline_mode<synchronous>, transform_indices = @transform_2, window_bounds = array<i64: 1, 128>}, {transform_indices = @transform_3, window_bounds = array<i64: 128, 128>}]} {
    %c0 = arith.constant 0 : index
    %c0_0 = arith.constant 0 : index
    %0 = vector.load %arg1[%c0, %c0_0] : memref<128x64xbf16, #tpu.memory_space<vmem>>, vector<128x64xbf16>
    %c0_1 = arith.constant 0 : index
    %c0_2 = arith.constant 0 : index
    %1 = vector.load %arg2[%c0_1, %c0_2] : memref<64x128xf32, #tpu.memory_space<vmem>>, vector<64x128xf32>
    %cst = arith.constant dense<0.000000e+00> : vector<128x128xf32>
    %2 = tpu.matmul %0, %1, %cst {dimension_numbers = #tpu.dot_dimension_numbers<[1], [0], [0], [1], [0, 0, 1, 1], [], []>} : vector<128x64xbf16>, vector<64x128xf32>, vector<128x128xf32> -> vector<128x128xf32>
    %c0_3 = arith.constant 0 : index
    %c0_4 = arith.constant 0 : index
    %3 = vector.load %arg3[%c0_3, %c0_4] : memref<1x128xf32, #tpu.memory_space<vmem>>, vector<1x128xf32>
    %4 = vector.broadcast %3 : vector<1x128xf32> to vector<128x128xf32>
    %5 = arith.addf %2, %4 : vector<128x128xf32>
    %6 = arith.truncf %5 : vector<128x128xf32> to vector<128x128xbf16>
    %c0_5 = arith.constant 0 : index
    %c0_6 = arith.constant 0 : index
    %7 = vector.load %arg4[%c0_5, %c0_6] : memref<128x128xbf16, #tpu.memory_space<vmem>>, vector<128x128xbf16>
    tpu.vector_store %arg4[%c0_5, %c0_6], %6 {strides = array<i32>} : memref<128x128xbf16, #tpu.memory_space<vmem>>, vector<128x128xbf16>,
    return
  }
  func.func @transform_0(%arg0: i32) -> (i32, i32) {
    %c0_i32 = arith.constant 0 : i32
    %c0_i32_0 = arith.constant 0 : i32
    return %arg0, %c0_i32 : i32, i32
  }
  func.func @transform_1(%arg0: i32) -> (i32, i32) {
    %c0_i32 = arith.constant 0 : i32
    %c0_i32_0 = arith.constant 0 : i32
    %c0_i32_1 = arith.constant 0 : i32
    return %c0_i32, %c0_i32_0 : i32, i32
  }
  func.func @transform_2(%arg0: i32) -> (i32, i32) {
    %c0_i32 = arith.constant 0 : i32
    %c0_i32_0 = arith.constant 0 : i32
    %c0_i32_1 = arith.constant 0 : i32
    return %c0_i32, %c0_i32_0 : i32, i32
  }
  func.func @transform_3(%arg0: i32) -> (i32, i32) {
    %c0_i32 = arith.constant 0 : i32
    %c0_i32_0 = arith.constant 0 : i32
    return %arg0, %c0_i32 : i32, i32
  }
}

module attributes {stable_mosaic.version = 11 : i64} {
  func.func @_uph_kernel(%arg0: i32, %arg1: i32, %arg2: memref<1x16x512xbf16, #tpu.memory_space<vmem>>, %arg3: memref<32x16xf32, #tpu.memory_space<vmem>>, %arg4: memref<1x32x512xbf16, #tpu.memory_space<vmem>>) attributes {dimension_semantics = [#tpu.dimension_semantics<parallel>, #tpu.dimension_semantics<parallel>], iteration_bounds = array<i64: 2, 2>, scalar_prefetch = 0 : i64, scratch_operands = 0 : i64, tpu.core_type = #tpu.core_type<tc>, window_params = [{transform_indices = @transform_0, window_bounds = array<i64: 1, 16, 512>}, {pipeline_mode = #tpu.pipeline_mode<synchronous>, transform_indices = @transform_1, window_bounds = array<i64: 32, 16>}, {transform_indices = @transform_2, window_bounds = array<i64: 1, 32, 512>}]} {
    %c0 = arith.constant 0 : index
    %c0_0 = arith.constant 0 : index
    %0 = vector.load %arg3[%c0, %c0_0] : memref<32x16xf32, #tpu.memory_space<vmem>>, vector<32x16xf32>
    %c0_1 = arith.constant 0 : index
    %c0_2 = arith.constant 0 : index
    %c0_3 = arith.constant 0 : index
    %1 = vector.load %arg2[%c0_1, %c0_2, %c0_3] : memref<1x16x512xbf16, #tpu.memory_space<vmem>>, vector<1x16x512xbf16>
    %2 = vector.shape_cast %1 : vector<1x16x512xbf16> to vector<16x512xbf16>
    %3 = arith.extf %2 : vector<16x512xbf16> to vector<16x512xf32>
    %cst = arith.constant dense<0.000000e+00> : vector<32x512xf32>
    %4 = tpu.matmul %0, %3, %cst {dimension_numbers = #tpu.dot_dimension_numbers<[1], [0], [0], [1], [0, 0, 1, 1], [], []>} : vector<32x16xf32>, vector<16x512xf32>, vector<32x512xf32> -> vector<32x512xf32>
    %5 = vector.shape_cast %4 : vector<32x512xf32> to vector<1x32x512xf32>
    %6 = arith.truncf %5 : vector<1x32x512xf32> to vector<1x32x512xbf16>
    %c0_4 = arith.constant 0 : index
    %c0_5 = arith.constant 0 : index
    %c0_6 = arith.constant 0 : index
    %7 = vector.load %arg4[%c0_4, %c0_5, %c0_6] : memref<1x32x512xbf16, #tpu.memory_space<vmem>>, vector<1x32x512xbf16>
    tpu.vector_store %arg4[%c0_4, %c0_5, %c0_6], %6 {strides = array<i32>} : memref<1x32x512xbf16, #tpu.memory_space<vmem>>, vector<1x32x512xbf16>,
    return
  }
  func.func @transform_0(%arg0: i32, %arg1: i32) -> (i32, i32, i32) {
    %c0_i32 = arith.constant 0 : i32
    %c0_i32_0 = arith.constant 0 : i32
    return %arg0, %c0_i32, %arg1 : i32, i32, i32
  }
  func.func @transform_1(%arg0: i32, %arg1: i32) -> (i32, i32) {
    %c0_i32 = arith.constant 0 : i32
    %c0_i32_0 = arith.constant 0 : i32
    %c0_i32_1 = arith.constant 0 : i32
    return %c0_i32, %c0_i32_0 : i32, i32
  }
  func.func @transform_2(%arg0: i32, %arg1: i32) -> (i32, i32, i32) {
    %c0_i32 = arith.constant 0 : i32
    %c0_i32_0 = arith.constant 0 : i32
    return %arg0, %c0_i32, %arg1 : i32, i32, i32
  }
}

module attributes {stable_mosaic.version = 11 : i64} {
  func.func @_dasi_fused_kernel(%arg0: i32, %arg1: memref<256x128xbf16, #tpu.memory_space<vmem>>, %arg2: memref<256x128xbf16, #tpu.memory_space<vmem>>, %arg3: memref<256x128xbf16, #tpu.memory_space<vmem>>, %arg4: memref<128x128xbf16, #tpu.memory_space<vmem>>, %arg5: memref<1x128xf32, #tpu.memory_space<vmem>>, %arg6: memref<128x128xbf16, #tpu.memory_space<vmem>>, %arg7: memref<1x128xf32, #tpu.memory_space<vmem>>, %arg8: memref<1x128xf32, #tpu.memory_space<vmem>>, %arg9: memref<1x128xf32, #tpu.memory_space<vmem>>, %arg10: memref<256x128xbf16, #tpu.memory_space<vmem>>) attributes {dimension_semantics = [#tpu.dimension_semantics<parallel>], iteration_bounds = array<i64: 2>, scalar_prefetch = 0 : i64, scratch_operands = 0 : i64, tpu.core_type = #tpu.core_type<tc>, window_params = [{transform_indices = @transform_0, window_bounds = array<i64: 256, 128>}, {transform_indices = @transform_1, window_bounds = array<i64: 256, 128>}, {transform_indices = @transform_2, window_bounds = array<i64: 256, 128>}, {pipeline_mode = #tpu.pipeline_mode<synchronous>, transform_indices = @transform_3, window_bounds = array<i64: 128, 128>}, {pipeline_mode = #tpu.pipeline_mode<synchronous>, transform_indices = @transform_4, window_bounds = array<i64: 1, 128>}, {pipeline_mode = #tpu.pipeline_mode<synchronous>, transform_indices = @transform_5, window_bounds = array<i64: 128, 128>}, {pipeline_mode = #tpu.pipeline_mode<synchronous>, transform_indices = @transform_6, window_bounds = array<i64: 1, 128>}, {pipeline_mode = #tpu.pipeline_mode<synchronous>, transform_indices = @transform_7, window_bounds = array<i64: 1, 128>}, {pipeline_mode = #tpu.pipeline_mode<synchronous>, transform_indices = @transform_8, window_bounds = array<i64: 1, 128>}, {transform_indices = @transform_9, window_bounds = array<i64: 256, 128>}]} {
    %c0 = arith.constant 0 : index
    %c0_0 = arith.constant 0 : index
    %0 = vector.load %arg1[%c0, %c0_0] : memref<256x128xbf16, #tpu.memory_space<vmem>>, vector<256x128xbf16>
    %c0_1 = arith.constant 0 : index
    %c0_2 = arith.constant 0 : index
    %1 = vector.load %arg4[%c0_1, %c0_2] : memref<128x128xbf16, #tpu.memory_space<vmem>>, vector<128x128xbf16>
    %cst = arith.constant dense<0.000000e+00> : vector<256x128xf32>
    %2 = tpu.matmul %0, %1, %cst {dimension_numbers = #tpu.dot_dimension_numbers<[1], [0], [0], [1], [0, 0, 1, 1], [], []>} : vector<256x128xbf16>, vector<128x128xbf16>, vector<256x128xf32> -> vector<256x128xf32>
    %c0_3 = arith.constant 0 : index
    %c0_4 = arith.constant 0 : index
    %3 = vector.load %arg5[%c0_3, %c0_4] : memref<1x128xf32, #tpu.memory_space<vmem>>, vector<1x128xf32>
    %4 = vector.broadcast %3 : vector<1x128xf32> to vector<256x128xf32>
    %5 = arith.addf %2, %4 : vector<256x128xf32>
    %6 = arith.negf %5 : vector<256x128xf32>
    %7 = math.exp %6 : vector<256x128xf32>
    %cst_5 = arith.constant 1.000000e+00 : f32
    %8 = vector.broadcast %cst_5 : f32 to vector<256x128xf32>
    %9 = arith.addf %8, %7 : vector<256x128xf32>
    %10 = arith.divf %8, %9 : vector<256x128xf32>
    %c0_6 = arith.constant 0 : index
    %c0_7 = arith.constant 0 : index
    %11 = vector.load %arg2[%c0_6, %c0_7] : memref<256x128xbf16, #tpu.memory_space<vmem>>, vector<256x128xbf16>
    %12 = arith.extf %11 : vector<256x128xbf16> to vector<256x128xf32>
    %13 = arith.mulf %10, %12 : vector<256x128xf32>
    %cst_8 = arith.constant 1.000000e+00 : f32
    %14 = vector.broadcast %cst_8 : f32 to vector<256x128xf32>
    %15 = arith.subf %14, %10 : vector<256x128xf32>
    %c0_9 = arith.constant 0 : index
    %c0_10 = arith.constant 0 : index
    %16 = vector.load %arg3[%c0_9, %c0_10] : memref<256x128xbf16, #tpu.memory_space<vmem>>, vector<256x128xbf16>
    %17 = arith.extf %16 : vector<256x128xbf16> to vector<256x128xf32>
    %18 = arith.mulf %15, %17 : vector<256x128xf32>
    %19 = arith.addf %13, %18 : vector<256x128xf32>
    %20 = arith.truncf %19 : vector<256x128xf32> to vector<256x128xbf16>
    %c0_11 = arith.constant 0 : index
    %c0_12 = arith.constant 0 : index
    %21 = vector.load %arg6[%c0_11, %c0_12] : memref<128x128xbf16, #tpu.memory_space<vmem>>, vector<128x128xbf16>
    %cst_13 = arith.constant dense<0.000000e+00> : vector<256x128xf32>
    %22 = tpu.matmul %20, %21, %cst_13 {dimension_numbers = #tpu.dot_dimension_numbers<[1], [0], [0], [1], [0, 0, 1, 1], [], []>} : vector<256x128xbf16>, vector<128x128xbf16>, vector<256x128xf32> -> vector<256x128xf32>
    %c0_14 = arith.constant 0 : index
    %c0_15 = arith.constant 0 : index
    %23 = vector.load %arg7[%c0_14, %c0_15] : memref<1x128xf32, #tpu.memory_space<vmem>>, vector<1x128xf32>
    %24 = vector.broadcast %23 : vector<1x128xf32> to vector<256x128xf32>
    %25 = arith.addf %22, %24 : vector<256x128xf32>
    %26 = arith.addf %25, %5 : vector<256x128xf32>
    %c0_16 = arith.constant 0 : index
    %c0_17 = arith.constant 0 : index
    %27 = vector.load %arg8[%c0_16, %c0_17] : memref<1x128xf32, #tpu.memory_space<vmem>>, vector<1x128xf32>
    %28 = vector.broadcast %27 : vector<1x128xf32> to vector<256x128xf32>
    %29 = arith.mulf %26, %28 : vector<256x128xf32>
    %c0_18 = arith.constant 0 : index
    %c0_19 = arith.constant 0 : index
    %30 = vector.load %arg9[%c0_18, %c0_19] : memref<1x128xf32, #tpu.memory_space<vmem>>, vector<1x128xf32>
    %31 = vector.broadcast %30 : vector<1x128xf32> to vector<256x128xf32>
    %32 = arith.addf %29, %31 : vector<256x128xf32>
    %cst_20 = arith.constant 0.000000e+00 : f32
    %33 = vector.broadcast %cst_20 : f32 to vector<256x128xf32>
    %34 = arith.maximumf %32, %33 : vector<256x128xf32>
    %35 = arith.truncf %34 : vector<256x128xf32> to vector<256x128xbf16>
    %c0_21 = arith.constant 0 : index
    %c0_22 = arith.constant 0 : index
    %36 = vector.load %arg10[%c0_21, %c0_22] : memref<256x128xbf16, #tpu.memory_space<vmem>>, vector<256x128xbf16>
    tpu.vector_store %arg10[%c0_21, %c0_22], %35 {strides = array<i32>} : memref<256x128xbf16, #tpu.memory_space<vmem>>, vector<256x128xbf16>,
    return
  }
  func.func @transform_0(%arg0: i32) -> (i32, i32) {
    %c0_i32 = arith.constant 0 : i32
    %c0_i32_0 = arith.constant 0 : i32
    return %arg0, %c0_i32 : i32, i32
  }
  func.func @transform_1(%arg0: i32) -> (i32, i32) {
    %c0_i32 = arith.constant 0 : i32
    %c0_i32_0 = arith.constant 0 : i32
    return %arg0, %c0_i32 : i32, i32
  }
  func.func @transform_2(%arg0: i32) -> (i32, i32) {
    %c0_i32 = arith.constant 0 : i32
    %c0_i32_0 = arith.constant 0 : i32
    return %arg0, %c0_i32 : i32, i32
  }
  func.func @transform_3(%arg0: i32) -> (i32, i32) {
    %c0_i32 = arith.constant 0 : i32
    %c0_i32_0 = arith.constant 0 : i32
    %c0_i32_1 = arith.constant 0 : i32
    return %c0_i32, %c0_i32_0 : i32, i32
  }
  func.func @transform_4(%arg0: i32) -> (i32, i32) {
    %c0_i32 = arith.constant 0 : i32
    %c0_i32_0 = arith.constant 0 : i32
    %c0_i32_1 = arith.constant 0 : i32
    return %c0_i32, %c0_i32_0 : i32, i32
  }
  func.func @transform_5(%arg0: i32) -> (i32, i32) {
    %c0_i32 = arith.constant 0 : i32
    %c0_i32_0 = arith.constant 0 : i32
    %c0_i32_1 = arith.constant 0 : i32
    return %c0_i32, %c0_i32_0 : i32, i32
  }
  func.func @transform_6(%arg0: i32) -> (i32, i32) {
    %c0_i32 = arith.constant 0 : i32
    %c0_i32_0 = arith.constant 0 : i32
    %c0_i32_1 = arith.constant 0 : i32
    return %c0_i32, %c0_i32_0 : i32, i32
  }
  func.func @transform_7(%arg0: i32) -> (i32, i32) {
    %c0_i32 = arith.constant 0 : i32
    %c0_i32_0 = arith.constant 0 : i32
    %c0_i32_1 = arith.constant 0 : i32
    return %c0_i32, %c0_i32_0 : i32, i32
  }
  func.func @transform_8(%arg0: i32) -> (i32, i32) {
    %c0_i32 = arith.constant 0 : i32
    %c0_i32_0 = arith.constant 0 : i32
    %c0_i32_1 = arith.constant 0 : i32
    return %c0_i32, %c0_i32_0 : i32, i32
  }
  func.func @transform_9(%arg0: i32) -> (i32, i32) {
    %c0_i32 = arith.constant 0 : i32
    %c0_i32_0 = arith.constant 0 : i32
    return %arg0, %c0_i32 : i32, i32
  }
}

</mosaic_0001>

<llo_original>
// kernel: dasi_forward.6
$region0: #{dasi_forward.6}
  #allocation0 [shape = 'u32[]', space=smem, size = 0x4, offset = 0x4, fixed_abs, tag = 'smem constant byte address 0x4 - core index']
  #allocation1 [shape = 'u32[144,128]{1,0:T(1,128)}', space=vmem, size = 0x12000, scoped, tag = 'internal scratch']
  %s0 = inlined_call_operand.vmem [shape: bf16[2,64,256], index: 0, kind: input, shape index: {}]
  %s1 = inlined_call_operand.vmem [shape: bf16[32,64], index: 1, kind: input, shape index: {}]
  %s2 = inlined_call_operand.vmem [shape: f32[32,1], index: 2, kind: input, shape index: {}]
  %s3 = inlined_call_operand.vmem [shape: bf16[2,32,256], index: 3, kind: output, shape index: {}]
  %s4 = sld [smem:[#allocation0]]
  $region123: #{dasi_forward.6} parent=0
    _
  %s6 = ssub.s32 1, %s4
  %s7 = scalar_select 0, %s6, %s4
  $region1: #{dasi_forward.6} parent=0
    #allocation2 [shape = 'u8[32768]{0}', space=vmem, size = 0x8000, scoped, tag = 'input window, operand 0']
    #allocation3 [shape = 'u8[16384]{0}', space=vmem, size = 0x4000, scoped, tag = 'output window, operand 0']
    loop: start=0, step=1, limit=6
    $region2: #{dasi_forward.6} parent=1 // loop_pre_header
      _
    $region3: #{dasi_forward.6} parent=1 // loop_header
      %s9 = sphi 0, %s13
      %p10 = scmp.ge.s32.totalorder %s9, 6
      %s16 = sphi 0, %s28
      %s17 = sphi 0, %s24
      %s18 = sphi 0, %s16
      %s19 = sphi 0, %s17
      %s20 = sphi 0, %s18
      %s21 = sphi 0, %s19
      %s33 = sphi 0, %s35
      %s36 = sphi 0, %s33
      %s37 = sphi 0, %s36
      %s53 = sphi 0, %s37
      %s57 = sphi 0, %s57
      %s59 = sphi 0, %s57
      %s60 = sphi 0, %s59
      %s74 = sphi 0, %s60
      %s78 = sphi 0, %s78
      %s80 = sphi 0, %s78
      %s81 = sphi 0, %s80
      %s95 = sphi 0, %s81
      %s103 = sphi 0, %s105
      %s106 = sphi 0, %s103
      %s107 = sphi 0, %s106
      %s123 = sphi 0, %s107
    $region4: #{dasi_forward.6} parent=1 // loop_header_branch
      %12 = sbr.rel (%p10) target = $region8
    $region5: #{dasi_forward.6} parent=1 // loop_body
      %s14 = ssub.s32 %s9, 1
      %s15 = ssub.s32 %s9, 2
      %s22 = sadd.s32 1, %s17
      %p23 = scmp.ge.s32.totalorder %s22, 2
      %s24 = scalar_select %p23, 0, %s22
      %s25 = sadd.s32 1, %s16
      %s26 = scalar_select %p23, %s25, %s16
      %p27 = scmp.ge.s32.totalorder %s26, 2
      %s28 = scalar_select %p27, 0, %s26
      %s29 = ssub.s32 %s16, %s28
      %s30 = ssub.s32 %s17, %s24
      %s31 = sor.u32 %s29, %s30
      %p32 = scmp.eq.s32.totalorder %s31, 0
      %s34 = sadd.s32 %s33, 1
      %s35 = scalar_select %p32, %s33, %s34
      %p38 = pneg %p32
      %p39 = scmp.eq.s32.totalorder %s9, 3
      %p40 = por %p38, %p39
      %p41 = scmp.ne.s32.totalorder %s33, %s36
      %p42 = scmp.eq.s32.totalorder %s9, 0
      %p43 = por %p41, %p42
      %p44 = scmp.ne.s32.totalorder %s33, %s36
      %p45 = scmp.eq.s32.totalorder %s14, 3
      %p46 = por %p44, %p45
      %p47 = scmp.ne.s32.totalorder %s36, %s37
      %p48 = scmp.eq.s32.totalorder %s14, 0
      %p49 = por %p47, %p48
      %p50 = scmp.ne.s32.totalorder %s36, %s37
      %p51 = scmp.eq.s32.totalorder %s15, 3
      %p52 = por %p50, %p51
      %p54 = scmp.ne.s32.totalorder %s37, %s53
      %p55 = scmp.eq.s32.totalorder %s15, 0
      %p56 = por %p54, %p55
      %s58 = sadd.s32 %s57, 1
      %p61 = scmp.eq.s32.totalorder %s9, 3
      %p62 = scmp.ne.s32.totalorder %s57, %s59
      %p63 = scmp.eq.s32.totalorder %s9, 0
      %p64 = por %p62, %p63
      %p65 = scmp.ne.s32.totalorder %s57, %s59
      %p66 = scmp.eq.s32.totalorder %s14, 3
      %p67 = por %p65, %p66
      %p68 = scmp.ne.s32.totalorder %s59, %s60
      %p69 = scmp.eq.s32.totalorder %s14, 0
      %p70 = por %p68, %p69
      %p71 = scmp.ne.s32.totalorder %s59, %s60
      %p72 = scmp.eq.s32.totalorder %s15, 3
      %p73 = por %p71, %p72
      %p75 = scmp.ne.s32.totalorder %s60, %s74
      %p76 = scmp.eq.s32.totalorder %s15, 0
      %p77 = por %p75, %p76
      %s79 = sadd.s32 %s78, 1
      %p82 = scmp.eq.s32.totalorder %s9, 3
      %p83 = scmp.ne.s32.totalorder %s78, %s80
      %p84 = scmp.eq.s32.totalorder %s9, 0
      %p85 = por %p83, %p84
      %p86 = scmp.ne.s32.totalorder %s78, %s80
      %p87 = scmp.eq.s32.totalorder %s14, 3
      %p88 = por %p86, %p87
      %p89 = scmp.ne.s32.totalorder %s80, %s81
      %p90 = scmp.eq.s32.totalorder %s14, 0
      %p91 = por %p89, %p90
      %p92 = scmp.ne.s32.totalorder %s80, %s81
      %p93 = scmp.eq.s32.totalorder %s15, 3
      %p94 = por %p92, %p93
      %p96 = scmp.ne.s32.totalorder %s81, %s95
      %p97 = scmp.eq.s32.totalorder %s15, 0
      %p98 = por %p96, %p97
      %s99 = ssub.s32 %s16, %s28
      %s100 = ssub.s32 %s17, %s24
      %s101 = sor.u32 %s99, %s100
      %p102 = scmp.eq.s32.totalorder %s101, 0
      %s104 = sadd.s32 %s103, 1
      %s105 = scalar_select %p102, %s103, %s104
      %p108 = pneg %p102
      %p109 = scmp.eq.s32.totalorder %s9, 3
      %p110 = por %p108, %p109
      %p111 = scmp.ne.s32.totalorder %s103, %s106
      %p112 = scmp.eq.s32.totalorder %s9, 0
      %p113 = por %p111, %p112
      %p114 = scmp.ne.s32.totalorder %s103, %s106
      %p115 = scmp.eq.s32.totalorder %s14, 3
      %p116 = por %p114, %p115
      %p117 = scmp.ne.s32.totalorder %s106, %s107
      %p118 = scmp.eq.s32.totalorder %s14, 0
      %p119 = por %p117, %p118
      %p120 = scmp.ne.s32.totalorder %s106, %s107
      %p121 = scmp.eq.s32.totalorder %s15, 3
      %p122 = por %p120, %p121
      %p124 = scmp.ne.s32.totalorder %s107, %s123
      %p125 = scmp.eq.s32.totalorder %s15, 0
      %p126 = por %p124, %p125
      %p127 = scmp.le.s32.totalorder 1, %s9
      %p128 = scmp.lt.s32.totalorder %s9, 5
      %p129 = pnand %p127, %p128
      %p130 = pneg %p129
      // Predicated region
      $region9: #{dasi_forward.6} parent=5 // pred_check
        _
      $region10: #{dasi_forward.6} parent=5 // pred_check_branch
        %132 = sbr.rel (%p129) target = $region12
      $region11: #{dasi_forward.6} parent=5 // pred_region
        %s133 = ssub.s32 %s9, 1
        // Predicated region
        $region13: #{dasi_forward.6} parent=11 // pred_check
          %p134 = pneg %p70
        $region14: #{dasi_forward.6} parent=11 // pred_check_branch
          %136 = sbr.rel (%p134) target = $region16
        $region15: #{dasi_forward.6} parent=11 // pred_region
          _
        $region16: #{dasi_forward.6} parent=11 // pred_fallthru
          _
        // Predicated region
        $region17: #{dasi_forward.6} parent=11 // pred_check
          %p137 = pneg %p91
        $region18: #{dasi_forward.6} parent=11 // pred_check_branch
          %139 = sbr.rel (%p137) target = $region20
        $region19: #{dasi_forward.6} parent=11 // pred_region
          _
        $region20: #{dasi_forward.6} parent=11 // pred_fallthru
          _
      $region12: #{dasi_forward.6} parent=5 // pred_fallthru
        _
      %p140 = scmp.lt.s32.totalorder %s9, 4
      // Predicated region
      $region21: #{dasi_forward.6} parent=5 // pred_check
        %p141 = pneg %p140
      $region22: #{dasi_forward.6} parent=5 // pred_check_branch
        %143 = sbr.rel (%p141) target = $region24
      $region23: #{dasi_forward.6} parent=5 // pred_region
        // Predicated region
        $region25: #{dasi_forward.6} parent=23 // pred_check
          %p144 = pneg %p43
        $region26: #{dasi_forward.6} parent=23 // pred_check_branch
          %146 = sbr.rel (%p144) target = $region28
        $region27: #{dasi_forward.6} parent=23 // pred_region
          %s147 = sand.u32 %s33, 1
          %s148 = sand.u32 %s33, 1
          %s149 = smul.addr %s148, 32
          %s150 = scalar_lea.vmem [#allocation2], %s149
          %s151 = smul.addr %s16, 16
          %s152 = sadd.s32 %s17, %s151
          %s153 = smul.addr %s152, 4
          %s154 = scalar_lea.vmem %s0, %s153
          // Predicated region
          $region29: #{dasi_forward.6} parent=27 // pred_check
            _
          $region30: #{dasi_forward.6} parent=27 // pred_check_branch
            %156 = sbr.rel (0) target = $region32
          $region31: #{dasi_forward.6} parent=27 // pred_region
            // Predicated region
            $region33: #{dasi_forward.6} parent=31 // pred_check
              _
            $region34: #{dasi_forward.6} parent=31 // pred_check_branch
              %158 = sbr.rel target = $region36
            $region35: #{dasi_forward.6} parent=31 // pred_region
              // Predicated region
              $region48: #{dasi_forward.6} parent=35 // pred_check
                _
              $region49: #{dasi_forward.6} parent=35 // pred_check_branch
                %188 = sbr.rel (0) target = $region51
              $region50: #{dasi_forward.6} parent=35 // pred_region
                loop: start=0, step=1, limit=1
                $region52: #{dasi_forward.6} parent=50 // loop_pre_header
                  _
                $region53: #{dasi_forward.6} parent=50 // loop_header
                  %s190 = sphi 0, %s194
                  %p191 = scmp.ge.s32.totalorder %s190, 1
                  %s195 = sphi %s154, %s154
                  %s196 = sphi %s150, %s150
                $region54: #{dasi_forward.6} parent=50 // loop_header_branch
                  %193 = sbr.rel (%p191) target = $region58
                $region55: #{dasi_forward.6} parent=50 // loop_body
                  _
                $region56: #{dasi_forward.6} parent=50 // loop_footer
                  %s194 = sadd.s32 1, %s190
                $region57: #{dasi_forward.6} parent=50 // loop_footer_branch
                  %189 = sbr.rel target = $region53
                $region58: #{dasi_forward.6} parent=50 // loop_exit
                  _
                %s198 = ssub.s32 16, 1
                loop: start=0, step=1, limit=1
                $region59: #{dasi_forward.6} parent=50 // loop_pre_header
                  _
                $region60: #{dasi_forward.6} parent=50 // loop_header
                  %s200 = sphi 0, %s204
                  %p201 = scmp.ge.s32.totalorder %s200, 1
                  %s205 = sphi %s154, %s154
                  %s206 = sphi %s150, %s150
                $region61: #{dasi_forward.6} parent=50 // loop_header_branch
                  %203 = sbr.rel (%p201) target = $region65
                $region62: #{dasi_forward.6} parent=50 // loop_body
                  %v207 = vld [vmem:[%s205] sm:%s198]
                  %208 = vst [vmem:[%s206] sm:%s198] %v207
                  %v209 = vld [vmem:[%s205 + $0x8] sm:%s198]
                  %210 = vst [vmem:[%s206 + $0x4] sm:%s198] %v209
                  %v211 = vld [vmem:[%s205 + $0x10] sm:%s198]
                  %212 = vst [vmem:[%s206 + $0x8] sm:%s198] %v211
                  %v213 = vld [vmem:[%s205 + $0x18] sm:%s198]
                  %214 = vst [vmem:[%s206 + $0xc] sm:%s198] %v213
                  %v215 = vld [vmem:[%s205 + $0x20] sm:%s198]
                  %216 = vst [vmem:[%s206 + $0x10] sm:%s198] %v215
                  %v217 = vld [vmem:[%s205 + $0x28] sm:%s198]
                  %218 = vst [vmem:[%s206 + $0x14] sm:%s198] %v217
                  %v219 = vld [vmem:[%s205 + $0x30] sm:%s198]
                  %220 = vst [vmem:[%s206 + $0x18] sm:%s198] %v219
                  %v221 = vld [vmem:[%s205 + $0x38] sm:%s198]
                  %222 = vst [vmem:[%s206 + $0x1c] sm:%s198] %v221
                $region63: #{dasi_forward.6} parent=50 // loop_footer
                  %s204 = sadd.s32 1, %s200
                $region64: #{dasi_forward.6} parent=50 // loop_footer_branch
                  %199 = sbr.rel target = $region60
                $region65: #{dasi_forward.6} parent=50 // loop_exit
                  _
              $region51: #{dasi_forward.6} parent=35 // pred_fallthru
                _
            $region36: #{dasi_forward.6} parent=31 // pred_fallthru
              _
            // Predicated region
            $region37: #{dasi_forward.6} parent=31 // pred_check
              _
            $region38: #{dasi_forward.6} parent=31 // pred_check_branch
              %160 = sbr.rel (0) target = $region40
            $region39: #{dasi_forward.6} parent=31 // pred_region
              %s162 = ssub.s32 16, 1
              loop: start=0, step=1, limit=1
              $region41: #{dasi_forward.6} parent=39 // loop_pre_header
                _
              $region42: #{dasi_forward.6} parent=39 // loop_header
                %s164 = sphi 0, %s168
                %p165 = scmp.ge.s32.totalorder %s164, 1
                %s169 = sphi %s154, %s154
                %s170 = sphi %s150, %s150
              $region43: #{dasi_forward.6} parent=39 // loop_header_branch
                %167 = sbr.rel (%p165) target = $region47
              $region44: #{dasi_forward.6} parent=39 // loop_body
                %v171 = vld [vmem:[%s169] sm:%s162]
                %172 = vst [vmem:[%s170] sm:%s162] %v171
                %v173 = vld [vmem:[%s169 + $0x8] sm:%s162]
                %174 = vst [vmem:[%s170 + $0x4] sm:%s162] %v173
                %v175 = vld [vmem:[%s169 + $0x10] sm:%s162]
                %176 = vst [vmem:[%s170 + $0x8] sm:%s162] %v175
                %v177 = vld [vmem:[%s169 + $0x18] sm:%s162]
                %178 = vst [vmem:[%s170 + $0xc] sm:%s162] %v177
                %v179 = vld [vmem:[%s169 + $0x20] sm:%s162]
                %180 = vst [vmem:[%s170 + $0x10] sm:%s162] %v179
                %v181 = vld [vmem:[%s169 + $0x28] sm:%s162]
                %182 = vst [vmem:[%s170 + $0x14] sm:%s162] %v181
                %v183 = vld [vmem:[%s169 + $0x30] sm:%s162]
                %184 = vst [vmem:[%s170 + $0x18] sm:%s162] %v183
                %v185 = vld [vmem:[%s169 + $0x38] sm:%s162]
                %186 = vst [vmem:[%s170 + $0x1c] sm:%s162] %v185
              $region45: #{dasi_forward.6} parent=39 // loop_footer
                %s168 = sadd.s32 1, %s164
              $region46: #{dasi_forward.6} parent=39 // loop_footer_branch
                %163 = sbr.rel target = $region42
              $region47: #{dasi_forward.6} parent=39 // loop_exit
                _
            $region40: #{dasi_forward.6} parent=31 // pred_fallthru
              _
          $region32: #{dasi_forward.6} parent=27 // pred_fallthru
            _
          %223 = vnop
        $region28: #{dasi_forward.6} parent=23 // pred_fallthru
          _
      $region24: #{dasi_forward.6} parent=5 // pred_fallthru
        _
      %p224 = scmp.le.s32.totalorder 1, %s9
      %p225 = scmp.lt.s32.totalorder %s9, 5
      %p226 = pnand %p224, %p225
      %p227 = pneg %p226
      // Predicated region
      $region66: #{dasi_forward.6} parent=5 // pred_check
        _
      $region67: #{dasi_forward.6} parent=5 // pred_check_branch
        %229 = sbr.rel (%p226) target = $region69
      $region68: #{dasi_forward.6} parent=5 // pred_region
        %s230 = ssub.s32 %s9, 1
        %s231 = sand.u32 %s36, 1
        %s232 = sand.u32 %s36, 1
        %s233 = smul.addr %s232, 32
        %s234 = scalar_lea.vmem [#allocation2], %s233
        // Predicated region
        $region70: #{dasi_forward.6} parent=68 // pred_check
          %p235 = pneg %p49
        $region71: #{dasi_forward.6} parent=68 // pred_check_branch
          %237 = sbr.rel (%p235) target = $region73
        $region72: #{dasi_forward.6} parent=68 // pred_region
          _
        $region73: #{dasi_forward.6} parent=68 // pred_fallthru
          _
        %s238 = sand.u32 %s36, 1
        %s239 = sand.u32 %s36, 1
        %s240 = smul.addr %s239, 32
        %s241 = scalar_lea.vmem [#allocation2], %s240
        %p242 = pneg %p49
        %p243 = pneg %p46
        %p244 = pneg %p70
        %p245 = pneg %p67
        %p246 = pneg %p91
        %p247 = pneg %p88
        %p248 = pneg %p119
        %p249 = pneg %p116
        %s250 = sand.u32 %s106, 1
        %s251 = sand.u32 %s106, 1
        %s252 = smul.addr %s251, 16
        %s253 = scalar_lea.vmem [#allocation3], %s252
        %v255 = vld [vmem:[%s1] sm:$0xf]
        %v256 = vld [vmem:[%s1 + $0x4] sm:$0xf]
        %v257 = vld [vmem:[%s1 + $0x8] sm:$0xf]
        %v258 = vld [vmem:[%s1 + $0xc] sm:$0xf]
        %v259 = vld [vmem:[%s234] sm:$0xf]
        %v260 = vld [vmem:[%s234 + $0x4] sm:$0xf]
        %v261 = vld [vmem:[%s234 + $0x8] sm:$0xf]
        %v262 = vld [vmem:[%s234 + $0xc] sm:$0xf]
        %v263 = vld [vmem:[%s234 + $0x10] sm:$0xf]
        %v264 = vld [vmem:[%s234 + $0x14] sm:$0xf]
        %v265 = vld [vmem:[%s234 + $0x18] sm:$0xf]
        %v266 = vld [vmem:[%s234 + $0x1c] sm:$0xf]
        %v267 = vld [vmem:[%s2] sm:$0xff]
        %v268 = vld [vmem:[%s2 + $0x8] sm:$0xff]
        %v269 = vld [vmem:[%s2 + $0x10] sm:$0xff]
        %v270 = vld [vmem:[%s2 + $0x18] sm:$0xff]
        %272 = vset.pattern.permute.xlu0 0
        %273 = vperm.xlu0 %272, %v267
        %v274 = vpop.permute.xlu0 %273
        %277 = vset.pattern.permute.xlu0 0
        %278 = vperm.xlu0 %277, %v268
        %v279 = vpop.permute.xlu0 %278
        %282 = vset.pattern.permute.xlu0 0
        %283 = vperm.xlu0 %282, %v269
        %v284 = vpop.permute.xlu0 %283
        %287 = vset.pattern.permute.xlu0 0
        %288 = vperm.xlu0 %287, %v270
        %v289 = vpop.permute.xlu0 %288
        %v295 = vunpack.c.l.b16 %v255
        %v296 = vunpack.c.l.b16 %v256
        %v297 = vunpack.c.l.b16 %v257
        %v298 = vunpack.c.l.b16 %v258
        %v299 = vpack.c.b16 %v296, %v295
        %v300 = vpack.c.b16 %v298, %v297
        %v309 = vunpack.c.l.b16 %v259
        %v310 = vunpack.c.l.b16 %v260
        %v311 = vunpack.c.l.b16 %v261
        %v312 = vunpack.c.l.b16 %v262
        %v313 = vunpack.c.l.b16 %v263
        %v314 = vunpack.c.l.b16 %v264
        %v315 = vunpack.c.l.b16 %v265
        %v316 = vunpack.c.l.b16 %v266
        %v317 = vpack.c.b16 %v310, %v309
        %v318 = vpack.c.b16 %v312, %v311
        %v319 = vpack.c.b16 %v314, %v313
        %v320 = vpack.c.b16 %v316, %v315
        %vm325 = vcmask 523264
        %v327 = vsel %vm325, %v299, 0
        %v330 = vsel %vm325, %v300, 0
        %332 = vmatprep.subr.bf16.mxu0 0
        %333 = vmatpush1.bf16.msra.mxu0 0
        %334 = vmatprep.subr.bf16.mxu0 0
        %335 = vmatpush1.bf16.msra.mxu0 0
        %336 = vmatprep.subr.bf16.mxu0 0
        %337 = vmatpush1.bf16.msra.mxu0 0
        %338 = vmatprep.subr.bf16.mxu0 0
        %339 = vmatpush1.bf16.msra.mxu0 0
        %340 = vmatprep.subr.bf16.mxu0 0
        %341 = vmatpush1.bf16.msra.mxu0 %v320
        %342 = vmatprep.subr.bf16.mxu0 0
        %343 = vmatpush1.bf16.msra.mxu0 %v319
        %344 = vmatprep.subr.bf16.mxu0 0
        %345 = vmatpush1.bf16.msra.mxu0 %v318
        %346 = vmatprep.subr.bf16.mxu0 0
        %347 = vmatpush1.bf16.msra.mxu0 %v317
        %348 = vmatprep.subr.bf16.mxu0 0
        %349 = vmatpush2.bf16.msra.mxu0 0
        %350 = vmatprep.subr.bf16.mxu0 0
        %351 = vmatpush2.bf16.msra.mxu0 0
        %352 = vmatprep.subr.bf16.mxu0 0
        %353 = vmatpush2.bf16.msra.mxu0 0
        %354 = vmatprep.subr.bf16.mxu0 0
        %355 = vmatpush2.bf16.msra.mxu0 0
        %356 = vmatprep.subr.bf16.mxu0 0
        %357 = vmatpush2.bf16.msra.mxu0 0
        %358 = vmatprep.subr.bf16.mxu0 0
        %359 = vmatpush2.bf16.msra.mxu0 0
        %360 = vmatprep.subr.bf16.mxu0 0
        %361 = vmatpush2.bf16.msra.mxu0 0
        %362 = vmatprep.subr.bf16.mxu0 0
        %363 = vmatpush2.bf16.msra.mxu0 0
        %364 = vmatprep.mubr.bf16.mxu0 0
        %365 = vmatmul.mubr.bf16.gmra.mxu0 %v327
        %v366 = vpop.f32.mrf.mxu0
        %v367 = vadd.f32 %v274, %v366
        %v368 = vpop.f32.mrf.mxu0
        %v369 = vpop.f32.mrf.mxu0
        %v370 = vadd.f32 %v279, %v369
        %v371 = vpop.f32.mrf.mxu0
        %372 = vmatprep.mubr.bf16.mxu0 0
        %373 = vmatmul.mubr.bf16.gmra.mxu0 %v330
        %v374 = vpop.f32.mrf.mxu0
        %v375 = vadd.f32 %v284, %v374
        %v376 = vpop.f32.mrf.mxu0
        %v377 = vpop.f32.mrf.mxu0
        %v378 = vadd.f32 %v289, %v377
        %v379 = vpop.f32.mrf.mxu0
        %380 = vdwg.mxu0
        %v381 = vpack.c.bf16 %v370, %v367
        %v382 = vpack.c.bf16 %v378, %v375
        %v385 = vunpack.c.l.b16 %v381
        %v386 = vunpack.c.h.b16 %v381
        %v387 = vunpack.c.l.b16 %v382
        %v388 = vunpack.c.h.b16 %v382
        %v389 = vpack.c.b16 %v385, %v385
        %v390 = vpack.c.b16 %v386, %v386
        %v391 = vpack.c.b16 %v387, %v387
        %v392 = vpack.c.b16 %v388, %v388
        %397 = vst [vmem:[%s253] sm:$0xf] %v389
        %398 = vst [vmem:[%s253 + $0x4] sm:$0xf] %v390
        %399 = vst [vmem:[%s253 + $0x8] sm:$0xf] %v391
        %400 = vst [vmem:[%s253 + $0xc] sm:$0xf] %v392
        %s401 = sand.u32 %s106, 1
        %s402 = sand.u32 %s106, 1
        %s403 = smul.addr %s402, 16
        %s404 = scalar_lea.vmem [#allocation3], %s403
        // Predicated region
        $region74: #{dasi_forward.6} parent=68 // pred_check
          %p405 = pneg %p116
        $region75: #{dasi_forward.6} parent=68 // pred_check_branch
          %407 = sbr.rel (%p405) target = $region77
        $region76: #{dasi_forward.6} parent=68 // pred_region
          %s408 = smul.addr %s18, 8
          %s409 = sadd.s32 %s19, %s408
          %s410 = smul.addr %s409, 4
          %s411 = scalar_lea.vmem %s3, %s410
          // Predicated region
          $region78: #{dasi_forward.6} parent=76 // pred_check
            _
          $region79: #{dasi_forward.6} parent=76 // pred_check_branch
            %413 = sbr.rel (0) target = $region81
          $region80: #{dasi_forward.6} parent=76 // pred_region
            // Predicated region
            $region82: #{dasi_forward.6} parent=80 // pred_check
              _
            $region83: #{dasi_forward.6} parent=80 // pred_check_branch
              %415 = sbr.rel target = $region85
            $region84: #{dasi_forward.6} parent=80 // pred_region
              // Predicated region
              $region97: #{dasi_forward.6} parent=84 // pred_check
                _
              $region98: #{dasi_forward.6} parent=84 // pred_check_branch
                %437 = sbr.rel (0) target = $region100
              $region99: #{dasi_forward.6} parent=84 // pred_region
                loop: start=0, step=1, limit=1
                $region101: #{dasi_forward.6} parent=99 // loop_pre_header
                  _
                $region102: #{dasi_forward.6} parent=99 // loop_header
                  %s439 = sphi 0, %s443
                  %p440 = scmp.ge.s32.totalorder %s439, 1
                  %s444 = sphi %s404, %s404
                  %s445 = sphi %s411, %s411
                $region103: #{dasi_forward.6} parent=99 // loop_header_branch
                  %442 = sbr.rel (%p440) target = $region107
                $region104: #{dasi_forward.6} parent=99 // loop_body
                  _
                $region105: #{dasi_forward.6} parent=99 // loop_footer
                  %s443 = sadd.s32 1, %s439
                $region106: #{dasi_forward.6} parent=99 // loop_footer_branch
                  %438 = sbr.rel target = $region102
                $region107: #{dasi_forward.6} parent=99 // loop_exit
                  _
                %s447 = ssub.s32 16, 1
                loop: start=0, step=1, limit=1
                $region108: #{dasi_forward.6} parent=99 // loop_pre_header
                  _
                $region109: #{dasi_forward.6} parent=99 // loop_header
                  %s449 = sphi 0, %s453
                  %p450 = scmp.ge.s32.totalorder %s449, 1
                  %s454 = sphi %s404, %s404
                  %s455 = sphi %s411, %s411
                $region110: #{dasi_forward.6} parent=99 // loop_header_branch
                  %452 = sbr.rel (%p450) target = $region114
                $region111: #{dasi_forward.6} parent=99 // loop_body
                  %v456 = vld [vmem:[%s454] sm:%s447]
                  %457 = vst [vmem:[%s455] sm:%s447] %v456
                  %v458 = vld [vmem:[%s454 + $0x4] sm:%s447]
                  %459 = vst [vmem:[%s455 + $0x8] sm:%s447] %v458
                  %v460 = vld [vmem:[%s454 + $0x8] sm:%s447]
                  %461 = vst [vmem:[%s455 + $0x10] sm:%s447] %v460
                  %v462 = vld [vmem:[%s454 + $0xc] sm:%s447]
                  %463 = vst [vmem:[%s455 + $0x18] sm:%s447] %v462
                $region112: #{dasi_forward.6} parent=99 // loop_footer
                  %s453 = sadd.s32 1, %s449
                $region113: #{dasi_forward.6} parent=99 // loop_footer_branch
                  %448 = sbr.rel target = $region109
                $region114: #{dasi_forward.6} parent=99 // loop_exit
                  _
              $region100: #{dasi_forward.6} parent=84 // pred_fallthru
                _
            $region85: #{dasi_forward.6} parent=80 // pred_fallthru
              _
            // Predicated region
            $region86: #{dasi_forward.6} parent=80 // pred_check
              _
            $region87: #{dasi_forward.6} parent=80 // pred_check_branch
              %417 = sbr.rel (0) target = $region89
            $region88: #{dasi_forward.6} parent=80 // pred_region
              %s419 = ssub.s32 16, 1
              loop: start=0, step=1, limit=1
              $region90: #{dasi_forward.6} parent=88 // loop_pre_header
                _
              $region91: #{dasi_forward.6} parent=88 // loop_header
                %s421 = sphi 0, %s425
                %p422 = scmp.ge.s32.totalorder %s421, 1
                %s426 = sphi %s404, %s404
                %s427 = sphi %s411, %s411
              $region92: #{dasi_forward.6} parent=88 // loop_header_branch
                %424 = sbr.rel (%p422) target = $region96
              $region93: #{dasi_forward.6} parent=88 // loop_body
                %v428 = vld [vmem:[%s426] sm:%s419]
                %429 = vst [vmem:[%s427] sm:%s419] %v428
                %v430 = vld [vmem:[%s426 + $0x4] sm:%s419]
                %431 = vst [vmem:[%s427 + $0x8] sm:%s419] %v430
                %v432 = vld [vmem:[%s426 + $0x8] sm:%s419]
                %433 = vst [vmem:[%s427 + $0x10] sm:%s419] %v432
                %v434 = vld [vmem:[%s426 + $0xc] sm:%s419]
                %435 = vst [vmem:[%s427 + $0x18] sm:%s419] %v434
              $region94: #{dasi_forward.6} parent=88 // loop_footer
                %s425 = sadd.s32 1, %s421
              $region95: #{dasi_forward.6} parent=88 // loop_footer_branch
                %420 = sbr.rel target = $region91
              $region96: #{dasi_forward.6} parent=88 // loop_exit
                _
            $region89: #{dasi_forward.6} parent=80 // pred_fallthru
              _
          $region81: #{dasi_forward.6} parent=76 // pred_fallthru
            _
          %464 = vnop
        $region77: #{dasi_forward.6} parent=68 // pred_fallthru
          _
      $region69: #{dasi_forward.6} parent=5 // pred_fallthru
        _
      %p465 = scmp.le.s32.totalorder 2, %s9
      // Predicated region
      $region115: #{dasi_forward.6} parent=5 // pred_check
        %p466 = pneg %p465
      $region116: #{dasi_forward.6} parent=5 // pred_check_branch
        %468 = sbr.rel (%p466) target = $region118
      $region117: #{dasi_forward.6} parent=5 // pred_region
        %s469 = ssub.s32 %s9, 2
        // Predicated region
        $region119: #{dasi_forward.6} parent=117 // pred_check
          %p470 = pneg %p122
        $region120: #{dasi_forward.6} parent=117 // pred_check_branch
          %472 = sbr.rel (%p470) target = $region122
        $region121: #{dasi_forward.6} parent=117 // pred_region
          %s473 = sand.u32 %s107, 1
          %s474 = sand.u32 %s107, 1
          %s475 = smul.addr %s474, 16
          %s476 = scalar_lea.vmem [#allocation3], %s475
        $region122: #{dasi_forward.6} parent=117 // pred_fallthru
          _
      $region118: #{dasi_forward.6} parent=5 // pred_fallthru
        _
    $region6: #{dasi_forward.6} parent=1 // loop_footer
      %s13 = sadd.s32 1, %s9
    $region7: #{dasi_forward.6} parent=1 // loop_footer_branch
      %8 = sbr.rel target = $region3
    $region8: #{dasi_forward.6} parent=1 // loop_exit
      _

// kernel: dasi_forward.5
$region0: #{dasi_forward.5}
  #allocation0 [shape = 'u32[]', space=smem, size = 0x4, offset = 0x4, fixed_abs, tag = 'smem constant byte address 0x4 - core index']
  #allocation1 [shape = 'u32[144,128]{1,0:T(1,128)}', space=vmem, size = 0x12000, scoped, tag = 'internal scratch']
  %s0 = inlined_call_operand.vmem [shape: bf16[2,32,34,48], index: 0, kind: input, shape index: {}]
  %s1 = inlined_call_operand.vmem [shape: bf16[3,48,32], index: 1, kind: input, shape index: {}]
  %s2 = inlined_call_operand.vmem [shape: f32[1,32], index: 2, kind: input, shape index: {}]
  %s3 = inlined_call_operand.vmem [shape: bf16[2,32,32,32], index: 3, kind: output, shape index: {}]
  %s4 = sld [smem:[#allocation0]]
  $region45: #{dasi_forward.5} parent=0
    _
  %s6 = ssub.s32 1, %s4
  %s7 = scalar_select 0, %s6, %s4
  loop: start=0, step=1, limit=4
  $region2: #{dasi_forward.5} parent=0 // loop_pre_header
    _
  $region3: #{dasi_forward.5} parent=0 // loop_header
    %s9 = sphi 0, %s13
    %p10 = scmp.ge.s32.totalorder %s9, 4
    %s16 = sphi 0, %s28
    %s17 = sphi 0, %s24
    %s18 = sphi 0, %s16
    %s19 = sphi 0, %s17
    %s20 = sphi 0, %s18
    %s21 = sphi 0, %s19
    %s33 = sphi 0, %s35
    %s36 = sphi 0, %s33
    %s37 = sphi 0, %s36
    %s53 = sphi 0, %s37
    %s57 = sphi 0, %s57
    %s59 = sphi 0, %s57
    %s60 = sphi 0, %s59
    %s74 = sphi 0, %s60
    %s78 = sphi 0, %s78
    %s80 = sphi 0, %s78
    %s81 = sphi 0, %s80
    %s95 = sphi 0, %s81
    %s103 = sphi 0, %s105
    %s106 = sphi 0, %s103
    %s107 = sphi 0, %s106
    %s123 = sphi 0, %s107
  $region4: #{dasi_forward.5} parent=0 // loop_header_branch
    %12 = sbr.rel (%p10) target = $region8
  $region5: #{dasi_forward.5} parent=0 // loop_body
    %s14 = ssub.s32 %s9, 1
    %s15 = ssub.s32 %s9, 2
    %s22 = sadd.s32 1, %s17
    %p23 = scmp.ge.s32.totalorder %s22, 1
    %s24 = scalar_select %p23, 0, %s22
    %s25 = sadd.s32 1, %s16
    %s26 = scalar_select %p23, %s25, %s16
    %p27 = scmp.ge.s32.totalorder %s26, 2
    %s28 = scalar_select %p27, 0, %s26
    %s29 = ssub.s32 %s16, %s28
    %s30 = ssub.s32 %s17, %s24
    %s31 = sor.u32 %s29, %s30
    %p32 = scmp.eq.s32.totalorder %s31, 0
    %s34 = sadd.s32 %s33, 1
    %s35 = scalar_select %p32, %s33, %s34
    %p38 = pneg %p32
    %p39 = scmp.eq.s32.totalorder %s9, 1
    %p40 = por %p38, %p39
    %p41 = scmp.ne.s32.totalorder %s33, %s36
    %p42 = scmp.eq.s32.totalorder %s9, 0
    %p43 = por %p41, %p42
    %p44 = scmp.ne.s32.totalorder %s33, %s36
    %p45 = scmp.eq.s32.totalorder %s14, 1
    %p46 = por %p44, %p45
    %p47 = scmp.ne.s32.totalorder %s36, %s37
    %p48 = scmp.eq.s32.totalorder %s14, 0
    %p49 = por %p47, %p48
    %p50 = scmp.ne.s32.totalorder %s36, %s37
    %p51 = scmp.eq.s32.totalorder %s15, 1
    %p52 = por %p50, %p51
    %p54 = scmp.ne.s32.totalorder %s37, %s53
    %p55 = scmp.eq.s32.totalorder %s15, 0
    %p56 = por %p54, %p55
    %s58 = sadd.s32 %s57, 1
    %p61 = scmp.eq.s32.totalorder %s9, 1
    %p62 = scmp.ne.s32.totalorder %s57, %s59
    %p63 = scmp.eq.s32.totalorder %s9, 0
    %p64 = por %p62, %p63
    %p65 = scmp.ne.s32.totalorder %s57, %s59
    %p66 = scmp.eq.s32.totalorder %s14, 1
    %p67 = por %p65, %p66
    %p68 = scmp.ne.s32.totalorder %s59, %s60
    %p69 = scmp.eq.s32.totalorder %s14, 0
    %p70 = por %p68, %p69
    %p71 = scmp.ne.s32.totalorder %s59, %s60
    %p72 = scmp.eq.s32.totalorder %s15, 1
    %p73 = por %p71, %p72
    %p75 = scmp.ne.s32.totalorder %s60, %s74
    %p76 = scmp.eq.s32.totalorder %s15, 0
    %p77 = por %p75, %p76
    %s79 = sadd.s32 %s78, 1
    %p82 = scmp.eq.s32.totalorder %s9, 1
    %p83 = scmp.ne.s32.totalorder %s78, %s80
    %p84 = scmp.eq.s32.totalorder %s9, 0
    %p85 = por %p83, %p84
    %p86 = scmp.ne.s32.totalorder %s78, %s80
    %p87 = scmp.eq.s32.totalorder %s14, 1
    %p88 = por %p86, %p87
    %p89 = scmp.ne.s32.totalorder %s80, %s81
    %p90 = scmp.eq.s32.totalorder %s14, 0
    %p91 = por %p89, %p90
    %p92 = scmp.ne.s32.totalorder %s80, %s81
    %p93 = scmp.eq.s32.totalorder %s15, 1
    %p94 = por %p92, %p93
    %p96 = scmp.ne.s32.totalorder %s81, %s95
    %p97 = scmp.eq.s32.totalorder %s15, 0
    %p98 = por %p96, %p97
    %s99 = ssub.s32 %s16, %s28
    %s100 = ssub.s32 %s17, %s24
    %s101 = sor.u32 %s99, %s100
    %p102 = scmp.eq.s32.totalorder %s101, 0
    %s104 = sadd.s32 %s103, 1
    %s105 = scalar_select %p102, %s103, %s104
    %p108 = pneg %p102
    %p109 = scmp.eq.s32.totalorder %s9, 1
    %p110 = por %p108, %p109
    %p111 = scmp.ne.s32.totalorder %s103, %s106
    %p112 = scmp.eq.s32.totalorder %s9, 0
    %p113 = por %p111, %p112
    %p114 = scmp.ne.s32.totalorder %s103, %s106
    %p115 = scmp.eq.s32.totalorder %s14, 1
    %p116 = por %p114, %p115
    %p117 = scmp.ne.s32.totalorder %s106, %s107
    %p118 = scmp.eq.s32.totalorder %s14, 0
    %p119 = por %p117, %p118
    %p120 = scmp.ne.s32.totalorder %s106, %s107
    %p121 = scmp.eq.s32.totalorder %s15, 1
    %p122 = por %p120, %p121
    %p124 = scmp.ne.s32.totalorder %s107, %s123
    %p125 = scmp.eq.s32.totalorder %s15, 0
    %p126 = por %p124, %p125
    %p127 = scmp.le.s32.totalorder 1, %s9
    %p128 = scmp.lt.s32.totalorder %s9, 3
    %p129 = pnand %p127, %p128
    %p130 = pneg %p129
    // Predicated region
    $region9: #{dasi_forward.5} parent=5 // pred_check
      _
    $region10: #{dasi_forward.5} parent=5 // pred_check_branch
      %132 = sbr.rel (%p129) target = $region12
    $region11: #{dasi_forward.5} parent=5 // pred_region
      %s133 = ssub.s32 %s9, 1
      // Predicated region
      $region13: #{dasi_forward.5} parent=11 // pred_check
        %p134 = pneg %p70
      $region14: #{dasi_forward.5} parent=11 // pred_check_branch
        %136 = sbr.rel (%p134) target = $region16
      $region15: #{dasi_forward.5} parent=11 // pred_region
        _
      $region16: #{dasi_forward.5} parent=11 // pred_fallthru
        _
      // Predicated region
      $region17: #{dasi_forward.5} parent=11 // pred_check
        %p137 = pneg %p91
      $region18: #{dasi_forward.5} parent=11 // pred_check_branch
        %139 = sbr.rel (%p137) target = $region20
      $region19: #{dasi_forward.5} parent=11 // pred_region
        _
      $region20: #{dasi_forward.5} parent=11 // pred_fallthru
        _
    $region12: #{dasi_forward.5} parent=5 // pred_fallthru
      _
    %p140 = scmp.lt.s32.totalorder %s9, 2
    // Predicated region
    $region21: #{dasi_forward.5} parent=5 // pred_check
      %p141 = pneg %p140
    $region22: #{dasi_forward.5} parent=5 // pred_check_branch
      %143 = sbr.rel (%p141) target = $region24
    $region23: #{dasi_forward.5} parent=5 // pred_region
      // Predicated region
      $region25: #{dasi_forward.5} parent=23 // pred_check
        %p144 = pneg %p43
      $region26: #{dasi_forward.5} parent=23 // pred_check_branch
        %146 = sbr.rel (%p144) target = $region28
      $region27: #{dasi_forward.5} parent=23 // pred_region
        %s147 = smul.u32 32, %s17
        %p148 = scmp.lt.s32.totalorder %s16, 1
        %s149 = scalar_select %p148, %s16, 1
        %p150 = scmp.lt.s32.totalorder %s147, 31
        %s151 = scalar_select %p150, %s147, 31
        %s152 = smul.addr %s151, 5
        %s153 = smul.addr %s149, 160
        %s154 = sadd.s32 %s152, %s153
        %s155 = smul.addr %s154, 4
        %s156 = scalar_lea.vmem %s0, %s155
        %s157 = smul.u32 32, %s17
      $region28: #{dasi_forward.5} parent=23 // pred_fallthru
        _
    $region24: #{dasi_forward.5} parent=5 // pred_fallthru
      _
    %p158 = scmp.le.s32.totalorder 1, %s9
    %p159 = scmp.lt.s32.totalorder %s9, 3
    %p160 = pnand %p158, %p159
    %p161 = pneg %p160
    // Predicated region
    $region29: #{dasi_forward.5} parent=5 // pred_check
      _
    $region30: #{dasi_forward.5} parent=5 // pred_check_branch
      %163 = sbr.rel (%p160) target = $region32
    $region31: #{dasi_forward.5} parent=5 // pred_region
      %s164 = ssub.s32 %s9, 1
      %s165 = smul.u32 32, %s19
      %p166 = scmp.lt.s32.totalorder %s18, 1
      %s167 = scalar_select %p166, %s18, 1
      %p168 = scmp.lt.s32.totalorder %s165, 31
      %s169 = scalar_select %p168, %s165, 31
      %s170 = smul.addr %s169, 5
      %s171 = smul.addr %s167, 160
      %s172 = sadd.s32 %s170, %s171
      %s173 = smul.addr %s172, 4
      %s174 = scalar_lea.vmem %s0, %s173
      %p175 = pneg %p49
      %p176 = pneg %p46
      %p177 = pneg %p70
      %p178 = pneg %p67
      %p179 = pneg %p91
      %p180 = pneg %p88
      %p181 = pneg %p119
      %p182 = pneg %p116
      %s183 = smul.u32 32, %s19
      %p184 = scmp.lt.s32.totalorder %s18, 1
      %s185 = scalar_select %p184, %s18, 1
      %p186 = scmp.lt.s32.totalorder %s183, 31
      %s187 = scalar_select %p186, %s183, 31
      %s188 = smul.addr %s187, 4
      %s189 = smul.addr %s185, 128
      %s190 = sadd.s32 %s188, %s189
      %s191 = smul.addr %s190, 4
      %s192 = scalar_lea.vmem %s3, %s191
      %s193 = smul.u32 32, %s19
      %p194 = scmp.lt.s32.totalorder %s18, 1
      %s195 = scalar_select %p194, %s18, 1
      %p196 = scmp.lt.s32.totalorder %s193, 31
      %s197 = scalar_select %p196, %s193, 31
      %s198 = smul.addr %s197, 5
      %s199 = smul.addr %s195, 160
      %s200 = sadd.s32 %s198, %s199
      %s201 = smul.addr %s200, 4
      %s202 = scalar_lea.vmem %s0, %s201
      %s203 = smul.u32 32, %s19
      %s204 = smul.u32 32, %s19
      %p205 = scmp.lt.s32.totalorder %s18, 1
      %s206 = scalar_select %p205, %s18, 1
      %p207 = scmp.lt.s32.totalorder %s204, 31
      %s208 = scalar_select %p207, %s204, 31
      %s209 = smul.addr %s208, 4
      %s210 = smul.addr %s206, 128
      %s211 = sadd.s32 %s209, %s210
      %s212 = smul.addr %s211, 4
      %s213 = scalar_lea.vmem %s3, %s212
      %s214 = smul.u32 32, %s19
      %v216 = vld [vmem:[%s202] sm:$0xf]
      %v217 = vld [vmem:[%s202 + $0x4] sm:$0xf]
      %v218 = vld [vmem:[%s202 + $0x8] sm:$0xf]
      %v219 = vld [vmem:[%s202 + $0xc] sm:$0xf]
      %v220 = vld [vmem:[%s202 + $0x14] sm:$0xf]
      %v221 = vld [vmem:[%s202 + $0x18] sm:$0xf]
      %v222 = vld [vmem:[%s202 + $0x1c] sm:$0xf]
      %v223 = vld [vmem:[%s202 + $0x20] sm:$0xf]
      %v224 = vld [vmem:[%s202 + $0x28] sm:$0xf]
      %v225 = vld [vmem:[%s202 + $0x2c] sm:$0xf]
      %v226 = vld [vmem:[%s202 + $0x30] sm:$0xf]
      %v227 = vld [vmem:[%s202 + $0x34] sm:$0xf]
      %v228 = vld [vmem:[%s202 + $0x3c] sm:$0xf]
      %v229 = vld [vmem:[%s202 + $0x40] sm:$0xf]
      %v230 = vld [vmem:[%s202 + $0x44] sm:$0xf]
      %v231 = vld [vmem:[%s202 + $0x48] sm:$0xf]
      %v232 = vld [vmem:[%s202 + $0x50] sm:$0xf]
      %v233 = vld [vmem:[%s202 + $0x54] sm:$0xf]
      %v234 = vld [vmem:[%s202 + $0x58] sm:$0xf]
      %v235 = vld [vmem:[%s202 + $0x5c] sm:$0xf]
      %v236 = vld [vmem:[%s202 + $0x64] sm:$0xf]
      %v237 = vld [vmem:[%s202 + $0x68] sm:$0xf]
      %v238 = vld [vmem:[%s202 + $0x6c] sm:$0xf]
      %v239 = vld [vmem:[%s202 + $0x70] sm:$0xf]
      %v240 = vld [vmem:[%s202 + $0x78] sm:$0xf]
      %v241 = vld [vmem:[%s202 + $0x7c] sm:$0xf]
      %v242 = vld [vmem:[%s202 + $0x80] sm:$0xf]
      %v243 = vld [vmem:[%s202 + $0x84] sm:$0xf]
      %v244 = vld [vmem:[%s202 + $0x8c] sm:$0xf]
      %v245 = vld [vmem:[%s202 + $0x90] sm:$0xf]
      %v246 = vld [vmem:[%s202 + $0x94] sm:$0xf]
      %v247 = vld [vmem:[%s202 + $0x98] sm:$0xf]
      %v248 = vld [vmem:[%s202 + $0xa0] sm:$0xf]
      %v249 = vld [vmem:[%s202 + $0xa4] sm:$0xf]
      %v250 = vld [vmem:[%s202 + $0xa8] sm:$0xf]
      %v251 = vld [vmem:[%s202 + $0xac] sm:$0xf]
      %v252 = vld [vmem:[%s202 + $0xb4] sm:$0xf]
      %v253 = vld [vmem:[%s202 + $0xb8] sm:$0xf]
      %v254 = vld [vmem:[%s202 + $0xbc] sm:$0xf]
      %v255 = vld [vmem:[%s202 + $0xc0] sm:$0xf]
      %v256 = vld [vmem:[%s202 + $0xc8] sm:$0xf]
      %v257 = vld [vmem:[%s202 + $0xcc] sm:$0xf]
      %v258 = vld [vmem:[%s202 + $0xd0] sm:$0xf]
      %v259 = vld [vmem:[%s202 + $0xd4] sm:$0xf]
      %v260 = vld [vmem:[%s202 + $0xdc] sm:$0xf]
      %v261 = vld [vmem:[%s202 + $0xe0] sm:$0xf]
      %v262 = vld [vmem:[%s202 + $0xe4] sm:$0xf]
      %v263 = vld [vmem:[%s202 + $0xe8] sm:$0xf]
      %v264 = vld [vmem:[%s202 + $0xf0] sm:$0xf]
      %v265 = vld [vmem:[%s202 + $0xf4] sm:$0xf]
      %v266 = vld [vmem:[%s202 + $0xf8] sm:$0xf]
      %v267 = vld [vmem:[%s202 + $0xfc] sm:$0xf]
      %v268 = vld [vmem:[%s202 + $0x104] sm:$0xf]
      %v269 = vld [vmem:[%s202 + $0x108] sm:$0xf]
      %v270 = vld [vmem:[%s202 + $0x10c] sm:$0xf]
      %v271 = vld [vmem:[%s202 + $0x110] sm:$0xf]
      %v272 = vld [vmem:[%s202 + $0x118] sm:$0xf]
      %v273 = vld [vmem:[%s202 + $0x11c] sm:$0xf]
      %v274 = vld [vmem:[%s202 + $0x120] sm:$0xf]
      %v275 = vld [vmem:[%s202 + $0x124] sm:$0xf]
      %v276 = vld [vmem:[%s202 + $0x12c] sm:$0xf]
      %v277 = vld [vmem:[%s202 + $0x130] sm:$0xf]
      %v278 = vld [vmem:[%s202 + $0x134] sm:$0xf]
      %v279 = vld [vmem:[%s202 + $0x138] sm:$0xf]
      %v280 = vld [vmem:[%s202 + $0x140] sm:$0xf]
      %v281 = vld [vmem:[%s202 + $0x144] sm:$0xf]
      %v282 = vld [vmem:[%s202 + $0x148] sm:$0xf]
      %v283 = vld [vmem:[%s202 + $0x14c] sm:$0xf]
      %v284 = vld [vmem:[%s202 + $0x154] sm:$0xf]
      %v285 = vld [vmem:[%s202 + $0x158] sm:$0xf]
      %v286 = vld [vmem:[%s202 + $0x15c] sm:$0xf]
      %v287 = vld [vmem:[%s202 + $0x160] sm:$0xf]
      %v288 = vld [vmem:[%s202 + $0x168] sm:$0xf]
      %v289 = vld [vmem:[%s202 + $0x16c] sm:$0xf]
      %v290 = vld [vmem:[%s202 + $0x170] sm:$0xf]
      %v291 = vld [vmem:[%s202 + $0x174] sm:$0xf]
      %v292 = vld [vmem:[%s202 + $0x17c] sm:$0xf]
      %v293 = vld [vmem:[%s202 + $0x180] sm:$0xf]
      %v294 = vld [vmem:[%s202 + $0x184] sm:$0xf]
      %v295 = vld [vmem:[%s202 + $0x188] sm:$0xf]
      %v296 = vld [vmem:[%s202 + $0x190] sm:$0xf]
      %v297 = vld [vmem:[%s202 + $0x194] sm:$0xf]
      %v298 = vld [vmem:[%s202 + $0x198] sm:$0xf]
      %v299 = vld [vmem:[%s202 + $0x19c] sm:$0xf]
      %v300 = vld [vmem:[%s202 + $0x1a4] sm:$0xf]
      %v301 = vld [vmem:[%s202 + $0x1a8] sm:$0xf]
      %v302 = vld [vmem:[%s202 + $0x1ac] sm:$0xf]
      %v303 = vld [vmem:[%s202 + $0x1b0] sm:$0xf]
      %v304 = vld [vmem:[%s202 + $0x1b8] sm:$0xf]
      %v305 = vld [vmem:[%s202 + $0x1bc] sm:$0xf]
      %v306 = vld [vmem:[%s202 + $0x1c0] sm:$0xf]
      %v307 = vld [vmem:[%s202 + $0x1c4] sm:$0xf]
      %v308 = vld [vmem:[%s202 + $0x1cc] sm:$0xf]
      %v309 = vld [vmem:[%s202 + $0x1d0] sm:$0xf]
      %v310 = vld [vmem:[%s202 + $0x1d4] sm:$0xf]
      %v311 = vld [vmem:[%s202 + $0x1d8] sm:$0xf]
      %v312 = vld [vmem:[%s202 + $0x1e0] sm:$0xf]
      %v313 = vld [vmem:[%s202 + $0x1e4] sm:$0xf]
      %v314 = vld [vmem:[%s202 + $0x1e8] sm:$0xf]
      %v315 = vld [vmem:[%s202 + $0x1ec] sm:$0xf]
      %v316 = vld [vmem:[%s202 + $0x1f4] sm:$0xf]
      %v317 = vld [vmem:[%s202 + $0x1f8] sm:$0xf]
      %v318 = vld [vmem:[%s202 + $0x1fc] sm:$0xf]
      %v319 = vld [vmem:[%s202 + $0x200] sm:$0xf]
      %v320 = vld [vmem:[%s202 + $0x208] sm:$0xf]
      %v321 = vld [vmem:[%s202 + $0x20c] sm:$0xf]
      %v322 = vld [vmem:[%s202 + $0x210] sm:$0xf]
      %v323 = vld [vmem:[%s202 + $0x214] sm:$0xf]
      %v324 = vld [vmem:[%s202 + $0x21c] sm:$0xf]
      %v325 = vld [vmem:[%s202 + $0x220] sm:$0xf]
      %v326 = vld [vmem:[%s202 + $0x224] sm:$0xf]
      %v327 = vld [vmem:[%s202 + $0x228] sm:$0xf]
      %v328 = vld [vmem:[%s202 + $0x230] sm:$0xf]
      %v329 = vld [vmem:[%s202 + $0x234] sm:$0xf]
      %v330 = vld [vmem:[%s202 + $0x238] sm:$0xf]
      %v331 = vld [vmem:[%s202 + $0x23c] sm:$0xf]
      %v332 = vld [vmem:[%s202 + $0x244] sm:$0xf]
      %v333 = vld [vmem:[%s202 + $0x248] sm:$0xf]
      %v334 = vld [vmem:[%s202 + $0x24c] sm:$0xf]
      %v335 = vld [vmem:[%s202 + $0x250] sm:$0xf]
      %v336 = vld [vmem:[%s202 + $0x258] sm:$0xf]
      %v337 = vld [vmem:[%s202 + $0x25c] sm:$0xf]
      %v338 = vld [vmem:[%s202 + $0x260] sm:$0xf]
      %v339 = vld [vmem:[%s202 + $0x264] sm:$0xf]
      %v340 = vld [vmem:[%s202 + $0x26c] sm:$0xf]
      %v341 = vld [vmem:[%s202 + $0x270] sm:$0xf]
      %v342 = vld [vmem:[%s202 + $0x274] sm:$0xf]
      %v343 = vld [vmem:[%s202 + $0x278] sm:$0xf]
      %v344 = vld [vmem:[%s1] sm:$0xf]
      %v345 = vld [vmem:[%s1 + $0x4] sm:$0xf]
      %v346 = vld [vmem:[%s1 + $0x8] sm:$0xf]
      %v347 = vld [vmem:[%s1 + $0xc] sm:$0xf]
      %v348 = vld [vmem:[%s1 + $0x10] sm:$0xf]
      %v349 = vld [vmem:[%s1 + $0x14] sm:$0xf]
      %v350 = vld [vmem:[%s202 + $0x10] sm:$0x1]
      %v351 = vld [vmem:[%s202 + $0x24] sm:$0x1]
      %v352 = vld [vmem:[%s202 + $0x38] sm:$0x1]
      %v353 = vld [vmem:[%s202 + $0x4c] sm:$0x1]
      %v354 = vld [vmem:[%s202 + $0x60] sm:$0x1]
      %v355 = vld [vmem:[%s202 + $0x74] sm:$0x1]
      %v356 = vld [vmem:[%s202 + $0x88] sm:$0x1]
      %v357 = vld [vmem:[%s202 + $0x9c] sm:$0x1]
      %v358 = vld [vmem:[%s202 + $0xb0] sm:$0x1]
      %v359 = vld [vmem:[%s202 + $0xc4] sm:$0x1]
      %v360 = vld [vmem:[%s202 + $0xd8] sm:$0x1]
      %v361 = vld [vmem:[%s202 + $0xec] sm:$0x1]
      %v362 = vld [vmem:[%s202 + $0x100] sm:$0x1]
      %v363 = vld [vmem:[%s202 + $0x114] sm:$0x1]
      %v364 = vld [vmem:[%s202 + $0x128] sm:$0x1]
      %v365 = vld [vmem:[%s202 + $0x13c] sm:$0x1]
      %v366 = vld [vmem:[%s202 + $0x150] sm:$0x1]
      %v367 = vld [vmem:[%s202 + $0x164] sm:$0x1]
      %v368 = vld [vmem:[%s202 + $0x178] sm:$0x1]
      %v369 = vld [vmem:[%s202 + $0x18c] sm:$0x1]
      %v370 = vld [vmem:[%s202 + $0x1a0] sm:$0x1]
      %v371 = vld [vmem:[%s202 + $0x1b4] sm:$0x1]
      %v372 = vld [vmem:[%s202 + $0x1c8] sm:$0x1]
      %v373 = vld [vmem:[%s202 + $0x1dc] sm:$0x1]
      %v374 = vld [vmem:[%s202 + $0x1f0] sm:$0x1]
      %v375 = vld [vmem:[%s202 + $0x204] sm:$0x1]
      %v376 = vld [vmem:[%s202 + $0x218] sm:$0x1]
      %v377 = vld [vmem:[%s202 + $0x22c] sm:$0x1]
      %v378 = vld [vmem:[%s202 + $0x240] sm:$0x1]
      %v379 = vld [vmem:[%s202 + $0x254] sm:$0x1]
      %v380 = vld [vmem:[%s202 + $0x268] sm:$0x1]
      %v381 = vld [vmem:[%s202 + $0x27c] sm:$0x1]
      %vm382 = vsmask.f32 3328
      %vm383 = vsmask.f32 7440
      %vm384 = vmor %vm382, %vm383
      %v386 = vshrl.u32 %v216, 16
      %v388 = vrot.slane %v386, 4
      %v389 = vshll.u32 %v216, 16
      %v391 = vrot.slane %v389, 5
      %v392 = vor.u32 %v388, %v391
      %v393 = vrot.slane %v392, 4
      %v395 = vshll.u32 %v217, 16
      %v397 = vrot.slane %v395, 5
      %v398 = vsel %vm384, %v393, %v397
      %v399 = vshrl.u32 %v217, 16
      %v401 = vrot.slane %v399, 4
      %v402 = vor.u32 %v401, %v397
      %v403 = vrot.slane %v402, 4
      %v405 = vshll.u32 %v218, 16
      %v407 = vrot.slane %v405, 5
      %v408 = vsel %vm384, %v403, %v407
      %v409 = vshrl.u32 %v218, 16
      %v411 = vrot.slane %v409, 4
      %v412 = vor.u32 %v411, %v407
      %v413 = vrot.slane %v412, 4
      %v415 = vshll.u32 %v219, 16
      %v417 = vrot.slane %v415, 5
      %v418 = vsel %vm384, %v413, %v417
      %v419 = vshrl.u32 %v219, 16
      %v421 = vrot.slane %v419, 4
      %v422 = vor.u32 %v421, %v417
      %v423 = vrot.slane %v422, 4
      %v425 = vshll.u32 %v350, 16
      %v427 = vrot.slane %v425, 5
      %v428 = vsel %vm384, %v423, %v427
      %v430 = vshrl.u32 %v220, 16
      %v432 = vrot.slane %v430, 4
      %v433 = vshll.u32 %v220, 16
      %v435 = vrot.slane %v433, 5
      %v436 = vor.u32 %v432, %v435
      %v437 = vrot.slane %v436, 4
      %v439 = vshll.u32 %v221, 16
      %v441 = vrot.slane %v439, 5
      %v442 = vsel %vm384, %v437, %v441
      %v443 = vshrl.u32 %v221, 16
      %v445 = vrot.slane %v443, 4
      %v446 = vor.u32 %v445, %v441
      %v447 = vrot.slane %v446, 4
      %v449 = vshll.u32 %v222, 16
      %v451 = vrot.slane %v449, 5
      %v452 = vsel %vm384, %v447, %v451
      %v453 = vshrl.u32 %v222, 16
      %v455 = vrot.slane %v453, 4
      %v456 = vor.u32 %v455, %v451
      %v457 = vrot.slane %v456, 4
      %v459 = vshll.u32 %v223, 16
      %v461 = vrot.slane %v459, 5
      %v462 = vsel %vm384, %v457, %v461
      %v463 = vshrl.u32 %v223, 16
      %v465 = vrot.slane %v463, 4
      %v466 = vor.u32 %v465, %v461
      %v467 = vrot.slane %v466, 4
      %v469 = vshll.u32 %v351, 16
      %v471 = vrot.slane %v469, 5
      %v472 = vsel %vm384, %v467, %v471
      %v474 = vshrl.u32 %v224, 16
      %v476 = vrot.slane %v474, 4
      %v477 = vshll.u32 %v224, 16
      %v479 = vrot.slane %v477, 5
      %v480 = vor.u32 %v476, %v479
      %v481 = vrot.slane %v480, 4
      %v483 = vshll.u32 %v225, 16
      %v485 = vrot.slane %v483, 5
      %v486 = vsel %vm384, %v481, %v485
      %v487 = vshrl.u32 %v225, 16
      %v489 = vrot.slane %v487, 4
      %v490 = vor.u32 %v489, %v485
      %v491 = vrot.slane %v490, 4
      %v493 = vshll.u32 %v226, 16
      %v495 = vrot.slane %v493, 5
      %v496 = vsel %vm384, %v491, %v495
      %v497 = vshrl.u32 %v226, 16
      %v499 = vrot.slane %v497, 4
      %v500 = vor.u32 %v499, %v495
      %v501 = vrot.slane %v500, 4
      %v503 = vshll.u32 %v227, 16
      %v505 = vrot.slane %v503, 5
      %v506 = vsel %vm384, %v501, %v505
      %v507 = vshrl.u32 %v227, 16
      %v509 = vrot.slane %v507, 4
      %v510 = vor.u32 %v509, %v505
      %v511 = vrot.slane %v510, 4
      %v513 = vshll.u32 %v352, 16
      %v515 = vrot.slane %v513, 5
      %v516 = vsel %vm384, %v511, %v515
      %v518 = vshrl.u32 %v228, 16
      %v520 = vrot.slane %v518, 4
      %v521 = vshll.u32 %v228, 16
      %v523 = vrot.slane %v521, 5
      %v524 = vor.u32 %v520, %v523
      %v525 = vrot.slane %v524, 4
      %v527 = vshll.u32 %v229, 16
      %v529 = vrot.slane %v527, 5
      %v530 = vsel %vm384, %v525, %v529
      %v531 = vshrl.u32 %v229, 16
      %v533 = vrot.slane %v531, 4
      %v534 = vor.u32 %v533, %v529
      %v535 = vrot.slane %v534, 4
      %v537 = vshll.u32 %v230, 16
      %v539 = vrot.slane %v537, 5
      %v540 = vsel %vm384, %v535, %v539
      %v541 = vshrl.u32 %v230, 16
      %v543 = vrot.slane %v541, 4
      %v544 = vor.u32 %v543, %v539
      %v545 = vrot.slane %v544, 4
      %v547 = vshll.u32 %v231, 16
      %v549 = vrot.slane %v547, 5
      %v550 = vsel %vm384, %v545, %v549
      %v551 = vshrl.u32 %v231, 16
      %v553 = vrot.slane %v551, 4
      %v554 = vor.u32 %v553, %v549
      %v555 = vrot.slane %v554, 4
      %v557 = vshll.u32 %v353, 16
      %v559 = vrot.slane %v557, 5
      %v560 = vsel %vm384, %v555, %v559
      %v562 = vshrl.u32 %v232, 16
      %v564 = vrot.slane %v562, 4
      %v565 = vshll.u32 %v232, 16
      %v567 = vrot.slane %v565, 5
      %v568 = vor.u32 %v564, %v567
      %v569 = vrot.slane %v568, 4
      %v571 = vshll.u32 %v233, 16
      %v573 = vrot.slane %v571, 5
      %v574 = vsel %vm384, %v569, %v573
      %v575 = vshrl.u32 %v233, 16
      %v577 = vrot.slane %v575, 4
      %v578 = vor.u32 %v577, %v573
      %v579 = vrot.slane %v578, 4
      %v581 = vshll.u32 %v234, 16
      %v583 = vrot.slane %v581, 5
      %v584 = vsel %vm384, %v579, %v583
      %v585 = vshrl.u32 %v234, 16
      %v587 = vrot.slane %v585, 4
      %v588 = vor.u32 %v587, %v583
      %v589 = vrot.slane %v588, 4
      %v591 = vshll.u32 %v235, 16
      %v593 = vrot.slane %v591, 5
      %v594 = vsel %vm384, %v589, %v593
      %v595 = vshrl.u32 %v235, 16
      %v597 = vrot.slane %v595, 4
      %v598 = vor.u32 %v597, %v593
      %v599 = vrot.slane %v598, 4
      %v601 = vshll.u32 %v354, 16
      %v603 = vrot.slane %v601, 5
      %v604 = vsel %vm384, %v599, %v603
      %v606 = vshrl.u32 %v236, 16
      %v608 = vrot.slane %v606, 4
      %v609 = vshll.u32 %v236, 16
      %v611 = vrot.slane %v609, 5
      %v612 = vor.u32 %v608, %v611
      %v613 = vrot.slane %v612, 4
      %v615 = vshll.u32 %v237, 16
      %v617 = vrot.slane %v615, 5
      %v618 = vsel %vm384, %v613, %v617
      %v619 = vshrl.u32 %v237, 16
      %v621 = vrot.slane %v619, 4
      %v622 = vor.u32 %v621, %v617
      %v623 = vrot.slane %v622, 4
      %v625 = vshll.u32 %v238, 16
      %v627 = vrot.slane %v625, 5
      %v628 = vsel %vm384, %v623, %v627
      %v629 = vshrl.u32 %v238, 16
      %v631 = vrot.slane %v629, 4
      %v632 = vor.u32 %v631, %v627
      %v633 = vrot.slane %v632, 4
      %v635 = vshll.u32 %v239, 16
      %v637 = vrot.slane %v635, 5
      %v638 = vsel %vm384, %v633, %v637
      %v639 = vshrl.u32 %v239, 16
      %v641 = vrot.slane %v639, 4
      %v642 = vor.u32 %v641, %v637
      %v643 = vrot.slane %v642, 4
      %v645 = vshll.u32 %v355, 16
      %v647 = vrot.slane %v645, 5
      %v648 = vsel %vm384, %v643, %v647
      %v650 = vshrl.u32 %v240, 16
      %v652 = vrot.slane %v650, 4
      %v653 = vshll.u32 %v240, 16
      %v655 = vrot.slane %v653, 5
      %v656 = vor.u32 %v652, %v655
      %v657 = vrot.slane %v656, 4
      %v659 = vshll.u32 %v241, 16
      %v661 = vrot.slane %v659, 5
      %v662 = vsel %vm384, %v657, %v661
      %v663 = vshrl.u32 %v241, 16
      %v665 = vrot.slane %v663, 4
      %v666 = vor.u32 %v665, %v661
      %v667 = vrot.slane %v666, 4
      %v669 = vshll.u32 %v242, 16
      %v671 = vrot.slane %v669, 5
      %v672 = vsel %vm384, %v667, %v671
      %v673 = vshrl.u32 %v242, 16
      %v675 = vrot.slane %v673, 4
      %v676 = vor.u32 %v675, %v671
      %v677 = vrot.slane %v676, 4
      %v679 = vshll.u32 %v243, 16
      %v681 = vrot.slane %v679, 5
      %v682 = vsel %vm384, %v677, %v681
      %v683 = vshrl.u32 %v243, 16
      %v685 = vrot.slane %v683, 4
      %v686 = vor.u32 %v685, %v681
      %v687 = vrot.slane %v686, 4
      %v689 = vshll.u32 %v356, 16
      %v691 = vrot.slane %v689, 5
      %v692 = vsel %vm384, %v687, %v691
      %v694 = vshrl.u32 %v244, 16
      %v696 = vrot.slane %v694, 4
      %v697 = vshll.u32 %v244, 16
      %v699 = vrot.slane %v697, 5
      %v700 = vor.u32 %v696, %v699
      %v701 = vrot.slane %v700, 4
      %v703 = vshll.u32 %v245, 16
      %v705 = vrot.slane %v703, 5
      %v706 = vsel %vm384, %v701, %v705
      %v707 = vshrl.u32 %v245, 16
      %v709 = vrot.slane %v707, 4
      %v710 = vor.u32 %v709, %v705
      %v711 = vrot.slane %v710, 4
      %v713 = vshll.u32 %v246, 16
      %v715 = vrot.slane %v713, 5
      %v716 = vsel %vm384, %v711, %v715
      %v717 = vshrl.u32 %v246, 16
      %v719 = vrot.slane %v717, 4
      %v720 = vor.u32 %v719, %v715
      %v721 = vrot.slane %v720, 4
      %v723 = vshll.u32 %v247, 16
      %v725 = vrot.slane %v723, 5
      %v726 = vsel %vm384, %v721, %v725
      %v727 = vshrl.u32 %v247, 16
      %v729 = vrot.slane %v727, 4
      %v730 = vor.u32 %v729, %v725
      %v731 = vrot.slane %v730, 4
      %v733 = vshll.u32 %v357, 16
      %v735 = vrot.slane %v733, 5
      %v736 = vsel %vm384, %v731, %v735
      %v738 = vshrl.u32 %v248, 16
      %v740 = vrot.slane %v738, 4
      %v741 = vshll.u32 %v248, 16
      %v743 = vrot.slane %v741, 5
      %v744 = vor.u32 %v740, %v743
      %v745 = vrot.slane %v744, 4
      %v747 = vshll.u32 %v249, 16
      %v749 = vrot.slane %v747, 5
      %v750 = vsel %vm384, %v745, %v749
      %v751 = vshrl.u32 %v249, 16
      %v753 = vrot.slane %v751, 4
      %v754 = vor.u32 %v753, %v749
      %v755 = vrot.slane %v754, 4
      %v757 = vshll.u32 %v250, 16
      %v759 = vrot.slane %v757, 5
      %v760 = vsel %vm384, %v755, %v759
      %v761 = vshrl.u32 %v250, 16
      %v763 = vrot.slane %v761, 4
      %v764 = vor.u32 %v763, %v759
      %v765 = vrot.slane %v764, 4
      %v767 = vshll.u32 %v251, 16
      %v769 = vrot.slane %v767, 5
      %v770 = vsel %vm384, %v765, %v769
      %v771 = vshrl.u32 %v251, 16
      %v773 = vrot.slane %v771, 4
      %v774 = vor.u32 %v773, %v769
      %v775 = vrot.slane %v774, 4
      %v777 = vshll.u32 %v358, 16
      %v779 = vrot.slane %v777, 5
      %v780 = vsel %vm384, %v775, %v779
      %v782 = vshrl.u32 %v252, 16
      %v784 = vrot.slane %v782, 4
      %v785 = vshll.u32 %v252, 16
      %v787 = vrot.slane %v785, 5
      %v788 = vor.u32 %v784, %v787
      %v789 = vrot.slane %v788, 4
      %v791 = vshll.u32 %v253, 16
      %v793 = vrot.slane %v791, 5
      %v794 = vsel %vm384, %v789, %v793
      %v795 = vshrl.u32 %v253, 16
      %v797 = vrot.slane %v795, 4
      %v798 = vor.u32 %v797, %v793
      %v799 = vrot.slane %v798, 4
      %v801 = vshll.u32 %v254, 16
      %v803 = vrot.slane %v801, 5
      %v804 = vsel %vm384, %v799, %v803
      %v805 = vshrl.u32 %v254, 16
      %v807 = vrot.slane %v805, 4
      %v808 = vor.u32 %v807, %v803
      %v809 = vrot.slane %v808, 4
      %v811 = vshll.u32 %v255, 16
      %v813 = vrot.slane %v811, 5
      %v814 = vsel %vm384, %v809, %v813
      %v815 = vshrl.u32 %v255, 16
      %v817 = vrot.slane %v815, 4
      %v818 = vor.u32 %v817, %v813
      %v819 = vrot.slane %v818, 4
      %v821 = vshll.u32 %v359, 16
      %v823 = vrot.slane %v821, 5
      %v824 = vsel %vm384, %v819, %v823
      %v826 = vshrl.u32 %v256, 16
      %v828 = vrot.slane %v826, 4
      %v829 = vshll.u32 %v256, 16
      %v831 = vrot.slane %v829, 5
      %v832 = vor.u32 %v828, %v831
      %v833 = vrot.slane %v832, 4
      %v835 = vshll.u32 %v257, 16
      %v837 = vrot.slane %v835, 5
      %v838 = vsel %vm384, %v833, %v837
      %v839 = vshrl.u32 %v257, 16
      %v841 = vrot.slane %v839, 4
      %v842 = vor.u32 %v841, %v837
      %v843 = vrot.slane %v842, 4
      %v845 = vshll.u32 %v258, 16
      %v847 = vrot.slane %v845, 5
      %v848 = vsel %vm384, %v843, %v847
      %v849 = vshrl.u32 %v258, 16
      %v851 = vrot.slane %v849, 4
      %v852 = vor.u32 %v851, %v847
      %v853 = vrot.slane %v852, 4
      %v855 = vshll.u32 %v259, 16
      %v857 = vrot.slane %v855, 5
      %v858 = vsel %vm384, %v853, %v857
      %v859 = vshrl.u32 %v259, 16
      %v861 = vrot.slane %v859, 4
      %v862 = vor.u32 %v861, %v857
      %v863 = vrot.slane %v862, 4
      %v865 = vshll.u32 %v360, 16
      %v867 = vrot.slane %v865, 5
      %v868 = vsel %vm384, %v863, %v867
      %v870 = vshrl.u32 %v260, 16
      %v872 = vrot.slane %v870, 4
      %v873 = vshll.u32 %v260, 16
      %v875 = vrot.slane %v873, 5
      %v876 = vor.u32 %v872, %v875
      %v877 = vrot.slane %v876, 4
      %v879 = vshll.u32 %v261, 16
      %v881 = vrot.slane %v879, 5
      %v882 = vsel %vm384, %v877, %v881
      %v883 = vshrl.u32 %v261, 16
      %v885 = vrot.slane %v883, 4
      %v886 = vor.u32 %v885, %v881
      %v887 = vrot.slane %v886, 4
      %v889 = vshll.u32 %v262, 16
      %v891 = vrot.slane %v889, 5
      %v892 = vsel %vm384, %v887, %v891
      %v893 = vshrl.u32 %v262, 16
      %v895 = vrot.slane %v893, 4
      %v896 = vor.u32 %v895, %v891
      %v897 = vrot.slane %v896, 4
      %v899 = vshll.u32 %v263, 16
      %v901 = vrot.slane %v899, 5
      %v902 = vsel %vm384, %v897, %v901
      %v903 = vshrl.u32 %v263, 16
      %v905 = vrot.slane %v903, 4
      %v906 = vor.u32 %v905, %v901
      %v907 = vrot.slane %v906, 4
      %v909 = vshll.u32 %v361, 16
      %v911 = vrot.slane %v909, 5
      %v912 = vsel %vm384, %v907, %v911
      %v914 = vshrl.u32 %v264, 16
      %v916 = vrot.slane %v914, 4
      %v917 = vshll.u32 %v264, 16
      %v919 = vrot.slane %v917, 5
      %v920 = vor.u32 %v916, %v919
      %v921 = vrot.slane %v920, 4
      %v923 = vshll.u32 %v265, 16
      %v925 = vrot.slane %v923, 5
      %v926 = vsel %vm384, %v921, %v925
      %v927 = vshrl.u32 %v265, 16
      %v929 = vrot.slane %v927, 4
      %v930 = vor.u32 %v929, %v925
      %v931 = vrot.slane %v930, 4
      %v933 = vshll.u32 %v266, 16
      %v935 = vrot.slane %v933, 5
      %v936 = vsel %vm384, %v931, %v935
      %v937 = vshrl.u32 %v266, 16
      %v939 = vrot.slane %v937, 4
      %v940 = vor.u32 %v939, %v935
      %v941 = vrot.slane %v940, 4
      %v943 = vshll.u32 %v267, 16
      %v945 = vrot.slane %v943, 5
      %v946 = vsel %vm384, %v941, %v945
      %v947 = vshrl.u32 %v267, 16
      %v949 = vrot.slane %v947, 4
      %v950 = vor.u32 %v949, %v945
      %v951 = vrot.slane %v950, 4
      %v953 = vshll.u32 %v362, 16
      %v955 = vrot.slane %v953, 5
      %v956 = vsel %vm384, %v951, %v955
      %v958 = vshrl.u32 %v268, 16
      %v960 = vrot.slane %v958, 4
      %v961 = vshll.u32 %v268, 16
      %v963 = vrot.slane %v961, 5
      %v964 = vor.u32 %v960, %v963
      %v965 = vrot.slane %v964, 4
      %v967 = vshll.u32 %v269, 16
      %v969 = vrot.slane %v967, 5
      %v970 = vsel %vm384, %v965, %v969
      %v971 = vshrl.u32 %v269, 16
      %v973 = vrot.slane %v971, 4
      %v974 = vor.u32 %v973, %v969
      %v975 = vrot.slane %v974, 4
      %v977 = vshll.u32 %v270, 16
      %v979 = vrot.slane %v977, 5
      %v980 = vsel %vm384, %v975, %v979
      %v981 = vshrl.u32 %v270, 16
      %v983 = vrot.slane %v981, 4
      %v984 = vor.u32 %v983, %v979
      %v985 = vrot.slane %v984, 4
      %v987 = vshll.u32 %v271, 16
      %v989 = vrot.slane %v987, 5
      %v990 = vsel %vm384, %v985, %v989
      %v991 = vshrl.u32 %v271, 16
      %v993 = vrot.slane %v991, 4
      %v994 = vor.u32 %v993, %v989
      %v995 = vrot.slane %v994, 4
      %v997 = vshll.u32 %v363, 16
      %v999 = vrot.slane %v997, 5
      %v1000 = vsel %vm384, %v995, %v999
      %v1002 = vshrl.u32 %v272, 16
      %v1004 = vrot.slane %v1002, 4
      %v1005 = vshll.u32 %v272, 16
      %v1007 = vrot.slane %v1005, 5
      %v1008 = vor.u32 %v1004, %v1007
      %v1009 = vrot.slane %v1008, 4
      %v1011 = vshll.u32 %v273, 16
      %v1013 = vrot.slane %v1011, 5
      %v1014 = vsel %vm384, %v1009, %v1013
      %v1015 = vshrl.u32 %v273, 16
      %v1017 = vrot.slane %v1015, 4
      %v1018 = vor.u32 %v1017, %v1013
      %v1019 = vrot.slane %v1018, 4
      %v1021 = vshll.u32 %v274, 16
      %v1023 = vrot.slane %v1021, 5
      %v1024 = vsel %vm384, %v1019, %v1023
      %v1025 = vshrl.u32 %v274, 16
      %v1027 = vrot.slane %v1025, 4
      %v1028 = vor.u32 %v1027, %v1023
      %v1029 = vrot.slane %v1028, 4
      %v1031 = vshll.u32 %v275, 16
      %v1033 = vrot.slane %v1031, 5
      %v1034 = vsel %vm384, %v1029, %v1033
      %v1035 = vshrl.u32 %v275, 16
      %v1037 = vrot.slane %v1035, 4
      %v1038 = vor.u32 %v1037, %v1033
      %v1039 = vrot.slane %v1038, 4
      %v1041 = vshll.u32 %v364, 16
      %v1043 = vrot.slane %v1041, 5
      %v1044 = vsel %vm384, %v1039, %v1043
      %v1046 = vshrl.u32 %v276, 16
      %v1048 = vrot.slane %v1046, 4
      %v1049 = vshll.u32 %v276, 16
      %v1051 = vrot.slane %v1049, 5
      %v1052 = vor.u32 %v1048, %v1051
      %v1053 = vrot.slane %v1052, 4
      %v1055 = vshll.u32 %v277, 16
      %v1057 = vrot.slane %v1055, 5
      %v1058 = vsel %vm384, %v1053, %v1057
      %v1059 = vshrl.u32 %v277, 16
      %v1061 = vrot.slane %v1059, 4
      %v1062 = vor.u32 %v1061, %v1057
      %v1063 = vrot.slane %v1062, 4
      %v1065 = vshll.u32 %v278, 16
      %v1067 = vrot.slane %v1065, 5
      %v1068 = vsel %vm384, %v1063, %v1067
      %v1069 = vshrl.u32 %v278, 16
      %v1071 = vrot.slane %v1069, 4
      %v1072 = vor.u32 %v1071, %v1067
      %v1073 = vrot.slane %v1072, 4
      %v1075 = vshll.u32 %v279, 16
      %v1077 = vrot.slane %v1075, 5
      %v1078 = vsel %vm384, %v1073, %v1077
      %v1079 = vshrl.u32 %v279, 16
      %v1081 = vrot.slane %v1079, 4
      %v1082 = vor.u32 %v1081, %v1077
      %v1083 = vrot.slane %v1082, 4
      %v1085 = vshll.u32 %v365, 16
      %v1087 = vrot.slane %v1085, 5
      %v1088 = vsel %vm384, %v1083, %v1087
      %v1090 = vshrl.u32 %v280, 16
      %v1092 = vrot.slane %v1090, 4
      %v1093 = vshll.u32 %v280, 16
      %v1095 = vrot.slane %v1093, 5
      %v1096 = vor.u32 %v1092, %v1095
      %v1097 = vrot.slane %v1096, 4
      %v1099 = vshll.u32 %v281, 16
      %v1101 = vrot.slane %v1099, 5
      %v1102 = vsel %vm384, %v1097, %v1101
      %v1103 = vshrl.u32 %v281, 16
      %v1105 = vrot.slane %v1103, 4
      %v1106 = vor.u32 %v1105, %v1101
      %v1107 = vrot.slane %v1106, 4
      %v1109 = vshll.u32 %v282, 16
      %v1111 = vrot.slane %v1109, 5
      %v1112 = vsel %vm384, %v1107, %v1111
      %v1113 = vshrl.u32 %v282, 16
      %v1115 = vrot.slane %v1113, 4
      %v1116 = vor.u32 %v1115, %v1111
      %v1117 = vrot.slane %v1116, 4
      %v1119 = vshll.u32 %v283, 16
      %v1121 = vrot.slane %v1119, 5
      %v1122 = vsel %vm384, %v1117, %v1121
      %v1123 = vshrl.u32 %v283, 16
      %v1125 = vrot.slane %v1123, 4
      %v1126 = vor.u32 %v1125, %v1121
      %v1127 = vrot.slane %v1126, 4
      %v1129 = vshll.u32 %v366, 16
      %v1131 = vrot.slane %v1129, 5
      %v1132 = vsel %vm384, %v1127, %v1131
      %v1134 = vshrl.u32 %v284, 16
      %v1136 = vrot.slane %v1134, 4
      %v1137 = vshll.u32 %v284, 16
      %v1139 = vrot.slane %v1137, 5
      %v1140 = vor.u32 %v1136, %v1139
      %v1141 = vrot.slane %v1140, 4
      %v1143 = vshll.u32 %v285, 16
      %v1145 = vrot.slane %v1143, 5
      %v1146 = vsel %vm384, %v1141, %v1145
      %v1147 = vshrl.u32 %v285, 16
      %v1149 = vrot.slane %v1147, 4
      %v1150 = vor.u32 %v1149, %v1145
      %v1151 = vrot.slane %v1150, 4
      %v1153 = vshll.u32 %v286, 16
      %v1155 = vrot.slane %v1153, 5
      %v1156 = vsel %vm384, %v1151, %v1155
      %v1157 = vshrl.u32 %v286, 16
      %v1159 = vrot.slane %v1157, 4
      %v1160 = vor.u32 %v1159, %v1155
      %v1161 = vrot.slane %v1160, 4
      %v1163 = vshll.u32 %v287, 16
      %v1165 = vrot.slane %v1163, 5
      %v1166 = vsel %vm384, %v1161, %v1165
      %v1167 = vshrl.u32 %v287, 16
      %v1169 = vrot.slane %v1167, 4
      %v1170 = vor.u32 %v1169, %v1165
      %v1171 = vrot.slane %v1170, 4
      %v1173 = vshll.u32 %v367, 16
      %v1175 = vrot.slane %v1173, 5
      %v1176 = vsel %vm384, %v1171, %v1175
      %v1178 = vshrl.u32 %v288, 16
      %v1180 = vrot.slane %v1178, 4
      %v1181 = vshll.u32 %v288, 16
      %v1183 = vrot.slane %v1181, 5
      %v1184 = vor.u32 %v1180, %v1183
      %v1185 = vrot.slane %v1184, 4
      %v1187 = vshll.u32 %v289, 16
      %v1189 = vrot.slane %v1187, 5
      %v1190 = vsel %vm384, %v1185, %v1189
      %v1191 = vshrl.u32 %v289, 16
      %v1193 = vrot.slane %v1191, 4
      %v1194 = vor.u32 %v1193, %v1189
      %v1195 = vrot.slane %v1194, 4
      %v1197 = vshll.u32 %v290, 16
      %v1199 = vrot.slane %v1197, 5
      %v1200 = vsel %vm384, %v1195, %v1199
      %v1201 = vshrl.u32 %v290, 16
      %v1203 = vrot.slane %v1201, 4
      %v1204 = vor.u32 %v1203, %v1199
      %v1205 = vrot.slane %v1204, 4
      %v1207 = vshll.u32 %v291, 16
      %v1209 = vrot.slane %v1207, 5
      %v1210 = vsel %vm384, %v1205, %v1209
      %v1211 = vshrl.u32 %v291, 16
      %v1213 = vrot.slane %v1211, 4
      %v1214 = vor.u32 %v1213, %v1209
      %v1215 = vrot.slane %v1214, 4
      %v1217 = vshll.u32 %v368, 16
      %v1219 = vrot.slane %v1217, 5
      %v1220 = vsel %vm384, %v1215, %v1219
      %v1222 = vshrl.u32 %v292, 16
      %v1224 = vrot.slane %v1222, 4
      %v1225 = vshll.u32 %v292, 16
      %v1227 = vrot.slane %v1225, 5
      %v1228 = vor.u32 %v1224, %v1227
      %v1229 = vrot.slane %v1228, 4
      %v1231 = vshll.u32 %v293, 16
      %v1233 = vrot.slane %v1231, 5
      %v1234 = vsel %vm384, %v1229, %v1233
      %v1235 = vshrl.u32 %v293, 16
      %v1237 = vrot.slane %v1235, 4
      %v1238 = vor.u32 %v1237, %v1233
      %v1239 = vrot.slane %v1238, 4
      %v1241 = vshll.u32 %v294, 16
      %v1243 = vrot.slane %v1241, 5
      %v1244 = vsel %vm384, %v1239, %v1243
      %v1245 = vshrl.u32 %v294, 16
      %v1247 = vrot.slane %v1245, 4
      %v1248 = vor.u32 %v1247, %v1243
      %v1249 = vrot.slane %v1248, 4
      %v1251 = vshll.u32 %v295, 16
      %v1253 = vrot.slane %v1251, 5
      %v1254 = vsel %vm384, %v1249, %v1253
      %v1255 = vshrl.u32 %v295, 16
      %v1257 = vrot.slane %v1255, 4
      %v1258 = vor.u32 %v1257, %v1253
      %v1259 = vrot.slane %v1258, 4
      %v1261 = vshll.u32 %v369, 16
      %v1263 = vrot.slane %v1261, 5
      %v1264 = vsel %vm384, %v1259, %v1263
      %v1266 = vshrl.u32 %v296, 16
      %v1268 = vrot.slane %v1266, 4
      %v1269 = vshll.u32 %v296, 16
      %v1271 = vrot.slane %v1269, 5
      %v1272 = vor.u32 %v1268, %v1271
      %v1273 = vrot.slane %v1272, 4
      %v1275 = vshll.u32 %v297, 16
      %v1277 = vrot.slane %v1275, 5
      %v1278 = vsel %vm384, %v1273, %v1277
      %v1279 = vshrl.u32 %v297, 16
      %v1281 = vrot.slane %v1279, 4
      %v1282 = vor.u32 %v1281, %v1277
      %v1283 = vrot.slane %v1282, 4
      %v1285 = vshll.u32 %v298, 16
      %v1287 = vrot.slane %v1285, 5
      %v1288 = vsel %vm384, %v1283, %v1287
      %v1289 = vshrl.u32 %v298, 16
      %v1291 = vrot.slane %v1289, 4
      %v1292 = vor.u32 %v1291, %v1287
      %v1293 = vrot.slane %v1292, 4
      %v1295 = vshll.u32 %v299, 16
      %v1297 = vrot.slane %v1295, 5
      %v1298 = vsel %vm384, %v1293, %v1297
      %v1299 = vshrl.u32 %v299, 16
      %v1301 = vrot.slane %v1299, 4
      %v1302 = vor.u32 %v1301, %v1297
      %v1303 = vrot.slane %v1302, 4
      %v1305 = vshll.u32 %v370, 16
      %v1307 = vrot.slane %v1305, 5
      %v1308 = vsel %vm384, %v1303, %v1307
      %v1310 = vshrl.u32 %v300, 16
      %v1312 = vrot.slane %v1310, 4
      %v1313 = vshll.u32 %v300, 16
      %v1315 = vrot.slane %v1313, 5
      %v1316 = vor.u32 %v1312, %v1315
      %v1317 = vrot.slane %v1316, 4
      %v1319 = vshll.u32 %v301, 16
      %v1321 = vrot.slane %v1319, 5
      %v1322 = vsel %vm384, %v1317, %v1321
      %v1323 = vshrl.u32 %v301, 16
      %v1325 = vrot.slane %v1323, 4
      %v1326 = vor.u32 %v1325, %v1321
      %v1327 = vrot.slane %v1326, 4
      %v1329 = vshll.u32 %v302, 16
      %v1331 = vrot.slane %v1329, 5
      %v1332 = vsel %vm384, %v1327, %v1331
      %v1333 = vshrl.u32 %v302, 16
      %v1335 = vrot.slane %v1333, 4
      %v1336 = vor.u32 %v1335, %v1331
      %v1337 = vrot.slane %v1336, 4
      %v1339 = vshll.u32 %v303, 16
      %v1341 = vrot.slane %v1339, 5
      %v1342 = vsel %vm384, %v1337, %v1341
      %v1343 = vshrl.u32 %v303, 16
      %v1345 = vrot.slane %v1343, 4
      %v1346 = vor.u32 %v1345, %v1341
      %v1347 = vrot.slane %v1346, 4
      %v1349 = vshll.u32 %v371, 16
      %v1351 = vrot.slane %v1349, 5
      %v1352 = vsel %vm384, %v1347, %v1351
      %v1354 = vshrl.u32 %v304, 16
      %v1356 = vrot.slane %v1354, 4
      %v1357 = vshll.u32 %v304, 16
      %v1359 = vrot.slane %v1357, 5
      %v1360 = vor.u32 %v1356, %v1359
      %v1361 = vrot.slane %v1360, 4
      %v1363 = vshll.u32 %v305, 16
      %v1365 = vrot.slane %v1363, 5
      %v1366 = vsel %vm384, %v1361, %v1365
      %v1367 = vshrl.u32 %v305, 16
      %v1369 = vrot.slane %v1367, 4
      %v1370 = vor.u32 %v1369, %v1365
      %v1371 = vrot.slane %v1370, 4
      %v1373 = vshll.u32 %v306, 16
      %v1375 = vrot.slane %v1373, 5
      %v1376 = vsel %vm384, %v1371, %v1375
      %v1377 = vshrl.u32 %v306, 16
      %v1379 = vrot.slane %v1377, 4
      %v1380 = vor.u32 %v1379, %v1375
      %v1381 = vrot.slane %v1380, 4
      %v1383 = vshll.u32 %v307, 16
      %v1385 = vrot.slane %v1383, 5
      %v1386 = vsel %vm384, %v1381, %v1385
      %v1387 = vshrl.u32 %v307, 16
      %v1389 = vrot.slane %v1387, 4
      %v1390 = vor.u32 %v1389, %v1385
      %v1391 = vrot.slane %v1390, 4
      %v1393 = vshll.u32 %v372, 16
      %v1395 = vrot.slane %v1393, 5
      %v1396 = vsel %vm384, %v1391, %v1395
      %v1398 = vshrl.u32 %v308, 16
      %v1400 = vrot.slane %v1398, 4
      %v1401 = vshll.u32 %v308, 16
      %v1403 = vrot.slane %v1401, 5
      %v1404 = vor.u32 %v1400, %v1403
      %v1405 = vrot.slane %v1404, 4
      %v1407 = vshll.u32 %v309, 16
      %v1409 = vrot.slane %v1407, 5
      %v1410 = vsel %vm384, %v1405, %v1409
      %v1411 = vshrl.u32 %v309, 16
      %v1413 = vrot.slane %v1411, 4
      %v1414 = vor.u32 %v1413, %v1409
      %v1415 = vrot.slane %v1414, 4
      %v1417 = vshll.u32 %v310, 16
      %v1419 = vrot.slane %v1417, 5
      %v1420 = vsel %vm384, %v1415, %v1419
      %v1421 = vshrl.u32 %v310, 16
      %v1423 = vrot.slane %v1421, 4
      %v1424 = vor.u32 %v1423, %v1419
      %v1425 = vrot.slane %v1424, 4
      %v1427 = vshll.u32 %v311, 16
      %v1429 = vrot.slane %v1427, 5
      %v1430 = vsel %vm384, %v1425, %v1429
      %v1431 = vshrl.u32 %v311, 16
      %v1433 = vrot.slane %v1431, 4
      %v1434 = vor.u32 %v1433, %v1429
      %v1435 = vrot.slane %v1434, 4
      %v1437 = vshll.u32 %v373, 16
      %v1439 = vrot.slane %v1437, 5
      %v1440 = vsel %vm384, %v1435, %v1439
      %v1442 = vshrl.u32 %v312, 16
      %v1444 = vrot.slane %v1442, 4
      %v1445 = vshll.u32 %v312, 16
      %v1447 = vrot.slane %v1445, 5
      %v1448 = vor.u32 %v1444, %v1447
      %v1449 = vrot.slane %v1448, 4
      %v1451 = vshll.u32 %v313, 16
      %v1453 = vrot.slane %v1451, 5
      %v1454 = vsel %vm384, %v1449, %v1453
      %v1455 = vshrl.u32 %v313, 16
      %v1457 = vrot.slane %v1455, 4
      %v1458 = vor.u32 %v1457, %v1453
      %v1459 = vrot.slane %v1458, 4
      %v1461 = vshll.u32 %v314, 16
      %v1463 = vrot.slane %v1461, 5
      %v1464 = vsel %vm384, %v1459, %v1463
      %v1465 = vshrl.u32 %v314, 16
      %v1467 = vrot.slane %v1465, 4
      %v1468 = vor.u32 %v1467, %v1463
      %v1469 = vrot.slane %v1468, 4
      %v1471 = vshll.u32 %v315, 16
      %v1473 = vrot.slane %v1471, 5
      %v1474 = vsel %vm384, %v1469, %v1473
      %v1475 = vshrl.u32 %v315, 16
      %v1477 = vrot.slane %v1475, 4
      %v1478 = vor.u32 %v1477, %v1473
      %v1479 = vrot.slane %v1478, 4
      %v1481 = vshll.u32 %v374, 16
      %v1483 = vrot.slane %v1481, 5
      %v1484 = vsel %vm384, %v1479, %v1483
      %v1486 = vshrl.u32 %v316, 16
      %v1488 = vrot.slane %v1486, 4
      %v1489 = vshll.u32 %v316, 16
      %v1491 = vrot.slane %v1489, 5
      %v1492 = vor.u32 %v1488, %v1491
      %v1493 = vrot.slane %v1492, 4
      %v1495 = vshll.u32 %v317, 16
      %v1497 = vrot.slane %v1495, 5
      %v1498 = vsel %vm384, %v1493, %v1497
      %v1499 = vshrl.u32 %v317, 16
      %v1501 = vrot.slane %v1499, 4
      %v1502 = vor.u32 %v1501, %v1497
      %v1503 = vrot.slane %v1502, 4
      %v1505 = vshll.u32 %v318, 16
      %v1507 = vrot.slane %v1505, 5
      %v1508 = vsel %vm384, %v1503, %v1507
      %v1509 = vshrl.u32 %v318, 16
      %v1511 = vrot.slane %v1509, 4
      %v1512 = vor.u32 %v1511, %v1507
      %v1513 = vrot.slane %v1512, 4
      %v1515 = vshll.u32 %v319, 16
      %v1517 = vrot.slane %v1515, 5
      %v1518 = vsel %vm384, %v1513, %v1517
      %v1519 = vshrl.u32 %v319, 16
      %v1521 = vrot.slane %v1519, 4
      %v1522 = vor.u32 %v1521, %v1517
      %v1523 = vrot.slane %v1522, 4
      %v1525 = vshll.u32 %v375, 16
      %v1527 = vrot.slane %v1525, 5
      %v1528 = vsel %vm384, %v1523, %v1527
      %v1530 = vshrl.u32 %v320, 16
      %v1532 = vrot.slane %v1530, 4
      %v1533 = vshll.u32 %v320, 16
      %v1535 = vrot.slane %v1533, 5
      %v1536 = vor.u32 %v1532, %v1535
      %v1537 = vrot.slane %v1536, 4
      %v1539 = vshll.u32 %v321, 16
      %v1541 = vrot.slane %v1539, 5
      %v1542 = vsel %vm384, %v1537, %v1541
      %v1543 = vshrl.u32 %v321, 16
      %v1545 = vrot.slane %v1543, 4
      %v1546 = vor.u32 %v1545, %v1541
      %v1547 = vrot.slane %v1546, 4
      %v1549 = vshll.u32 %v322, 16
      %v1551 = vrot.slane %v1549, 5
      %v1552 = vsel %vm384, %v1547, %v1551
      %v1553 = vshrl.u32 %v322, 16
      %v1555 = vrot.slane %v1553, 4
      %v1556 = vor.u32 %v1555, %v1551
      %v1557 = vrot.slane %v1556, 4
      %v1559 = vshll.u32 %v323, 16
      %v1561 = vrot.slane %v1559, 5
      %v1562 = vsel %vm384, %v1557, %v1561
      %v1563 = vshrl.u32 %v323, 16
      %v1565 = vrot.slane %v1563, 4
      %v1566 = vor.u32 %v1565, %v1561
      %v1567 = vrot.slane %v1566, 4
      %v1569 = vshll.u32 %v376, 16
      %v1571 = vrot.slane %v1569, 5
      %v1572 = vsel %vm384, %v1567, %v1571
      %v1574 = vshrl.u32 %v324, 16
      %v1576 = vrot.slane %v1574, 4
      %v1577 = vshll.u32 %v324, 16
      %v1579 = vrot.slane %v1577, 5
      %v1580 = vor.u32 %v1576, %v1579
      %v1581 = vrot.slane %v1580, 4
      %v1583 = vshll.u32 %v325, 16
      %v1585 = vrot.slane %v1583, 5
      %v1586 = vsel %vm384, %v1581, %v1585
      %v1587 = vshrl.u32 %v325, 16
      %v1589 = vrot.slane %v1587, 4
      %v1590 = vor.u32 %v1589, %v1585
      %v1591 = vrot.slane %v1590, 4
      %v1593 = vshll.u32 %v326, 16
      %v1595 = vrot.slane %v1593, 5
      %v1596 = vsel %vm384, %v1591, %v1595
      %v1597 = vshrl.u32 %v326, 16
      %v1599 = vrot.slane %v1597, 4
      %v1600 = vor.u32 %v1599, %v1595
      %v1601 = vrot.slane %v1600, 4
      %v1603 = vshll.u32 %v327, 16
      %v1605 = vrot.slane %v1603, 5
      %v1606 = vsel %vm384, %v1601, %v1605
      %v1607 = vshrl.u32 %v327, 16
      %v1609 = vrot.slane %v1607, 4
      %v1610 = vor.u32 %v1609, %v1605
      %v1611 = vrot.slane %v1610, 4
      %v1613 = vshll.u32 %v377, 16
      %v1615 = vrot.slane %v1613, 5
      %v1616 = vsel %vm384, %v1611, %v1615
      %v1618 = vshrl.u32 %v328, 16
      %v1620 = vrot.slane %v1618, 4
      %v1621 = vshll.u32 %v328, 16
      %v1623 = vrot.slane %v1621, 5
      %v1624 = vor.u32 %v1620, %v1623
      %v1625 = vrot.slane %v1624, 4
      %v1627 = vshll.u32 %v329, 16
      %v1629 = vrot.slane %v1627, 5
      %v1630 = vsel %vm384, %v1625, %v1629
      %v1631 = vshrl.u32 %v329, 16
      %v1633 = vrot.slane %v1631, 4
      %v1634 = vor.u32 %v1633, %v1629
      %v1635 = vrot.slane %v1634, 4
      %v1637 = vshll.u32 %v330, 16
      %v1639 = vrot.slane %v1637, 5
      %v1640 = vsel %vm384, %v1635, %v1639
      %v1641 = vshrl.u32 %v330, 16
      %v1643 = vrot.slane %v1641, 4
      %v1644 = vor.u32 %v1643, %v1639
      %v1645 = vrot.slane %v1644, 4
      %v1647 = vshll.u32 %v331, 16
      %v1649 = vrot.slane %v1647, 5
      %v1650 = vsel %vm384, %v1645, %v1649
      %v1651 = vshrl.u32 %v331, 16
      %v1653 = vrot.slane %v1651, 4
      %v1654 = vor.u32 %v1653, %v1649
      %v1655 = vrot.slane %v1654, 4
      %v1657 = vshll.u32 %v378, 16
      %v1659 = vrot.slane %v1657, 5
      %v1660 = vsel %vm384, %v1655, %v1659
      %v1662 = vshrl.u32 %v332, 16
      %v1664 = vrot.slane %v1662, 4
      %v1665 = vshll.u32 %v332, 16
      %v1667 = vrot.slane %v1665, 5
      %v1668 = vor.u32 %v1664, %v1667
      %v1669 = vrot.slane %v1668, 4
      %v1671 = vshll.u32 %v333, 16
      %v1673 = vrot.slane %v1671, 5
      %v1674 = vsel %vm384, %v1669, %v1673
      %v1675 = vshrl.u32 %v333, 16
      %v1677 = vrot.slane %v1675, 4
      %v1678 = vor.u32 %v1677, %v1673
      %v1679 = vrot.slane %v1678, 4
      %v1681 = vshll.u32 %v334, 16
      %v1683 = vrot.slane %v1681, 5
      %v1684 = vsel %vm384, %v1679, %v1683
      %v1685 = vshrl.u32 %v334, 16
      %v1687 = vrot.slane %v1685, 4
      %v1688 = vor.u32 %v1687, %v1683
      %v1689 = vrot.slane %v1688, 4
      %v1691 = vshll.u32 %v335, 16
      %v1693 = vrot.slane %v1691, 5
      %v1694 = vsel %vm384, %v1689, %v1693
      %v1695 = vshrl.u32 %v335, 16
      %v1697 = vrot.slane %v1695, 4
      %v1698 = vor.u32 %v1697, %v1693
      %v1699 = vrot.slane %v1698, 4
      %v1701 = vshll.u32 %v379, 16
      %v1703 = vrot.slane %v1701, 5
      %v1704 = vsel %vm384, %v1699, %v1703
      %v1706 = vshrl.u32 %v336, 16
      %v1708 = vrot.slane %v1706, 4
      %v1709 = vshll.u32 %v336, 16
      %v1711 = vrot.slane %v1709, 5
      %v1712 = vor.u32 %v1708, %v1711
      %v1713 = vrot.slane %v1712, 4
      %v1715 = vshll.u32 %v337, 16
      %v1717 = vrot.slane %v1715, 5
      %v1718 = vsel %vm384, %v1713, %v1717
      %v1719 = vshrl.u32 %v337, 16
      %v1721 = vrot.slane %v1719, 4
      %v1722 = vor.u32 %v1721, %v1717
      %v1723 = vrot.slane %v1722, 4
      %v1725 = vshll.u32 %v338, 16
      %v1727 = vrot.slane %v1725, 5
      %v1728 = vsel %vm384, %v1723, %v1727
      %v1729 = vshrl.u32 %v338, 16
      %v1731 = vrot.slane %v1729, 4
      %v1732 = vor.u32 %v1731, %v1727
      %v1733 = vrot.slane %v1732, 4
      %v1735 = vshll.u32 %v339, 16
      %v1737 = vrot.slane %v1735, 5
      %v1738 = vsel %vm384, %v1733, %v1737
      %v1739 = vshrl.u32 %v339, 16
      %v1741 = vrot.slane %v1739, 4
      %v1742 = vor.u32 %v1741, %v1737
      %v1743 = vrot.slane %v1742, 4
      %v1745 = vshll.u32 %v380, 16
      %v1747 = vrot.slane %v1745, 5
      %v1748 = vsel %vm384, %v1743, %v1747
      %v1750 = vshrl.u32 %v340, 16
      %v1752 = vrot.slane %v1750, 4
      %v1753 = vshll.u32 %v340, 16
      %v1755 = vrot.slane %v1753, 5
      %v1756 = vor.u32 %v1752, %v1755
      %v1757 = vrot.slane %v1756, 4
      %v1759 = vshll.u32 %v341, 16
      %v1761 = vrot.slane %v1759, 5
      %v1762 = vsel %vm384, %v1757, %v1761
      %v1763 = vshrl.u32 %v341, 16
      %v1765 = vrot.slane %v1763, 4
      %v1766 = vor.u32 %v1765, %v1761
      %v1767 = vrot.slane %v1766, 4
      %v1769 = vshll.u32 %v342, 16
      %v1771 = vrot.slane %v1769, 5
      %v1772 = vsel %vm384, %v1767, %v1771
      %v1773 = vshrl.u32 %v342, 16
      %v1775 = vrot.slane %v1773, 4
      %v1776 = vor.u32 %v1775, %v1771
      %v1777 = vrot.slane %v1776, 4
      %v1779 = vshll.u32 %v343, 16
      %v1781 = vrot.slane %v1779, 5
      %v1782 = vsel %vm384, %v1777, %v1781
      %v1783 = vshrl.u32 %v343, 16
      %v1785 = vrot.slane %v1783, 4
      %v1786 = vor.u32 %v1785, %v1781
      %v1787 = vrot.slane %v1786, 4
      %v1789 = vshll.u32 %v381, 16
      %v1791 = vrot.slane %v1789, 5
      %v1792 = vsel %vm384, %v1787, %v1791
      %s1793 = scalar_lea.vmem %s1, 24
      %v1794 = vld [vmem:[%s1793] sm:$0xf]
      %v1795 = vld [vmem:[%s1793 + $0x4] sm:$0xf]
      %v1796 = vld [vmem:[%s1793 + $0x8] sm:$0xf]
      %v1797 = vld [vmem:[%s1793 + $0xc] sm:$0xf]
      %v1798 = vld [vmem:[%s1793 + $0x10] sm:$0xf]
      %v1799 = vld [vmem:[%s1793 + $0x14] sm:$0xf]
      %v1800 = vunpack.c.l.b16 %v398
      %v1801 = vunpack.c.l.b16 %v408
      %v1802 = vunpack.c.l.b16 %v418
      %v1803 = vunpack.c.l.b16 %v428
      %v1804 = vunpack.c.l.b16 %v442
      %v1805 = vunpack.c.l.b16 %v452
      %v1806 = vunpack.c.l.b16 %v462
      %v1807 = vunpack.c.l.b16 %v472
      %v1808 = vunpack.c.l.b16 %v486
      %v1809 = vunpack.c.l.b16 %v496
      %v1810 = vunpack.c.l.b16 %v506
      %v1811 = vunpack.c.l.b16 %v516
      %v1812 = vunpack.c.l.b16 %v530
      %v1813 = vunpack.c.l.b16 %v540
      %v1814 = vunpack.c.l.b16 %v550
      %v1815 = vunpack.c.l.b16 %v560
      %v1816 = vunpack.c.l.b16 %v574
      %v1817 = vunpack.c.l.b16 %v584
      %v1818 = vunpack.c.l.b16 %v594
      %v1819 = vunpack.c.l.b16 %v604
      %v1820 = vunpack.c.l.b16 %v618
      %v1821 = vunpack.c.l.b16 %v628
      %v1822 = vunpack.c.l.b16 %v638
      %v1823 = vunpack.c.l.b16 %v648
      %v1824 = vunpack.c.l.b16 %v662
      %v1825 = vunpack.c.l.b16 %v672
      %v1826 = vunpack.c.l.b16 %v682
      %v1827 = vunpack.c.l.b16 %v692
      %v1828 = vunpack.c.l.b16 %v706
      %v1829 = vunpack.c.l.b16 %v716
      %v1830 = vunpack.c.l.b16 %v726
      %v1831 = vunpack.c.l.b16 %v736
      %v1832 = vunpack.c.l.b16 %v750
      %v1833 = vunpack.c.l.b16 %v760
      %v1834 = vunpack.c.l.b16 %v770
      %v1835 = vunpack.c.l.b16 %v780
      %v1836 = vunpack.c.l.b16 %v794
      %v1837 = vunpack.c.l.b16 %v804
      %v1838 = vunpack.c.l.b16 %v814
      %v1839 = vunpack.c.l.b16 %v824
      %v1840 = vunpack.c.l.b16 %v838
      %v1841 = vunpack.c.l.b16 %v848
      %v1842 = vunpack.c.l.b16 %v858
      %v1843 = vunpack.c.l.b16 %v868
      %v1844 = vunpack.c.l.b16 %v882
      %v1845 = vunpack.c.l.b16 %v892
      %v1846 = vunpack.c.l.b16 %v902
      %v1847 = vunpack.c.l.b16 %v912
      %v1848 = vunpack.c.l.b16 %v926
      %v1849 = vunpack.c.l.b16 %v936
      %v1850 = vunpack.c.l.b16 %v946
      %v1851 = vunpack.c.l.b16 %v956
      %v1852 = vunpack.c.l.b16 %v970
      %v1853 = vunpack.c.l.b16 %v980
      %v1854 = vunpack.c.l.b16 %v990
      %v1855 = vunpack.c.l.b16 %v1000
      %v1856 = vunpack.c.l.b16 %v1014
      %v1857 = vunpack.c.l.b16 %v1024
      %v1858 = vunpack.c.l.b16 %v1034
      %v1859 = vunpack.c.l.b16 %v1044
      %v1860 = vunpack.c.l.b16 %v1058
      %v1861 = vunpack.c.l.b16 %v1068
      %v1862 = vunpack.c.l.b16 %v1078
      %v1863 = vunpack.c.l.b16 %v1088
      %v1864 = vunpack.c.l.b16 %v1102
      %v1865 = vunpack.c.l.b16 %v1112
      %v1866 = vunpack.c.l.b16 %v1122
      %v1867 = vunpack.c.l.b16 %v1132
      %v1868 = vunpack.c.l.b16 %v1146
      %v1869 = vunpack.c.l.b16 %v1156
      %v1870 = vunpack.c.l.b16 %v1166
      %v1871 = vunpack.c.l.b16 %v1176
      %v1872 = vunpack.c.l.b16 %v1190
      %v1873 = vunpack.c.l.b16 %v1200
      %v1874 = vunpack.c.l.b16 %v1210
      %v1875 = vunpack.c.l.b16 %v1220
      %v1876 = vunpack.c.l.b16 %v1234
      %v1877 = vunpack.c.l.b16 %v1244
      %v1878 = vunpack.c.l.b16 %v1254
      %v1879 = vunpack.c.l.b16 %v1264
      %v1880 = vunpack.c.l.b16 %v1278
      %v1881 = vunpack.c.l.b16 %v1288
      %v1882 = vunpack.c.l.b16 %v1298
      %v1883 = vunpack.c.l.b16 %v1308
      %v1884 = vunpack.c.l.b16 %v1322
      %v1885 = vunpack.c.l.b16 %v1332
      %v1886 = vunpack.c.l.b16 %v1342
      %v1887 = vunpack.c.l.b16 %v1352
      %v1888 = vunpack.c.l.b16 %v1366
      %v1889 = vunpack.c.l.b16 %v1376
      %v1890 = vunpack.c.l.b16 %v1386
      %v1891 = vunpack.c.l.b16 %v1396
      %v1892 = vunpack.c.l.b16 %v1410
      %v1893 = vunpack.c.l.b16 %v1420
      %v1894 = vunpack.c.l.b16 %v1430
      %v1895 = vunpack.c.l.b16 %v1440
      %v1896 = vunpack.c.l.b16 %v1454
      %v1897 = vunpack.c.l.b16 %v1464
      %v1898 = vunpack.c.l.b16 %v1474
      %v1899 = vunpack.c.l.b16 %v1484
      %v1900 = vunpack.c.l.b16 %v1498
      %v1901 = vunpack.c.l.b16 %v1508
      %v1902 = vunpack.c.l.b16 %v1518
      %v1903 = vunpack.c.l.b16 %v1528
      %v1904 = vunpack.c.l.b16 %v1542
      %v1905 = vunpack.c.l.b16 %v1552
      %v1906 = vunpack.c.l.b16 %v1562
      %v1907 = vunpack.c.l.b16 %v1572
      %v1908 = vunpack.c.l.b16 %v1586
      %v1909 = vunpack.c.l.b16 %v1596
      %v1910 = vunpack.c.l.b16 %v1606
      %v1911 = vunpack.c.l.b16 %v1616
      %v1912 = vunpack.c.l.b16 %v1630
      %v1913 = vunpack.c.l.b16 %v1640
      %v1914 = vunpack.c.l.b16 %v1650
      %v1915 = vunpack.c.l.b16 %v1660
      %v1916 = vunpack.c.l.b16 %v1674
      %v1917 = vunpack.c.l.b16 %v1684
      %v1918 = vunpack.c.l.b16 %v1694
      %v1919 = vunpack.c.l.b16 %v1704
      %v1920 = vunpack.c.l.b16 %v1718
      %v1921 = vunpack.c.l.b16 %v1728
      %v1922 = vunpack.c.l.b16 %v1738
      %v1923 = vunpack.c.l.b16 %v1748
      %v1924 = vunpack.c.l.b16 %v1762
      %v1925 = vunpack.c.l.b16 %v1772
      %v1926 = vunpack.c.l.b16 %v1782
      %v1927 = vunpack.c.l.b16 %v1792
      %v1928 = vpack.c.b16 %v1801, %v1800
      %v1929 = vpack.c.b16 %v1803, %v1802
      %v1930 = vpack.c.b16 %v1805, %v1804
      %v1931 = vpack.c.b16 %v1807, %v1806
      %v1932 = vpack.c.b16 %v1809, %v1808
      %v1933 = vpack.c.b16 %v1811, %v1810
      %v1934 = vpack.c.b16 %v1813, %v1812
      %v1935 = vpack.c.b16 %v1815, %v1814
      %v1936 = vpack.c.b16 %v1817, %v1816
      %v1937 = vpack.c.b16 %v1819, %v1818
      %v1938 = vpack.c.b16 %v1821, %v1820
      %v1939 = vpack.c.b16 %v1823, %v1822
      %v1940 = vpack.c.b16 %v1825, %v1824
      %v1941 = vpack.c.b16 %v1827, %v1826
      %v1942 = vpack.c.b16 %v1829, %v1828
      %v1943 = vpack.c.b16 %v1831, %v1830
      %v1944 = vpack.c.b16 %v1833, %v1832
      %v1945 = vpack.c.b16 %v1835, %v1834
      %v1946 = vpack.c.b16 %v1837, %v1836
      %v1947 = vpack.c.b16 %v1839, %v1838
      %v1948 = vpack.c.b16 %v1841, %v1840
      %v1949 = vpack.c.b16 %v1843, %v1842
      %v1950 = vpack.c.b16 %v1845, %v1844
      %v1951 = vpack.c.b16 %v1847, %v1846
      %v1952 = vpack.c.b16 %v1849, %v1848
      %v1953 = vpack.c.b16 %v1851, %v1850
      %v1954 = vpack.c.b16 %v1853, %v1852
      %v1955 = vpack.c.b16 %v1855, %v1854
      %v1956 = vpack.c.b16 %v1857, %v1856
      %v1957 = vpack.c.b16 %v1859, %v1858
      %v1958 = vpack.c.b16 %v1861, %v1860
      %v1959 = vpack.c.b16 %v1863, %v1862
      %v1960 = vpack.c.b16 %v1865, %v1864
      %v1961 = vpack.c.b16 %v1867, %v1866
      %v1962 = vpack.c.b16 %v1869, %v1868
      %v1963 = vpack.c.b16 %v1871, %v1870
      %v1964 = vpack.c.b16 %v1873, %v1872
      %v1965 = vpack.c.b16 %v1875, %v1874
      %v1966 = vpack.c.b16 %v1877, %v1876
      %v1967 = vpack.c.b16 %v1879, %v1878
      %v1968 = vpack.c.b16 %v1881, %v1880
      %v1969 = vpack.c.b16 %v1883, %v1882
      %v1970 = vpack.c.b16 %v1885, %v1884
      %v1971 = vpack.c.b16 %v1887, %v1886
      %v1972 = vpack.c.b16 %v1889, %v1888
      %v1973 = vpack.c.b16 %v1891, %v1890
      %v1974 = vpack.c.b16 %v1893, %v1892
      %v1975 = vpack.c.b16 %v1895, %v1894
      %v1976 = vpack.c.b16 %v1897, %v1896
      %v1977 = vpack.c.b16 %v1899, %v1898
      %v1978 = vpack.c.b16 %v1901, %v1900
      %v1979 = vpack.c.b16 %v1903, %v1902
      %v1980 = vpack.c.b16 %v1905, %v1904
      %v1981 = vpack.c.b16 %v1907, %v1906
      %v1982 = vpack.c.b16 %v1909, %v1908
      %v1983 = vpack.c.b16 %v1911, %v1910
      %v1984 = vpack.c.b16 %v1913, %v1912
      %v1985 = vpack.c.b16 %v1915, %v1914
      %v1986 = vpack.c.b16 %v1917, %v1916
      %v1987 = vpack.c.b16 %v1919, %v1918
      %v1988 = vpack.c.b16 %v1921, %v1920
      %v1989 = vpack.c.b16 %v1923, %v1922
      %v1990 = vpack.c.b16 %v1925, %v1924
      %v1991 = vpack.c.b16 %v1927, %v1926
      %v1998 = vunpack.c.l.b16 %v1794
      %v1999 = vunpack.c.l.b16 %v1795
      %v2000 = vunpack.c.l.b16 %v1796
      %v2001 = vunpack.c.l.b16 %v1797
      %v2002 = vunpack.c.l.b16 %v1798
      %v2003 = vunpack.c.l.b16 %v1799
      %v2004 = vpack.c.b16 %v1999, %v1998
      %v2005 = vpack.c.b16 %v2001, %v2000
      %v2006 = vpack.c.b16 %v2003, %v2002
      %vm2010 = vcmask 392192
      %v2012 = vsel %vm2010, %v1928, 0
      %v2015 = vsel %vm2010, %v1929, 0
      %v2018 = vsel %vm2010, %v1930, 0
      %v2021 = vsel %vm2010, %v1931, 0
      %v2024 = vsel %vm2010, %v1932, 0
      %v2027 = vsel %vm2010, %v1933, 0
      %v2030 = vsel %vm2010, %v1934, 0
      %v2033 = vsel %vm2010, %v1935, 0
      %v2036 = vsel %vm2010, %v1936, 0
      %v2039 = vsel %vm2010, %v1937, 0
      %v2042 = vsel %vm2010, %v1938, 0
      %v2045 = vsel %vm2010, %v1939, 0
      %v2048 = vsel %vm2010, %v1940, 0
      %v2051 = vsel %vm2010, %v1941, 0
      %v2054 = vsel %vm2010, %v1942, 0
      %v2057 = vsel %vm2010, %v1943, 0
      %v2060 = vsel %vm2010, %v1944, 0
      %v2063 = vsel %vm2010, %v1945, 0
      %v2066 = vsel %vm2010, %v1946, 0
      %v2069 = vsel %vm2010, %v1947, 0
      %v2072 = vsel %vm2010, %v1948, 0
      %v2075 = vsel %vm2010, %v1949, 0
      %v2078 = vsel %vm2010, %v1950, 0
      %v2081 = vsel %vm2010, %v1951, 0
      %v2084 = vsel %vm2010, %v1952, 0
      %v2087 = vsel %vm2010, %v1953, 0
      %v2090 = vsel %vm2010, %v1954, 0
      %v2093 = vsel %vm2010, %v1955, 0
      %v2096 = vsel %vm2010, %v1956, 0
      %v2099 = vsel %vm2010, %v1957, 0
      %v2102 = vsel %vm2010, %v1958, 0
      %v2105 = vsel %vm2010, %v1959, 0
      %v2108 = vsel %vm2010, %v1960, 0
      %v2111 = vsel %vm2010, %v1961, 0
      %v2114 = vsel %vm2010, %v1962, 0
      %v2117 = vsel %vm2010, %v1963, 0
      %v2120 = vsel %vm2010, %v1964, 0
      %v2123 = vsel %vm2010, %v1965, 0
      %v2126 = vsel %vm2010, %v1966, 0
      %v2129 = vsel %vm2010, %v1967, 0
      %v2132 = vsel %vm2010, %v1968, 0
      %v2135 = vsel %vm2010, %v1969, 0
      %v2138 = vsel %vm2010, %v1970, 0
      %v2141 = vsel %vm2010, %v1971, 0
      %v2144 = vsel %vm2010, %v1972, 0
      %v2147 = vsel %vm2010, %v1973, 0
      %v2150 = vsel %vm2010, %v1974, 0
      %v2153 = vsel %vm2010, %v1975, 0
      %v2156 = vsel %vm2010, %v1976, 0
      %v2159 = vsel %vm2010, %v1977, 0
      %v2162 = vsel %vm2010, %v1978, 0
      %v2165 = vsel %vm2010, %v1979, 0
      %v2168 = vsel %vm2010, %v1980, 0
      %v2171 = vsel %vm2010, %v1981, 0
      %v2174 = vsel %vm2010, %v1982, 0
      %v2177 = vsel %vm2010, %v1983, 0
      %v2180 = vsel %vm2010, %v1984, 0
      %v2183 = vsel %vm2010, %v1985, 0
      %v2186 = vsel %vm2010, %v1986, 0
      %v2189 = vsel %vm2010, %v1987, 0
      %v2192 = vsel %vm2010, %v1988, 0
      %v2195 = vsel %vm2010, %v1989, 0
      %v2198 = vsel %vm2010, %v1990, 0
      %v2201 = vsel %vm2010, %v1991, 0
      %2203 = vmatprep.subr.bf16.mxu0 0
      %2204 = vmatpush1.bf16.msra.mxu0 0
      %2205 = vmatprep.subr.bf16.mxu0 0
      %2206 = vmatpush1.bf16.msra.mxu0 0
      %2207 = vmatprep.subr.bf16.mxu0 0
      %2208 = vmatpush1.bf16.msra.mxu0 0
      %2209 = vmatprep.subr.bf16.mxu0 0
      %2210 = vmatpush1.bf16.msra.mxu0 0
      %2211 = vmatprep.subr.bf16.mxu0 0
      %2212 = vmatpush1.bf16.msra.mxu0 0
      %2213 = vmatprep.subr.bf16.mxu0 0
      %2214 = vmatpush1.bf16.msra.mxu0 %v2006
      %2215 = vmatprep.subr.bf16.mxu0 0
      %2216 = vmatpush1.bf16.msra.mxu0 %v2005
      %2217 = vmatprep.subr.bf16.mxu0 0
      %2218 = vmatpush1.bf16.msra.mxu0 %v2004
      %2219 = vmatprep.subr.bf16.mxu0 0
      %2220 = vmatpush2.bf16.msra.mxu0 0
      %2221 = vmatprep.subr.bf16.mxu0 0
      %2222 = vmatpush2.bf16.msra.mxu0 0
      %2223 = vmatprep.subr.bf16.mxu0 0
      %2224 = vmatpush2.bf16.msra.mxu0 0
      %2225 = vmatprep.subr.bf16.mxu0 0
      %2226 = vmatpush2.bf16.msra.mxu0 0
      %2227 = vmatprep.subr.bf16.mxu0 0
      %2228 = vmatpush2.bf16.msra.mxu0 0
      %2229 = vmatprep.subr.bf16.mxu0 0
      %2230 = vmatpush2.bf16.msra.mxu0 0
      %2231 = vmatprep.subr.bf16.mxu0 0
      %2232 = vmatpush2.bf16.msra.mxu0 0
      %2233 = vmatprep.subr.bf16.mxu0 0
      %2234 = vmatpush2.bf16.msra.mxu0 0
      %2235 = vmatprep.mubr.bf16.mxu0 0
      %2236 = vmatmul.mubr.bf16.gmra.mxu0 %v2012
      %v2237 = vpop.f32.mrf.mxu0
      %v2238 = vadd.f32 0.0, %v2237
      %v2239 = vpop.f32.mrf.mxu0
      %v2240 = vpop.f32.mrf.mxu0
      %v2241 = vadd.f32 0.0, %v2240
      %v2242 = vpop.f32.mrf.mxu0
      %2243 = vmatprep.mubr.bf16.mxu0 0
      %2244 = vmatmul.mubr.bf16.gmra.mxu0 %v2015
      %v2245 = vpop.f32.mrf.mxu0
      %v2246 = vadd.f32 0.0, %v2245
      %v2247 = vpop.f32.mrf.mxu0
      %v2248 = vpop.f32.mrf.mxu0
      %v2249 = vadd.f32 0.0, %v2248
      %v2250 = vpop.f32.mrf.mxu0
      %2251 = vmatprep.mubr.bf16.mxu0 0
      %2252 = vmatmul.mubr.bf16.gmra.mxu0 %v2018
      %v2253 = vpop.f32.mrf.mxu0
      %v2254 = vadd.f32 0.0, %v2253
      %v2255 = vpop.f32.mrf.mxu0
      %v2256 = vpop.f32.mrf.mxu0
      %v2257 = vadd.f32 0.0, %v2256
      %v2258 = vpop.f32.mrf.mxu0
      %2259 = vmatprep.mubr.bf16.mxu0 0
      %2260 = vmatmul.mubr.bf16.gmra.mxu0 %v2021
      %v2261 = vpop.f32.mrf.mxu0
      %v2262 = vadd.f32 0.0, %v2261
      %v2263 = vpop.f32.mrf.mxu0
      %v2264 = vpop.f32.mrf.mxu0
      %v2265 = vadd.f32 0.0, %v2264
      %v2266 = vpop.f32.mrf.mxu0
      %2267 = vmatprep.mubr.bf16.mxu0 0
      %2268 = vmatmul.mubr.bf16.gmra.mxu0 %v2024
      %v2269 = vpop.f32.mrf.mxu0
      %v2270 = vadd.f32 0.0, %v2269
      %v2271 = vpop.f32.mrf.mxu0
      %v2272 = vpop.f32.mrf.mxu0
      %v2273 = vadd.f32 0.0, %v2272
      %v2274 = vpop.f32.mrf.mxu0
      %2275 = vmatprep.mubr.bf16.mxu0 0
      %2276 = vmatmul.mubr.bf16.gmra.mxu0 %v2027
      %v2277 = vpop.f32.mrf.mxu0
      %v2278 = vadd.f32 0.0, %v2277
      %v2279 = vpop.f32.mrf.mxu0
      %v2280 = vpop.f32.mrf.mxu0
      %v2281 = vadd.f32 0.0, %v2280
      %v2282 = vpop.f32.mrf.mxu0
      %2283 = vmatprep.mubr.bf16.mxu0 0
      %2284 = vmatmul.mubr.bf16.gmra.mxu0 %v2030
      %v2285 = vpop.f32.mrf.mxu0
      %v2286 = vadd.f32 0.0, %v2285
      %v2287 = vpop.f32.mrf.mxu0
      %v2288 = vpop.f32.mrf.mxu0
      %v2289 = vadd.f32 0.0, %v2288
      %v2290 = vpop.f32.mrf.mxu0
      %2291 = vmatprep.mubr.bf16.mxu0 0
      %2292 = vmatmul.mubr.bf16.gmra.mxu0 %v2033
      %v2293 = vpop.f32.mrf.mxu0
      %v2294 = vadd.f32 0.0, %v2293
      %v2295 = vpop.f32.mrf.mxu0
      %v2296 = vpop.f32.mrf.mxu0
      %v2297 = vadd.f32 0.0, %v2296
      %v2298 = vpop.f32.mrf.mxu0
      %2299 = vmatprep.mubr.bf16.mxu0 0
      %2300 = vmatmul.mubr.bf16.gmra.mxu0 %v2036
      %v2301 = vpop.f32.mrf.mxu0
      %v2302 = vadd.f32 0.0, %v2301
      %v2303 = vpop.f32.mrf.mxu0
      %v2304 = vpop.f32.mrf.mxu0
      %v2305 = vadd.f32 0.0, %v2304
      %v2306 = vpop.f32.mrf.mxu0
      %2307 = vmatprep.mubr.bf16.mxu0 0
      %2308 = vmatmul.mubr.bf16.gmra.mxu0 %v2039
      %v2309 = vpop.f32.mrf.mxu0
      %v2310 = vadd.f32 0.0, %v2309
      %v2311 = vpop.f32.mrf.mxu0
      %v2312 = vpop.f32.mrf.mxu0
      %v2313 = vadd.f32 0.0, %v2312
      %v2314 = vpop.f32.mrf.mxu0
      %2315 = vmatprep.mubr.bf16.mxu0 0
      %2316 = vmatmul.mubr.bf16.gmra.mxu0 %v2042
      %v2317 = vpop.f32.mrf.mxu0
      %v2318 = vadd.f32 0.0, %v2317
      %v2319 = vpop.f32.mrf.mxu0
      %v2320 = vpop.f32.mrf.mxu0
      %v2321 = vadd.f32 0.0, %v2320
      %v2322 = vpop.f32.mrf.mxu0
      %2323 = vmatprep.mubr.bf16.mxu0 0
      %2324 = vmatmul.mubr.bf16.gmra.mxu0 %v2045
      %v2325 = vpop.f32.mrf.mxu0
      %v2326 = vadd.f32 0.0, %v2325
      %v2327 = vpop.f32.mrf.mxu0
      %v2328 = vpop.f32.mrf.mxu0
      %v2329 = vadd.f32 0.0, %v2328
      %v2330 = vpop.f32.mrf.mxu0
      %2331 = vmatprep.mubr.bf16.mxu0 0
      %2332 = vmatmul.mubr.bf16.gmra.mxu0 %v2048
      %v2333 = vpop.f32.mrf.mxu0
      %v2334 = vadd.f32 0.0, %v2333
      %v2335 = vpop.f32.mrf.mxu0
      %v2336 = vpop.f32.mrf.mxu0
      %v2337 = vadd.f32 0.0, %v2336
      %v2338 = vpop.f32.mrf.mxu0
      %2339 = vmatprep.mubr.bf16.mxu0 0
      %2340 = vmatmul.mubr.bf16.gmra.mxu0 %v2051
      %v2341 = vpop.f32.mrf.mxu0
      %v2342 = vadd.f32 0.0, %v2341
      %v2343 = vpop.f32.mrf.mxu0
      %v2344 = vpop.f32.mrf.mxu0
      %v2345 = vadd.f32 0.0, %v2344
      %v2346 = vpop.f32.mrf.mxu0
      %2347 = vmatprep.mubr.bf16.mxu0 0
      %2348 = vmatmul.mubr.bf16.gmra.mxu0 %v2054
      %v2349 = vpop.f32.mrf.mxu0
      %v2350 = vadd.f32 0.0, %v2349
      %v2351 = vpop.f32.mrf.mxu0
      %v2352 = vpop.f32.mrf.mxu0
      %v2353 = vadd.f32 0.0, %v2352
      %v2354 = vpop.f32.mrf.mxu0
      %2355 = vmatprep.mubr.bf16.mxu0 0
      %2356 = vmatmul.mubr.bf16.gmra.mxu0 %v2057
      %v2357 = vpop.f32.mrf.mxu0
      %v2358 = vadd.f32 0.0, %v2357
      %v2359 = vpop.f32.mrf.mxu0
      %v2360 = vpop.f32.mrf.mxu0
      %v2361 = vadd.f32 0.0, %v2360
      %v2362 = vpop.f32.mrf.mxu0
      %2363 = vmatprep.mubr.bf16.mxu0 0
      %2364 = vmatmul.mubr.bf16.gmra.mxu0 %v2060
      %v2365 = vpop.f32.mrf.mxu0
      %v2366 = vadd.f32 0.0, %v2365
      %v2367 = vpop.f32.mrf.mxu0
      %v2368 = vpop.f32.mrf.mxu0
      %v2369 = vadd.f32 0.0, %v2368
      %v2370 = vpop.f32.mrf.mxu0
      %2371 = vmatprep.mubr.bf16.mxu0 0
      %2372 = vmatmul.mubr.bf16.gmra.mxu0 %v2063
      %v2373 = vpop.f32.mrf.mxu0
      %v2374 = vadd.f32 0.0, %v2373
      %v2375 = vpop.f32.mrf.mxu0
      %v2376 = vpop.f32.mrf.mxu0
      %v2377 = vadd.f32 0.0, %v2376
      %v2378 = vpop.f32.mrf.mxu0
      %2379 = vmatprep.mubr.bf16.mxu0 0
      %2380 = vmatmul.mubr.bf16.gmra.mxu0 %v2066
      %v2381 = vpop.f32.mrf.mxu0
      %v2382 = vadd.f32 0.0, %v2381
      %v2383 = vpop.f32.mrf.mxu0
      %v2384 = vpop.f32.mrf.mxu0
      %v2385 = vadd.f32 0.0, %v2384
      %v2386 = vpop.f32.mrf.mxu0
      %2387 = vmatprep.mubr.bf16.mxu0 0
      %2388 = vmatmul.mubr.bf16.gmra.mxu0 %v2069
      %v2389 = vpop.f32.mrf.mxu0
      %v2390 = vadd.f32 0.0, %v2389
      %v2391 = vpop.f32.mrf.mxu0
      %v2392 = vpop.f32.mrf.mxu0
      %v2393 = vadd.f32 0.0, %v2392
      %v2394 = vpop.f32.mrf.mxu0
      %2395 = vmatprep.mubr.bf16.mxu0 0
      %2396 = vmatmul.mubr.bf16.gmra.mxu0 %v2072
      %v2397 = vpop.f32.mrf.mxu0
      %v2398 = vadd.f32 0.0, %v2397
      %v2399 = vpop.f32.mrf.mxu0
      %v2400 = vpop.f32.mrf.mxu0
      %v2401 = vadd.f32 0.0, %v2400
      %v2402 = vpop.f32.mrf.mxu0
      %2403 = vmatprep.mubr.bf16.mxu0 0
      %2404 = vmatmul.mubr.bf16.gmra.mxu0 %v2075
      %v2405 = vpop.f32.mrf.mxu0
      %v2406 = vadd.f32 0.0, %v2405
      %v2407 = vpop.f32.mrf.mxu0
      %v2408 = vpop.f32.mrf.mxu0
      %v2409 = vadd.f32 0.0, %v2408
      %v2410 = vpop.f32.mrf.mxu0
      %2411 = vmatprep.mubr.bf16.mxu0 0
      %2412 = vmatmul.mubr.bf16.gmra.mxu0 %v2078
      %v2413 = vpop.f32.mrf.mxu0
      %v2414 = vadd.f32 0.0, %v2413
      %v2415 = vpop.f32.mrf.mxu0
      %v2416 = vpop.f32.mrf.mxu0
      %v2417 = vadd.f32 0.0, %v2416
      %v2418 = vpop.f32.mrf.mxu0
      %2419 = vmatprep.mubr.bf16.mxu0 0
      %2420 = vmatmul.mubr.bf16.gmra.mxu0 %v2081
      %v2421 = vpop.f32.mrf.mxu0
      %v2422 = vadd.f32 0.0, %v2421
      %v2423 = vpop.f32.mrf.mxu0
      %v2424 = vpop.f32.mrf.mxu0
      %v2425 = vadd.f32 0.0, %v2424
      %v2426 = vpop.f32.mrf.mxu0
      %2427 = vmatprep.mubr.bf16.mxu0 0
      %2428 = vmatmul.mubr.bf16.gmra.mxu0 %v2084
      %v2429 = vpop.f32.mrf.mxu0
      %v2430 = vadd.f32 0.0, %v2429
      %v2431 = vpop.f32.mrf.mxu0
      %v2432 = vpop.f32.mrf.mxu0
      %v2433 = vadd.f32 0.0, %v2432
      %v2434 = vpop.f32.mrf.mxu0
      %2435 = vmatprep.mubr.bf16.mxu0 0
      %2436 = vmatmul.mubr.bf16.gmra.mxu0 %v2087
      %v2437 = vpop.f32.mrf.mxu0
      %v2438 = vadd.f32 0.0, %v2437
      %v2439 = vpop.f32.mrf.mxu0
      %v2440 = vpop.f32.mrf.mxu0
      %v2441 = vadd.f32 0.0, %v2440
      %v2442 = vpop.f32.mrf.mxu0
      %2443 = vmatprep.mubr.bf16.mxu0 0
      %2444 = vmatmul.mubr.bf16.gmra.mxu0 %v2090
      %v2445 = vpop.f32.mrf.mxu0
      %v2446 = vadd.f32 0.0, %v2445
      %v2447 = vpop.f32.mrf.mxu0
      %v2448 = vpop.f32.mrf.mxu0
      %v2449 = vadd.f32 0.0, %v2448
      %v2450 = vpop.f32.mrf.mxu0
      %2451 = vmatprep.mubr.bf16.mxu0 0
      %2452 = vmatmul.mubr.bf16.gmra.mxu0 %v2093
      %v2453 = vpop.f32.mrf.mxu0
      %v2454 = vadd.f32 0.0, %v2453
      %v2455 = vpop.f32.mrf.mxu0
      %v2456 = vpop.f32.mrf.mxu0
      %v2457 = vadd.f32 0.0, %v2456
      %v2458 = vpop.f32.mrf.mxu0
      %2459 = vmatprep.mubr.bf16.mxu0 0
      %2460 = vmatmul.mubr.bf16.gmra.mxu0 %v2096
      %v2461 = vpop.f32.mrf.mxu0
      %v2462 = vadd.f32 0.0, %v2461
      %v2463 = vpop.f32.mrf.mxu0
      %v2464 = vpop.f32.mrf.mxu0
      %v2465 = vadd.f32 0.0, %v2464
      %v2466 = vpop.f32.mrf.mxu0
      %2467 = vmatprep.mubr.bf16.mxu0 0
      %2468 = vmatmul.mubr.bf16.gmra.mxu0 %v2099
      %v2469 = vpop.f32.mrf.mxu0
      %v2470 = vadd.f32 0.0, %v2469
      %v2471 = vpop.f32.mrf.mxu0
      %v2472 = vpop.f32.mrf.mxu0
      %v2473 = vadd.f32 0.0, %v2472
      %v2474 = vpop.f32.mrf.mxu0
      %2475 = vmatprep.mubr.bf16.mxu0 0
      %2476 = vmatmul.mubr.bf16.gmra.mxu0 %v2102
      %v2477 = vpop.f32.mrf.mxu0
      %v2478 = vadd.f32 0.0, %v2477
      %v2479 = vpop.f32.mrf.mxu0
      %v2480 = vpop.f32.mrf.mxu0
      %v2481 = vadd.f32 0.0, %v2480
      %v2482 = vpop.f32.mrf.mxu0
      %2483 = vmatprep.mubr.bf16.mxu0 0
      %2484 = vmatmul.mubr.bf16.gmra.mxu0 %v2105
      %v2485 = vpop.f32.mrf.mxu0
      %v2486 = vadd.f32 0.0, %v2485
      %v2487 = vpop.f32.mrf.mxu0
      %v2488 = vpop.f32.mrf.mxu0
      %v2489 = vadd.f32 0.0, %v2488
      %v2490 = vpop.f32.mrf.mxu0
      %2491 = vmatprep.mubr.bf16.mxu0 0
      %2492 = vmatmul.mubr.bf16.gmra.mxu0 %v2108
      %v2493 = vpop.f32.mrf.mxu0
      %v2494 = vadd.f32 0.0, %v2493
      %v2495 = vpop.f32.mrf.mxu0
      %v2496 = vpop.f32.mrf.mxu0
      %v2497 = vadd.f32 0.0, %v2496
      %v2498 = vpop.f32.mrf.mxu0
      %2499 = vmatprep.mubr.bf16.mxu0 0
      %2500 = vmatmul.mubr.bf16.gmra.mxu0 %v2111
      %v2501 = vpop.f32.mrf.mxu0
      %v2502 = vadd.f32 0.0, %v2501
      %v2503 = vpop.f32.mrf.mxu0
      %v2504 = vpop.f32.mrf.mxu0
      %v2505 = vadd.f32 0.0, %v2504
      %v2506 = vpop.f32.mrf.mxu0
      %2507 = vmatprep.mubr.bf16.mxu0 0
      %2508 = vmatmul.mubr.bf16.gmra.mxu0 %v2114
      %v2509 = vpop.f32.mrf.mxu0
      %v2510 = vadd.f32 0.0, %v2509
      %v2511 = vpop.f32.mrf.mxu0
      %v2512 = vpop.f32.mrf.mxu0
      %v2513 = vadd.f32 0.0, %v2512
      %v2514 = vpop.f32.mrf.mxu0
      %2515 = vmatprep.mubr.bf16.mxu0 0
      %2516 = vmatmul.mubr.bf16.gmra.mxu0 %v2117
      %v2517 = vpop.f32.mrf.mxu0
      %v2518 = vadd.f32 0.0, %v2517
      %v2519 = vpop.f32.mrf.mxu0
      %v2520 = vpop.f32.mrf.mxu0
      %v2521 = vadd.f32 0.0, %v2520
      %v2522 = vpop.f32.mrf.mxu0
      %2523 = vmatprep.mubr.bf16.mxu0 0
      %2524 = vmatmul.mubr.bf16.gmra.mxu0 %v2120
      %v2525 = vpop.f32.mrf.mxu0
      %v2526 = vadd.f32 0.0, %v2525
      %v2527 = vpop.f32.mrf.mxu0
      %v2528 = vpop.f32.mrf.mxu0
      %v2529 = vadd.f32 0.0, %v2528
      %v2530 = vpop.f32.mrf.mxu0
      %2531 = vmatprep.mubr.bf16.mxu0 0
      %2532 = vmatmul.mubr.bf16.gmra.mxu0 %v2123
      %v2533 = vpop.f32.mrf.mxu0
      %v2534 = vadd.f32 0.0, %v2533
      %v2535 = vpop.f32.mrf.mxu0
      %v2536 = vpop.f32.mrf.mxu0
      %v2537 = vadd.f32 0.0, %v2536
      %v2538 = vpop.f32.mrf.mxu0
      %2539 = vmatprep.mubr.bf16.mxu0 0
      %2540 = vmatmul.mubr.bf16.gmra.mxu0 %v2126
      %v2541 = vpop.f32.mrf.mxu0
      %v2542 = vadd.f32 0.0, %v2541
      %v2543 = vpop.f32.mrf.mxu0
      %v2544 = vpop.f32.mrf.mxu0
      %v2545 = vadd.f32 0.0, %v2544
      %v2546 = vpop.f32.mrf.mxu0
      %2547 = vmatprep.mubr.bf16.mxu0 0
      %2548 = vmatmul.mubr.bf16.gmra.mxu0 %v2129
      %v2549 = vpop.f32.mrf.mxu0
      %v2550 = vadd.f32 0.0, %v2549
      %v2551 = vpop.f32.mrf.mxu0
      %v2552 = vpop.f32.mrf.mxu0
      %v2553 = vadd.f32 0.0, %v2552
      %v2554 = vpop.f32.mrf.mxu0
      %2555 = vmatprep.mubr.bf16.mxu0 0
      %2556 = vmatmul.mubr.bf16.gmra.mxu0 %v2132
      %v2557 = vpop.f32.mrf.mxu0
      %v2558 = vadd.f32 0.0, %v2557
      %v2559 = vpop.f32.mrf.mxu0
      %v2560 = vpop.f32.mrf.mxu0
      %v2561 = vadd.f32 0.0, %v2560
      %v2562 = vpop.f32.mrf.mxu0
      %2563 = vmatprep.mubr.bf16.mxu0 0
      %2564 = vmatmul.mubr.bf16.gmra.mxu0 %v2135
      %v2565 = vpop.f32.mrf.mxu0
      %v2566 = vadd.f32 0.0, %v2565
      %v2567 = vpop.f32.mrf.mxu0
      %v2568 = vpop.f32.mrf.mxu0
      %v2569 = vadd.f32 0.0, %v2568
      %v2570 = vpop.f32.mrf.mxu0
      %2571 = vmatprep.mubr.bf16.mxu0 0
      %2572 = vmatmul.mubr.bf16.gmra.mxu0 %v2138
      %v2573 = vpop.f32.mrf.mxu0
      %v2574 = vadd.f32 0.0, %v2573
      %v2575 = vpop.f32.mrf.mxu0
      %v2576 = vpop.f32.mrf.mxu0
      %v2577 = vadd.f32 0.0, %v2576
      %v2578 = vpop.f32.mrf.mxu0
      %2579 = vmatprep.mubr.bf16.mxu0 0
      %2580 = vmatmul.mubr.bf16.gmra.mxu0 %v2141
      %v2581 = vpop.f32.mrf.mxu0
      %v2582 = vadd.f32 0.0, %v2581
      %v2583 = vpop.f32.mrf.mxu0
      %v2584 = vpop.f32.mrf.mxu0
      %v2585 = vadd.f32 0.0, %v2584
      %v2586 = vpop.f32.mrf.mxu0
      %2587 = vmatprep.mubr.bf16.mxu0 0
      %2588 = vmatmul.mubr.bf16.gmra.mxu0 %v2144
      %v2589 = vpop.f32.mrf.mxu0
      %v2590 = vadd.f32 0.0, %v2589
      %v2591 = vpop.f32.mrf.mxu0
      %v2592 = vpop.f32.mrf.mxu0
      %v2593 = vadd.f32 0.0, %v2592
      %v2594 = vpop.f32.mrf.mxu0
      %2595 = vmatprep.mubr.bf16.mxu0 0
      %2596 = vmatmul.mubr.bf16.gmra.mxu0 %v2147
      %v2597 = vpop.f32.mrf.mxu0
      %v2598 = vadd.f32 0.0, %v2597
      %v2599 = vpop.f32.mrf.mxu0
      %v2600 = vpop.f32.mrf.mxu0
      %v2601 = vadd.f32 0.0, %v2600
      %v2602 = vpop.f32.mrf.mxu0
      %2603 = vmatprep.mubr.bf16.mxu0 0
      %2604 = vmatmul.mubr.bf16.gmra.mxu0 %v2150
      %v2605 = vpop.f32.mrf.mxu0
      %v2606 = vadd.f32 0.0, %v2605
      %v2607 = vpop.f32.mrf.mxu0
      %v2608 = vpop.f32.mrf.mxu0
      %v2609 = vadd.f32 0.0, %v2608
      %v2610 = vpop.f32.mrf.mxu0
      %2611 = vmatprep.mubr.bf16.mxu0 0
      %2612 = vmatmul.mubr.bf16.gmra.mxu0 %v2153
      %v2613 = vpop.f32.mrf.mxu0
      %v2614 = vadd.f32 0.0, %v2613
      %v2615 = vpop.f32.mrf.mxu0
      %v2616 = vpop.f32.mrf.mxu0
      %v2617 = vadd.f32 0.0, %v2616
      %v2618 = vpop.f32.mrf.mxu0
      %2619 = vmatprep.mubr.bf16.mxu0 0
      %2620 = vmatmul.mubr.bf16.gmra.mxu0 %v2156
      %v2621 = vpop.f32.mrf.mxu0
      %v2622 = vadd.f32 0.0, %v2621
      %v2623 = vpop.f32.mrf.mxu0
      %v2624 = vpop.f32.mrf.mxu0
      %v2625 = vadd.f32 0.0, %v2624
      %v2626 = vpop.f32.mrf.mxu0
      %2627 = vmatprep.mubr.bf16.mxu0 0
      %2628 = vmatmul.mubr.bf16.gmra.mxu0 %v2159
      %v2629 = vpop.f32.mrf.mxu0
      %v2630 = vadd.f32 0.0, %v2629
      %v2631 = vpop.f32.mrf.mxu0
      %v2632 = vpop.f32.mrf.mxu0
      %v2633 = vadd.f32 0.0, %v2632
      %v2634 = vpop.f32.mrf.mxu0
      %2635 = vmatprep.mubr.bf16.mxu0 0
      %2636 = vmatmul.mubr.bf16.gmra.mxu0 %v2162
      %v2637 = vpop.f32.mrf.mxu0
      %v2638 = vadd.f32 0.0, %v2637
      %v2639 = vpop.f32.mrf.mxu0
      %v2640 = vpop.f32.mrf.mxu0
      %v2641 = vadd.f32 0.0, %v2640
      %v2642 = vpop.f32.mrf.mxu0
      %2643 = vmatprep.mubr.bf16.mxu0 0
      %2644 = vmatmul.mubr.bf16.gmra.mxu0 %v2165
      %v2645 = vpop.f32.mrf.mxu0
      %v2646 = vadd.f32 0.0, %v2645
      %v2647 = vpop.f32.mrf.mxu0
      %v2648 = vpop.f32.mrf.mxu0
      %v2649 = vadd.f32 0.0, %v2648
      %v2650 = vpop.f32.mrf.mxu0
      %2651 = vmatprep.mubr.bf16.mxu0 0
      %2652 = vmatmul.mubr.bf16.gmra.mxu0 %v2168
      %v2653 = vpop.f32.mrf.mxu0
      %v2654 = vadd.f32 0.0, %v2653
      %v2655 = vpop.f32.mrf.mxu0
      %v2656 = vpop.f32.mrf.mxu0
      %v2657 = vadd.f32 0.0, %v2656
      %v2658 = vpop.f32.mrf.mxu0
      %2659 = vmatprep.mubr.bf16.mxu0 0
      %2660 = vmatmul.mubr.bf16.gmra.mxu0 %v2171
      %v2661 = vpop.f32.mrf.mxu0
      %v2662 = vadd.f32 0.0, %v2661
      %v2663 = vpop.f32.mrf.mxu0
      %v2664 = vpop.f32.mrf.mxu0
      %v2665 = vadd.f32 0.0, %v2664
      %v2666 = vpop.f32.mrf.mxu0
      %2667 = vmatprep.mubr.bf16.mxu0 0
      %2668 = vmatmul.mubr.bf16.gmra.mxu0 %v2174
      %v2669 = vpop.f32.mrf.mxu0
      %v2670 = vadd.f32 0.0, %v2669
      %v2671 = vpop.f32.mrf.mxu0
      %v2672 = vpop.f32.mrf.mxu0
      %v2673 = vadd.f32 0.0, %v2672
      %v2674 = vpop.f32.mrf.mxu0
      %2675 = vmatprep.mubr.bf16.mxu0 0
      %2676 = vmatmul.mubr.bf16.gmra.mxu0 %v2177
      %v2677 = vpop.f32.mrf.mxu0
      %v2678 = vadd.f32 0.0, %v2677
      %v2679 = vpop.f32.mrf.mxu0
      %v2680 = vpop.f32.mrf.mxu0
      %v2681 = vadd.f32 0.0, %v2680
      %v2682 = vpop.f32.mrf.mxu0
      %2683 = vmatprep.mubr.bf16.mxu0 0
      %2684 = vmatmul.mubr.bf16.gmra.mxu0 %v2180
      %v2685 = vpop.f32.mrf.mxu0
      %v2686 = vadd.f32 0.0, %v2685
      %v2687 = vpop.f32.mrf.mxu0
      %v2688 = vpop.f32.mrf.mxu0
      %v2689 = vadd.f32 0.0, %v2688
      %v2690 = vpop.f32.mrf.mxu0
      %2691 = vmatprep.mubr.bf16.mxu0 0
      %2692 = vmatmul.mubr.bf16.gmra.mxu0 %v2183
      %v2693 = vpop.f32.mrf.mxu0
      %v2694 = vadd.f32 0.0, %v2693
      %v2695 = vpop.f32.mrf.mxu0
      %v2696 = vpop.f32.mrf.mxu0
      %v2697 = vadd.f32 0.0, %v2696
      %v2698 = vpop.f32.mrf.mxu0
      %2699 = vmatprep.mubr.bf16.mxu0 0
      %2700 = vmatmul.mubr.bf16.gmra.mxu0 %v2186
      %v2701 = vpop.f32.mrf.mxu0
      %v2702 = vadd.f32 0.0, %v2701
      %v2703 = vpop.f32.mrf.mxu0
      %v2704 = vpop.f32.mrf.mxu0
      %v2705 = vadd.f32 0.0, %v2704
      %v2706 = vpop.f32.mrf.mxu0
      %2707 = vmatprep.mubr.bf16.mxu0 0
      %2708 = vmatmul.mubr.bf16.gmra.mxu0 %v2189
      %v2709 = vpop.f32.mrf.mxu0
      %v2710 = vadd.f32 0.0, %v2709
      %v2711 = vpop.f32.mrf.mxu0
      %v2712 = vpop.f32.mrf.mxu0
      %v2713 = vadd.f32 0.0, %v2712
      %v2714 = vpop.f32.mrf.mxu0
      %2715 = vmatprep.mubr.bf16.mxu0 0
      %2716 = vmatmul.mubr.bf16.gmra.mxu0 %v2192
      %v2717 = vpop.f32.mrf.mxu0
      %v2718 = vadd.f32 0.0, %v2717
      %v2719 = vpop.f32.mrf.mxu0
      %v2720 = vpop.f32.mrf.mxu0
      %v2721 = vadd.f32 0.0, %v2720
      %v2722 = vpop.f32.mrf.mxu0
      %2723 = vmatprep.mubr.bf16.mxu0 0
      %2724 = vmatmul.mubr.bf16.gmra.mxu0 %v2195
      %v2725 = vpop.f32.mrf.mxu0
      %v2726 = vadd.f32 0.0, %v2725
      %v2727 = vpop.f32.mrf.mxu0
      %v2728 = vpop.f32.mrf.mxu0
      %v2729 = vadd.f32 0.0, %v2728
      %v2730 = vpop.f32.mrf.mxu0
      %2731 = vmatprep.mubr.bf16.mxu0 0
      %2732 = vmatmul.mubr.bf16.gmra.mxu0 %v2198
      %v2733 = vpop.f32.mrf.mxu0
      %v2734 = vadd.f32 0.0, %v2733
      %v2735 = vpop.f32.mrf.mxu0
      %v2736 = vpop.f32.mrf.mxu0
      %v2737 = vadd.f32 0.0, %v2736
      %v2738 = vpop.f32.mrf.mxu0
      %2739 = vmatprep.mubr.bf16.mxu0 0
      %2740 = vmatmul.mubr.bf16.gmra.mxu0 %v2201
      %v2741 = vpop.f32.mrf.mxu0
      %v2742 = vadd.f32 0.0, %v2741
      %v2743 = vpop.f32.mrf.mxu0
      %v2744 = vpop.f32.mrf.mxu0
      %v2745 = vadd.f32 0.0, %v2744
      %v2746 = vpop.f32.mrf.mxu0
      %2747 = vdwg.mxu0
      %v2876 = vunpack.c.l.b16 %v216
      %v2877 = vunpack.c.l.b16 %v217
      %v2878 = vunpack.c.l.b16 %v218
      %v2879 = vunpack.c.l.b16 %v219
      %v2880 = vunpack.c.l.b16 %v220
      %v2881 = vunpack.c.l.b16 %v221
      %v2882 = vunpack.c.l.b16 %v222
      %v2883 = vunpack.c.l.b16 %v223
      %v2884 = vunpack.c.l.b16 %v224
      %v2885 = vunpack.c.l.b16 %v225
      %v2886 = vunpack.c.l.b16 %v226
      %v2887 = vunpack.c.l.b16 %v227
      %v2888 = vunpack.c.l.b16 %v228
      %v2889 = vunpack.c.l.b16 %v229
      %v2890 = vunpack.c.l.b16 %v230
      %v2891 = vunpack.c.l.b16 %v231
      %v2892 = vunpack.c.l.b16 %v232
      %v2893 = vunpack.c.l.b16 %v233
      %v2894 = vunpack.c.l.b16 %v234
      %v2895 = vunpack.c.l.b16 %v235
      %v2896 = vunpack.c.l.b16 %v236
      %v2897 = vunpack.c.l.b16 %v237
      %v2898 = vunpack.c.l.b16 %v238
      %v2899 = vunpack.c.l.b16 %v239
      %v2900 = vunpack.c.l.b16 %v240
      %v2901 = vunpack.c.l.b16 %v241
      %v2902 = vunpack.c.l.b16 %v242
      %v2903 = vunpack.c.l.b16 %v243
      %v2904 = vunpack.c.l.b16 %v244
      %v2905 = vunpack.c.l.b16 %v245
      %v2906 = vunpack.c.l.b16 %v246
      %v2907 = vunpack.c.l.b16 %v247
      %v2908 = vunpack.c.l.b16 %v248
      %v2909 = vunpack.c.l.b16 %v249
      %v2910 = vunpack.c.l.b16 %v250
      %v2911 = vunpack.c.l.b16 %v251
      %v2912 = vunpack.c.l.b16 %v252
      %v2913 = vunpack.c.l.b16 %v253
      %v2914 = vunpack.c.l.b16 %v254
      %v2915 = vunpack.c.l.b16 %v255
      %v2916 = vunpack.c.l.b16 %v256
      %v2917 = vunpack.c.l.b16 %v257
      %v2918 = vunpack.c.l.b16 %v258
      %v2919 = vunpack.c.l.b16 %v259
      %v2920 = vunpack.c.l.b16 %v260
      %v2921 = vunpack.c.l.b16 %v261
      %v2922 = vunpack.c.l.b16 %v262
      %v2923 = vunpack.c.l.b16 %v263
      %v2924 = vunpack.c.l.b16 %v264
      %v2925 = vunpack.c.l.b16 %v265
      %v2926 = vunpack.c.l.b16 %v266
      %v2927 = vunpack.c.l.b16 %v267
      %v2928 = vunpack.c.l.b16 %v268
      %v2929 = vunpack.c.l.b16 %v269
      %v2930 = vunpack.c.l.b16 %v270
      %v2931 = vunpack.c.l.b16 %v271
      %v2932 = vunpack.c.l.b16 %v272
      %v2933 = vunpack.c.l.b16 %v273
      %v2934 = vunpack.c.l.b16 %v274
      %v2935 = vunpack.c.l.b16 %v275
      %v2936 = vunpack.c.l.b16 %v276
      %v2937 = vunpack.c.l.b16 %v277
      %v2938 = vunpack.c.l.b16 %v278
      %v2939 = vunpack.c.l.b16 %v279
      %v2940 = vunpack.c.l.b16 %v280
      %v2941 = vunpack.c.l.b16 %v281
      %v2942 = vunpack.c.l.b16 %v282
      %v2943 = vunpack.c.l.b16 %v283
      %v2944 = vunpack.c.l.b16 %v284
      %v2945 = vunpack.c.l.b16 %v285
      %v2946 = vunpack.c.l.b16 %v286
      %v2947 = vunpack.c.l.b16 %v287
      %v2948 = vunpack.c.l.b16 %v288
      %v2949 = vunpack.c.l.b16 %v289
      %v2950 = vunpack.c.l.b16 %v290
      %v2951 = vunpack.c.l.b16 %v291
      %v2952 = vunpack.c.l.b16 %v292
      %v2953 = vunpack.c.l.b16 %v293
      %v2954 = vunpack.c.l.b16 %v294
      %v2955 = vunpack.c.l.b16 %v295
      %v2956 = vunpack.c.l.b16 %v296
      %v2957 = vunpack.c.l.b16 %v297
      %v2958 = vunpack.c.l.b16 %v298
      %v2959 = vunpack.c.l.b16 %v299
      %v2960 = vunpack.c.l.b16 %v300
      %v2961 = vunpack.c.l.b16 %v301
      %v2962 = vunpack.c.l.b16 %v302
      %v2963 = vunpack.c.l.b16 %v303
      %v2964 = vunpack.c.l.b16 %v304
      %v2965 = vunpack.c.l.b16 %v305
      %v2966 = vunpack.c.l.b16 %v306
      %v2967 = vunpack.c.l.b16 %v307
      %v2968 = vunpack.c.l.b16 %v308
      %v2969 = vunpack.c.l.b16 %v309
      %v2970 = vunpack.c.l.b16 %v310
      %v2971 = vunpack.c.l.b16 %v311
      %v2972 = vunpack.c.l.b16 %v312
      %v2973 = vunpack.c.l.b16 %v313
      %v2974 = vunpack.c.l.b16 %v314
      %v2975 = vunpack.c.l.b16 %v315
      %v2976 = vunpack.c.l.b16 %v316
      %v2977 = vunpack.c.l.b16 %v317
      %v2978 = vunpack.c.l.b16 %v318
      %v2979 = vunpack.c.l.b16 %v319
      %v2980 = vunpack.c.l.b16 %v320
      %v2981 = vunpack.c.l.b16 %v321
      %v2982 = vunpack.c.l.b16 %v322
      %v2983 = vunpack.c.l.b16 %v323
      %v2984 = vunpack.c.l.b16 %v324
      %v2985 = vunpack.c.l.b16 %v325
      %v2986 = vunpack.c.l.b16 %v326
      %v2987 = vunpack.c.l.b16 %v327
      %v2988 = vunpack.c.l.b16 %v328
      %v2989 = vunpack.c.l.b16 %v329
      %v2990 = vunpack.c.l.b16 %v330
      %v2991 = vunpack.c.l.b16 %v331
      %v2992 = vunpack.c.l.b16 %v332
      %v2993 = vunpack.c.l.b16 %v333
      %v2994 = vunpack.c.l.b16 %v334
      %v2995 = vunpack.c.l.b16 %v335
      %v2996 = vunpack.c.l.b16 %v336
      %v2997 = vunpack.c.l.b16 %v337
      %v2998 = vunpack.c.l.b16 %v338
      %v2999 = vunpack.c.l.b16 %v339
      %v3000 = vunpack.c.l.b16 %v340
      %v3001 = vunpack.c.l.b16 %v341
      %v3002 = vunpack.c.l.b16 %v342
      %v3003 = vunpack.c.l.b16 %v343
      %v3004 = vpack.c.b16 %v2877, %v2876
      %v3005 = vpack.c.b16 %v2879, %v2878
      %v3006 = vpack.c.b16 %v2881, %v2880
      %v3007 = vpack.c.b16 %v2883, %v2882
      %v3008 = vpack.c.b16 %v2885, %v2884
      %v3009 = vpack.c.b16 %v2887, %v2886
      %v3010 = vpack.c.b16 %v2889, %v2888
      %v3011 = vpack.c.b16 %v2891, %v2890
      %v3012 = vpack.c.b16 %v2893, %v2892
      %v3013 = vpack.c.b16 %v2895, %v2894
      %v3014 = vpack.c.b16 %v2897, %v2896
      %v3015 = vpack.c.b16 %v2899, %v2898
      %v3016 = vpack.c.b16 %v2901, %v2900
      %v3017 = vpack.c.b16 %v2903, %v2902
      %v3018 = vpack.c.b16 %v2905, %v2904
      %v3019 = vpack.c.b16 %v2907, %v2906
      %v3020 = vpack.c.b16 %v2909, %v2908
      %v3021 = vpack.c.b16 %v2911, %v2910
      %v3022 = vpack.c.b16 %v2913, %v2912
      %v3023 = vpack.c.b16 %v2915, %v2914
      %v3024 = vpack.c.b16 %v2917, %v2916
      %v3025 = vpack.c.b16 %v2919, %v2918
      %v3026 = vpack.c.b16 %v2921, %v2920
      %v3027 = vpack.c.b16 %v2923, %v2922
      %v3028 = vpack.c.b16 %v2925, %v2924
      %v3029 = vpack.c.b16 %v2927, %v2926
      %v3030 = vpack.c.b16 %v2929, %v2928
      %v3031 = vpack.c.b16 %v2931, %v2930
      %v3032 = vpack.c.b16 %v2933, %v2932
      %v3033 = vpack.c.b16 %v2935, %v2934
      %v3034 = vpack.c.b16 %v2937, %v2936
      %v3035 = vpack.c.b16 %v2939, %v2938
      %v3036 = vpack.c.b16 %v2941, %v2940
      %v3037 = vpack.c.b16 %v2943, %v2942
      %v3038 = vpack.c.b16 %v2945, %v2944
      %v3039 = vpack.c.b16 %v2947, %v2946
      %v3040 = vpack.c.b16 %v2949, %v2948
      %v3041 = vpack.c.b16 %v2951, %v2950
      %v3042 = vpack.c.b16 %v2953, %v2952
      %v3043 = vpack.c.b16 %v2955, %v2954
      %v3044 = vpack.c.b16 %v2957, %v2956
      %v3045 = vpack.c.b16 %v2959, %v2958
      %v3046 = vpack.c.b16 %v2961, %v2960
      %v3047 = vpack.c.b16 %v2963, %v2962
      %v3048 = vpack.c.b16 %v2965, %v2964
      %v3049 = vpack.c.b16 %v2967, %v2966
      %v3050 = vpack.c.b16 %v2969, %v2968
      %v3051 = vpack.c.b16 %v2971, %v2970
      %v3052 = vpack.c.b16 %v2973, %v2972
      %v3053 = vpack.c.b16 %v2975, %v2974
      %v3054 = vpack.c.b16 %v2977, %v2976
      %v3055 = vpack.c.b16 %v2979, %v2978
      %v3056 = vpack.c.b16 %v2981, %v2980
      %v3057 = vpack.c.b16 %v2983, %v2982
      %v3058 = vpack.c.b16 %v2985, %v2984
      %v3059 = vpack.c.b16 %v2987, %v2986
      %v3060 = vpack.c.b16 %v2989, %v2988
      %v3061 = vpack.c.b16 %v2991, %v2990
      %v3062 = vpack.c.b16 %v2993, %v2992
      %v3063 = vpack.c.b16 %v2995, %v2994
      %v3064 = vpack.c.b16 %v2997, %v2996
      %v3065 = vpack.c.b16 %v2999, %v2998
      %v3066 = vpack.c.b16 %v3001, %v3000
      %v3067 = vpack.c.b16 %v3003, %v3002
      %v3074 = vunpack.c.l.b16 %v344
      %v3075 = vunpack.c.l.b16 %v345
      %v3076 = vunpack.c.l.b16 %v346
      %v3077 = vunpack.c.l.b16 %v347
      %v3078 = vunpack.c.l.b16 %v348
      %v3079 = vunpack.c.l.b16 %v349
      %v3080 = vpack.c.b16 %v3075, %v3074
      %v3081 = vpack.c.b16 %v3077, %v3076
      %v3082 = vpack.c.b16 %v3079, %v3078
      %v3087 = vsel %vm2010, %v3004, 0
      %v3090 = vsel %vm2010, %v3005, 0
      %v3093 = vsel %vm2010, %v3006, 0
      %v3096 = vsel %vm2010, %v3007, 0
      %v3099 = vsel %vm2010, %v3008, 0
      %v3102 = vsel %vm2010, %v3009, 0
      %v3105 = vsel %vm2010, %v3010, 0
      %v3108 = vsel %vm2010, %v3011, 0
      %v3111 = vsel %vm2010, %v3012, 0
      %v3114 = vsel %vm2010, %v3013, 0
      %v3117 = vsel %vm2010, %v3014, 0
      %v3120 = vsel %vm2010, %v3015, 0
      %v3123 = vsel %vm2010, %v3016, 0
      %v3126 = vsel %vm2010, %v3017, 0
      %v3129 = vsel %vm2010, %v3018, 0
      %v3132 = vsel %vm2010, %v3019, 0
      %v3135 = vsel %vm2010, %v3020, 0
      %v3138 = vsel %vm2010, %v3021, 0
      %v3141 = vsel %vm2010, %v3022, 0
      %v3144 = vsel %vm2010, %v3023, 0
      %v3147 = vsel %vm2010, %v3024, 0
      %v3150 = vsel %vm2010, %v3025, 0
      %v3153 = vsel %vm2010, %v3026, 0
      %v3156 = vsel %vm2010, %v3027, 0
      %v3159 = vsel %vm2010, %v3028, 0
      %v3162 = vsel %vm2010, %v3029, 0
      %v3165 = vsel %vm2010, %v3030, 0
      %v3168 = vsel %vm2010, %v3031, 0
      %v3171 = vsel %vm2010, %v3032, 0
      %v3174 = vsel %vm2010, %v3033, 0
      %v3177 = vsel %vm2010, %v3034, 0
      %v3180 = vsel %vm2010, %v3035, 0
      %v3183 = vsel %vm2010, %v3036, 0
      %v3186 = vsel %vm2010, %v3037, 0
      %v3189 = vsel %vm2010, %v3038, 0
      %v3192 = vsel %vm2010, %v3039, 0
      %v3195 = vsel %vm2010, %v3040, 0
      %v3198 = vsel %vm2010, %v3041, 0
      %v3201 = vsel %vm2010, %v3042, 0
      %v3204 = vsel %vm2010, %v3043, 0
      %v3207 = vsel %vm2010, %v3044, 0
      %v3210 = vsel %vm2010, %v3045, 0
      %v3213 = vsel %vm2010, %v3046, 0
      %v3216 = vsel %vm2010, %v3047, 0
      %v3219 = vsel %vm2010, %v3048, 0
      %v3222 = vsel %vm2010, %v3049, 0
      %v3225 = vsel %vm2010, %v3050, 0
      %v3228 = vsel %vm2010, %v3051, 0
      %v3231 = vsel %vm2010, %v3052, 0
      %v3234 = vsel %vm2010, %v3053, 0
      %v3237 = vsel %vm2010, %v3054, 0
      %v3240 = vsel %vm2010, %v3055, 0
      %v3243 = vsel %vm2010, %v3056, 0
      %v3246 = vsel %vm2010, %v3057, 0
      %v3249 = vsel %vm2010, %v3058, 0
      %v3252 = vsel %vm2010, %v3059, 0
      %v3255 = vsel %vm2010, %v3060, 0
      %v3258 = vsel %vm2010, %v3061, 0
      %v3261 = vsel %vm2010, %v3062, 0
      %v3264 = vsel %vm2010, %v3063, 0
      %v3267 = vsel %vm2010, %v3064, 0
      %v3270 = vsel %vm2010, %v3065, 0
      %v3273 = vsel %vm2010, %v3066, 0
      %v3276 = vsel %vm2010, %v3067, 0
      %3278 = vmatprep.subr.bf16.mxu0 0
      %3279 = vmatpush1.bf16.msra.mxu0 0
      %3280 = vmatprep.subr.bf16.mxu0 0
      %3281 = vmatpush1.bf16.msra.mxu0 0
      %3282 = vmatprep.subr.bf16.mxu0 0
      %3283 = vmatpush1.bf16.msra.mxu0 0
      %3284 = vmatprep.subr.bf16.mxu0 0
      %3285 = vmatpush1.bf16.msra.mxu0 0
      %3286 = vmatprep.subr.bf16.mxu0 0
      %3287 = vmatpush1.bf16.msra.mxu0 0
      %3288 = vmatprep.subr.bf16.mxu0 0
      %3289 = vmatpush1.bf16.msra.mxu0 %v3082
      %3290 = vmatprep.subr.bf16.mxu0 0
      %3291 = vmatpush1.bf16.msra.mxu0 %v3081
      %3292 = vmatprep.subr.bf16.mxu0 0
      %3293 = vmatpush1.bf16.msra.mxu0 %v3080
      %3294 = vmatprep.subr.bf16.mxu0 0
      %3295 = vmatpush2.bf16.msra.mxu0 0
      %3296 = vmatprep.subr.bf16.mxu0 0
      %3297 = vmatpush2.bf16.msra.mxu0 0
      %3298 = vmatprep.subr.bf16.mxu0 0
      %3299 = vmatpush2.bf16.msra.mxu0 0
      %3300 = vmatprep.subr.bf16.mxu0 0
      %3301 = vmatpush2.bf16.msra.mxu0 0
      %3302 = vmatprep.subr.bf16.mxu0 0
      %3303 = vmatpush2.bf16.msra.mxu0 0
      %3304 = vmatprep.subr.bf16.mxu0 0
      %3305 = vmatpush2.bf16.msra.mxu0 0
      %3306 = vmatprep.subr.bf16.mxu0 0
      %3307 = vmatpush2.bf16.msra.mxu0 0
      %3308 = vmatprep.subr.bf16.mxu0 0
      %3309 = vmatpush2.bf16.msra.mxu0 0
      %3310 = vmatprep.mubr.bf16.mxu0 0
      %3311 = vmatmul.mubr.bf16.gmra.mxu0 %v3087
      %v3312 = vpop.f32.mrf.mxu0
      %v3313 = vadd.f32 %v2238, %v3312
      %v3314 = vpop.f32.mrf.mxu0
      %v3315 = vpop.f32.mrf.mxu0
      %v3316 = vadd.f32 %v2241, %v3315
      %v3317 = vpop.f32.mrf.mxu0
      %3318 = vmatprep.mubr.bf16.mxu0 0
      %3319 = vmatmul.mubr.bf16.gmra.mxu0 %v3090
      %v3320 = vpop.f32.mrf.mxu0
      %v3321 = vadd.f32 %v2246, %v3320
      %v3322 = vpop.f32.mrf.mxu0
      %v3323 = vpop.f32.mrf.mxu0
      %v3324 = vadd.f32 %v2249, %v3323
      %v3325 = vpop.f32.mrf.mxu0
      %3326 = vmatprep.mubr.bf16.mxu0 0
      %3327 = vmatmul.mubr.bf16.gmra.mxu0 %v3093
      %v3328 = vpop.f32.mrf.mxu0
      %v3329 = vadd.f32 %v2254, %v3328
      %v3330 = vpop.f32.mrf.mxu0
      %v3331 = vpop.f32.mrf.mxu0
      %v3332 = vadd.f32 %v2257, %v3331
      %v3333 = vpop.f32.mrf.mxu0
      %3334 = vmatprep.mubr.bf16.mxu0 0
      %3335 = vmatmul.mubr.bf16.gmra.mxu0 %v3096
      %v3336 = vpop.f32.mrf.mxu0
      %v3337 = vadd.f32 %v2262, %v3336
      %v3338 = vpop.f32.mrf.mxu0
      %v3339 = vpop.f32.mrf.mxu0
      %v3340 = vadd.f32 %v2265, %v3339
      %v3341 = vpop.f32.mrf.mxu0
      %3342 = vmatprep.mubr.bf16.mxu0 0
      %3343 = vmatmul.mubr.bf16.gmra.mxu0 %v3099
      %v3344 = vpop.f32.mrf.mxu0
      %v3345 = vadd.f32 %v2270, %v3344
      %v3346 = vpop.f32.mrf.mxu0
      %v3347 = vpop.f32.mrf.mxu0
      %v3348 = vadd.f32 %v2273, %v3347
      %v3349 = vpop.f32.mrf.mxu0
      %3350 = vmatprep.mubr.bf16.mxu0 0
      %3351 = vmatmul.mubr.bf16.gmra.mxu0 %v3102
      %v3352 = vpop.f32.mrf.mxu0
      %v3353 = vadd.f32 %v2278, %v3352
      %v3354 = vpop.f32.mrf.mxu0
      %v3355 = vpop.f32.mrf.mxu0
      %v3356 = vadd.f32 %v2281, %v3355
      %v3357 = vpop.f32.mrf.mxu0
      %3358 = vmatprep.mubr.bf16.mxu0 0
      %3359 = vmatmul.mubr.bf16.gmra.mxu0 %v3105
      %v3360 = vpop.f32.mrf.mxu0
      %v3361 = vadd.f32 %v2286, %v3360
      %v3362 = vpop.f32.mrf.mxu0
      %v3363 = vpop.f32.mrf.mxu0
      %v3364 = vadd.f32 %v2289, %v3363
      %v3365 = vpop.f32.mrf.mxu0
      %3366 = vmatprep.mubr.bf16.mxu0 0
      %3367 = vmatmul.mubr.bf16.gmra.mxu0 %v3108
      %v3368 = vpop.f32.mrf.mxu0
      %v3369 = vadd.f32 %v2294, %v3368
      %v3370 = vpop.f32.mrf.mxu0
      %v3371 = vpop.f32.mrf.mxu0
      %v3372 = vadd.f32 %v2297, %v3371
      %v3373 = vpop.f32.mrf.mxu0
      %3374 = vmatprep.mubr.bf16.mxu0 0
      %3375 = vmatmul.mubr.bf16.gmra.mxu0 %v3111
      %v3376 = vpop.f32.mrf.mxu0
      %v3377 = vadd.f32 %v2302, %v3376
      %v3378 = vpop.f32.mrf.mxu0
      %v3379 = vpop.f32.mrf.mxu0
      %v3380 = vadd.f32 %v2305, %v3379
      %v3381 = vpop.f32.mrf.mxu0
      %3382 = vmatprep.mubr.bf16.mxu0 0
      %3383 = vmatmul.mubr.bf16.gmra.mxu0 %v3114
      %v3384 = vpop.f32.mrf.mxu0
      %v3385 = vadd.f32 %v2310, %v3384
      %v3386 = vpop.f32.mrf.mxu0
      %v3387 = vpop.f32.mrf.mxu0
      %v3388 = vadd.f32 %v2313, %v3387
      %v3389 = vpop.f32.mrf.mxu0
      %3390 = vmatprep.mubr.bf16.mxu0 0
      %3391 = vmatmul.mubr.bf16.gmra.mxu0 %v3117
      %v3392 = vpop.f32.mrf.mxu0
      %v3393 = vadd.f32 %v2318, %v3392
      %v3394 = vpop.f32.mrf.mxu0
      %v3395 = vpop.f32.mrf.mxu0
      %v3396 = vadd.f32 %v2321, %v3395
      %v3397 = vpop.f32.mrf.mxu0
      %3398 = vmatprep.mubr.bf16.mxu0 0
      %3399 = vmatmul.mubr.bf16.gmra.mxu0 %v3120
      %v3400 = vpop.f32.mrf.mxu0
      %v3401 = vadd.f32 %v2326, %v3400
      %v3402 = vpop.f32.mrf.mxu0
      %v3403 = vpop.f32.mrf.mxu0
      %v3404 = vadd.f32 %v2329, %v3403
      %v3405 = vpop.f32.mrf.mxu0
      %3406 = vmatprep.mubr.bf16.mxu0 0
      %3407 = vmatmul.mubr.bf16.gmra.mxu0 %v3123
      %v3408 = vpop.f32.mrf.mxu0
      %v3409 = vadd.f32 %v2334, %v3408
      %v3410 = vpop.f32.mrf.mxu0
      %v3411 = vpop.f32.mrf.mxu0
      %v3412 = vadd.f32 %v2337, %v3411
      %v3413 = vpop.f32.mrf.mxu0
      %3414 = vmatprep.mubr.bf16.mxu0 0
      %3415 = vmatmul.mubr.bf16.gmra.mxu0 %v3126
      %v3416 = vpop.f32.mrf.mxu0
      %v3417 = vadd.f32 %v2342, %v3416
      %v3418 = vpop.f32.mrf.mxu0
      %v3419 = vpop.f32.mrf.mxu0
      %v3420 = vadd.f32 %v2345, %v3419
      %v3421 = vpop.f32.mrf.mxu0
      %3422 = vmatprep.mubr.bf16.mxu0 0
      %3423 = vmatmul.mubr.bf16.gmra.mxu0 %v3129
      %v3424 = vpop.f32.mrf.mxu0
      %v3425 = vadd.f32 %v2350, %v3424
      %v3426 = vpop.f32.mrf.mxu0
      %v3427 = vpop.f32.mrf.mxu0
      %v3428 = vadd.f32 %v2353, %v3427
      %v3429 = vpop.f32.mrf.mxu0
      %3430 = vmatprep.mubr.bf16.mxu0 0
      %3431 = vmatmul.mubr.bf16.gmra.mxu0 %v3132
      %v3432 = vpop.f32.mrf.mxu0
      %v3433 = vadd.f32 %v2358, %v3432
      %v3434 = vpop.f32.mrf.mxu0
      %v3435 = vpop.f32.mrf.mxu0
      %v3436 = vadd.f32 %v2361, %v3435
      %v3437 = vpop.f32.mrf.mxu0
      %3438 = vmatprep.mubr.bf16.mxu0 0
      %3439 = vmatmul.mubr.bf16.gmra.mxu0 %v3135
      %v3440 = vpop.f32.mrf.mxu0
      %v3441 = vadd.f32 %v2366, %v3440
      %v3442 = vpop.f32.mrf.mxu0
      %v3443 = vpop.f32.mrf.mxu0
      %v3444 = vadd.f32 %v2369, %v3443
      %v3445 = vpop.f32.mrf.mxu0
      %3446 = vmatprep.mubr.bf16.mxu0 0
      %3447 = vmatmul.mubr.bf16.gmra.mxu0 %v3138
      %v3448 = vpop.f32.mrf.mxu0
      %v3449 = vadd.f32 %v2374, %v3448
      %v3450 = vpop.f32.mrf.mxu0
      %v3451 = vpop.f32.mrf.mxu0
      %v3452 = vadd.f32 %v2377, %v3451
      %v3453 = vpop.f32.mrf.mxu0
      %3454 = vmatprep.mubr.bf16.mxu0 0
      %3455 = vmatmul.mubr.bf16.gmra.mxu0 %v3141
      %v3456 = vpop.f32.mrf.mxu0
      %v3457 = vadd.f32 %v2382, %v3456
      %v3458 = vpop.f32.mrf.mxu0
      %v3459 = vpop.f32.mrf.mxu0
      %v3460 = vadd.f32 %v2385, %v3459
      %v3461 = vpop.f32.mrf.mxu0
      %3462 = vmatprep.mubr.bf16.mxu0 0
      %3463 = vmatmul.mubr.bf16.gmra.mxu0 %v3144
      %v3464 = vpop.f32.mrf.mxu0
      %v3465 = vadd.f32 %v2390, %v3464
      %v3466 = vpop.f32.mrf.mxu0
      %v3467 = vpop.f32.mrf.mxu0
      %v3468 = vadd.f32 %v2393, %v3467
      %v3469 = vpop.f32.mrf.mxu0
      %3470 = vmatprep.mubr.bf16.mxu0 0
      %3471 = vmatmul.mubr.bf16.gmra.mxu0 %v3147
      %v3472 = vpop.f32.mrf.mxu0
      %v3473 = vadd.f32 %v2398, %v3472
      %v3474 = vpop.f32.mrf.mxu0
      %v3475 = vpop.f32.mrf.mxu0
      %v3476 = vadd.f32 %v2401, %v3475
      %v3477 = vpop.f32.mrf.mxu0
      %3478 = vmatprep.mubr.bf16.mxu0 0
      %3479 = vmatmul.mubr.bf16.gmra.mxu0 %v3150
      %v3480 = vpop.f32.mrf.mxu0
      %v3481 = vadd.f32 %v2406, %v3480
      %v3482 = vpop.f32.mrf.mxu0
      %v3483 = vpop.f32.mrf.mxu0
      %v3484 = vadd.f32 %v2409, %v3483
      %v3485 = vpop.f32.mrf.mxu0
      %3486 = vmatprep.mubr.bf16.mxu0 0
      %3487 = vmatmul.mubr.bf16.gmra.mxu0 %v3153
      %v3488 = vpop.f32.mrf.mxu0
      %v3489 = vadd.f32 %v2414, %v3488
      %v3490 = vpop.f32.mrf.mxu0
      %v3491 = vpop.f32.mrf.mxu0
      %v3492 = vadd.f32 %v2417, %v3491
      %v3493 = vpop.f32.mrf.mxu0
      %3494 = vmatprep.mubr.bf16.mxu0 0
      %3495 = vmatmul.mubr.bf16.gmra.mxu0 %v3156
      %v3496 = vpop.f32.mrf.mxu0
      %v3497 = vadd.f32 %v2422, %v3496
      %v3498 = vpop.f32.mrf.mxu0
      %v3499 = vpop.f32.mrf.mxu0
      %v3500 = vadd.f32 %v2425, %v3499
      %v3501 = vpop.f32.mrf.mxu0
      %3502 = vmatprep.mubr.bf16.mxu0 0
      %3503 = vmatmul.mubr.bf16.gmra.mxu0 %v3159
      %v3504 = vpop.f32.mrf.mxu0
      %v3505 = vadd.f32 %v2430, %v3504
      %v3506 = vpop.f32.mrf.mxu0
      %v3507 = vpop.f32.mrf.mxu0
      %v3508 = vadd.f32 %v2433, %v3507
      %v3509 = vpop.f32.mrf.mxu0
      %3510 = vmatprep.mubr.bf16.mxu0 0
      %3511 = vmatmul.mubr.bf16.gmra.mxu0 %v3162
      %v3512 = vpop.f32.mrf.mxu0
      %v3513 = vadd.f32 %v2438, %v3512
      %v3514 = vpop.f32.mrf.mxu0
      %v3515 = vpop.f32.mrf.mxu0
      %v3516 = vadd.f32 %v2441, %v3515
      %v3517 = vpop.f32.mrf.mxu0
      %3518 = vmatprep.mubr.bf16.mxu0 0
      %3519 = vmatmul.mubr.bf16.gmra.mxu0 %v3165
      %v3520 = vpop.f32.mrf.mxu0
      %v3521 = vadd.f32 %v2446, %v3520
      %v3522 = vpop.f32.mrf.mxu0
      %v3523 = vpop.f32.mrf.mxu0
      %v3524 = vadd.f32 %v2449, %v3523
      %v3525 = vpop.f32.mrf.mxu0
      %3526 = vmatprep.mubr.bf16.mxu0 0
      %3527 = vmatmul.mubr.bf16.gmra.mxu0 %v3168
      %v3528 = vpop.f32.mrf.mxu0
      %v3529 = vadd.f32 %v2454, %v3528
      %v3530 = vpop.f32.mrf.mxu0
      %v3531 = vpop.f32.mrf.mxu0
      %v3532 = vadd.f32 %v2457, %v3531
      %v3533 = vpop.f32.mrf.mxu0
      %3534 = vmatprep.mubr.bf16.mxu0 0
      %3535 = vmatmul.mubr.bf16.gmra.mxu0 %v3171
      %v3536 = vpop.f32.mrf.mxu0
      %v3537 = vadd.f32 %v2462, %v3536
      %v3538 = vpop.f32.mrf.mxu0
      %v3539 = vpop.f32.mrf.mxu0
      %v3540 = vadd.f32 %v2465, %v3539
      %v3541 = vpop.f32.mrf.mxu0
      %3542 = vmatprep.mubr.bf16.mxu0 0
      %3543 = vmatmul.mubr.bf16.gmra.mxu0 %v3174
      %v3544 = vpop.f32.mrf.mxu0
      %v3545 = vadd.f32 %v2470, %v3544
      %v3546 = vpop.f32.mrf.mxu0
      %v3547 = vpop.f32.mrf.mxu0
      %v3548 = vadd.f32 %v2473, %v3547
      %v3549 = vpop.f32.mrf.mxu0
      %3550 = vmatprep.mubr.bf16.mxu0 0
      %3551 = vmatmul.mubr.bf16.gmra.mxu0 %v3177
      %v3552 = vpop.f32.mrf.mxu0
      %v3553 = vadd.f32 %v2478, %v3552
      %v3554 = vpop.f32.mrf.mxu0
      %v3555 = vpop.f32.mrf.mxu0
      %v3556 = vadd.f32 %v2481, %v3555
      %v3557 = vpop.f32.mrf.mxu0
      %3558 = vmatprep.mubr.bf16.mxu0 0
      %3559 = vmatmul.mubr.bf16.gmra.mxu0 %v3180
      %v3560 = vpop.f32.mrf.mxu0
      %v3561 = vadd.f32 %v2486, %v3560
      %v3562 = vpop.f32.mrf.mxu0
      %v3563 = vpop.f32.mrf.mxu0
      %v3564 = vadd.f32 %v2489, %v3563
      %v3565 = vpop.f32.mrf.mxu0
      %3566 = vmatprep.mubr.bf16.mxu0 0
      %3567 = vmatmul.mubr.bf16.gmra.mxu0 %v3183
      %v3568 = vpop.f32.mrf.mxu0
      %v3569 = vadd.f32 %v2494, %v3568
      %v3570 = vpop.f32.mrf.mxu0
      %v3571 = vpop.f32.mrf.mxu0
      %v3572 = vadd.f32 %v2497, %v3571
      %v3573 = vpop.f32.mrf.mxu0
      %3574 = vmatprep.mubr.bf16.mxu0 0
      %3575 = vmatmul.mubr.bf16.gmra.mxu0 %v3186
      %v3576 = vpop.f32.mrf.mxu0
      %v3577 = vadd.f32 %v2502, %v3576
      %v3578 = vpop.f32.mrf.mxu0
      %v3579 = vpop.f32.mrf.mxu0
      %v3580 = vadd.f32 %v2505, %v3579
      %v3581 = vpop.f32.mrf.mxu0
      %3582 = vmatprep.mubr.bf16.mxu0 0
      %3583 = vmatmul.mubr.bf16.gmra.mxu0 %v3189
      %v3584 = vpop.f32.mrf.mxu0
      %v3585 = vadd.f32 %v2510, %v3584
      %v3586 = vpop.f32.mrf.mxu0
      %v3587 = vpop.f32.mrf.mxu0
      %v3588 = vadd.f32 %v2513, %v3587
      %v3589 = vpop.f32.mrf.mxu0
      %3590 = vmatprep.mubr.bf16.mxu0 0
      %3591 = vmatmul.mubr.bf16.gmra.mxu0 %v3192
      %v3592 = vpop.f32.mrf.mxu0
      %v3593 = vadd.f32 %v2518, %v3592
      %v3594 = vpop.f32.mrf.mxu0
      %v3595 = vpop.f32.mrf.mxu0
      %v3596 = vadd.f32 %v2521, %v3595
      %v3597 = vpop.f32.mrf.mxu0
      %3598 = vmatprep.mubr.bf16.mxu0 0
      %3599 = vmatmul.mubr.bf16.gmra.mxu0 %v3195
      %v3600 = vpop.f32.mrf.mxu0
      %v3601 = vadd.f32 %v2526, %v3600
      %v3602 = vpop.f32.mrf.mxu0
      %v3603 = vpop.f32.mrf.mxu0
      %v3604 = vadd.f32 %v2529, %v3603
      %v3605 = vpop.f32.mrf.mxu0
      %3606 = vmatprep.mubr.bf16.mxu0 0
      %3607 = vmatmul.mubr.bf16.gmra.mxu0 %v3198
      %v3608 = vpop.f32.mrf.mxu0
      %v3609 = vadd.f32 %v2534, %v3608
      %v3610 = vpop.f32.mrf.mxu0
      %v3611 = vpop.f32.mrf.mxu0
      %v3612 = vadd.f32 %v2537, %v3611
      %v3613 = vpop.f32.mrf.mxu0
      %3614 = vmatprep.mubr.bf16.mxu0 0
      %3615 = vmatmul.mubr.bf16.gmra.mxu0 %v3201
      %v3616 = vpop.f32.mrf.mxu0
      %v3617 = vadd.f32 %v2542, %v3616
      %v3618 = vpop.f32.mrf.mxu0
      %v3619 = vpop.f32.mrf.mxu0
      %v3620 = vadd.f32 %v2545, %v3619
      %v3621 = vpop.f32.mrf.mxu0
      %3622 = vmatprep.mubr.bf16.mxu0 0
      %3623 = vmatmul.mubr.bf16.gmra.mxu0 %v3204
      %v3624 = vpop.f32.mrf.mxu0
      %v3625 = vadd.f32 %v2550, %v3624
      %v3626 = vpop.f32.mrf.mxu0
      %v3627 = vpop.f32.mrf.mxu0
      %v3628 = vadd.f32 %v2553, %v3627
      %v3629 = vpop.f32.mrf.mxu0
      %3630 = vmatprep.mubr.bf16.mxu0 0
      %3631 = vmatmul.mubr.bf16.gmra.mxu0 %v3207
      %v3632 = vpop.f32.mrf.mxu0
      %v3633 = vadd.f32 %v2558, %v3632
      %v3634 = vpop.f32.mrf.mxu0
      %v3635 = vpop.f32.mrf.mxu0
      %v3636 = vadd.f32 %v2561, %v3635
      %v3637 = vpop.f32.mrf.mxu0
      %3638 = vmatprep.mubr.bf16.mxu0 0
      %3639 = vmatmul.mubr.bf16.gmra.mxu0 %v3210
      %v3640 = vpop.f32.mrf.mxu0
      %v3641 = vadd.f32 %v2566, %v3640
      %v3642 = vpop.f32.mrf.mxu0
      %v3643 = vpop.f32.mrf.mxu0
      %v3644 = vadd.f32 %v2569, %v3643
      %v3645 = vpop.f32.mrf.mxu0
      %3646 = vmatprep.mubr.bf16.mxu0 0
      %3647 = vmatmul.mubr.bf16.gmra.mxu0 %v3213
      %v3648 = vpop.f32.mrf.mxu0
      %v3649 = vadd.f32 %v2574, %v3648
      %v3650 = vpop.f32.mrf.mxu0
      %v3651 = vpop.f32.mrf.mxu0
      %v3652 = vadd.f32 %v2577, %v3651
      %v3653 = vpop.f32.mrf.mxu0
      %3654 = vmatprep.mubr.bf16.mxu0 0
      %3655 = vmatmul.mubr.bf16.gmra.mxu0 %v3216
      %v3656 = vpop.f32.mrf.mxu0
      %v3657 = vadd.f32 %v2582, %v3656
      %v3658 = vpop.f32.mrf.mxu0
      %v3659 = vpop.f32.mrf.mxu0
      %v3660 = vadd.f32 %v2585, %v3659
      %v3661 = vpop.f32.mrf.mxu0
      %3662 = vmatprep.mubr.bf16.mxu0 0
      %3663 = vmatmul.mubr.bf16.gmra.mxu0 %v3219
      %v3664 = vpop.f32.mrf.mxu0
      %v3665 = vadd.f32 %v2590, %v3664
      %v3666 = vpop.f32.mrf.mxu0
      %v3667 = vpop.f32.mrf.mxu0
      %v3668 = vadd.f32 %v2593, %v3667
      %v3669 = vpop.f32.mrf.mxu0
      %3670 = vmatprep.mubr.bf16.mxu0 0
      %3671 = vmatmul.mubr.bf16.gmra.mxu0 %v3222
      %v3672 = vpop.f32.mrf.mxu0
      %v3673 = vadd.f32 %v2598, %v3672
      %v3674 = vpop.f32.mrf.mxu0
      %v3675 = vpop.f32.mrf.mxu0
      %v3676 = vadd.f32 %v2601, %v3675
      %v3677 = vpop.f32.mrf.mxu0
      %3678 = vmatprep.mubr.bf16.mxu0 0
      %3679 = vmatmul.mubr.bf16.gmra.mxu0 %v3225
      %v3680 = vpop.f32.mrf.mxu0
      %v3681 = vadd.f32 %v2606, %v3680
      %v3682 = vpop.f32.mrf.mxu0
      %v3683 = vpop.f32.mrf.mxu0
      %v3684 = vadd.f32 %v2609, %v3683
      %v3685 = vpop.f32.mrf.mxu0
      %3686 = vmatprep.mubr.bf16.mxu0 0
      %3687 = vmatmul.mubr.bf16.gmra.mxu0 %v3228
      %v3688 = vpop.f32.mrf.mxu0
      %v3689 = vadd.f32 %v2614, %v3688
      %v3690 = vpop.f32.mrf.mxu0
      %v3691 = vpop.f32.mrf.mxu0
      %v3692 = vadd.f32 %v2617, %v3691
      %v3693 = vpop.f32.mrf.mxu0
      %3694 = vmatprep.mubr.bf16.mxu0 0
      %3695 = vmatmul.mubr.bf16.gmra.mxu0 %v3231
      %v3696 = vpop.f32.mrf.mxu0
      %v3697 = vadd.f32 %v2622, %v3696
      %v3698 = vpop.f32.mrf.mxu0
      %v3699 = vpop.f32.mrf.mxu0
      %v3700 = vadd.f32 %v2625, %v3699
      %v3701 = vpop.f32.mrf.mxu0
      %3702 = vmatprep.mubr.bf16.mxu0 0
      %3703 = vmatmul.mubr.bf16.gmra.mxu0 %v3234
      %v3704 = vpop.f32.mrf.mxu0
      %v3705 = vadd.f32 %v2630, %v3704
      %v3706 = vpop.f32.mrf.mxu0
      %v3707 = vpop.f32.mrf.mxu0
      %v3708 = vadd.f32 %v2633, %v3707
      %v3709 = vpop.f32.mrf.mxu0
      %3710 = vmatprep.mubr.bf16.mxu0 0
      %3711 = vmatmul.mubr.bf16.gmra.mxu0 %v3237
      %v3712 = vpop.f32.mrf.mxu0
      %v3713 = vadd.f32 %v2638, %v3712
      %v3714 = vpop.f32.mrf.mxu0
      %v3715 = vpop.f32.mrf.mxu0
      %v3716 = vadd.f32 %v2641, %v3715
      %v3717 = vpop.f32.mrf.mxu0
      %3718 = vmatprep.mubr.bf16.mxu0 0
      %3719 = vmatmul.mubr.bf16.gmra.mxu0 %v3240
      %v3720 = vpop.f32.mrf.mxu0
      %v3721 = vadd.f32 %v2646, %v3720
      %v3722 = vpop.f32.mrf.mxu0
      %v3723 = vpop.f32.mrf.mxu0
      %v3724 = vadd.f32 %v2649, %v3723
      %v3725 = vpop.f32.mrf.mxu0
      %3726 = vmatprep.mubr.bf16.mxu0 0
      %3727 = vmatmul.mubr.bf16.gmra.mxu0 %v3243
      %v3728 = vpop.f32.mrf.mxu0
      %v3729 = vadd.f32 %v2654, %v3728
      %v3730 = vpop.f32.mrf.mxu0
      %v3731 = vpop.f32.mrf.mxu0
      %v3732 = vadd.f32 %v2657, %v3731
      %v3733 = vpop.f32.mrf.mxu0
      %3734 = vmatprep.mubr.bf16.mxu0 0
      %3735 = vmatmul.mubr.bf16.gmra.mxu0 %v3246
      %v3736 = vpop.f32.mrf.mxu0
      %v3737 = vadd.f32 %v2662, %v3736
      %v3738 = vpop.f32.mrf.mxu0
      %v3739 = vpop.f32.mrf.mxu0
      %v3740 = vadd.f32 %v2665, %v3739
      %v3741 = vpop.f32.mrf.mxu0
      %3742 = vmatprep.mubr.bf16.mxu0 0
      %3743 = vmatmul.mubr.bf16.gmra.mxu0 %v3249
      %v3744 = vpop.f32.mrf.mxu0
      %v3745 = vadd.f32 %v2670, %v3744
      %v3746 = vpop.f32.mrf.mxu0
      %v3747 = vpop.f32.mrf.mxu0
      %v3748 = vadd.f32 %v2673, %v3747
      %v3749 = vpop.f32.mrf.mxu0
      %3750 = vmatprep.mubr.bf16.mxu0 0
      %3751 = vmatmul.mubr.bf16.gmra.mxu0 %v3252
      %v3752 = vpop.f32.mrf.mxu0
      %v3753 = vadd.f32 %v2678, %v3752
      %v3754 = vpop.f32.mrf.mxu0
      %v3755 = vpop.f32.mrf.mxu0
      %v3756 = vadd.f32 %v2681, %v3755
      %v3757 = vpop.f32.mrf.mxu0
      %3758 = vmatprep.mubr.bf16.mxu0 0
      %3759 = vmatmul.mubr.bf16.gmra.mxu0 %v3255
      %v3760 = vpop.f32.mrf.mxu0
      %v3761 = vadd.f32 %v2686, %v3760
      %v3762 = vpop.f32.mrf.mxu0
      %v3763 = vpop.f32.mrf.mxu0
      %v3764 = vadd.f32 %v2689, %v3763
      %v3765 = vpop.f32.mrf.mxu0
      %3766 = vmatprep.mubr.bf16.mxu0 0
      %3767 = vmatmul.mubr.bf16.gmra.mxu0 %v3258
      %v3768 = vpop.f32.mrf.mxu0
      %v3769 = vadd.f32 %v2694, %v3768
      %v3770 = vpop.f32.mrf.mxu0
      %v3771 = vpop.f32.mrf.mxu0
      %v3772 = vadd.f32 %v2697, %v3771
      %v3773 = vpop.f32.mrf.mxu0
      %3774 = vmatprep.mubr.bf16.mxu0 0
      %3775 = vmatmul.mubr.bf16.gmra.mxu0 %v3261
      %v3776 = vpop.f32.mrf.mxu0
      %v3777 = vadd.f32 %v2702, %v3776
      %v3778 = vpop.f32.mrf.mxu0
      %v3779 = vpop.f32.mrf.mxu0
      %v3780 = vadd.f32 %v2705, %v3779
      %v3781 = vpop.f32.mrf.mxu0
      %3782 = vmatprep.mubr.bf16.mxu0 0
      %3783 = vmatmul.mubr.bf16.gmra.mxu0 %v3264
      %v3784 = vpop.f32.mrf.mxu0
      %v3785 = vadd.f32 %v2710, %v3784
      %v3786 = vpop.f32.mrf.mxu0
      %v3787 = vpop.f32.mrf.mxu0
      %v3788 = vadd.f32 %v2713, %v3787
      %v3789 = vpop.f32.mrf.mxu0
      %3790 = vmatprep.mubr.bf16.mxu0 0
      %3791 = vmatmul.mubr.bf16.gmra.mxu0 %v3267
      %v3792 = vpop.f32.mrf.mxu0
      %v3793 = vadd.f32 %v2718, %v3792
      %v3794 = vpop.f32.mrf.mxu0
      %v3795 = vpop.f32.mrf.mxu0
      %v3796 = vadd.f32 %v2721, %v3795
      %v3797 = vpop.f32.mrf.mxu0
      %3798 = vmatprep.mubr.bf16.mxu0 0
      %3799 = vmatmul.mubr.bf16.gmra.mxu0 %v3270
      %v3800 = vpop.f32.mrf.mxu0
      %v3801 = vadd.f32 %v2726, %v3800
      %v3802 = vpop.f32.mrf.mxu0
      %v3803 = vpop.f32.mrf.mxu0
      %v3804 = vadd.f32 %v2729, %v3803
      %v3805 = vpop.f32.mrf.mxu0
      %3806 = vmatprep.mubr.bf16.mxu0 0
      %3807 = vmatmul.mubr.bf16.gmra.mxu0 %v3273
      %v3808 = vpop.f32.mrf.mxu0
      %v3809 = vadd.f32 %v2734, %v3808
      %v3810 = vpop.f32.mrf.mxu0
      %v3811 = vpop.f32.mrf.mxu0
      %v3812 = vadd.f32 %v2737, %v3811
      %v3813 = vpop.f32.mrf.mxu0
      %3814 = vmatprep.mubr.bf16.mxu0 0
      %3815 = vmatmul.mubr.bf16.gmra.mxu0 %v3276
      %v3816 = vpop.f32.mrf.mxu0
      %v3817 = vadd.f32 %v2742, %v3816
      %v3818 = vpop.f32.mrf.mxu0
      %v3819 = vpop.f32.mrf.mxu0
      %v3820 = vadd.f32 %v2745, %v3819
      %v3821 = vpop.f32.mrf.mxu0
      %3822 = vdwg.mxu0
      %v3823 = vld [vmem:[%s202] sm:$0xe]
      %v3824 = vld [vmem:[%s202 + $0x14] sm:$0xe]
      %v3825 = vld [vmem:[%s202 + $0x28] sm:$0xe]
      %v3826 = vld [vmem:[%s202 + $0x3c] sm:$0xe]
      %v3827 = vld [vmem:[%s202 + $0x50] sm:$0xe]
      %v3828 = vld [vmem:[%s202 + $0x64] sm:$0xe]
      %v3829 = vld [vmem:[%s202 + $0x78] sm:$0xe]
      %v3830 = vld [vmem:[%s202 + $0x8c] sm:$0xe]
      %v3831 = vld [vmem:[%s202 + $0xa0] sm:$0xe]
      %v3832 = vld [vmem:[%s202 + $0xb4] sm:$0xe]
      %v3833 = vld [vmem:[%s202 + $0xc8] sm:$0xe]
      %v3834 = vld [vmem:[%s202 + $0xdc] sm:$0xe]
      %v3835 = vld [vmem:[%s202 + $0xf0] sm:$0xe]
      %v3836 = vld [vmem:[%s202 + $0x104] sm:$0xe]
      %v3837 = vld [vmem:[%s202 + $0x118] sm:$0xe]
      %v3838 = vld [vmem:[%s202 + $0x12c] sm:$0xe]
      %v3839 = vld [vmem:[%s202 + $0x140] sm:$0xe]
      %v3840 = vld [vmem:[%s202 + $0x154] sm:$0xe]
      %v3841 = vld [vmem:[%s202 + $0x168] sm:$0xe]
      %v3842 = vld [vmem:[%s202 + $0x17c] sm:$0xe]
      %v3843 = vld [vmem:[%s202 + $0x190] sm:$0xe]
      %v3844 = vld [vmem:[%s202 + $0x1a4] sm:$0xe]
      %v3845 = vld [vmem:[%s202 + $0x1b8] sm:$0xe]
      %v3846 = vld [vmem:[%s202 + $0x1cc] sm:$0xe]
      %v3847 = vld [vmem:[%s202 + $0x1e0] sm:$0xe]
      %v3848 = vld [vmem:[%s202 + $0x1f4] sm:$0xe]
      %v3849 = vld [vmem:[%s202 + $0x208] sm:$0xe]
      %v3850 = vld [vmem:[%s202 + $0x21c] sm:$0xe]
      %v3851 = vld [vmem:[%s202 + $0x230] sm:$0xe]
      %v3852 = vld [vmem:[%s202 + $0x244] sm:$0xe]
      %v3853 = vld [vmem:[%s202 + $0x258] sm:$0xe]
      %v3854 = vld [vmem:[%s202 + $0x26c] sm:$0xe]
      %vm3919 = vcmask 1042432
      %vm3920 = vcmask 1046532
      %vm3921 = vmor %vm3919, %vm3920
      %v3922 = vrot.slane %v3823, 5
      %v3923 = vrot.slane %v3922, 4
      %v3924 = vrot.slane %v217, 5
      %v3925 = vsel %vm3921, %v3923, %v3924
      %v3926 = vrot.slane %v3924, 4
      %v3927 = vrot.slane %v218, 5
      %v3928 = vsel %vm3921, %v3926, %v3927
      %v3929 = vrot.slane %v3927, 4
      %v3930 = vrot.slane %v219, 5
      %v3931 = vsel %vm3921, %v3929, %v3930
      %v3932 = vrot.slane %v3930, 4
      %v3933 = vrot.slane %v350, 5
      %v3934 = vsel %vm3921, %v3932, %v3933
      %v3935 = vrot.slane %v3824, 5
      %v3936 = vrot.slane %v3935, 4
      %v3937 = vrot.slane %v221, 5
      %v3938 = vsel %vm3921, %v3936, %v3937
      %v3939 = vrot.slane %v3937, 4
      %v3940 = vrot.slane %v222, 5
      %v3941 = vsel %vm3921, %v3939, %v3940
      %v3942 = vrot.slane %v3940, 4
      %v3943 = vrot.slane %v223, 5
      %v3944 = vsel %vm3921, %v3942, %v3943
      %v3945 = vrot.slane %v3943, 4
      %v3946 = vrot.slane %v351, 5
      %v3947 = vsel %vm3921, %v3945, %v3946
      %v3948 = vrot.slane %v3825, 5
      %v3949 = vrot.slane %v3948, 4
      %v3950 = vrot.slane %v225, 5
      %v3951 = vsel %vm3921, %v3949, %v3950
      %v3952 = vrot.slane %v3950, 4
      %v3953 = vrot.slane %v226, 5
      %v3954 = vsel %vm3921, %v3952, %v3953
      %v3955 = vrot.slane %v3953, 4
      %v3956 = vrot.slane %v227, 5
      %v3957 = vsel %vm3921, %v3955, %v3956
      %v3958 = vrot.slane %v3956, 4
      %v3959 = vrot.slane %v352, 5
      %v3960 = vsel %vm3921, %v3958, %v3959
      %v3961 = vrot.slane %v3826, 5
      %v3962 = vrot.slane %v3961, 4
      %v3963 = vrot.slane %v229, 5
      %v3964 = vsel %vm3921, %v3962, %v3963
      %v3965 = vrot.slane %v3963, 4
      %v3966 = vrot.slane %v230, 5
      %v3967 = vsel %vm3921, %v3965, %v3966
      %v3968 = vrot.slane %v3966, 4
      %v3969 = vrot.slane %v231, 5
      %v3970 = vsel %vm3921, %v3968, %v3969
      %v3971 = vrot.slane %v3969, 4
      %v3972 = vrot.slane %v353, 5
      %v3973 = vsel %vm3921, %v3971, %v3972
      %v3974 = vrot.slane %v3827, 5
      %v3975 = vrot.slane %v3974, 4
      %v3976 = vrot.slane %v233, 5
      %v3977 = vsel %vm3921, %v3975, %v3976
      %v3978 = vrot.slane %v3976, 4
      %v3979 = vrot.slane %v234, 5
      %v3980 = vsel %vm3921, %v3978, %v3979
      %v3981 = vrot.slane %v3979, 4
      %v3982 = vrot.slane %v235, 5
      %v3983 = vsel %vm3921, %v3981, %v3982
      %v3984 = vrot.slane %v3982, 4
      %v3985 = vrot.slane %v354, 5
      %v3986 = vsel %vm3921, %v3984, %v3985
      %v3987 = vrot.slane %v3828, 5
      %v3988 = vrot.slane %v3987, 4
      %v3989 = vrot.slane %v237, 5
      %v3990 = vsel %vm3921, %v3988, %v3989
      %v3991 = vrot.slane %v3989, 4
      %v3992 = vrot.slane %v238, 5
      %v3993 = vsel %vm3921, %v3991, %v3992
      %v3994 = vrot.slane %v3992, 4
      %v3995 = vrot.slane %v239, 5
      %v3996 = vsel %vm3921, %v3994, %v3995
      %v3997 = vrot.slane %v3995, 4
      %v3998 = vrot.slane %v355, 5
      %v3999 = vsel %vm3921, %v3997, %v3998
      %v4000 = vrot.slane %v3829, 5
      %v4001 = vrot.slane %v4000, 4
      %v4002 = vrot.slane %v241, 5
      %v4003 = vsel %vm3921, %v4001, %v4002
      %v4004 = vrot.slane %v4002, 4
      %v4005 = vrot.slane %v242, 5
      %v4006 = vsel %vm3921, %v4004, %v4005
      %v4007 = vrot.slane %v4005, 4
      %v4008 = vrot.slane %v243, 5
      %v4009 = vsel %vm3921, %v4007, %v4008
      %v4010 = vrot.slane %v4008, 4
      %v4011 = vrot.slane %v356, 5
      %v4012 = vsel %vm3921, %v4010, %v4011
      %v4013 = vrot.slane %v3830, 5
      %v4014 = vrot.slane %v4013, 4
      %v4015 = vrot.slane %v245, 5
      %v4016 = vsel %vm3921, %v4014, %v4015
      %v4017 = vrot.slane %v4015, 4
      %v4018 = vrot.slane %v246, 5
      %v4019 = vsel %vm3921, %v4017, %v4018
      %v4020 = vrot.slane %v4018, 4
      %v4021 = vrot.slane %v247, 5
      %v4022 = vsel %vm3921, %v4020, %v4021
      %v4023 = vrot.slane %v4021, 4
      %v4024 = vrot.slane %v357, 5
      %v4025 = vsel %vm3921, %v4023, %v4024
      %v4026 = vrot.slane %v3831, 5
      %v4027 = vrot.slane %v4026, 4
      %v4028 = vrot.slane %v249, 5
      %v4029 = vsel %vm3921, %v4027, %v4028
      %v4030 = vrot.slane %v4028, 4
      %v4031 = vrot.slane %v250, 5
      %v4032 = vsel %vm3921, %v4030, %v4031
      %v4033 = vrot.slane %v4031, 4
      %v4034 = vrot.slane %v251, 5
      %v4035 = vsel %vm3921, %v4033, %v4034
      %v4036 = vrot.slane %v4034, 4
      %v4037 = vrot.slane %v358, 5
      %v4038 = vsel %vm3921, %v4036, %v4037
      %v4039 = vrot.slane %v3832, 5
      %v4040 = vrot.slane %v4039, 4
      %v4041 = vrot.slane %v253, 5
      %v4042 = vsel %vm3921, %v4040, %v4041
      %v4043 = vrot.slane %v4041, 4
      %v4044 = vrot.slane %v254, 5
      %v4045 = vsel %vm3921, %v4043, %v4044
      %v4046 = vrot.slane %v4044, 4
      %v4047 = vrot.slane %v255, 5
      %v4048 = vsel %vm3921, %v4046, %v4047
      %v4049 = vrot.slane %v4047, 4
      %v4050 = vrot.slane %v359, 5
      %v4051 = vsel %vm3921, %v4049, %v4050
      %v4052 = vrot.slane %v3833, 5
      %v4053 = vrot.slane %v4052, 4
      %v4054 = vrot.slane %v257, 5
      %v4055 = vsel %vm3921, %v4053, %v4054
      %v4056 = vrot.slane %v4054, 4
      %v4057 = vrot.slane %v258, 5
      %v4058 = vsel %vm3921, %v4056, %v4057
      %v4059 = vrot.slane %v4057, 4
      %v4060 = vrot.slane %v259, 5
      %v4061 = vsel %vm3921, %v4059, %v4060
      %v4062 = vrot.slane %v4060, 4
      %v4063 = vrot.slane %v360, 5
      %v4064 = vsel %vm3921, %v4062, %v4063
      %v4065 = vrot.slane %v3834, 5
      %v4066 = vrot.slane %v4065, 4
      %v4067 = vrot.slane %v261, 5
      %v4068 = vsel %vm3921, %v4066, %v4067
      %v4069 = vrot.slane %v4067, 4
      %v4070 = vrot.slane %v262, 5
      %v4071 = vsel %vm3921, %v4069, %v4070
      %v4072 = vrot.slane %v4070, 4
      %v4073 = vrot.slane %v263, 5
      %v4074 = vsel %vm3921, %v4072, %v4073
      %v4075 = vrot.slane %v4073, 4
      %v4076 = vrot.slane %v361, 5
      %v4077 = vsel %vm3921, %v4075, %v4076
      %v4078 = vrot.slane %v3835, 5
      %v4079 = vrot.slane %v4078, 4
      %v4080 = vrot.slane %v265, 5
      %v4081 = vsel %vm3921, %v4079, %v4080
      %v4082 = vrot.slane %v4080, 4
      %v4083 = vrot.slane %v266, 5
      %v4084 = vsel %vm3921, %v4082, %v4083
      %v4085 = vrot.slane %v4083, 4
      %v4086 = vrot.slane %v267, 5
      %v4087 = vsel %vm3921, %v4085, %v4086
      %v4088 = vrot.slane %v4086, 4
      %v4089 = vrot.slane %v362, 5
      %v4090 = vsel %vm3921, %v4088, %v4089
      %v4091 = vrot.slane %v3836, 5
      %v4092 = vrot.slane %v4091, 4
      %v4093 = vrot.slane %v269, 5
      %v4094 = vsel %vm3921, %v4092, %v4093
      %v4095 = vrot.slane %v4093, 4
      %v4096 = vrot.slane %v270, 5
      %v4097 = vsel %vm3921, %v4095, %v4096
      %v4098 = vrot.slane %v4096, 4
      %v4099 = vrot.slane %v271, 5
      %v4100 = vsel %vm3921, %v4098, %v4099
      %v4101 = vrot.slane %v4099, 4
      %v4102 = vrot.slane %v363, 5
      %v4103 = vsel %vm3921, %v4101, %v4102
      %v4104 = vrot.slane %v3837, 5
      %v4105 = vrot.slane %v4104, 4
      %v4106 = vrot.slane %v273, 5
      %v4107 = vsel %vm3921, %v4105, %v4106
      %v4108 = vrot.slane %v4106, 4
      %v4109 = vrot.slane %v274, 5
      %v4110 = vsel %vm3921, %v4108, %v4109
      %v4111 = vrot.slane %v4109, 4
      %v4112 = vrot.slane %v275, 5
      %v4113 = vsel %vm3921, %v4111, %v4112
      %v4114 = vrot.slane %v4112, 4
      %v4115 = vrot.slane %v364, 5
      %v4116 = vsel %vm3921, %v4114, %v4115
      %v4117 = vrot.slane %v3838, 5
      %v4118 = vrot.slane %v4117, 4
      %v4119 = vrot.slane %v277, 5
      %v4120 = vsel %vm3921, %v4118, %v4119
      %v4121 = vrot.slane %v4119, 4
      %v4122 = vrot.slane %v278, 5
      %v4123 = vsel %vm3921, %v4121, %v4122
      %v4124 = vrot.slane %v4122, 4
      %v4125 = vrot.slane %v279, 5
      %v4126 = vsel %vm3921, %v4124, %v4125
      %v4127 = vrot.slane %v4125, 4
      %v4128 = vrot.slane %v365, 5
      %v4129 = vsel %vm3921, %v4127, %v4128
      %v4130 = vrot.slane %v3839, 5
      %v4131 = vrot.slane %v4130, 4
      %v4132 = vrot.slane %v281, 5
      %v4133 = vsel %vm3921, %v4131, %v4132
      %v4134 = vrot.slane %v4132, 4
      %v4135 = vrot.slane %v282, 5
      %v4136 = vsel %vm3921, %v4134, %v4135
      %v4137 = vrot.slane %v4135, 4
      %v4138 = vrot.slane %v283, 5
      %v4139 = vsel %vm3921, %v4137, %v4138
      %v4140 = vrot.slane %v4138, 4
      %v4141 = vrot.slane %v366, 5
      %v4142 = vsel %vm3921, %v4140, %v4141
      %v4143 = vrot.slane %v3840, 5
      %v4144 = vrot.slane %v4143, 4
      %v4145 = vrot.slane %v285, 5
      %v4146 = vsel %vm3921, %v4144, %v4145
      %v4147 = vrot.slane %v4145, 4
      %v4148 = vrot.slane %v286, 5
      %v4149 = vsel %vm3921, %v4147, %v4148
      %v4150 = vrot.slane %v4148, 4
      %v4151 = vrot.slane %v287, 5
      %v4152 = vsel %vm3921, %v4150, %v4151
      %v4153 = vrot.slane %v4151, 4
      %v4154 = vrot.slane %v367, 5
      %v4155 = vsel %vm3921, %v4153, %v4154
      %v4156 = vrot.slane %v3841, 5
      %v4157 = vrot.slane %v4156, 4
      %v4158 = vrot.slane %v289, 5
      %v4159 = vsel %vm3921, %v4157, %v4158
      %v4160 = vrot.slane %v4158, 4
      %v4161 = vrot.slane %v290, 5
      %v4162 = vsel %vm3921, %v4160, %v4161
      %v4163 = vrot.slane %v4161, 4
      %v4164 = vrot.slane %v291, 5
      %v4165 = vsel %vm3921, %v4163, %v4164
      %v4166 = vrot.slane %v4164, 4
      %v4167 = vrot.slane %v368, 5
      %v4168 = vsel %vm3921, %v4166, %v4167
      %v4169 = vrot.slane %v3842, 5
      %v4170 = vrot.slane %v4169, 4
      %v4171 = vrot.slane %v293, 5
      %v4172 = vsel %vm3921, %v4170, %v4171
      %v4173 = vrot.slane %v4171, 4
      %v4174 = vrot.slane %v294, 5
      %v4175 = vsel %vm3921, %v4173, %v4174
      %v4176 = vrot.slane %v4174, 4
      %v4177 = vrot.slane %v295, 5
      %v4178 = vsel %vm3921, %v4176, %v4177
      %v4179 = vrot.slane %v4177, 4
      %v4180 = vrot.slane %v369, 5
      %v4181 = vsel %vm3921, %v4179, %v4180
      %v4182 = vrot.slane %v3843, 5
      %v4183 = vrot.slane %v4182, 4
      %v4184 = vrot.slane %v297, 5
      %v4185 = vsel %vm3921, %v4183, %v4184
      %v4186 = vrot.slane %v4184, 4
      %v4187 = vrot.slane %v298, 5
      %v4188 = vsel %vm3921, %v4186, %v4187
      %v4189 = vrot.slane %v4187, 4
      %v4190 = vrot.slane %v299, 5
      %v4191 = vsel %vm3921, %v4189, %v4190
      %v4192 = vrot.slane %v4190, 4
      %v4193 = vrot.slane %v370, 5
      %v4194 = vsel %vm3921, %v4192, %v4193
      %v4195 = vrot.slane %v3844, 5
      %v4196 = vrot.slane %v4195, 4
      %v4197 = vrot.slane %v301, 5
      %v4198 = vsel %vm3921, %v4196, %v4197
      %v4199 = vrot.slane %v4197, 4
      %v4200 = vrot.slane %v302, 5
      %v4201 = vsel %vm3921, %v4199, %v4200
      %v4202 = vrot.slane %v4200, 4
      %v4203 = vrot.slane %v303, 5
      %v4204 = vsel %vm3921, %v4202, %v4203
      %v4205 = vrot.slane %v4203, 4
      %v4206 = vrot.slane %v371, 5
      %v4207 = vsel %vm3921, %v4205, %v4206
      %v4208 = vrot.slane %v3845, 5
      %v4209 = vrot.slane %v4208, 4
      %v4210 = vrot.slane %v305, 5
      %v4211 = vsel %vm3921, %v4209, %v4210
      %v4212 = vrot.slane %v4210, 4
      %v4213 = vrot.slane %v306, 5
      %v4214 = vsel %vm3921, %v4212, %v4213
      %v4215 = vrot.slane %v4213, 4
      %v4216 = vrot.slane %v307, 5
      %v4217 = vsel %vm3921, %v4215, %v4216
      %v4218 = vrot.slane %v4216, 4
      %v4219 = vrot.slane %v372, 5
      %v4220 = vsel %vm3921, %v4218, %v4219
      %v4221 = vrot.slane %v3846, 5
      %v4222 = vrot.slane %v4221, 4
      %v4223 = vrot.slane %v309, 5
      %v4224 = vsel %vm3921, %v4222, %v4223
      %v4225 = vrot.slane %v4223, 4
      %v4226 = vrot.slane %v310, 5
      %v4227 = vsel %vm3921, %v4225, %v4226
      %v4228 = vrot.slane %v4226, 4
      %v4229 = vrot.slane %v311, 5
      %v4230 = vsel %vm3921, %v4228, %v4229
      %v4231 = vrot.slane %v4229, 4
      %v4232 = vrot.slane %v373, 5
      %v4233 = vsel %vm3921, %v4231, %v4232
      %v4234 = vrot.slane %v3847, 5
      %v4235 = vrot.slane %v4234, 4
      %v4236 = vrot.slane %v313, 5
      %v4237 = vsel %vm3921, %v4235, %v4236
      %v4238 = vrot.slane %v4236, 4
      %v4239 = vrot.slane %v314, 5
      %v4240 = vsel %vm3921, %v4238, %v4239
      %v4241 = vrot.slane %v4239, 4
      %v4242 = vrot.slane %v315, 5
      %v4243 = vsel %vm3921, %v4241, %v4242
      %v4244 = vrot.slane %v4242, 4
      %v4245 = vrot.slane %v374, 5
      %v4246 = vsel %vm3921, %v4244, %v4245
      %v4247 = vrot.slane %v3848, 5
      %v4248 = vrot.slane %v4247, 4
      %v4249 = vrot.slane %v317, 5
      %v4250 = vsel %vm3921, %v4248, %v4249
      %v4251 = vrot.slane %v4249, 4
      %v4252 = vrot.slane %v318, 5
      %v4253 = vsel %vm3921, %v4251, %v4252
      %v4254 = vrot.slane %v4252, 4
      %v4255 = vrot.slane %v319, 5
      %v4256 = vsel %vm3921, %v4254, %v4255
      %v4257 = vrot.slane %v4255, 4
      %v4258 = vrot.slane %v375, 5
      %v4259 = vsel %vm3921, %v4257, %v4258
      %v4260 = vrot.slane %v3849, 5
      %v4261 = vrot.slane %v4260, 4
      %v4262 = vrot.slane %v321, 5
      %v4263 = vsel %vm3921, %v4261, %v4262
      %v4264 = vrot.slane %v4262, 4
      %v4265 = vrot.slane %v322, 5
      %v4266 = vsel %vm3921, %v4264, %v4265
      %v4267 = vrot.slane %v4265, 4
      %v4268 = vrot.slane %v323, 5
      %v4269 = vsel %vm3921, %v4267, %v4268
      %v4270 = vrot.slane %v4268, 4
      %v4271 = vrot.slane %v376, 5
      %v4272 = vsel %vm3921, %v4270, %v4271
      %v4273 = vrot.slane %v3850, 5
      %v4274 = vrot.slane %v4273, 4
      %v4275 = vrot.slane %v325, 5
      %v4276 = vsel %vm3921, %v4274, %v4275
      %v4277 = vrot.slane %v4275, 4
      %v4278 = vrot.slane %v326, 5
      %v4279 = vsel %vm3921, %v4277, %v4278
      %v4280 = vrot.slane %v4278, 4
      %v4281 = vrot.slane %v327, 5
      %v4282 = vsel %vm3921, %v4280, %v4281
      %v4283 = vrot.slane %v4281, 4
      %v4284 = vrot.slane %v377, 5
      %v4285 = vsel %vm3921, %v4283, %v4284
      %v4286 = vrot.slane %v3851, 5
      %v4287 = vrot.slane %v4286, 4
      %v4288 = vrot.slane %v329, 5
      %v4289 = vsel %vm3921, %v4287, %v4288
      %v4290 = vrot.slane %v4288, 4
      %v4291 = vrot.slane %v330, 5
      %v4292 = vsel %vm3921, %v4290, %v4291
      %v4293 = vrot.slane %v4291, 4
      %v4294 = vrot.slane %v331, 5
      %v4295 = vsel %vm3921, %v4293, %v4294
      %v4296 = vrot.slane %v4294, 4
      %v4297 = vrot.slane %v378, 5
      %v4298 = vsel %vm3921, %v4296, %v4297
      %v4299 = vrot.slane %v3852, 5
      %v4300 = vrot.slane %v4299, 4
      %v4301 = vrot.slane %v333, 5
      %v4302 = vsel %vm3921, %v4300, %v4301
      %v4303 = vrot.slane %v4301, 4
      %v4304 = vrot.slane %v334, 5
      %v4305 = vsel %vm3921, %v4303, %v4304
      %v4306 = vrot.slane %v4304, 4
      %v4307 = vrot.slane %v335, 5
      %v4308 = vsel %vm3921, %v4306, %v4307
      %v4309 = vrot.slane %v4307, 4
      %v4310 = vrot.slane %v379, 5
      %v4311 = vsel %vm3921, %v4309, %v4310
      %v4312 = vrot.slane %v3853, 5
      %v4313 = vrot.slane %v4312, 4
      %v4314 = vrot.slane %v337, 5
      %v4315 = vsel %vm3921, %v4313, %v4314
      %v4316 = vrot.slane %v4314, 4
      %v4317 = vrot.slane %v338, 5
      %v4318 = vsel %vm3921, %v4316, %v4317
      %v4319 = vrot.slane %v4317, 4
      %v4320 = vrot.slane %v339, 5
      %v4321 = vsel %vm3921, %v4319, %v4320
      %v4322 = vrot.slane %v4320, 4
      %v4323 = vrot.slane %v380, 5
      %v4324 = vsel %vm3921, %v4322, %v4323
      %v4325 = vrot.slane %v3854, 5
      %v4326 = vrot.slane %v4325, 4
      %v4327 = vrot.slane %v341, 5
      %v4328 = vsel %vm3921, %v4326, %v4327
      %v4329 = vrot.slane %v4327, 4
      %v4330 = vrot.slane %v342, 5
      %v4331 = vsel %vm3921, %v4329, %v4330
      %v4332 = vrot.slane %v4330, 4
      %v4333 = vrot.slane %v343, 5
      %v4334 = vsel %vm3921, %v4332, %v4333
      %v4335 = vrot.slane %v4333, 4
      %v4336 = vrot.slane %v381, 5
      %v4337 = vsel %vm3921, %v4335, %v4336
      %s4338 = scalar_lea.vmem %s1, 48
      %v4339 = vld [vmem:[%s4338] sm:$0xf]
      %v4340 = vld [vmem:[%s4338 + $0x4] sm:$0xf]
      %v4341 = vld [vmem:[%s4338 + $0x8] sm:$0xf]
      %v4342 = vld [vmem:[%s4338 + $0xc] sm:$0xf]
      %v4343 = vld [vmem:[%s4338 + $0x10] sm:$0xf]
      %v4344 = vld [vmem:[%s4338 + $0x14] sm:$0xf]
      %v4345 = vunpack.c.l.b16 %v3925
      %v4346 = vunpack.c.l.b16 %v3928
      %v4347 = vunpack.c.l.b16 %v3931
      %v4348 = vunpack.c.l.b16 %v3934
      %v4349 = vunpack.c.l.b16 %v3938
      %v4350 = vunpack.c.l.b16 %v3941
      %v4351 = vunpack.c.l.b16 %v3944
      %v4352 = vunpack.c.l.b16 %v3947
      %v4353 = vunpack.c.l.b16 %v3951
      %v4354 = vunpack.c.l.b16 %v3954
      %v4355 = vunpack.c.l.b16 %v3957
      %v4356 = vunpack.c.l.b16 %v3960
      %v4357 = vunpack.c.l.b16 %v3964
      %v4358 = vunpack.c.l.b16 %v3967
      %v4359 = vunpack.c.l.b16 %v3970
      %v4360 = vunpack.c.l.b16 %v3973
      %v4361 = vunpack.c.l.b16 %v3977
      %v4362 = vunpack.c.l.b16 %v3980
      %v4363 = vunpack.c.l.b16 %v3983
      %v4364 = vunpack.c.l.b16 %v3986
      %v4365 = vunpack.c.l.b16 %v3990
      %v4366 = vunpack.c.l.b16 %v3993
      %v4367 = vunpack.c.l.b16 %v3996
      %v4368 = vunpack.c.l.b16 %v3999
      %v4369 = vunpack.c.l.b16 %v4003
      %v4370 = vunpack.c.l.b16 %v4006
      %v4371 = vunpack.c.l.b16 %v4009
      %v4372 = vunpack.c.l.b16 %v4012
      %v4373 = vunpack.c.l.b16 %v4016
      %v4374 = vunpack.c.l.b16 %v4019
      %v4375 = vunpack.c.l.b16 %v4022
      %v4376 = vunpack.c.l.b16 %v4025
      %v4377 = vunpack.c.l.b16 %v4029
      %v4378 = vunpack.c.l.b16 %v4032
      %v4379 = vunpack.c.l.b16 %v4035
      %v4380 = vunpack.c.l.b16 %v4038
      %v4381 = vunpack.c.l.b16 %v4042
      %v4382 = vunpack.c.l.b16 %v4045
      %v4383 = vunpack.c.l.b16 %v4048
      %v4384 = vunpack.c.l.b16 %v4051
      %v4385 = vunpack.c.l.b16 %v4055
      %v4386 = vunpack.c.l.b16 %v4058
      %v4387 = vunpack.c.l.b16 %v4061
      %v4388 = vunpack.c.l.b16 %v4064
      %v4389 = vunpack.c.l.b16 %v4068
      %v4390 = vunpack.c.l.b16 %v4071
      %v4391 = vunpack.c.l.b16 %v4074
      %v4392 = vunpack.c.l.b16 %v4077
      %v4393 = vunpack.c.l.b16 %v4081
      %v4394 = vunpack.c.l.b16 %v4084
      %v4395 = vunpack.c.l.b16 %v4087
      %v4396 = vunpack.c.l.b16 %v4090
      %v4397 = vunpack.c.l.b16 %v4094
      %v4398 = vunpack.c.l.b16 %v4097
      %v4399 = vunpack.c.l.b16 %v4100
      %v4400 = vunpack.c.l.b16 %v4103
      %v4401 = vunpack.c.l.b16 %v4107
      %v4402 = vunpack.c.l.b16 %v4110
      %v4403 = vunpack.c.l.b16 %v4113
      %v4404 = vunpack.c.l.b16 %v4116
      %v4405 = vunpack.c.l.b16 %v4120
      %v4406 = vunpack.c.l.b16 %v4123
      %v4407 = vunpack.c.l.b16 %v4126
      %v4408 = vunpack.c.l.b16 %v4129
      %v4409 = vunpack.c.l.b16 %v4133
      %v4410 = vunpack.c.l.b16 %v4136
      %v4411 = vunpack.c.l.b16 %v4139
      %v4412 = vunpack.c.l.b16 %v4142
      %v4413 = vunpack.c.l.b16 %v4146
      %v4414 = vunpack.c.l.b16 %v4149
      %v4415 = vunpack.c.l.b16 %v4152
      %v4416 = vunpack.c.l.b16 %v4155
      %v4417 = vunpack.c.l.b16 %v4159
      %v4418 = vunpack.c.l.b16 %v4162
      %v4419 = vunpack.c.l.b16 %v4165
      %v4420 = vunpack.c.l.b16 %v4168
      %v4421 = vunpack.c.l.b16 %v4172
      %v4422 = vunpack.c.l.b16 %v4175
      %v4423 = vunpack.c.l.b16 %v4178
      %v4424 = vunpack.c.l.b16 %v4181
      %v4425 = vunpack.c.l.b16 %v4185
      %v4426 = vunpack.c.l.b16 %v4188
      %v4427 = vunpack.c.l.b16 %v4191
      %v4428 = vunpack.c.l.b16 %v4194
      %v4429 = vunpack.c.l.b16 %v4198
      %v4430 = vunpack.c.l.b16 %v4201
      %v4431 = vunpack.c.l.b16 %v4204
      %v4432 = vunpack.c.l.b16 %v4207
      %v4433 = vunpack.c.l.b16 %v4211
      %v4434 = vunpack.c.l.b16 %v4214
      %v4435 = vunpack.c.l.b16 %v4217
      %v4436 = vunpack.c.l.b16 %v4220
      %v4437 = vunpack.c.l.b16 %v4224
      %v4438 = vunpack.c.l.b16 %v4227
      %v4439 = vunpack.c.l.b16 %v4230
      %v4440 = vunpack.c.l.b16 %v4233
      %v4441 = vunpack.c.l.b16 %v4237
      %v4442 = vunpack.c.l.b16 %v4240
      %v4443 = vunpack.c.l.b16 %v4243
      %v4444 = vunpack.c.l.b16 %v4246
      %v4445 = vunpack.c.l.b16 %v4250
      %v4446 = vunpack.c.l.b16 %v4253
      %v4447 = vunpack.c.l.b16 %v4256
      %v4448 = vunpack.c.l.b16 %v4259
      %v4449 = vunpack.c.l.b16 %v4263
      %v4450 = vunpack.c.l.b16 %v4266
      %v4451 = vunpack.c.l.b16 %v4269
      %v4452 = vunpack.c.l.b16 %v4272
      %v4453 = vunpack.c.l.b16 %v4276
      %v4454 = vunpack.c.l.b16 %v4279
      %v4455 = vunpack.c.l.b16 %v4282
      %v4456 = vunpack.c.l.b16 %v4285
      %v4457 = vunpack.c.l.b16 %v4289
      %v4458 = vunpack.c.l.b16 %v4292
      %v4459 = vunpack.c.l.b16 %v4295
      %v4460 = vunpack.c.l.b16 %v4298
      %v4461 = vunpack.c.l.b16 %v4302
      %v4462 = vunpack.c.l.b16 %v4305
      %v4463 = vunpack.c.l.b16 %v4308
      %v4464 = vunpack.c.l.b16 %v4311
      %v4465 = vunpack.c.l.b16 %v4315
      %v4466 = vunpack.c.l.b16 %v4318
      %v4467 = vunpack.c.l.b16 %v4321
      %v4468 = vunpack.c.l.b16 %v4324
      %v4469 = vunpack.c.l.b16 %v4328
      %v4470 = vunpack.c.l.b16 %v4331
      %v4471 = vunpack.c.l.b16 %v4334
      %v4472 = vunpack.c.l.b16 %v4337
      %v4473 = vpack.c.b16 %v4346, %v4345
      %v4474 = vpack.c.b16 %v4348, %v4347
      %v4475 = vpack.c.b16 %v4350, %v4349
      %v4476 = vpack.c.b16 %v4352, %v4351
      %v4477 = vpack.c.b16 %v4354, %v4353
      %v4478 = vpack.c.b16 %v4356, %v4355
      %v4479 = vpack.c.b16 %v4358, %v4357
      %v4480 = vpack.c.b16 %v4360, %v4359
      %v4481 = vpack.c.b16 %v4362, %v4361
      %v4482 = vpack.c.b16 %v4364, %v4363
      %v4483 = vpack.c.b16 %v4366, %v4365
      %v4484 = vpack.c.b16 %v4368, %v4367
      %v4485 = vpack.c.b16 %v4370, %v4369
      %v4486 = vpack.c.b16 %v4372, %v4371
      %v4487 = vpack.c.b16 %v4374, %v4373
      %v4488 = vpack.c.b16 %v4376, %v4375
      %v4489 = vpack.c.b16 %v4378, %v4377
      %v4490 = vpack.c.b16 %v4380, %v4379
      %v4491 = vpack.c.b16 %v4382, %v4381
      %v4492 = vpack.c.b16 %v4384, %v4383
      %v4493 = vpack.c.b16 %v4386, %v4385
      %v4494 = vpack.c.b16 %v4388, %v4387
      %v4495 = vpack.c.b16 %v4390, %v4389
      %v4496 = vpack.c.b16 %v4392, %v4391
      %v4497 = vpack.c.b16 %v4394, %v4393
      %v4498 = vpack.c.b16 %v4396, %v4395
      %v4499 = vpack.c.b16 %v4398, %v4397
      %v4500 = vpack.c.b16 %v4400, %v4399
      %v4501 = vpack.c.b16 %v4402, %v4401
      %v4502 = vpack.c.b16 %v4404, %v4403
      %v4503 = vpack.c.b16 %v4406, %v4405
      %v4504 = vpack.c.b16 %v4408, %v4407
      %v4505 = vpack.c.b16 %v4410, %v4409
      %v4506 = vpack.c.b16 %v4412, %v4411
      %v4507 = vpack.c.b16 %v4414, %v4413
      %v4508 = vpack.c.b16 %v4416, %v4415
      %v4509 = vpack.c.b16 %v4418, %v4417
      %v4510 = vpack.c.b16 %v4420, %v4419
      %v4511 = vpack.c.b16 %v4422, %v4421
      %v4512 = vpack.c.b16 %v4424, %v4423
      %v4513 = vpack.c.b16 %v4426, %v4425
      %v4514 = vpack.c.b16 %v4428, %v4427
      %v4515 = vpack.c.b16 %v4430, %v4429
      %v4516 = vpack.c.b16 %v4432, %v4431
      %v4517 = vpack.c.b16 %v4434, %v4433
      %v4518 = vpack.c.b16 %v4436, %v4435
      %v4519 = vpack.c.b16 %v4438, %v4437
      %v4520 = vpack.c.b16 %v4440, %v4439
      %v4521 = vpack.c.b16 %v4442, %v4441
      %v4522 = vpack.c.b16 %v4444, %v4443
      %v4523 = vpack.c.b16 %v4446, %v4445
      %v4524 = vpack.c.b16 %v4448, %v4447
      %v4525 = vpack.c.b16 %v4450, %v4449
      %v4526 = vpack.c.b16 %v4452, %v4451
      %v4527 = vpack.c.b16 %v4454, %v4453
      %v4528 = vpack.c.b16 %v4456, %v4455
      %v4529 = vpack.c.b16 %v4458, %v4457
      %v4530 = vpack.c.b16 %v4460, %v4459
      %v4531 = vpack.c.b16 %v4462, %v4461
      %v4532 = vpack.c.b16 %v4464, %v4463
      %v4533 = vpack.c.b16 %v4466, %v4465
      %v4534 = vpack.c.b16 %v4468, %v4467
      %v4535 = vpack.c.b16 %v4470, %v4469
      %v4536 = vpack.c.b16 %v4472, %v4471
      %v4543 = vunpack.c.l.b16 %v4339
      %v4544 = vunpack.c.l.b16 %v4340
      %v4545 = vunpack.c.l.b16 %v4341
      %v4546 = vunpack.c.l.b16 %v4342
      %v4547 = vunpack.c.l.b16 %v4343
      %v4548 = vunpack.c.l.b16 %v4344
      %v4549 = vpack.c.b16 %v4544, %v4543
      %v4550 = vpack.c.b16 %v4546, %v4545
      %v4551 = vpack.c.b16 %v4548, %v4547
      %v4556 = vsel %vm2010, %v4473, 0
      %v4559 = vsel %vm2010, %v4474, 0
      %v4562 = vsel %vm2010, %v4475, 0
      %v4565 = vsel %vm2010, %v4476, 0
      %v4568 = vsel %vm2010, %v4477, 0
      %v4571 = vsel %vm2010, %v4478, 0
      %v4574 = vsel %vm2010, %v4479, 0
      %v4577 = vsel %vm2010, %v4480, 0
      %v4580 = vsel %vm2010, %v4481, 0
      %v4583 = vsel %vm2010, %v4482, 0
      %v4586 = vsel %vm2010, %v4483, 0
      %v4589 = vsel %vm2010, %v4484, 0
      %v4592 = vsel %vm2010, %v4485, 0
      %v4595 = vsel %vm2010, %v4486, 0
      %v4598 = vsel %vm2010, %v4487, 0
      %v4601 = vsel %vm2010, %v4488, 0
      %v4604 = vsel %vm2010, %v4489, 0
      %v4607 = vsel %vm2010, %v4490, 0
      %v4610 = vsel %vm2010, %v4491, 0
      %v4613 = vsel %vm2010, %v4492, 0
      %v4616 = vsel %vm2010, %v4493, 0
      %v4619 = vsel %vm2010, %v4494, 0
      %v4622 = vsel %vm2010, %v4495, 0
      %v4625 = vsel %vm2010, %v4496, 0
      %v4628 = vsel %vm2010, %v4497, 0
      %v4631 = vsel %vm2010, %v4498, 0
      %v4634 = vsel %vm2010, %v4499, 0
      %v4637 = vsel %vm2010, %v4500, 0
      %v4640 = vsel %vm2010, %v4501, 0
      %v4643 = vsel %vm2010, %v4502, 0
      %v4646 = vsel %vm2010, %v4503, 0
      %v4649 = vsel %vm2010, %v4504, 0
      %v4652 = vsel %vm2010, %v4505, 0
      %v4655 = vsel %vm2010, %v4506, 0
      %v4658 = vsel %vm2010, %v4507, 0
      %v4661 = vsel %vm2010, %v4508, 0
      %v4664 = vsel %vm2010, %v4509, 0
      %v4667 = vsel %vm2010, %v4510, 0
      %v4670 = vsel %vm2010, %v4511, 0
      %v4673 = vsel %vm2010, %v4512, 0
      %v4676 = vsel %vm2010, %v4513, 0
      %v4679 = vsel %vm2010, %v4514, 0
      %v4682 = vsel %vm2010, %v4515, 0
      %v4685 = vsel %vm2010, %v4516, 0
      %v4688 = vsel %vm2010, %v4517, 0
      %v4691 = vsel %vm2010, %v4518, 0
      %v4694 = vsel %vm2010, %v4519, 0
      %v4697 = vsel %vm2010, %v4520, 0
      %v4700 = vsel %vm2010, %v4521, 0
      %v4703 = vsel %vm2010, %v4522, 0
      %v4706 = vsel %vm2010, %v4523, 0
      %v4709 = vsel %vm2010, %v4524, 0
      %v4712 = vsel %vm2010, %v4525, 0
      %v4715 = vsel %vm2010, %v4526, 0
      %v4718 = vsel %vm2010, %v4527, 0
      %v4721 = vsel %vm2010, %v4528, 0
      %v4724 = vsel %vm2010, %v4529, 0
      %v4727 = vsel %vm2010, %v4530, 0
      %v4730 = vsel %vm2010, %v4531, 0
      %v4733 = vsel %vm2010, %v4532, 0
      %v4736 = vsel %vm2010, %v4533, 0
      %v4739 = vsel %vm2010, %v4534, 0
      %v4742 = vsel %vm2010, %v4535, 0
      %v4745 = vsel %vm2010, %v4536, 0
      %4747 = vmatprep.subr.bf16.mxu0 0
      %4748 = vmatpush1.bf16.msra.mxu0 0
      %4749 = vmatprep.subr.bf16.mxu0 0
      %4750 = vmatpush1.bf16.msra.mxu0 0
      %4751 = vmatprep.subr.bf16.mxu0 0
      %4752 = vmatpush1.bf16.msra.mxu0 0
      %4753 = vmatprep.subr.bf16.mxu0 0
      %4754 = vmatpush1.bf16.msra.mxu0 0
      %4755 = vmatprep.subr.bf16.mxu0 0
      %4756 = vmatpush1.bf16.msra.mxu0 0
      %4757 = vmatprep.subr.bf16.mxu0 0
      %4758 = vmatpush1.bf16.msra.mxu0 %v4551
      %4759 = vmatprep.subr.bf16.mxu0 0
      %4760 = vmatpush1.bf16.msra.mxu0 %v4550
      %4761 = vmatprep.subr.bf16.mxu0 0
      %4762 = vmatpush1.bf16.msra.mxu0 %v4549
      %4763 = vmatprep.subr.bf16.mxu0 0
      %4764 = vmatpush2.bf16.msra.mxu0 0
      %4765 = vmatprep.subr.bf16.mxu0 0
      %4766 = vmatpush2.bf16.msra.mxu0 0
      %4767 = vmatprep.subr.bf16.mxu0 0
      %4768 = vmatpush2.bf16.msra.mxu0 0
      %4769 = vmatprep.subr.bf16.mxu0 0
      %4770 = vmatpush2.bf16.msra.mxu0 0
      %4771 = vmatprep.subr.bf16.mxu0 0
      %4772 = vmatpush2.bf16.msra.mxu0 0
      %4773 = vmatprep.subr.bf16.mxu0 0
      %4774 = vmatpush2.bf16.msra.mxu0 0
      %4775 = vmatprep.subr.bf16.mxu0 0
      %4776 = vmatpush2.bf16.msra.mxu0 0
      %4777 = vmatprep.subr.bf16.mxu0 0
      %4778 = vmatpush2.bf16.msra.mxu0 0
      %4779 = vmatprep.mubr.bf16.mxu0 0
      %4780 = vmatmul.mubr.bf16.gmra.mxu0 %v4556
      %v4781 = vpop.f32.mrf.mxu0
      %v4782 = vadd.f32 0.0, %v4781
      %v4783 = vpop.f32.mrf.mxu0
      %v4784 = vpop.f32.mrf.mxu0
      %v4785 = vadd.f32 0.0, %v4784
      %v4786 = vpop.f32.mrf.mxu0
      %4787 = vmatprep.mubr.bf16.mxu0 0
      %4788 = vmatmul.mubr.bf16.gmra.mxu0 %v4559
      %v4789 = vpop.f32.mrf.mxu0
      %v4790 = vadd.f32 0.0, %v4789
      %v4791 = vpop.f32.mrf.mxu0
      %v4792 = vpop.f32.mrf.mxu0
      %v4793 = vadd.f32 0.0, %v4792
      %v4794 = vpop.f32.mrf.mxu0
      %4795 = vmatprep.mubr.bf16.mxu0 0
      %4796 = vmatmul.mubr.bf16.gmra.mxu0 %v4562
      %v4797 = vpop.f32.mrf.mxu0
      %v4798 = vadd.f32 0.0, %v4797
      %v4799 = vpop.f32.mrf.mxu0
      %v4800 = vpop.f32.mrf.mxu0
      %v4801 = vadd.f32 0.0, %v4800
      %v4802 = vpop.f32.mrf.mxu0
      %4803 = vmatprep.mubr.bf16.mxu0 0
      %4804 = vmatmul.mubr.bf16.gmra.mxu0 %v4565
      %v4805 = vpop.f32.mrf.mxu0
      %v4806 = vadd.f32 0.0, %v4805
      %v4807 = vpop.f32.mrf.mxu0
      %v4808 = vpop.f32.mrf.mxu0
      %v4809 = vadd.f32 0.0, %v4808
      %v4810 = vpop.f32.mrf.mxu0
      %4811 = vmatprep.mubr.bf16.mxu0 0
      %4812 = vmatmul.mubr.bf16.gmra.mxu0 %v4568
      %v4813 = vpop.f32.mrf.mxu0
      %v4814 = vadd.f32 0.0, %v4813
      %v4815 = vpop.f32.mrf.mxu0
      %v4816 = vpop.f32.mrf.mxu0
      %v4817 = vadd.f32 0.0, %v4816
      %v4818 = vpop.f32.mrf.mxu0
      %4819 = vmatprep.mubr.bf16.mxu0 0
      %4820 = vmatmul.mubr.bf16.gmra.mxu0 %v4571
      %v4821 = vpop.f32.mrf.mxu0
      %v4822 = vadd.f32 0.0, %v4821
      %v4823 = vpop.f32.mrf.mxu0
      %v4824 = vpop.f32.mrf.mxu0
      %v4825 = vadd.f32 0.0, %v4824
      %v4826 = vpop.f32.mrf.mxu0
      %4827 = vmatprep.mubr.bf16.mxu0 0
      %4828 = vmatmul.mubr.bf16.gmra.mxu0 %v4574
      %v4829 = vpop.f32.mrf.mxu0
      %v4830 = vadd.f32 0.0, %v4829
      %v4831 = vpop.f32.mrf.mxu0
      %v4832 = vpop.f32.mrf.mxu0
      %v4833 = vadd.f32 0.0, %v4832
      %v4834 = vpop.f32.mrf.mxu0
      %4835 = vmatprep.mubr.bf16.mxu0 0
      %4836 = vmatmul.mubr.bf16.gmra.mxu0 %v4577
      %v4837 = vpop.f32.mrf.mxu0
      %v4838 = vadd.f32 0.0, %v4837
      %v4839 = vpop.f32.mrf.mxu0
      %v4840 = vpop.f32.mrf.mxu0
      %v4841 = vadd.f32 0.0, %v4840
      %v4842 = vpop.f32.mrf.mxu0
      %4843 = vmatprep.mubr.bf16.mxu0 0
      %4844 = vmatmul.mubr.bf16.gmra.mxu0 %v4580
      %v4845 = vpop.f32.mrf.mxu0
      %v4846 = vadd.f32 0.0, %v4845
      %v4847 = vpop.f32.mrf.mxu0
      %v4848 = vpop.f32.mrf.mxu0
      %v4849 = vadd.f32 0.0, %v4848
      %v4850 = vpop.f32.mrf.mxu0
      %4851 = vmatprep.mubr.bf16.mxu0 0
      %4852 = vmatmul.mubr.bf16.gmra.mxu0 %v4583
      %v4853 = vpop.f32.mrf.mxu0
      %v4854 = vadd.f32 0.0, %v4853
      %v4855 = vpop.f32.mrf.mxu0
      %v4856 = vpop.f32.mrf.mxu0
      %v4857 = vadd.f32 0.0, %v4856
      %v4858 = vpop.f32.mrf.mxu0
      %4859 = vmatprep.mubr.bf16.mxu0 0
      %4860 = vmatmul.mubr.bf16.gmra.mxu0 %v4586
      %v4861 = vpop.f32.mrf.mxu0
      %v4862 = vadd.f32 0.0, %v4861
      %v4863 = vpop.f32.mrf.mxu0
      %v4864 = vpop.f32.mrf.mxu0
      %v4865 = vadd.f32 0.0, %v4864
      %v4866 = vpop.f32.mrf.mxu0
      %4867 = vmatprep.mubr.bf16.mxu0 0
      %4868 = vmatmul.mubr.bf16.gmra.mxu0 %v4589
      %v4869 = vpop.f32.mrf.mxu0
      %v4870 = vadd.f32 0.0, %v4869
      %v4871 = vpop.f32.mrf.mxu0
      %v4872 = vpop.f32.mrf.mxu0
      %v4873 = vadd.f32 0.0, %v4872
      %v4874 = vpop.f32.mrf.mxu0
      %4875 = vmatprep.mubr.bf16.mxu0 0
      %4876 = vmatmul.mubr.bf16.gmra.mxu0 %v4592
      %v4877 = vpop.f32.mrf.mxu0
      %v4878 = vadd.f32 0.0, %v4877
      %v4879 = vpop.f32.mrf.mxu0
      %v4880 = vpop.f32.mrf.mxu0
      %v4881 = vadd.f32 0.0, %v4880
      %v4882 = vpop.f32.mrf.mxu0
      %4883 = vmatprep.mubr.bf16.mxu0 0
      %4884 = vmatmul.mubr.bf16.gmra.mxu0 %v4595
      %v4885 = vpop.f32.mrf.mxu0
      %v4886 = vadd.f32 0.0, %v4885
      %v4887 = vpop.f32.mrf.mxu0
      %v4888 = vpop.f32.mrf.mxu0
      %v4889 = vadd.f32 0.0, %v4888
      %v4890 = vpop.f32.mrf.mxu0
      %4891 = vmatprep.mubr.bf16.mxu0 0
      %4892 = vmatmul.mubr.bf16.gmra.mxu0 %v4598
      %v4893 = vpop.f32.mrf.mxu0
      %v4894 = vadd.f32 0.0, %v4893
      %v4895 = vpop.f32.mrf.mxu0
      %v4896 = vpop.f32.mrf.mxu0
      %v4897 = vadd.f32 0.0, %v4896
      %v4898 = vpop.f32.mrf.mxu0
      %4899 = vmatprep.mubr.bf16.mxu0 0
      %4900 = vmatmul.mubr.bf16.gmra.mxu0 %v4601
      %v4901 = vpop.f32.mrf.mxu0
      %v4902 = vadd.f32 0.0, %v4901
      %v4903 = vpop.f32.mrf.mxu0
      %v4904 = vpop.f32.mrf.mxu0
      %v4905 = vadd.f32 0.0, %v4904
      %v4906 = vpop.f32.mrf.mxu0
      %4907 = vmatprep.mubr.bf16.mxu0 0
      %4908 = vmatmul.mubr.bf16.gmra.mxu0 %v4604
      %v4909 = vpop.f32.mrf.mxu0
      %v4910 = vadd.f32 0.0, %v4909
      %v4911 = vpop.f32.mrf.mxu0
      %v4912 = vpop.f32.mrf.mxu0
      %v4913 = vadd.f32 0.0, %v4912
      %v4914 = vpop.f32.mrf.mxu0
      %4915 = vmatprep.mubr.bf16.mxu0 0
      %4916 = vmatmul.mubr.bf16.gmra.mxu0 %v4607
      %v4917 = vpop.f32.mrf.mxu0
      %v4918 = vadd.f32 0.0, %v4917
      %v4919 = vpop.f32.mrf.mxu0
      %v4920 = vpop.f32.mrf.mxu0
      %v4921 = vadd.f32 0.0, %v4920
      %v4922 = vpop.f32.mrf.mxu0
      %4923 = vmatprep.mubr.bf16.mxu0 0
      %4924 = vmatmul.mubr.bf16.gmra.mxu0 %v4610
      %v4925 = vpop.f32.mrf.mxu0
      %v4926 = vadd.f32 0.0, %v4925
      %v4927 = vpop.f32.mrf.mxu0
      %v4928 = vpop.f32.mrf.mxu0
      %v4929 = vadd.f32 0.0, %v4928
      %v4930 = vpop.f32.mrf.mxu0
      %4931 = vmatprep.mubr.bf16.mxu0 0
      %4932 = vmatmul.mubr.bf16.gmra.mxu0 %v4613
      %v4933 = vpop.f32.mrf.mxu0
      %v4934 = vadd.f32 0.0, %v4933
      %v4935 = vpop.f32.mrf.mxu0
      %v4936 = vpop.f32.mrf.mxu0
      %v4937 = vadd.f32 0.0, %v4936
      %v4938 = vpop.f32.mrf.mxu0
      %4939 = vmatprep.mubr.bf16.mxu0 0
      %4940 = vmatmul.mubr.bf16.gmra.mxu0 %v4616
      %v4941 = vpop.f32.mrf.mxu0
      %v4942 = vadd.f32 0.0, %v4941
      %v4943 = vpop.f32.mrf.mxu0
      %v4944 = vpop.f32.mrf.mxu0
      %v4945 = vadd.f32 0.0, %v4944
      %v4946 = vpop.f32.mrf.mxu0
      %4947 = vmatprep.mubr.bf16.mxu0 0
      %4948 = vmatmul.mubr.bf16.gmra.mxu0 %v4619
      %v4949 = vpop.f32.mrf.mxu0
      %v4950 = vadd.f32 0.0, %v4949
      %v4951 = vpop.f32.mrf.mxu0
      %v4952 = vpop.f32.mrf.mxu0
      %v4953 = vadd.f32 0.0, %v4952
      %v4954 = vpop.f32.mrf.mxu0
      %4955 = vmatprep.mubr.bf16.mxu0 0
      %4956 = vmatmul.mubr.bf16.gmra.mxu0 %v4622
      %v4957 = vpop.f32.mrf.mxu0
      %v4958 = vadd.f32 0.0, %v4957
      %v4959 = vpop.f32.mrf.mxu0
      %v4960 = vpop.f32.mrf.mxu0
      %v4961 = vadd.f32 0.0, %v4960
      %v4962 = vpop.f32.mrf.mxu0
      %4963 = vmatprep.mubr.bf16.mxu0 0
      %4964 = vmatmul.mubr.bf16.gmra.mxu0 %v4625
      %v4965 = vpop.f32.mrf.mxu0
      %v4966 = vadd.f32 0.0, %v4965
      %v4967 = vpop.f32.mrf.mxu0
      %v4968 = vpop.f32.mrf.mxu0
      %v4969 = vadd.f32 0.0, %v4968
      %v4970 = vpop.f32.mrf.mxu0
      %4971 = vmatprep.mubr.bf16.mxu0 0
      %4972 = vmatmul.mubr.bf16.gmra.mxu0 %v4628
      %v4973 = vpop.f32.mrf.mxu0
      %v4974 = vadd.f32 0.0, %v4973
      %v4975 = vpop.f32.mrf.mxu0
      %v4976 = vpop.f32.mrf.mxu0
      %v4977 = vadd.f32 0.0, %v4976
      %v4978 = vpop.f32.mrf.mxu0
      %4979 = vmatprep.mubr.bf16.mxu0 0
      %4980 = vmatmul.mubr.bf16.gmra.mxu0 %v4631
      %v4981 = vpop.f32.mrf.mxu0
      %v4982 = vadd.f32 0.0, %v4981
      %v4983 = vpop.f32.mrf.mxu0
      %v4984 = vpop.f32.mrf.mxu0
      %v4985 = vadd.f32 0.0, %v4984
      %v4986 = vpop.f32.mrf.mxu0
      %4987 = vmatprep.mubr.bf16.mxu0 0
      %4988 = vmatmul.mubr.bf16.gmra.mxu0 %v4634
      %v4989 = vpop.f32.mrf.mxu0
      %v4990 = vadd.f32 0.0, %v4989
      %v4991 = vpop.f32.mrf.mxu0
      %v4992 = vpop.f32.mrf.mxu0
      %v4993 = vadd.f32 0.0, %v4992
      %v4994 = vpop.f32.mrf.mxu0
      %4995 = vmatprep.mubr.bf16.mxu0 0
      %4996 = vmatmul.mubr.bf16.gmra.mxu0 %v4637
      %v4997 = vpop.f32.mrf.mxu0
      %v4998 = vadd.f32 0.0, %v4997
      %v4999 = vpop.f32.mrf.mxu0
      %v5000 = vpop.f32.mrf.mxu0
      %v5001 = vadd.f32 0.0, %v5000
      %v5002 = vpop.f32.mrf.mxu0
      %5003 = vmatprep.mubr.bf16.mxu0 0
      %5004 = vmatmul.mubr.bf16.gmra.mxu0 %v4640
      %v5005 = vpop.f32.mrf.mxu0
      %v5006 = vadd.f32 0.0, %v5005
      %v5007 = vpop.f32.mrf.mxu0
      %v5008 = vpop.f32.mrf.mxu0
      %v5009 = vadd.f32 0.0, %v5008
      %v5010 = vpop.f32.mrf.mxu0
      %5011 = vmatprep.mubr.bf16.mxu0 0
      %5012 = vmatmul.mubr.bf16.gmra.mxu0 %v4643
      %v5013 = vpop.f32.mrf.mxu0
      %v5014 = vadd.f32 0.0, %v5013
      %v5015 = vpop.f32.mrf.mxu0
      %v5016 = vpop.f32.mrf.mxu0
      %v5017 = vadd.f32 0.0, %v5016
      %v5018 = vpop.f32.mrf.mxu0
      %5019 = vmatprep.mubr.bf16.mxu0 0
      %5020 = vmatmul.mubr.bf16.gmra.mxu0 %v4646
      %v5021 = vpop.f32.mrf.mxu0
      %v5022 = vadd.f32 0.0, %v5021
      %v5023 = vpop.f32.mrf.mxu0
      %v5024 = vpop.f32.mrf.mxu0
      %v5025 = vadd.f32 0.0, %v5024
      %v5026 = vpop.f32.mrf.mxu0
      %5027 = vmatprep.mubr.bf16.mxu0 0
      %5028 = vmatmul.mubr.bf16.gmra.mxu0 %v4649
      %v5029 = vpop.f32.mrf.mxu0
      %v5030 = vadd.f32 0.0, %v5029
      %v5031 = vpop.f32.mrf.mxu0
      %v5032 = vpop.f32.mrf.mxu0
      %v5033 = vadd.f32 0.0, %v5032
      %v5034 = vpop.f32.mrf.mxu0
      %5035 = vmatprep.mubr.bf16.mxu0 0
      %5036 = vmatmul.mubr.bf16.gmra.mxu0 %v4652
      %v5037 = vpop.f32.mrf.mxu0
      %v5038 = vadd.f32 0.0, %v5037
      %v5039 = vpop.f32.mrf.mxu0
      %v5040 = vpop.f32.mrf.mxu0
      %v5041 = vadd.f32 0.0, %v5040
      %v5042 = vpop.f32.mrf.mxu0
      %5043 = vmatprep.mubr.bf16.mxu0 0
      %5044 = vmatmul.mubr.bf16.gmra.mxu0 %v4655
      %v5045 = vpop.f32.mrf.mxu0
      %v5046 = vadd.f32 0.0, %v5045
      %v5047 = vpop.f32.mrf.mxu0
      %v5048 = vpop.f32.mrf.mxu0
      %v5049 = vadd.f32 0.0, %v5048
      %v5050 = vpop.f32.mrf.mxu0
      %5051 = vmatprep.mubr.bf16.mxu0 0
      %5052 = vmatmul.mubr.bf16.gmra.mxu0 %v4658
      %v5053 = vpop.f32.mrf.mxu0
      %v5054 = vadd.f32 0.0, %v5053
      %v5055 = vpop.f32.mrf.mxu0
      %v5056 = vpop.f32.mrf.mxu0
      %v5057 = vadd.f32 0.0, %v5056
      %v5058 = vpop.f32.mrf.mxu0
      %5059 = vmatprep.mubr.bf16.mxu0 0
      %5060 = vmatmul.mubr.bf16.gmra.mxu0 %v4661
      %v5061 = vpop.f32.mrf.mxu0
      %v5062 = vadd.f32 0.0, %v5061
      %v5063 = vpop.f32.mrf.mxu0
      %v5064 = vpop.f32.mrf.mxu0
      %v5065 = vadd.f32 0.0, %v5064
      %v5066 = vpop.f32.mrf.mxu0
      %5067 = vmatprep.mubr.bf16.mxu0 0
      %5068 = vmatmul.mubr.bf16.gmra.mxu0 %v4664
      %v5069 = vpop.f32.mrf.mxu0
      %v5070 = vadd.f32 0.0, %v5069
      %v5071 = vpop.f32.mrf.mxu0
      %v5072 = vpop.f32.mrf.mxu0
      %v5073 = vadd.f32 0.0, %v5072
      %v5074 = vpop.f32.mrf.mxu0
      %5075 = vmatprep.mubr.bf16.mxu0 0
      %5076 = vmatmul.mubr.bf16.gmra.mxu0 %v4667
      %v5077 = vpop.f32.mrf.mxu0
      %v5078 = vadd.f32 0.0, %v5077
      %v5079 = vpop.f32.mrf.mxu0
      %v5080 = vpop.f32.mrf.mxu0
      %v5081 = vadd.f32 0.0, %v5080
      %v5082 = vpop.f32.mrf.mxu0
      %5083 = vmatprep.mubr.bf16.mxu0 0
      %5084 = vmatmul.mubr.bf16.gmra.mxu0 %v4670
      %v5085 = vpop.f32.mrf.mxu0
      %v5086 = vadd.f32 0.0, %v5085
      %v5087 = vpop.f32.mrf.mxu0
      %v5088 = vpop.f32.mrf.mxu0
      %v5089 = vadd.f32 0.0, %v5088
      %v5090 = vpop.f32.mrf.mxu0
      %5091 = vmatprep.mubr.bf16.mxu0 0
      %5092 = vmatmul.mubr.bf16.gmra.mxu0 %v4673
      %v5093 = vpop.f32.mrf.mxu0
      %v5094 = vadd.f32 0.0, %v5093
      %v5095 = vpop.f32.mrf.mxu0
      %v5096 = vpop.f32.mrf.mxu0
      %v5097 = vadd.f32 0.0, %v5096
      %v5098 = vpop.f32.mrf.mxu0
      %5099 = vmatprep.mubr.bf16.mxu0 0
      %5100 = vmatmul.mubr.bf16.gmra.mxu0 %v4676
      %v5101 = vpop.f32.mrf.mxu0
      %v5102 = vadd.f32 0.0, %v5101
      %v5103 = vpop.f32.mrf.mxu0
      %v5104 = vpop.f32.mrf.mxu0
      %v5105 = vadd.f32 0.0, %v5104
      %v5106 = vpop.f32.mrf.mxu0
      %5107 = vmatprep.mubr.bf16.mxu0 0
      %5108 = vmatmul.mubr.bf16.gmra.mxu0 %v4679
      %v5109 = vpop.f32.mrf.mxu0
      %v5110 = vadd.f32 0.0, %v5109
      %v5111 = vpop.f32.mrf.mxu0
      %v5112 = vpop.f32.mrf.mxu0
      %v5113 = vadd.f32 0.0, %v5112
      %v5114 = vpop.f32.mrf.mxu0
      %5115 = vmatprep.mubr.bf16.mxu0 0
      %5116 = vmatmul.mubr.bf16.gmra.mxu0 %v4682
      %v5117 = vpop.f32.mrf.mxu0
      %v5118 = vadd.f32 0.0, %v5117
      %v5119 = vpop.f32.mrf.mxu0
      %v5120 = vpop.f32.mrf.mxu0
      %v5121 = vadd.f32 0.0, %v5120
      %v5122 = vpop.f32.mrf.mxu0
      %5123 = vmatprep.mubr.bf16.mxu0 0
      %5124 = vmatmul.mubr.bf16.gmra.mxu0 %v4685
      %v5125 = vpop.f32.mrf.mxu0
      %v5126 = vadd.f32 0.0, %v5125
      %v5127 = vpop.f32.mrf.mxu0
      %v5128 = vpop.f32.mrf.mxu0
      %v5129 = vadd.f32 0.0, %v5128
      %v5130 = vpop.f32.mrf.mxu0
      %5131 = vmatprep.mubr.bf16.mxu0 0
      %5132 = vmatmul.mubr.bf16.gmra.mxu0 %v4688
      %v5133 = vpop.f32.mrf.mxu0
      %v5134 = vadd.f32 0.0, %v5133
      %v5135 = vpop.f32.mrf.mxu0
      %v5136 = vpop.f32.mrf.mxu0
      %v5137 = vadd.f32 0.0, %v5136
      %v5138 = vpop.f32.mrf.mxu0
      %5139 = vmatprep.mubr.bf16.mxu0 0
      %5140 = vmatmul.mubr.bf16.gmra.mxu0 %v4691
      %v5141 = vpop.f32.mrf.mxu0
      %v5142 = vadd.f32 0.0, %v5141
      %v5143 = vpop.f32.mrf.mxu0
      %v5144 = vpop.f32.mrf.mxu0
      %v5145 = vadd.f32 0.0, %v5144
      %v5146 = vpop.f32.mrf.mxu0
      %5147 = vmatprep.mubr.bf16.mxu0 0
      %5148 = vmatmul.mubr.bf16.gmra.mxu0 %v4694
      %v5149 = vpop.f32.mrf.mxu0
      %v5150 = vadd.f32 0.0, %v5149
      %v5151 = vpop.f32.mrf.mxu0
      %v5152 = vpop.f32.mrf.mxu0
      %v5153 = vadd.f32 0.0, %v5152
      %v5154 = vpop.f32.mrf.mxu0
      %5155 = vmatprep.mubr.bf16.mxu0 0
      %5156 = vmatmul.mubr.bf16.gmra.mxu0 %v4697
      %v5157 = vpop.f32.mrf.mxu0
      %v5158 = vadd.f32 0.0, %v5157
      %v5159 = vpop.f32.mrf.mxu0
      %v5160 = vpop.f32.mrf.mxu0
      %v5161 = vadd.f32 0.0, %v5160
      %v5162 = vpop.f32.mrf.mxu0
      %5163 = vmatprep.mubr.bf16.mxu0 0
      %5164 = vmatmul.mubr.bf16.gmra.mxu0 %v4700
      %v5165 = vpop.f32.mrf.mxu0
      %v5166 = vadd.f32 0.0, %v5165
      %v5167 = vpop.f32.mrf.mxu0
      %v5168 = vpop.f32.mrf.mxu0
      %v5169 = vadd.f32 0.0, %v5168
      %v5170 = vpop.f32.mrf.mxu0
      %5171 = vmatprep.mubr.bf16.mxu0 0
      %5172 = vmatmul.mubr.bf16.gmra.mxu0 %v4703
      %v5173 = vpop.f32.mrf.mxu0
      %v5174 = vadd.f32 0.0, %v5173
      %v5175 = vpop.f32.mrf.mxu0
      %v5176 = vpop.f32.mrf.mxu0
      %v5177 = vadd.f32 0.0, %v5176
      %v5178 = vpop.f32.mrf.mxu0
      %5179 = vmatprep.mubr.bf16.mxu0 0
      %5180 = vmatmul.mubr.bf16.gmra.mxu0 %v4706
      %v5181 = vpop.f32.mrf.mxu0
      %v5182 = vadd.f32 0.0, %v5181
      %v5183 = vpop.f32.mrf.mxu0
      %v5184 = vpop.f32.mrf.mxu0
      %v5185 = vadd.f32 0.0, %v5184
      %v5186 = vpop.f32.mrf.mxu0
      %5187 = vmatprep.mubr.bf16.mxu0 0
      %5188 = vmatmul.mubr.bf16.gmra.mxu0 %v4709
      %v5189 = vpop.f32.mrf.mxu0
      %v5190 = vadd.f32 0.0, %v5189
      %v5191 = vpop.f32.mrf.mxu0
      %v5192 = vpop.f32.mrf.mxu0
      %v5193 = vadd.f32 0.0, %v5192
      %v5194 = vpop.f32.mrf.mxu0
      %5195 = vmatprep.mubr.bf16.mxu0 0
      %5196 = vmatmul.mubr.bf16.gmra.mxu0 %v4712
      %v5197 = vpop.f32.mrf.mxu0
      %v5198 = vadd.f32 0.0, %v5197
      %v5199 = vpop.f32.mrf.mxu0
      %v5200 = vpop.f32.mrf.mxu0
      %v5201 = vadd.f32 0.0, %v5200
      %v5202 = vpop.f32.mrf.mxu0
      %5203 = vmatprep.mubr.bf16.mxu0 0
      %5204 = vmatmul.mubr.bf16.gmra.mxu0 %v4715
      %v5205 = vpop.f32.mrf.mxu0
      %v5206 = vadd.f32 0.0, %v5205
      %v5207 = vpop.f32.mrf.mxu0
      %v5208 = vpop.f32.mrf.mxu0
      %v5209 = vadd.f32 0.0, %v5208
      %v5210 = vpop.f32.mrf.mxu0
      %5211 = vmatprep.mubr.bf16.mxu0 0
      %5212 = vmatmul.mubr.bf16.gmra.mxu0 %v4718
      %v5213 = vpop.f32.mrf.mxu0
      %v5214 = vadd.f32 0.0, %v5213
      %v5215 = vpop.f32.mrf.mxu0
      %v5216 = vpop.f32.mrf.mxu0
      %v5217 = vadd.f32 0.0, %v5216
      %v5218 = vpop.f32.mrf.mxu0
      %5219 = vmatprep.mubr.bf16.mxu0 0
      %5220 = vmatmul.mubr.bf16.gmra.mxu0 %v4721
      %v5221 = vpop.f32.mrf.mxu0
      %v5222 = vadd.f32 0.0, %v5221
      %v5223 = vpop.f32.mrf.mxu0
      %v5224 = vpop.f32.mrf.mxu0
      %v5225 = vadd.f32 0.0, %v5224
      %v5226 = vpop.f32.mrf.mxu0
      %5227 = vmatprep.mubr.bf16.mxu0 0
      %5228 = vmatmul.mubr.bf16.gmra.mxu0 %v4724
      %v5229 = vpop.f32.mrf.mxu0
      %v5230 = vadd.f32 0.0, %v5229
      %v5231 = vpop.f32.mrf.mxu0
      %v5232 = vpop.f32.mrf.mxu0
      %v5233 = vadd.f32 0.0, %v5232
      %v5234 = vpop.f32.mrf.mxu0
      %5235 = vmatprep.mubr.bf16.mxu0 0
      %5236 = vmatmul.mubr.bf16.gmra.mxu0 %v4727
      %v5237 = vpop.f32.mrf.mxu0
      %v5238 = vadd.f32 0.0, %v5237
      %v5239 = vpop.f32.mrf.mxu0
      %v5240 = vpop.f32.mrf.mxu0
      %v5241 = vadd.f32 0.0, %v5240
      %v5242 = vpop.f32.mrf.mxu0
      %5243 = vmatprep.mubr.bf16.mxu0 0
      %5244 = vmatmul.mubr.bf16.gmra.mxu0 %v4730
      %v5245 = vpop.f32.mrf.mxu0
      %v5246 = vadd.f32 0.0, %v5245
      %v5247 = vpop.f32.mrf.mxu0
      %v5248 = vpop.f32.mrf.mxu0
      %v5249 = vadd.f32 0.0, %v5248
      %v5250 = vpop.f32.mrf.mxu0
      %5251 = vmatprep.mubr.bf16.mxu0 0
      %5252 = vmatmul.mubr.bf16.gmra.mxu0 %v4733
      %v5253 = vpop.f32.mrf.mxu0
      %v5254 = vadd.f32 0.0, %v5253
      %v5255 = vpop.f32.mrf.mxu0
      %v5256 = vpop.f32.mrf.mxu0
      %v5257 = vadd.f32 0.0, %v5256
      %v5258 = vpop.f32.mrf.mxu0
      %5259 = vmatprep.mubr.bf16.mxu0 0
      %5260 = vmatmul.mubr.bf16.gmra.mxu0 %v4736
      %v5261 = vpop.f32.mrf.mxu0
      %v5262 = vadd.f32 0.0, %v5261
      %v5263 = vpop.f32.mrf.mxu0
      %v5264 = vpop.f32.mrf.mxu0
      %v5265 = vadd.f32 0.0, %v5264
      %v5266 = vpop.f32.mrf.mxu0
      %5267 = vmatprep.mubr.bf16.mxu0 0
      %5268 = vmatmul.mubr.bf16.gmra.mxu0 %v4739
      %v5269 = vpop.f32.mrf.mxu0
      %v5270 = vadd.f32 0.0, %v5269
      %v5271 = vpop.f32.mrf.mxu0
      %v5272 = vpop.f32.mrf.mxu0
      %v5273 = vadd.f32 0.0, %v5272
      %v5274 = vpop.f32.mrf.mxu0
      %5275 = vmatprep.mubr.bf16.mxu0 0
      %5276 = vmatmul.mubr.bf16.gmra.mxu0 %v4742
      %v5277 = vpop.f32.mrf.mxu0
      %v5278 = vadd.f32 0.0, %v5277
      %v5279 = vpop.f32.mrf.mxu0
      %v5280 = vpop.f32.mrf.mxu0
      %v5281 = vadd.f32 0.0, %v5280
      %v5282 = vpop.f32.mrf.mxu0
      %5283 = vmatprep.mubr.bf16.mxu0 0
      %5284 = vmatmul.mubr.bf16.gmra.mxu0 %v4745
      %v5285 = vpop.f32.mrf.mxu0
      %v5286 = vadd.f32 0.0, %v5285
      %v5287 = vpop.f32.mrf.mxu0
      %v5288 = vpop.f32.mrf.mxu0
      %v5289 = vadd.f32 0.0, %v5288
      %v5290 = vpop.f32.mrf.mxu0
      %5291 = vdwg.mxu0
      %v5292 = vadd.f32 %v3313, %v4782
      %v5293 = vadd.f32 %v3316, %v4785
      %v5294 = vadd.f32 %v3321, %v4790
      %v5295 = vadd.f32 %v3324, %v4793
      %v5296 = vadd.f32 %v3329, %v4798
      %v5297 = vadd.f32 %v3332, %v4801
      %v5298 = vadd.f32 %v3337, %v4806
      %v5299 = vadd.f32 %v3340, %v4809
      %v5300 = vadd.f32 %v3345, %v4814
      %v5301 = vadd.f32 %v3348, %v4817
      %v5302 = vadd.f32 %v3353, %v4822
      %v5303 = vadd.f32 %v3356, %v4825
      %v5304 = vadd.f32 %v3361, %v4830
      %v5305 = vadd.f32 %v3364, %v4833
      %v5306 = vadd.f32 %v3369, %v4838
      %v5307 = vadd.f32 %v3372, %v4841
      %v5308 = vadd.f32 %v3377, %v4846
      %v5309 = vadd.f32 %v3380, %v4849
      %v5310 = vadd.f32 %v3385, %v4854
      %v5311 = vadd.f32 %v3388, %v4857
      %v5312 = vadd.f32 %v3393, %v4862
      %v5313 = vadd.f32 %v3396, %v4865
      %v5314 = vadd.f32 %v3401, %v4870
      %v5315 = vadd.f32 %v3404, %v4873
      %v5316 = vadd.f32 %v3409, %v4878
      %v5317 = vadd.f32 %v3412, %v4881
      %v5318 = vadd.f32 %v3417, %v4886
      %v5319 = vadd.f32 %v3420, %v4889
      %v5320 = vadd.f32 %v3425, %v4894
      %v5321 = vadd.f32 %v3428, %v4897
      %v5322 = vadd.f32 %v3433, %v4902
      %v5323 = vadd.f32 %v3436, %v4905
      %v5324 = vadd.f32 %v3441, %v4910
      %v5325 = vadd.f32 %v3444, %v4913
      %v5326 = vadd.f32 %v3449, %v4918
      %v5327 = vadd.f32 %v3452, %v4921
      %v5328 = vadd.f32 %v3457, %v4926
      %v5329 = vadd.f32 %v3460, %v4929
      %v5330 = vadd.f32 %v3465, %v4934
      %v5331 = vadd.f32 %v3468, %v4937
      %v5332 = vadd.f32 %v3473, %v4942
      %v5333 = vadd.f32 %v3476, %v4945
      %v5334 = vadd.f32 %v3481, %v4950
      %v5335 = vadd.f32 %v3484, %v4953
      %v5336 = vadd.f32 %v3489, %v4958
      %v5337 = vadd.f32 %v3492, %v4961
      %v5338 = vadd.f32 %v3497, %v4966
      %v5339 = vadd.f32 %v3500, %v4969
      %v5340 = vadd.f32 %v3505, %v4974
      %v5341 = vadd.f32 %v3508, %v4977
      %v5342 = vadd.f32 %v3513, %v4982
      %v5343 = vadd.f32 %v3516, %v4985
      %v5344 = vadd.f32 %v3521, %v4990
      %v5345 = vadd.f32 %v3524, %v4993
      %v5346 = vadd.f32 %v3529, %v4998
      %v5347 = vadd.f32 %v3532, %v5001
      %v5348 = vadd.f32 %v3537, %v5006
      %v5349 = vadd.f32 %v3540, %v5009
      %v5350 = vadd.f32 %v3545, %v5014
      %v5351 = vadd.f32 %v3548, %v5017
      %v5352 = vadd.f32 %v3553, %v5022
      %v5353 = vadd.f32 %v3556, %v5025
      %v5354 = vadd.f32 %v3561, %v5030
      %v5355 = vadd.f32 %v3564, %v5033
      %v5356 = vadd.f32 %v3569, %v5038
      %v5357 = vadd.f32 %v3572, %v5041
      %v5358 = vadd.f32 %v3577, %v5046
      %v5359 = vadd.f32 %v3580, %v5049
      %v5360 = vadd.f32 %v3585, %v5054
      %v5361 = vadd.f32 %v3588, %v5057
      %v5362 = vadd.f32 %v3593, %v5062
      %v5363 = vadd.f32 %v3596, %v5065
      %v5364 = vadd.f32 %v3601, %v5070
      %v5365 = vadd.f32 %v3604, %v5073
      %v5366 = vadd.f32 %v3609, %v5078
      %v5367 = vadd.f32 %v3612, %v5081
      %v5368 = vadd.f32 %v3617, %v5086
      %v5369 = vadd.f32 %v3620, %v5089
      %v5370 = vadd.f32 %v3625, %v5094
      %v5371 = vadd.f32 %v3628, %v5097
      %v5372 = vadd.f32 %v3633, %v5102
      %v5373 = vadd.f32 %v3636, %v5105
      %v5374 = vadd.f32 %v3641, %v5110
      %v5375 = vadd.f32 %v3644, %v5113
      %v5376 = vadd.f32 %v3649, %v5118
      %v5377 = vadd.f32 %v3652, %v5121
      %v5378 = vadd.f32 %v3657, %v5126
      %v5379 = vadd.f32 %v3660, %v5129
      %v5380 = vadd.f32 %v3665, %v5134
      %v5381 = vadd.f32 %v3668, %v5137
      %v5382 = vadd.f32 %v3673, %v5142
      %v5383 = vadd.f32 %v3676, %v5145
      %v5384 = vadd.f32 %v3681, %v5150
      %v5385 = vadd.f32 %v3684, %v5153
      %v5386 = vadd.f32 %v3689, %v5158
      %v5387 = vadd.f32 %v3692, %v5161
      %v5388 = vadd.f32 %v3697, %v5166
      %v5389 = vadd.f32 %v3700, %v5169
      %v5390 = vadd.f32 %v3705, %v5174
      %v5391 = vadd.f32 %v3708, %v5177
      %v5392 = vadd.f32 %v3713, %v5182
      %v5393 = vadd.f32 %v3716, %v5185
      %v5394 = vadd.f32 %v3721, %v5190
      %v5395 = vadd.f32 %v3724, %v5193
      %v5396 = vadd.f32 %v3729, %v5198
      %v5397 = vadd.f32 %v3732, %v5201
      %v5398 = vadd.f32 %v3737, %v5206
      %v5399 = vadd.f32 %v3740, %v5209
      %v5400 = vadd.f32 %v3745, %v5214
      %v5401 = vadd.f32 %v3748, %v5217
      %v5402 = vadd.f32 %v3753, %v5222
      %v5403 = vadd.f32 %v3756, %v5225
      %v5404 = vadd.f32 %v3761, %v5230
      %v5405 = vadd.f32 %v3764, %v5233
      %v5406 = vadd.f32 %v3769, %v5238
      %v5407 = vadd.f32 %v3772, %v5241
      %v5408 = vadd.f32 %v3777, %v5246
      %v5409 = vadd.f32 %v3780, %v5249
      %v5410 = vadd.f32 %v3785, %v5254
      %v5411 = vadd.f32 %v3788, %v5257
      %v5412 = vadd.f32 %v3793, %v5262
      %v5413 = vadd.f32 %v3796, %v5265
      %v5414 = vadd.f32 %v3801, %v5270
      %v5415 = vadd.f32 %v3804, %v5273
      %v5416 = vadd.f32 %v3809, %v5278
      %v5417 = vadd.f32 %v3812, %v5281
      %v5418 = vadd.f32 %v3817, %v5286
      %v5419 = vadd.f32 %v3820, %v5289
      %v5420 = vld [vmem:[%s2] sm:$0x1]
      %v5422 = vlaneseq
      %v5423 = vshrl.u32 %v5422, 7
      %v5424 = vsub.s32 0, %v5423
      %v5425 = vrot.slane %v5420, %v5424
      %v5427 = vadd.f32 %v5292, %v5425
      %v5428 = vadd.f32 %v5293, %v5425
      %v5429 = vadd.f32 %v5294, %v5425
      %v5430 = vadd.f32 %v5295, %v5425
      %v5431 = vadd.f32 %v5296, %v5425
      %v5432 = vadd.f32 %v5297, %v5425
      %v5433 = vadd.f32 %v5298, %v5425
      %v5434 = vadd.f32 %v5299, %v5425
      %v5435 = vadd.f32 %v5300, %v5425
      %v5436 = vadd.f32 %v5301, %v5425
      %v5437 = vadd.f32 %v5302, %v5425
      %v5438 = vadd.f32 %v5303, %v5425
      %v5439 = vadd.f32 %v5304, %v5425
      %v5440 = vadd.f32 %v5305, %v5425
      %v5441 = vadd.f32 %v5306, %v5425
      %v5442 = vadd.f32 %v5307, %v5425
      %v5443 = vadd.f32 %v5308, %v5425
      %v5444 = vadd.f32 %v5309, %v5425
      %v5445 = vadd.f32 %v5310, %v5425
      %v5446 = vadd.f32 %v5311, %v5425
      %v5447 = vadd.f32 %v5312, %v5425
      %v5448 = vadd.f32 %v5313, %v5425
      %v5449 = vadd.f32 %v5314, %v5425
      %v5450 = vadd.f32 %v5315, %v5425
      %v5451 = vadd.f32 %v5316, %v5425
      %v5452 = vadd.f32 %v5317, %v5425
      %v5453 = vadd.f32 %v5318, %v5425
      %v5454 = vadd.f32 %v5319, %v5425
      %v5455 = vadd.f32 %v5320, %v5425
      %v5456 = vadd.f32 %v5321, %v5425
      %v5457 = vadd.f32 %v5322, %v5425
      %v5458 = vadd.f32 %v5323, %v5425
      %v5459 = vadd.f32 %v5324, %v5425
      %v5460 = vadd.f32 %v5325, %v5425
      %v5461 = vadd.f32 %v5326, %v5425
      %v5462 = vadd.f32 %v5327, %v5425
      %v5463 = vadd.f32 %v5328, %v5425
      %v5464 = vadd.f32 %v5329, %v5425
      %v5465 = vadd.f32 %v5330, %v5425
      %v5466 = vadd.f32 %v5331, %v5425
      %v5467 = vadd.f32 %v5332, %v5425
      %v5468 = vadd.f32 %v5333, %v5425
      %v5469 = vadd.f32 %v5334, %v5425
      %v5470 = vadd.f32 %v5335, %v5425
      %v5471 = vadd.f32 %v5336, %v5425
      %v5472 = vadd.f32 %v5337, %v5425
      %v5473 = vadd.f32 %v5338, %v5425
      %v5474 = vadd.f32 %v5339, %v5425
      %v5475 = vadd.f32 %v5340, %v5425
      %v5476 = vadd.f32 %v5341, %v5425
      %v5477 = vadd.f32 %v5342, %v5425
      %v5478 = vadd.f32 %v5343, %v5425
      %v5479 = vadd.f32 %v5344, %v5425
      %v5480 = vadd.f32 %v5345, %v5425
      %v5481 = vadd.f32 %v5346, %v5425
      %v5482 = vadd.f32 %v5347, %v5425
      %v5483 = vadd.f32 %v5348, %v5425
      %v5484 = vadd.f32 %v5349, %v5425
      %v5485 = vadd.f32 %v5350, %v5425
      %v5486 = vadd.f32 %v5351, %v5425
      %v5487 = vadd.f32 %v5352, %v5425
      %v5488 = vadd.f32 %v5353, %v5425
      %v5489 = vadd.f32 %v5354, %v5425
      %v5490 = vadd.f32 %v5355, %v5425
      %v5491 = vadd.f32 %v5356, %v5425
      %v5492 = vadd.f32 %v5357, %v5425
      %v5493 = vadd.f32 %v5358, %v5425
      %v5494 = vadd.f32 %v5359, %v5425
      %v5495 = vadd.f32 %v5360, %v5425
      %v5496 = vadd.f32 %v5361, %v5425
      %v5497 = vadd.f32 %v5362, %v5425
      %v5498 = vadd.f32 %v5363, %v5425
      %v5499 = vadd.f32 %v5364, %v5425
      %v5500 = vadd.f32 %v5365, %v5425
      %v5501 = vadd.f32 %v5366, %v5425
      %v5502 = vadd.f32 %v5367, %v5425
      %v5503 = vadd.f32 %v5368, %v5425
      %v5504 = vadd.f32 %v5369, %v5425
      %v5505 = vadd.f32 %v5370, %v5425
      %v5506 = vadd.f32 %v5371, %v5425
      %v5507 = vadd.f32 %v5372, %v5425
      %v5508 = vadd.f32 %v5373, %v5425
      %v5509 = vadd.f32 %v5374, %v5425
      %v5510 = vadd.f32 %v5375, %v5425
      %v5511 = vadd.f32 %v5376, %v5425
      %v5512 = vadd.f32 %v5377, %v5425
      %v5513 = vadd.f32 %v5378, %v5425
      %v5514 = vadd.f32 %v5379, %v5425
      %v5515 = vadd.f32 %v5380, %v5425
      %v5516 = vadd.f32 %v5381, %v5425
      %v5517 = vadd.f32 %v5382, %v5425
      %v5518 = vadd.f32 %v5383, %v5425
      %v5519 = vadd.f32 %v5384, %v5425
      %v5520 = vadd.f32 %v5385, %v5425
      %v5521 = vadd.f32 %v5386, %v5425
      %v5522 = vadd.f32 %v5387, %v5425
      %v5523 = vadd.f32 %v5388, %v5425
      %v5524 = vadd.f32 %v5389, %v5425
      %v5525 = vadd.f32 %v5390, %v5425
      %v5526 = vadd.f32 %v5391, %v5425
      %v5527 = vadd.f32 %v5392, %v5425
      %v5528 = vadd.f32 %v5393, %v5425
      %v5529 = vadd.f32 %v5394, %v5425
      %v5530 = vadd.f32 %v5395, %v5425
      %v5531 = vadd.f32 %v5396, %v5425
      %v5532 = vadd.f32 %v5397, %v5425
      %v5533 = vadd.f32 %v5398, %v5425
      %v5534 = vadd.f32 %v5399, %v5425
      %v5535 = vadd.f32 %v5400, %v5425
      %v5536 = vadd.f32 %v5401, %v5425
      %v5537 = vadd.f32 %v5402, %v5425
      %v5538 = vadd.f32 %v5403, %v5425
      %v5539 = vadd.f32 %v5404, %v5425
      %v5540 = vadd.f32 %v5405, %v5425
      %v5541 = vadd.f32 %v5406, %v5425
      %v5542 = vadd.f32 %v5407, %v5425
      %v5543 = vadd.f32 %v5408, %v5425
      %v5544 = vadd.f32 %v5409, %v5425
      %v5545 = vadd.f32 %v5410, %v5425
      %v5546 = vadd.f32 %v5411, %v5425
      %v5547 = vadd.f32 %v5412, %v5425
      %v5548 = vadd.f32 %v5413, %v5425
      %v5549 = vadd.f32 %v5414, %v5425
      %v5550 = vadd.f32 %v5415, %v5425
      %v5551 = vadd.f32 %v5416, %v5425
      %v5552 = vadd.f32 %v5417, %v5425
      %v5553 = vadd.f32 %v5418, %v5425
      %v5554 = vadd.f32 %v5419, %v5425
      %v5555 = vpack.c.bf16 %v5428, %v5427
      %v5556 = vpack.c.bf16 %v5430, %v5429
      %v5557 = vpack.c.bf16 %v5432, %v5431
      %v5558 = vpack.c.bf16 %v5434, %v5433
      %v5559 = vpack.c.bf16 %v5436, %v5435
      %v5560 = vpack.c.bf16 %v5438, %v5437
      %v5561 = vpack.c.bf16 %v5440, %v5439
      %v5562 = vpack.c.bf16 %v5442, %v5441
      %v5563 = vpack.c.bf16 %v5444, %v5443
      %v5564 = vpack.c.bf16 %v5446, %v5445
      %v5565 = vpack.c.bf16 %v5448, %v5447
      %v5566 = vpack.c.bf16 %v5450, %v5449
      %v5567 = vpack.c.bf16 %v5452, %v5451
      %v5568 = vpack.c.bf16 %v5454, %v5453
      %v5569 = vpack.c.bf16 %v5456, %v5455
      %v5570 = vpack.c.bf16 %v5458, %v5457
      %v5571 = vpack.c.bf16 %v5460, %v5459
      %v5572 = vpack.c.bf16 %v5462, %v5461
      %v5573 = vpack.c.bf16 %v5464, %v5463
      %v5574 = vpack.c.bf16 %v5466, %v5465
      %v5575 = vpack.c.bf16 %v5468, %v5467
      %v5576 = vpack.c.bf16 %v5470, %v5469
      %v5577 = vpack.c.bf16 %v5472, %v5471
      %v5578 = vpack.c.bf16 %v5474, %v5473
      %v5579 = vpack.c.bf16 %v5476, %v5475
      %v5580 = vpack.c.bf16 %v5478, %v5477
      %v5581 = vpack.c.bf16 %v5480, %v5479
      %v5582 = vpack.c.bf16 %v5482, %v5481
      %v5583 = vpack.c.bf16 %v5484, %v5483
      %v5584 = vpack.c.bf16 %v5486, %v5485
      %v5585 = vpack.c.bf16 %v5488, %v5487
      %v5586 = vpack.c.bf16 %v5490, %v5489
      %v5587 = vpack.c.bf16 %v5492, %v5491
      %v5588 = vpack.c.bf16 %v5494, %v5493
      %v5589 = vpack.c.bf16 %v5496, %v5495
      %v5590 = vpack.c.bf16 %v5498, %v5497
      %v5591 = vpack.c.bf16 %v5500, %v5499
      %v5592 = vpack.c.bf16 %v5502, %v5501
      %v5593 = vpack.c.bf16 %v5504, %v5503
      %v5594 = vpack.c.bf16 %v5506, %v5505
      %v5595 = vpack.c.bf16 %v5508, %v5507
      %v5596 = vpack.c.bf16 %v5510, %v5509
      %v5597 = vpack.c.bf16 %v5512, %v5511
      %v5598 = vpack.c.bf16 %v5514, %v5513
      %v5599 = vpack.c.bf16 %v5516, %v5515
      %v5600 = vpack.c.bf16 %v5518, %v5517
      %v5601 = vpack.c.bf16 %v5520, %v5519
      %v5602 = vpack.c.bf16 %v5522, %v5521
      %v5603 = vpack.c.bf16 %v5524, %v5523
      %v5604 = vpack.c.bf16 %v5526, %v5525
      %v5605 = vpack.c.bf16 %v5528, %v5527
      %v5606 = vpack.c.bf16 %v5530, %v5529
      %v5607 = vpack.c.bf16 %v5532, %v5531
      %v5608 = vpack.c.bf16 %v5534, %v5533
      %v5609 = vpack.c.bf16 %v5536, %v5535
      %v5610 = vpack.c.bf16 %v5538, %v5537
      %v5611 = vpack.c.bf16 %v5540, %v5539
      %v5612 = vpack.c.bf16 %v5542, %v5541
      %v5613 = vpack.c.bf16 %v5544, %v5543
      %v5614 = vpack.c.bf16 %v5546, %v5545
      %v5615 = vpack.c.bf16 %v5548, %v5547
      %v5616 = vpack.c.bf16 %v5550, %v5549
      %v5617 = vpack.c.bf16 %v5552, %v5551
      %v5618 = vpack.c.bf16 %v5554, %v5553
      %v5683 = vunpack.c.l.b16 %v5555
      %v5684 = vunpack.c.h.b16 %v5555
      %v5685 = vunpack.c.l.b16 %v5556
      %v5686 = vunpack.c.h.b16 %v5556
      %v5687 = vunpack.c.l.b16 %v5557
      %v5688 = vunpack.c.h.b16 %v5557
      %v5689 = vunpack.c.l.b16 %v5558
      %v5690 = vunpack.c.h.b16 %v5558
      %v5691 = vunpack.c.l.b16 %v5559
      %v5692 = vunpack.c.h.b16 %v5559
      %v5693 = vunpack.c.l.b16 %v5560
      %v5694 = vunpack.c.h.b16 %v5560
      %v5695 = vunpack.c.l.b16 %v5561
      %v5696 = vunpack.c.h.b16 %v5561
      %v5697 = vunpack.c.l.b16 %v5562
      %v5698 = vunpack.c.h.b16 %v5562
      %v5699 = vunpack.c.l.b16 %v5563
      %v5700 = vunpack.c.h.b16 %v5563
      %v5701 = vunpack.c.l.b16 %v5564
      %v5702 = vunpack.c.h.b16 %v5564
      %v5703 = vunpack.c.l.b16 %v5565
      %v5704 = vunpack.c.h.b16 %v5565
      %v5705 = vunpack.c.l.b16 %v5566
      %v5706 = vunpack.c.h.b16 %v5566
      %v5707 = vunpack.c.l.b16 %v5567
      %v5708 = vunpack.c.h.b16 %v5567
      %v5709 = vunpack.c.l.b16 %v5568
      %v5710 = vunpack.c.h.b16 %v5568
      %v5711 = vunpack.c.l.b16 %v5569
      %v5712 = vunpack.c.h.b16 %v5569
      %v5713 = vunpack.c.l.b16 %v5570
      %v5714 = vunpack.c.h.b16 %v5570
      %v5715 = vunpack.c.l.b16 %v5571
      %v5716 = vunpack.c.h.b16 %v5571
      %v5717 = vunpack.c.l.b16 %v5572
      %v5718 = vunpack.c.h.b16 %v5572
      %v5719 = vunpack.c.l.b16 %v5573
      %v5720 = vunpack.c.h.b16 %v5573
      %v5721 = vunpack.c.l.b16 %v5574
      %v5722 = vunpack.c.h.b16 %v5574
      %v5723 = vunpack.c.l.b16 %v5575
      %v5724 = vunpack.c.h.b16 %v5575
      %v5725 = vunpack.c.l.b16 %v5576
      %v5726 = vunpack.c.h.b16 %v5576
      %v5727 = vunpack.c.l.b16 %v5577
      %v5728 = vunpack.c.h.b16 %v5577
      %v5729 = vunpack.c.l.b16 %v5578
      %v5730 = vunpack.c.h.b16 %v5578
      %v5731 = vunpack.c.l.b16 %v5579
      %v5732 = vunpack.c.h.b16 %v5579
      %v5733 = vunpack.c.l.b16 %v5580
      %v5734 = vunpack.c.h.b16 %v5580
      %v5735 = vunpack.c.l.b16 %v5581
      %v5736 = vunpack.c.h.b16 %v5581
      %v5737 = vunpack.c.l.b16 %v5582
      %v5738 = vunpack.c.h.b16 %v5582
      %v5739 = vunpack.c.l.b16 %v5583
      %v5740 = vunpack.c.h.b16 %v5583
      %v5741 = vunpack.c.l.b16 %v5584
      %v5742 = vunpack.c.h.b16 %v5584
      %v5743 = vunpack.c.l.b16 %v5585
      %v5744 = vunpack.c.h.b16 %v5585
      %v5745 = vunpack.c.l.b16 %v5586
      %v5746 = vunpack.c.h.b16 %v5586
      %v5747 = vunpack.c.l.b16 %v5587
      %v5748 = vunpack.c.h.b16 %v5587
      %v5749 = vunpack.c.l.b16 %v5588
      %v5750 = vunpack.c.h.b16 %v5588
      %v5751 = vunpack.c.l.b16 %v5589
      %v5752 = vunpack.c.h.b16 %v5589
      %v5753 = vunpack.c.l.b16 %v5590
      %v5754 = vunpack.c.h.b16 %v5590
      %v5755 = vunpack.c.l.b16 %v5591
      %v5756 = vunpack.c.h.b16 %v5591
      %v5757 = vunpack.c.l.b16 %v5592
      %v5758 = vunpack.c.h.b16 %v5592
      %v5759 = vunpack.c.l.b16 %v5593
      %v5760 = vunpack.c.h.b16 %v5593
      %v5761 = vunpack.c.l.b16 %v5594
      %v5762 = vunpack.c.h.b16 %v5594
      %v5763 = vunpack.c.l.b16 %v5595
      %v5764 = vunpack.c.h.b16 %v5595
      %v5765 = vunpack.c.l.b16 %v5596
      %v5766 = vunpack.c.h.b16 %v5596
      %v5767 = vunpack.c.l.b16 %v5597
      %v5768 = vunpack.c.h.b16 %v5597
      %v5769 = vunpack.c.l.b16 %v5598
      %v5770 = vunpack.c.h.b16 %v5598
      %v5771 = vunpack.c.l.b16 %v5599
      %v5772 = vunpack.c.h.b16 %v5599
      %v5773 = vunpack.c.l.b16 %v5600
      %v5774 = vunpack.c.h.b16 %v5600
      %v5775 = vunpack.c.l.b16 %v5601
      %v5776 = vunpack.c.h.b16 %v5601
      %v5777 = vunpack.c.l.b16 %v5602
      %v5778 = vunpack.c.h.b16 %v5602
      %v5779 = vunpack.c.l.b16 %v5603
      %v5780 = vunpack.c.h.b16 %v5603
      %v5781 = vunpack.c.l.b16 %v5604
      %v5782 = vunpack.c.h.b16 %v5604
      %v5783 = vunpack.c.l.b16 %v5605
      %v5784 = vunpack.c.h.b16 %v5605
      %v5785 = vunpack.c.l.b16 %v5606
      %v5786 = vunpack.c.h.b16 %v5606
      %v5787 = vunpack.c.l.b16 %v5607
      %v5788 = vunpack.c.h.b16 %v5607
      %v5789 = vunpack.c.l.b16 %v5608
      %v5790 = vunpack.c.h.b16 %v5608
      %v5791 = vunpack.c.l.b16 %v5609
      %v5792 = vunpack.c.h.b16 %v5609
      %v5793 = vunpack.c.l.b16 %v5610
      %v5794 = vunpack.c.h.b16 %v5610
      %v5795 = vunpack.c.l.b16 %v5611
      %v5796 = vunpack.c.h.b16 %v5611
      %v5797 = vunpack.c.l.b16 %v5612
      %v5798 = vunpack.c.h.b16 %v5612
      %v5799 = vunpack.c.l.b16 %v5613
      %v5800 = vunpack.c.h.b16 %v5613
      %v5801 = vunpack.c.l.b16 %v5614
      %v5802 = vunpack.c.h.b16 %v5614
      %v5803 = vunpack.c.l.b16 %v5615
      %v5804 = vunpack.c.h.b16 %v5615
      %v5805 = vunpack.c.l.b16 %v5616
      %v5806 = vunpack.c.h.b16 %v5616
      %v5807 = vunpack.c.l.b16 %v5617
      %v5808 = vunpack.c.h.b16 %v5617
      %v5809 = vunpack.c.l.b16 %v5618
      %v5810 = vunpack.c.h.b16 %v5618
      %v5811 = vpack.c.b16 %v5683, %v5683
      %v5812 = vpack.c.b16 %v5684, %v5684
      %v5813 = vpack.c.b16 %v5685, %v5685
      %v5814 = vpack.c.b16 %v5686, %v5686
      %v5815 = vpack.c.b16 %v5687, %v5687
      %v5816 = vpack.c.b16 %v5688, %v5688
      %v5817 = vpack.c.b16 %v5689, %v5689
      %v5818 = vpack.c.b16 %v5690, %v5690
      %v5819 = vpack.c.b16 %v5691, %v5691
      %v5820 = vpack.c.b16 %v5692, %v5692
      %v5821 = vpack.c.b16 %v5693, %v5693
      %v5822 = vpack.c.b16 %v5694, %v5694
      %v5823 = vpack.c.b16 %v5695, %v5695
      %v5824 = vpack.c.b16 %v5696, %v5696
      %v5825 = vpack.c.b16 %v5697, %v5697
      %v5826 = vpack.c.b16 %v5698, %v5698
      %v5827 = vpack.c.b16 %v5699, %v5699
      %v5828 = vpack.c.b16 %v5700, %v5700
      %v5829 = vpack.c.b16 %v5701, %v5701
      %v5830 = vpack.c.b16 %v5702, %v5702
      %v5831 = vpack.c.b16 %v5703, %v5703
      %v5832 = vpack.c.b16 %v5704, %v5704
      %v5833 = vpack.c.b16 %v5705, %v5705
      %v5834 = vpack.c.b16 %v5706, %v5706
      %v5835 = vpack.c.b16 %v5707, %v5707
      %v5836 = vpack.c.b16 %v5708, %v5708
      %v5837 = vpack.c.b16 %v5709, %v5709
      %v5838 = vpack.c.b16 %v5710, %v5710
      %v5839 = vpack.c.b16 %v5711, %v5711
      %v5840 = vpack.c.b16 %v5712, %v5712
      %v5841 = vpack.c.b16 %v5713, %v5713
      %v5842 = vpack.c.b16 %v5714, %v5714
      %v5843 = vpack.c.b16 %v5715, %v5715
      %v5844 = vpack.c.b16 %v5716, %v5716
      %v5845 = vpack.c.b16 %v5717, %v5717
      %v5846 = vpack.c.b16 %v5718, %v5718
      %v5847 = vpack.c.b16 %v5719, %v5719
      %v5848 = vpack.c.b16 %v5720, %v5720
      %v5849 = vpack.c.b16 %v5721, %v5721
      %v5850 = vpack.c.b16 %v5722, %v5722
      %v5851 = vpack.c.b16 %v5723, %v5723
      %v5852 = vpack.c.b16 %v5724, %v5724
      %v5853 = vpack.c.b16 %v5725, %v5725
      %v5854 = vpack.c.b16 %v5726, %v5726
      %v5855 = vpack.c.b16 %v5727, %v5727
      %v5856 = vpack.c.b16 %v5728, %v5728
      %v5857 = vpack.c.b16 %v5729, %v5729
      %v5858 = vpack.c.b16 %v5730, %v5730
      %v5859 = vpack.c.b16 %v5731, %v5731
      %v5860 = vpack.c.b16 %v5732, %v5732
      %v5861 = vpack.c.b16 %v5733, %v5733
      %v5862 = vpack.c.b16 %v5734, %v5734
      %v5863 = vpack.c.b16 %v5735, %v5735
      %v5864 = vpack.c.b16 %v5736, %v5736
      %v5865 = vpack.c.b16 %v5737, %v5737
      %v5866 = vpack.c.b16 %v5738, %v5738
      %v5867 = vpack.c.b16 %v5739, %v5739
      %v5868 = vpack.c.b16 %v5740, %v5740
      %v5869 = vpack.c.b16 %v5741, %v5741
      %v5870 = vpack.c.b16 %v5742, %v5742
      %v5871 = vpack.c.b16 %v5743, %v5743
      %v5872 = vpack.c.b16 %v5744, %v5744
      %v5873 = vpack.c.b16 %v5745, %v5745
      %v5874 = vpack.c.b16 %v5746, %v5746
      %v5875 = vpack.c.b16 %v5747, %v5747
      %v5876 = vpack.c.b16 %v5748, %v5748
      %v5877 = vpack.c.b16 %v5749, %v5749
      %v5878 = vpack.c.b16 %v5750, %v5750
      %v5879 = vpack.c.b16 %v5751, %v5751
      %v5880 = vpack.c.b16 %v5752, %v5752
      %v5881 = vpack.c.b16 %v5753, %v5753
      %v5882 = vpack.c.b16 %v5754, %v5754
      %v5883 = vpack.c.b16 %v5755, %v5755
      %v5884 = vpack.c.b16 %v5756, %v5756
      %v5885 = vpack.c.b16 %v5757, %v5757
      %v5886 = vpack.c.b16 %v5758, %v5758
      %v5887 = vpack.c.b16 %v5759, %v5759
      %v5888 = vpack.c.b16 %v5760, %v5760
      %v5889 = vpack.c.b16 %v5761, %v5761
      %v5890 = vpack.c.b16 %v5762, %v5762
      %v5891 = vpack.c.b16 %v5763, %v5763
      %v5892 = vpack.c.b16 %v5764, %v5764
      %v5893 = vpack.c.b16 %v5765, %v5765
      %v5894 = vpack.c.b16 %v5766, %v5766
      %v5895 = vpack.c.b16 %v5767, %v5767
      %v5896 = vpack.c.b16 %v5768, %v5768
      %v5897 = vpack.c.b16 %v5769, %v5769
      %v5898 = vpack.c.b16 %v5770, %v5770
      %v5899 = vpack.c.b16 %v5771, %v5771
      %v5900 = vpack.c.b16 %v5772, %v5772
      %v5901 = vpack.c.b16 %v5773, %v5773
      %v5902 = vpack.c.b16 %v5774, %v5774
      %v5903 = vpack.c.b16 %v5775, %v5775
      %v5904 = vpack.c.b16 %v5776, %v5776
      %v5905 = vpack.c.b16 %v5777, %v5777
      %v5906 = vpack.c.b16 %v5778, %v5778
      %v5907 = vpack.c.b16 %v5779, %v5779
      %v5908 = vpack.c.b16 %v5780, %v5780
      %v5909 = vpack.c.b16 %v5781, %v5781
      %v5910 = vpack.c.b16 %v5782, %v5782
      %v5911 = vpack.c.b16 %v5783, %v5783
      %v5912 = vpack.c.b16 %v5784, %v5784
      %v5913 = vpack.c.b16 %v5785, %v5785
      %v5914 = vpack.c.b16 %v5786, %v5786
      %v5915 = vpack.c.b16 %v5787, %v5787
      %v5916 = vpack.c.b16 %v5788, %v5788
      %v5917 = vpack.c.b16 %v5789, %v5789
      %v5918 = vpack.c.b16 %v5790, %v5790
      %v5919 = vpack.c.b16 %v5791, %v5791
      %v5920 = vpack.c.b16 %v5792, %v5792
      %v5921 = vpack.c.b16 %v5793, %v5793
      %v5922 = vpack.c.b16 %v5794, %v5794
      %v5923 = vpack.c.b16 %v5795, %v5795
      %v5924 = vpack.c.b16 %v5796, %v5796
      %v5925 = vpack.c.b16 %v5797, %v5797
      %v5926 = vpack.c.b16 %v5798, %v5798
      %v5927 = vpack.c.b16 %v5799, %v5799
      %v5928 = vpack.c.b16 %v5800, %v5800
      %v5929 = vpack.c.b16 %v5801, %v5801
      %v5930 = vpack.c.b16 %v5802, %v5802
      %v5931 = vpack.c.b16 %v5803, %v5803
      %v5932 = vpack.c.b16 %v5804, %v5804
      %v5933 = vpack.c.b16 %v5805, %v5805
      %v5934 = vpack.c.b16 %v5806, %v5806
      %v5935 = vpack.c.b16 %v5807, %v5807
      %v5936 = vpack.c.b16 %v5808, %v5808
      %v5937 = vpack.c.b16 %v5809, %v5809
      %v5938 = vpack.c.b16 %v5810, %v5810
      %vm6067 = vcmask 257024
      %6068 = vst.msk [vmem:[%s213] sm:$0xf] %vm6067, %v5811
      %6069 = vst.msk [vmem:[%s213 + $0x4] sm:$0xf] %vm6067, %v5812
      %6070 = vst.msk [vmem:[%s213 + $0x8] sm:$0xf] %vm6067, %v5813
      %6071 = vst.msk [vmem:[%s213 + $0xc] sm:$0xf] %vm6067, %v5814
      %6072 = vst.msk [vmem:[%s213 + $0x10] sm:$0xf] %vm6067, %v5815
      %6073 = vst.msk [vmem:[%s213 + $0x14] sm:$0xf] %vm6067, %v5816
      %6074 = vst.msk [vmem:[%s213 + $0x18] sm:$0xf] %vm6067, %v5817
      %6075 = vst.msk [vmem:[%s213 + $0x1c] sm:$0xf] %vm6067, %v5818
      %6076 = vst.msk [vmem:[%s213 + $0x20] sm:$0xf] %vm6067, %v5819
      %6077 = vst.msk [vmem:[%s213 + $0x24] sm:$0xf] %vm6067, %v5820
      %6078 = vst.msk [vmem:[%s213 + $0x28] sm:$0xf] %vm6067, %v5821
      %6079 = vst.msk [vmem:[%s213 + $0x2c] sm:$0xf] %vm6067, %v5822
      %6080 = vst.msk [vmem:[%s213 + $0x30] sm:$0xf] %vm6067, %v5823
      %6081 = vst.msk [vmem:[%s213 + $0x34] sm:$0xf] %vm6067, %v5824
      %6082 = vst.msk [vmem:[%s213 + $0x38] sm:$0xf] %vm6067, %v5825
      %6083 = vst.msk [vmem:[%s213 + $0x3c] sm:$0xf] %vm6067, %v5826
      %6084 = vst.msk [vmem:[%s213 + $0x40] sm:$0xf] %vm6067, %v5827
      %6085 = vst.msk [vmem:[%s213 + $0x44] sm:$0xf] %vm6067, %v5828
      %6086 = vst.msk [vmem:[%s213 + $0x48] sm:$0xf] %vm6067, %v5829
      %6087 = vst.msk [vmem:[%s213 + $0x4c] sm:$0xf] %vm6067, %v5830
      %6088 = vst.msk [vmem:[%s213 + $0x50] sm:$0xf] %vm6067, %v5831
      %6089 = vst.msk [vmem:[%s213 + $0x54] sm:$0xf] %vm6067, %v5832
      %6090 = vst.msk [vmem:[%s213 + $0x58] sm:$0xf] %vm6067, %v5833
      %6091 = vst.msk [vmem:[%s213 + $0x5c] sm:$0xf] %vm6067, %v5834
      %6092 = vst.msk [vmem:[%s213 + $0x60] sm:$0xf] %vm6067, %v5835
      %6093 = vst.msk [vmem:[%s213 + $0x64] sm:$0xf] %vm6067, %v5836
      %6094 = vst.msk [vmem:[%s213 + $0x68] sm:$0xf] %vm6067, %v5837
      %6095 = vst.msk [vmem:[%s213 + $0x6c] sm:$0xf] %vm6067, %v5838
      %6096 = vst.msk [vmem:[%s213 + $0x70] sm:$0xf] %vm6067, %v5839
      %6097 = vst.msk [vmem:[%s213 + $0x74] sm:$0xf] %vm6067, %v5840
      %6098 = vst.msk [vmem:[%s213 + $0x78] sm:$0xf] %vm6067, %v5841
      %6099 = vst.msk [vmem:[%s213 + $0x7c] sm:$0xf] %vm6067, %v5842
      %6100 = vst.msk [vmem:[%s213 + $0x80] sm:$0xf] %vm6067, %v5843
      %6101 = vst.msk [vmem:[%s213 + $0x84] sm:$0xf] %vm6067, %v5844
      %6102 = vst.msk [vmem:[%s213 + $0x88] sm:$0xf] %vm6067, %v5845
      %6103 = vst.msk [vmem:[%s213 + $0x8c] sm:$0xf] %vm6067, %v5846
      %6104 = vst.msk [vmem:[%s213 + $0x90] sm:$0xf] %vm6067, %v5847
      %6105 = vst.msk [vmem:[%s213 + $0x94] sm:$0xf] %vm6067, %v5848
      %6106 = vst.msk [vmem:[%s213 + $0x98] sm:$0xf] %vm6067, %v5849
      %6107 = vst.msk [vmem:[%s213 + $0x9c] sm:$0xf] %vm6067, %v5850
      %6108 = vst.msk [vmem:[%s213 + $0xa0] sm:$0xf] %vm6067, %v5851
      %6109 = vst.msk [vmem:[%s213 + $0xa4] sm:$0xf] %vm6067, %v5852
      %6110 = vst.msk [vmem:[%s213 + $0xa8] sm:$0xf] %vm6067, %v5853
      %6111 = vst.msk [vmem:[%s213 + $0xac] sm:$0xf] %vm6067, %v5854
      %6112 = vst.msk [vmem:[%s213 + $0xb0] sm:$0xf] %vm6067, %v5855
      %6113 = vst.msk [vmem:[%s213 + $0xb4] sm:$0xf] %vm6067, %v5856
      %6114 = vst.msk [vmem:[%s213 + $0xb8] sm:$0xf] %vm6067, %v5857
      %6115 = vst.msk [vmem:[%s213 + $0xbc] sm:$0xf] %vm6067, %v5858
      %6116 = vst.msk [vmem:[%s213 + $0xc0] sm:$0xf] %vm6067, %v5859
      %6117 = vst.msk [vmem:[%s213 + $0xc4] sm:$0xf] %vm6067, %v5860
      %6118 = vst.msk [vmem:[%s213 + $0xc8] sm:$0xf] %vm6067, %v5861
      %6119 = vst.msk [vmem:[%s213 + $0xcc] sm:$0xf] %vm6067, %v5862
      %6120 = vst.msk [vmem:[%s213 + $0xd0] sm:$0xf] %vm6067, %v5863
      %6121 = vst.msk [vmem:[%s213 + $0xd4] sm:$0xf] %vm6067, %v5864
      %6122 = vst.msk [vmem:[%s213 + $0xd8] sm:$0xf] %vm6067, %v5865
      %6123 = vst.msk [vmem:[%s213 + $0xdc] sm:$0xf] %vm6067, %v5866
      %6124 = vst.msk [vmem:[%s213 + $0xe0] sm:$0xf] %vm6067, %v5867
      %6125 = vst.msk [vmem:[%s213 + $0xe4] sm:$0xf] %vm6067, %v5868
      %6126 = vst.msk [vmem:[%s213 + $0xe8] sm:$0xf] %vm6067, %v5869
      %6127 = vst.msk [vmem:[%s213 + $0xec] sm:$0xf] %vm6067, %v5870
      %6128 = vst.msk [vmem:[%s213 + $0xf0] sm:$0xf] %vm6067, %v5871
      %6129 = vst.msk [vmem:[%s213 + $0xf4] sm:$0xf] %vm6067, %v5872
      %6130 = vst.msk [vmem:[%s213 + $0xf8] sm:$0xf] %vm6067, %v5873
      %6131 = vst.msk [vmem:[%s213 + $0xfc] sm:$0xf] %vm6067, %v5874
      %6132 = vst.msk [vmem:[%s213 + $0x100] sm:$0xf] %vm6067, %v5875
      %6133 = vst.msk [vmem:[%s213 + $0x104] sm:$0xf] %vm6067, %v5876
      %6134 = vst.msk [vmem:[%s213 + $0x108] sm:$0xf] %vm6067, %v5877
      %6135 = vst.msk [vmem:[%s213 + $0x10c] sm:$0xf] %vm6067, %v5878
      %6136 = vst.msk [vmem:[%s213 + $0x110] sm:$0xf] %vm6067, %v5879
      %6137 = vst.msk [vmem:[%s213 + $0x114] sm:$0xf] %vm6067, %v5880
      %6138 = vst.msk [vmem:[%s213 + $0x118] sm:$0xf] %vm6067, %v5881
      %6139 = vst.msk [vmem:[%s213 + $0x11c] sm:$0xf] %vm6067, %v5882
      %6140 = vst.msk [vmem:[%s213 + $0x120] sm:$0xf] %vm6067, %v5883
      %6141 = vst.msk [vmem:[%s213 + $0x124] sm:$0xf] %vm6067, %v5884
      %6142 = vst.msk [vmem:[%s213 + $0x128] sm:$0xf] %vm6067, %v5885
      %6143 = vst.msk [vmem:[%s213 + $0x12c] sm:$0xf] %vm6067, %v5886
      %6144 = vst.msk [vmem:[%s213 + $0x130] sm:$0xf] %vm6067, %v5887
      %6145 = vst.msk [vmem:[%s213 + $0x134] sm:$0xf] %vm6067, %v5888
      %6146 = vst.msk [vmem:[%s213 + $0x138] sm:$0xf] %vm6067, %v5889
      %6147 = vst.msk [vmem:[%s213 + $0x13c] sm:$0xf] %vm6067, %v5890
      %6148 = vst.msk [vmem:[%s213 + $0x140] sm:$0xf] %vm6067, %v5891
      %6149 = vst.msk [vmem:[%s213 + $0x144] sm:$0xf] %vm6067, %v5892
      %6150 = vst.msk [vmem:[%s213 + $0x148] sm:$0xf] %vm6067, %v5893
      %6151 = vst.msk [vmem:[%s213 + $0x14c] sm:$0xf] %vm6067, %v5894
      %6152 = vst.msk [vmem:[%s213 + $0x150] sm:$0xf] %vm6067, %v5895
      %6153 = vst.msk [vmem:[%s213 + $0x154] sm:$0xf] %vm6067, %v5896
      %6154 = vst.msk [vmem:[%s213 + $0x158] sm:$0xf] %vm6067, %v5897
      %6155 = vst.msk [vmem:[%s213 + $0x15c] sm:$0xf] %vm6067, %v5898
      %6156 = vst.msk [vmem:[%s213 + $0x160] sm:$0xf] %vm6067, %v5899
      %6157 = vst.msk [vmem:[%s213 + $0x164] sm:$0xf] %vm6067, %v5900
      %6158 = vst.msk [vmem:[%s213 + $0x168] sm:$0xf] %vm6067, %v5901
      %6159 = vst.msk [vmem:[%s213 + $0x16c] sm:$0xf] %vm6067, %v5902
      %6160 = vst.msk [vmem:[%s213 + $0x170] sm:$0xf] %vm6067, %v5903
      %6161 = vst.msk [vmem:[%s213 + $0x174] sm:$0xf] %vm6067, %v5904
      %6162 = vst.msk [vmem:[%s213 + $0x178] sm:$0xf] %vm6067, %v5905
      %6163 = vst.msk [vmem:[%s213 + $0x17c] sm:$0xf] %vm6067, %v5906
      %6164 = vst.msk [vmem:[%s213 + $0x180] sm:$0xf] %vm6067, %v5907
      %6165 = vst.msk [vmem:[%s213 + $0x184] sm:$0xf] %vm6067, %v5908
      %6166 = vst.msk [vmem:[%s213 + $0x188] sm:$0xf] %vm6067, %v5909
      %6167 = vst.msk [vmem:[%s213 + $0x18c] sm:$0xf] %vm6067, %v5910
      %6168 = vst.msk [vmem:[%s213 + $0x190] sm:$0xf] %vm6067, %v5911
      %6169 = vst.msk [vmem:[%s213 + $0x194] sm:$0xf] %vm6067, %v5912
      %6170 = vst.msk [vmem:[%s213 + $0x198] sm:$0xf] %vm6067, %v5913
      %6171 = vst.msk [vmem:[%s213 + $0x19c] sm:$0xf] %vm6067, %v5914
      %6172 = vst.msk [vmem:[%s213 + $0x1a0] sm:$0xf] %vm6067, %v5915
      %6173 = vst.msk [vmem:[%s213 + $0x1a4] sm:$0xf] %vm6067, %v5916
      %6174 = vst.msk [vmem:[%s213 + $0x1a8] sm:$0xf] %vm6067, %v5917
      %6175 = vst.msk [vmem:[%s213 + $0x1ac] sm:$0xf] %vm6067, %v5918
      %6176 = vst.msk [vmem:[%s213 + $0x1b0] sm:$0xf] %vm6067, %v5919
      %6177 = vst.msk [vmem:[%s213 + $0x1b4] sm:$0xf] %vm6067, %v5920
      %6178 = vst.msk [vmem:[%s213 + $0x1b8] sm:$0xf] %vm6067, %v5921
      %6179 = vst.msk [vmem:[%s213 + $0x1bc] sm:$0xf] %vm6067, %v5922
      %6180 = vst.msk [vmem:[%s213 + $0x1c0] sm:$0xf] %vm6067, %v5923
      %6181 = vst.msk [vmem:[%s213 + $0x1c4] sm:$0xf] %vm6067, %v5924
      %6182 = vst.msk [vmem:[%s213 + $0x1c8] sm:$0xf] %vm6067, %v5925
      %6183 = vst.msk [vmem:[%s213 + $0x1cc] sm:$0xf] %vm6067, %v5926
      %6184 = vst.msk [vmem:[%s213 + $0x1d0] sm:$0xf] %vm6067, %v5927
      %6185 = vst.msk [vmem:[%s213 + $0x1d4] sm:$0xf] %vm6067, %v5928
      %6186 = vst.msk [vmem:[%s213 + $0x1d8] sm:$0xf] %vm6067, %v5929
      %6187 = vst.msk [vmem:[%s213 + $0x1dc] sm:$0xf] %vm6067, %v5930
      %6188 = vst.msk [vmem:[%s213 + $0x1e0] sm:$0xf] %vm6067, %v5931
      %6189 = vst.msk [vmem:[%s213 + $0x1e4] sm:$0xf] %vm6067, %v5932
      %6190 = vst.msk [vmem:[%s213 + $0x1e8] sm:$0xf] %vm6067, %v5933
      %6191 = vst.msk [vmem:[%s213 + $0x1ec] sm:$0xf] %vm6067, %v5934
      %6192 = vst.msk [vmem:[%s213 + $0x1f0] sm:$0xf] %vm6067, %v5935
      %6193 = vst.msk [vmem:[%s213 + $0x1f4] sm:$0xf] %vm6067, %v5936
      %6194 = vst.msk [vmem:[%s213 + $0x1f8] sm:$0xf] %vm6067, %v5937
      %6195 = vst.msk [vmem:[%s213 + $0x1fc] sm:$0xf] %vm6067, %v5938
      %s6196 = smul.u32 32, %s19
      %p6197 = scmp.lt.s32.totalorder %s18, 1
      %s6198 = scalar_select %p6197, %s18, 1
      %p6199 = scmp.lt.s32.totalorder %s6196, 31
      %s6200 = scalar_select %p6199, %s6196, 31
      %s6201 = smul.addr %s6200, 4
      %s6202 = smul.addr %s6198, 128
      %s6203 = sadd.s32 %s6201, %s6202
      %s6204 = smul.addr %s6203, 4
      %s6205 = scalar_lea.vmem %s3, %s6204
      // Predicated region
      $region33: #{dasi_forward.5} parent=31 // pred_check
        %p6206 = pneg %p116
      $region34: #{dasi_forward.5} parent=31 // pred_check_branch
        %6208 = sbr.rel (%p6206) target = $region36
      $region35: #{dasi_forward.5} parent=31 // pred_region
        %s6209 = smul.u32 32, %s19
      $region36: #{dasi_forward.5} parent=31 // pred_fallthru
        _
    $region32: #{dasi_forward.5} parent=5 // pred_fallthru
      _
    %p6210 = scmp.le.s32.totalorder 2, %s9
    // Predicated region
    $region37: #{dasi_forward.5} parent=5 // pred_check
      %p6211 = pneg %p6210
    $region38: #{dasi_forward.5} parent=5 // pred_check_branch
      %6213 = sbr.rel (%p6211) target = $region40
    $region39: #{dasi_forward.5} parent=5 // pred_region
      %s6214 = ssub.s32 %s9, 2
      // Predicated region
      $region41: #{dasi_forward.5} parent=39 // pred_check
        %p6215 = pneg %p122
      $region42: #{dasi_forward.5} parent=39 // pred_check_branch
        %6217 = sbr.rel (%p6215) target = $region44
      $region43: #{dasi_forward.5} parent=39 // pred_region
        %s6218 = smul.u32 32, %s21
        %p6219 = scmp.lt.s32.totalorder %s20, 1
        %s6220 = scalar_select %p6219, %s20, 1
        %p6221 = scmp.lt.s32.totalorder %s6218, 31
        %s6222 = scalar_select %p6221, %s6218, 31
        %s6223 = smul.addr %s6222, 4
        %s6224 = smul.addr %s6220, 128
        %s6225 = sadd.s32 %s6223, %s6224
        %s6226 = smul.addr %s6225, 4
        %s6227 = scalar_lea.vmem %s3, %s6226
      $region44: #{dasi_forward.5} parent=39 // pred_fallthru
        _
    $region40: #{dasi_forward.5} parent=5 // pred_fallthru
      _
  $region6: #{dasi_forward.5} parent=0 // loop_footer
    %s13 = sadd.s32 1, %s9
  $region7: #{dasi_forward.5} parent=0 // loop_footer_branch
    %8 = sbr.rel target = $region3
  $region8: #{dasi_forward.5} parent=0 // loop_exit
    _

// kernel: tile.33
$region0: #{tile.33}
  #allocation0 [shape = 's32[1]{0}', space=sflag, size = 0x4, scoped, tag = 'scoped memory for tile.33']
  %s0 = inlined_call_operand.vmem [shape: f32[32], index: 0, kind: input, shape index: {}]
  %s1 = inlined_call_operand.vmem [shape: f32[4,32], index: 1, kind: output, shape index: {}]
  // Predicated region
  $region2: #{tile.33} parent=0 // pred_check
    _
  $region3: #{tile.33} parent=0 // pred_check_branch
    %3 = sbr.rel (0) target = $region5
  $region4: #{tile.33} parent=0 // pred_region
    _
  $region5: #{tile.33} parent=0 // pred_fallthru
    _
  %v4 = vld [vmem:[%s0] ss:$0 sm:$0xff]
  %5 = vst [vmem:[%s1] sm:$0xf] %v4

// kernel: tile.34
$region0: #{tile.34}
  %s0 = inlined_call_operand.vmem [shape: f32[4,32], index: 0, kind: input, shape index: {}]
  %s1 = inlined_call_operand.vmem [shape: f32[1,128], index: 1, kind: output, shape index: {}]
  $region1: #{tile.34} parent=0
    #allocation0 [shape = 'u8[4096]{0}', space=vmem, size = 0x1000, scoped, tag = 'scoped mem for output reshape']
    #allocation1 [shape = 'u8[4096]{0}', space=vmem, size = 0x1000, scoped, tag = 'scoped mem for input reshape']
    %s3 = sshll.u32 1, 4
    %s4 = ssub.s32 %s3, 1
    %v5 = vld [vmem:[%s0] sm:%s4]
    %6 = vst [vmem:[#allocation1] sm:%s4] %v5
    %v7 = vld [vmem:[#allocation1] sm:$0x1]
    %vm8 = vcmask 261120
    %9 = vst.msk [vmem:[#allocation0] sm:$0x1] %vm8, %v7
    %s10 = scalar_lea.vmem [#allocation1], 3
    %v11 = vld [vmem:[%s10] sm:$0x1]
    %12 = vrot.lane.b32.xlu0 %v11, 96
    %v13 = vpop.permute.xlu0 %12
    %vm14 = vcmask 1048320
    %15 = vst.msk [vmem:[#allocation0] sm:$0x1] %vm14, %v13
    %s16 = scalar_lea.vmem [#allocation1], 2
    %v17 = vld [vmem:[%s16] sm:$0x1]
    %18 = vrot.lane.b32.xlu0 %v17, 64
    %v19 = vpop.permute.xlu0 %18
    %vm20 = vcmask 785920
    %21 = vst.msk [vmem:[#allocation0] sm:$0x1] %vm20, %v19
    %s22 = scalar_lea.vmem [#allocation1], 1
    %v23 = vld [vmem:[%s22] sm:$0x1]
    %24 = vrot.lane.b32.xlu0 %v23, 32
    %v25 = vpop.permute.xlu0 %24
    %vm26 = vcmask 523520
    %27 = vst.msk [vmem:[#allocation0] sm:$0x1] %vm26, %v25
    %s29 = sshll.u32 1, 1
    %s30 = ssub.s32 %s29, 1
    %v32 = vld [vmem:[#allocation0] sm:%s30]
    %s33 = sshll.u32 1, 1
    %s34 = ssub.s32 %s33, 1
    %35 = vst [vmem:[%s1] sm:%s34] %v32

// kernel: dasi_forward.7
$region0: #{dasi_forward.7}
  #allocation0 [shape = 'u32[]', space=smem, size = 0x4, offset = 0x4, fixed_abs, tag = 'smem constant byte address 0x4 - core index']
  #allocation1 [shape = 'u32[144,128]{1,0:T(1,128)}', space=vmem, size = 0x12000, scoped, tag = 'internal scratch']
  %s0 = inlined_call_operand.vmem [shape: bf16[256,64], index: 0, kind: input, shape index: {}]
  %s1 = inlined_call_operand.vmem [shape: f32[64,128], index: 1, kind: input, shape index: {}]
  %s2 = inlined_call_operand.vmem [shape: f32[1,128], index: 2, kind: input, shape index: {}]
  %s3 = inlined_call_operand.vmem [shape: bf16[256,128], index: 3, kind: output, shape index: {}]
  %s4 = sld [smem:[#allocation0]]
  $region45: #{dasi_forward.7} parent=0
    _
  %s6 = ssub.s32 1, %s4
  %s7 = scalar_select 0, %s6, %s4
  loop: start=0, step=1, limit=4
  $region2: #{dasi_forward.7} parent=0 // loop_pre_header
    _
  $region3: #{dasi_forward.7} parent=0 // loop_header
    %s9 = sphi 0, %s13
    %p10 = scmp.ge.s32.totalorder %s9, 4
    %s19 = sphi 0, %s21
    %s22 = sphi 0, %s19
    %s23 = sphi 0, %s22
    %s39 = sphi 0, %s23
    %s43 = sphi 0, %s43
    %s45 = sphi 0, %s43
    %s46 = sphi 0, %s45
    %s60 = sphi 0, %s46
    %s64 = sphi 0, %s64
    %s66 = sphi 0, %s64
    %s67 = sphi 0, %s66
    %s81 = sphi 0, %s67
    %s87 = sphi 0, %s89
    %s90 = sphi 0, %s87
    %s91 = sphi 0, %s90
    %s107 = sphi 0, %s91
  $region4: #{dasi_forward.7} parent=0 // loop_header_branch
    %12 = sbr.rel (%p10) target = $region8
  $region5: #{dasi_forward.7} parent=0 // loop_body
    %s14 = ssub.s32 %s9, 1
    %s15 = ssub.s32 %s9, 2
    %s16 = sadd.s32 %s9, 1
    %s17 = ssub.s32 %s9, %s16
    %p18 = scmp.eq.s32.totalorder %s17, 0
    %s20 = sadd.s32 %s19, 1
    %s21 = scalar_select %p18, %s19, %s20
    %p24 = pneg %p18
    %p25 = scmp.eq.s32.totalorder %s9, 1
    %p26 = por %p24, %p25
    %p27 = scmp.ne.s32.totalorder %s19, %s22
    %p28 = scmp.eq.s32.totalorder %s9, 0
    %p29 = por %p27, %p28
    %p30 = scmp.ne.s32.totalorder %s19, %s22
    %p31 = scmp.eq.s32.totalorder %s14, 1
    %p32 = por %p30, %p31
    %p33 = scmp.ne.s32.totalorder %s22, %s23
    %p34 = scmp.eq.s32.totalorder %s14, 0
    %p35 = por %p33, %p34
    %p36 = scmp.ne.s32.totalorder %s22, %s23
    %p37 = scmp.eq.s32.totalorder %s15, 1
    %p38 = por %p36, %p37
    %p40 = scmp.ne.s32.totalorder %s23, %s39
    %p41 = scmp.eq.s32.totalorder %s15, 0
    %p42 = por %p40, %p41
    %s44 = sadd.s32 %s43, 1
    %p47 = scmp.eq.s32.totalorder %s9, 1
    %p48 = scmp.ne.s32.totalorder %s43, %s45
    %p49 = scmp.eq.s32.totalorder %s9, 0
    %p50 = por %p48, %p49
    %p51 = scmp.ne.s32.totalorder %s43, %s45
    %p52 = scmp.eq.s32.totalorder %s14, 1
    %p53 = por %p51, %p52
    %p54 = scmp.ne.s32.totalorder %s45, %s46
    %p55 = scmp.eq.s32.totalorder %s14, 0
    %p56 = por %p54, %p55
    %p57 = scmp.ne.s32.totalorder %s45, %s46
    %p58 = scmp.eq.s32.totalorder %s15, 1
    %p59 = por %p57, %p58
    %p61 = scmp.ne.s32.totalorder %s46, %s60
    %p62 = scmp.eq.s32.totalorder %s15, 0
    %p63 = por %p61, %p62
    %s65 = sadd.s32 %s64, 1
    %p68 = scmp.eq.s32.totalorder %s9, 1
    %p69 = scmp.ne.s32.totalorder %s64, %s66
    %p70 = scmp.eq.s32.totalorder %s9, 0
    %p71 = por %p69, %p70
    %p72 = scmp.ne.s32.totalorder %s64, %s66
    %p73 = scmp.eq.s32.totalorder %s14, 1
    %p74 = por %p72, %p73
    %p75 = scmp.ne.s32.totalorder %s66, %s67
    %p76 = scmp.eq.s32.totalorder %s14, 0
    %p77 = por %p75, %p76
    %p78 = scmp.ne.s32.totalorder %s66, %s67
    %p79 = scmp.eq.s32.totalorder %s15, 1
    %p80 = por %p78, %p79
    %p82 = scmp.ne.s32.totalorder %s67, %s81
    %p83 = scmp.eq.s32.totalorder %s15, 0
    %p84 = por %p82, %p83
    %s85 = ssub.s32 %s9, %s16
    %p86 = scmp.eq.s32.totalorder %s85, 0
    %s88 = sadd.s32 %s87, 1
    %s89 = scalar_select %p86, %s87, %s88
    %p92 = pneg %p86
    %p93 = scmp.eq.s32.totalorder %s9, 1
    %p94 = por %p92, %p93
    %p95 = scmp.ne.s32.totalorder %s87, %s90
    %p96 = scmp.eq.s32.totalorder %s9, 0
    %p97 = por %p95, %p96
    %p98 = scmp.ne.s32.totalorder %s87, %s90
    %p99 = scmp.eq.s32.totalorder %s14, 1
    %p100 = por %p98, %p99
    %p101 = scmp.ne.s32.totalorder %s90, %s91
    %p102 = scmp.eq.s32.totalorder %s14, 0
    %p103 = por %p101, %p102
    %p104 = scmp.ne.s32.totalorder %s90, %s91
    %p105 = scmp.eq.s32.totalorder %s15, 1
    %p106 = por %p104, %p105
    %p108 = scmp.ne.s32.totalorder %s91, %s107
    %p109 = scmp.eq.s32.totalorder %s15, 0
    %p110 = por %p108, %p109
    %p111 = scmp.le.s32.totalorder 1, %s9
    %p112 = scmp.lt.s32.totalorder %s9, 3
    %p113 = pnand %p111, %p112
    %p114 = pneg %p113
    // Predicated region
    $region9: #{dasi_forward.7} parent=5 // pred_check
      _
    $region10: #{dasi_forward.7} parent=5 // pred_check_branch
      %116 = sbr.rel (%p113) target = $region12
    $region11: #{dasi_forward.7} parent=5 // pred_region
      %s117 = ssub.s32 %s9, 1
      // Predicated region
      $region13: #{dasi_forward.7} parent=11 // pred_check
        %p118 = pneg %p56
      $region14: #{dasi_forward.7} parent=11 // pred_check_branch
        %120 = sbr.rel (%p118) target = $region16
      $region15: #{dasi_forward.7} parent=11 // pred_region
        _
      $region16: #{dasi_forward.7} parent=11 // pred_fallthru
        _
      // Predicated region
      $region17: #{dasi_forward.7} parent=11 // pred_check
        %p121 = pneg %p77
      $region18: #{dasi_forward.7} parent=11 // pred_check_branch
        %123 = sbr.rel (%p121) target = $region20
      $region19: #{dasi_forward.7} parent=11 // pred_region
        _
      $region20: #{dasi_forward.7} parent=11 // pred_fallthru
        _
    $region12: #{dasi_forward.7} parent=5 // pred_fallthru
      _
    %p124 = scmp.lt.s32.totalorder %s9, 2
    // Predicated region
    $region21: #{dasi_forward.7} parent=5 // pred_check
      %p125 = pneg %p124
    $region22: #{dasi_forward.7} parent=5 // pred_check_branch
      %127 = sbr.rel (%p125) target = $region24
    $region23: #{dasi_forward.7} parent=5 // pred_region
      // Predicated region
      $region25: #{dasi_forward.7} parent=23 // pred_check
        %p128 = pneg %p29
      $region26: #{dasi_forward.7} parent=23 // pred_check_branch
        %130 = sbr.rel (%p128) target = $region28
      $region27: #{dasi_forward.7} parent=23 // pred_region
        %s131 = smul.u32 16, %s9
        %p132 = scmp.lt.s32.totalorder %s131, 31
        %s133 = scalar_select %p132, %s131, 31
        %s134 = smul.addr %s133, 4
        %s135 = scalar_lea.vmem %s0, %s134
        %s136 = smul.u32 16, %s9
      $region28: #{dasi_forward.7} parent=23 // pred_fallthru
        _
    $region24: #{dasi_forward.7} parent=5 // pred_fallthru
      _
    %p137 = scmp.le.s32.totalorder 1, %s9
    %p138 = scmp.lt.s32.totalorder %s9, 3
    %p139 = pnand %p137, %p138
    %p140 = pneg %p139
    // Predicated region
    $region29: #{dasi_forward.7} parent=5 // pred_check
      _
    $region30: #{dasi_forward.7} parent=5 // pred_check_branch
      %142 = sbr.rel (%p139) target = $region32
    $region31: #{dasi_forward.7} parent=5 // pred_region
      %s143 = ssub.s32 %s9, 1
      %s144 = smul.u32 16, %s14
      %p145 = scmp.lt.s32.totalorder %s144, 31
      %s146 = scalar_select %p145, %s144, 31
      %s147 = smul.addr %s146, 4
      %s148 = scalar_lea.vmem %s0, %s147
      %p149 = pneg %p35
      %p150 = pneg %p32
      %p151 = pneg %p56
      %p152 = pneg %p53
      %p153 = pneg %p77
      %p154 = pneg %p74
      %p155 = pneg %p103
      %p156 = pneg %p100
      %s157 = smul.u32 16, %s14
      %p158 = scmp.lt.s32.totalorder %s157, 31
      %s159 = scalar_select %p158, %s157, 31
      %s160 = smul.addr %s159, 4
      %s161 = scalar_lea.vmem %s3, %s160
      %s162 = smul.u32 16, %s14
      %p163 = scmp.lt.s32.totalorder %s162, 31
      %s164 = scalar_select %p163, %s162, 31
      %s165 = smul.addr %s164, 4
      %s166 = scalar_lea.vmem %s0, %s165
      %s167 = smul.u32 16, %s14
      %s168 = smul.u32 16, %s14
      %p169 = scmp.lt.s32.totalorder %s168, 31
      %s170 = scalar_select %p169, %s168, 31
      %s171 = smul.addr %s170, 4
      %s172 = scalar_lea.vmem %s3, %s171
      %s173 = smul.u32 16, %s14
      %v175 = vld [vmem:[%s166] sm:$0xf]
      %v176 = vld [vmem:[%s166 + $0x4] sm:$0xf]
      %v177 = vld [vmem:[%s166 + $0x8] sm:$0xf]
      %v178 = vld [vmem:[%s166 + $0xc] sm:$0xf]
      %v179 = vld [vmem:[%s166 + $0x10] sm:$0xf]
      %v180 = vld [vmem:[%s166 + $0x14] sm:$0xf]
      %v181 = vld [vmem:[%s166 + $0x18] sm:$0xf]
      %v182 = vld [vmem:[%s166 + $0x1c] sm:$0xf]
      %v183 = vld [vmem:[%s166 + $0x20] sm:$0xf]
      %v184 = vld [vmem:[%s166 + $0x24] sm:$0xf]
      %v185 = vld [vmem:[%s166 + $0x28] sm:$0xf]
      %v186 = vld [vmem:[%s166 + $0x2c] sm:$0xf]
      %v187 = vld [vmem:[%s166 + $0x30] sm:$0xf]
      %v188 = vld [vmem:[%s166 + $0x34] sm:$0xf]
      %v189 = vld [vmem:[%s166 + $0x38] sm:$0xf]
      %v190 = vld [vmem:[%s166 + $0x3c] sm:$0xf]
      %v191 = vld [vmem:[%s1] sm:$0xff]
      %v192 = vld [vmem:[%s1 + $0x8] sm:$0xff]
      %v193 = vld [vmem:[%s1 + $0x10] sm:$0xff]
      %v194 = vld [vmem:[%s1 + $0x18] sm:$0xff]
      %v195 = vld [vmem:[%s1 + $0x20] sm:$0xff]
      %v196 = vld [vmem:[%s1 + $0x28] sm:$0xff]
      %v197 = vld [vmem:[%s1 + $0x30] sm:$0xff]
      %v198 = vld [vmem:[%s1 + $0x38] sm:$0xff]
      %v199 = vld [vmem:[%s2] sm:$0x1]
      %v201 = vlaneseq
      %v202 = vshrl.u32 %v201, 7
      %v203 = vsub.s32 0, %v202
      %v204 = vrot.slane %v199, %v203
      %v222 = vunpack.c.l.b16 %v175
      %v223 = vunpack.c.l.b16 %v176
      %v224 = vunpack.c.l.b16 %v177
      %v225 = vunpack.c.l.b16 %v178
      %v226 = vunpack.c.l.b16 %v179
      %v227 = vunpack.c.l.b16 %v180
      %v228 = vunpack.c.l.b16 %v181
      %v229 = vunpack.c.l.b16 %v182
      %v230 = vunpack.c.l.b16 %v183
      %v231 = vunpack.c.l.b16 %v184
      %v232 = vunpack.c.l.b16 %v185
      %v233 = vunpack.c.l.b16 %v186
      %v234 = vunpack.c.l.b16 %v187
      %v235 = vunpack.c.l.b16 %v188
      %v236 = vunpack.c.l.b16 %v189
      %v237 = vunpack.c.l.b16 %v190
      %v238 = vpack.c.b16 %v223, %v222
      %v239 = vpack.c.b16 %v225, %v224
      %v240 = vpack.c.b16 %v227, %v226
      %v241 = vpack.c.b16 %v229, %v228
      %v242 = vpack.c.b16 %v231, %v230
      %v243 = vpack.c.b16 %v233, %v232
      %v244 = vpack.c.b16 %v235, %v234
      %v245 = vpack.c.b16 %v237, %v236
      %vm246 = vcmask 523264
      %v248 = vsel %vm246, %v238, 0
      %v251 = vsel %vm246, %v239, 0
      %v254 = vsel %vm246, %v240, 0
      %v257 = vsel %vm246, %v241, 0
      %v260 = vsel %vm246, %v242, 0
      %v263 = vsel %vm246, %v243, 0
      %v266 = vsel %vm246, %v244, 0
      %v269 = vsel %vm246, %v245, 0
      %271 = vmatprep.subr.mxu0 0.0
      %272 = vmatpush1.msra.mxu0 0.0
      %273 = vmatprep.subr.mxu0 0.0
      %274 = vmatpush1.msra.mxu0 0.0
      %275 = vmatprep.subr.mxu0 0.0
      %276 = vmatpush1.msra.mxu0 0.0
      %277 = vmatprep.subr.mxu0 0.0
      %278 = vmatpush1.msra.mxu0 0.0
      %279 = vmatprep.subr.mxu0 0.0
      %280 = vmatpush1.msra.mxu0 0.0
      %281 = vmatprep.subr.mxu0 0.0
      %282 = vmatpush1.msra.mxu0 0.0
      %283 = vmatprep.subr.mxu0 0.0
      %284 = vmatpush1.msra.mxu0 0.0
      %285 = vmatprep.subr.mxu0 0.0
      %286 = vmatpush1.msra.mxu0 0.0
      %287 = vmatprep.subr.mxu0 0.0
      %288 = vmatpush1.msra.mxu0 %v198
      %289 = vmatprep.subr.mxu0 0.0
      %290 = vmatpush1.msra.mxu0 %v197
      %291 = vmatprep.subr.mxu0 0.0
      %292 = vmatpush1.msra.mxu0 %v196
      %293 = vmatprep.subr.mxu0 0.0
      %294 = vmatpush1.msra.mxu0 %v195
      %295 = vmatprep.subr.mxu0 0.0
      %296 = vmatpush1.msra.mxu0 %v194
      %297 = vmatprep.subr.mxu0 0.0
      %298 = vmatpush1.msra.mxu0 %v193
      %299 = vmatprep.subr.mxu0 0.0
      %300 = vmatpush1.msra.mxu0 %v192
      %301 = vmatprep.subr.mxu0 0.0
      %302 = vmatpush1.msra.mxu0 %v191
      %303 = vmatprep.subr.mxu0 0.0
      %304 = vmatpush2.msra.mxu0 0.0
      %305 = vmatprep.subr.mxu0 0.0
      %306 = vmatpush2.msra.mxu0 0.0
      %307 = vmatprep.subr.mxu0 0.0
      %308 = vmatpush2.msra.mxu0 0.0
      %309 = vmatprep.subr.mxu0 0.0
      %310 = vmatpush2.msra.mxu0 0.0
      %311 = vmatprep.subr.mxu0 0.0
      %312 = vmatpush2.msra.mxu0 0.0
      %313 = vmatprep.subr.mxu0 0.0
      %314 = vmatpush2.msra.mxu0 0.0
      %315 = vmatprep.subr.mxu0 0.0
      %316 = vmatpush2.msra.mxu0 0.0
      %317 = vmatprep.subr.mxu0 0.0
      %318 = vmatpush2.msra.mxu0 0.0
      %319 = vmatprep.subr.mxu0 0.0
      %320 = vmatpush2.msra.mxu0 0.0
      %321 = vmatprep.subr.mxu0 0.0
      %322 = vmatpush2.msra.mxu0 0.0
      %323 = vmatprep.subr.mxu0 0.0
      %324 = vmatpush2.msra.mxu0 0.0
      %325 = vmatprep.subr.mxu0 0.0
      %326 = vmatpush2.msra.mxu0 0.0
      %327 = vmatprep.subr.mxu0 0.0
      %328 = vmatpush2.msra.mxu0 0.0
      %329 = vmatprep.subr.mxu0 0.0
      %330 = vmatpush2.msra.mxu0 0.0
      %331 = vmatprep.subr.mxu0 0.0
      %332 = vmatpush2.msra.mxu0 0.0
      %333 = vmatprep.subr.mxu0 0.0
      %334 = vmatpush2.msra.mxu0 0.0
      %335 = vmatprep.mubr.bf16.mxu0 0
      %336 = vmatmul.mubr.bf16.gmra.mxu0 %v248
      %v337 = vpop.f32.mrf.mxu0
      %v338 = vadd.f32 %v204, %v337
      %v339 = vpop.f32.mrf.mxu0
      %v340 = vpop.f32.mrf.mxu0
      %v341 = vadd.f32 %v204, %v340
      %v342 = vpop.f32.mrf.mxu0
      %343 = vmatprep.mubr.bf16.mxu0 0
      %344 = vmatmul.mubr.bf16.gmra.mxu0 %v251
      %v345 = vpop.f32.mrf.mxu0
      %v346 = vadd.f32 %v204, %v345
      %v347 = vpop.f32.mrf.mxu0
      %v348 = vpop.f32.mrf.mxu0
      %v349 = vadd.f32 %v204, %v348
      %v350 = vpop.f32.mrf.mxu0
      %351 = vmatprep.mubr.bf16.mxu0 0
      %352 = vmatmul.mubr.bf16.gmra.mxu0 %v254
      %v353 = vpop.f32.mrf.mxu0
      %v354 = vadd.f32 %v204, %v353
      %v355 = vpop.f32.mrf.mxu0
      %v356 = vpop.f32.mrf.mxu0
      %v357 = vadd.f32 %v204, %v356
      %v358 = vpop.f32.mrf.mxu0
      %359 = vmatprep.mubr.bf16.mxu0 0
      %360 = vmatmul.mubr.bf16.gmra.mxu0 %v257
      %v361 = vpop.f32.mrf.mxu0
      %v362 = vadd.f32 %v204, %v361
      %v363 = vpop.f32.mrf.mxu0
      %v364 = vpop.f32.mrf.mxu0
      %v365 = vadd.f32 %v204, %v364
      %v366 = vpop.f32.mrf.mxu0
      %367 = vmatprep.mubr.bf16.mxu0 0
      %368 = vmatmul.mubr.bf16.gmra.mxu0 %v260
      %v369 = vpop.f32.mrf.mxu0
      %v370 = vadd.f32 %v204, %v369
      %v371 = vpop.f32.mrf.mxu0
      %v372 = vpop.f32.mrf.mxu0
      %v373 = vadd.f32 %v204, %v372
      %v374 = vpop.f32.mrf.mxu0
      %375 = vmatprep.mubr.bf16.mxu0 0
      %376 = vmatmul.mubr.bf16.gmra.mxu0 %v263
      %v377 = vpop.f32.mrf.mxu0
      %v378 = vadd.f32 %v204, %v377
      %v379 = vpop.f32.mrf.mxu0
      %v380 = vpop.f32.mrf.mxu0
      %v381 = vadd.f32 %v204, %v380
      %v382 = vpop.f32.mrf.mxu0
      %383 = vmatprep.mubr.bf16.mxu0 0
      %384 = vmatmul.mubr.bf16.gmra.mxu0 %v266
      %v385 = vpop.f32.mrf.mxu0
      %v386 = vadd.f32 %v204, %v385
      %v387 = vpop.f32.mrf.mxu0
      %v388 = vpop.f32.mrf.mxu0
      %v389 = vadd.f32 %v204, %v388
      %v390 = vpop.f32.mrf.mxu0
      %391 = vmatprep.mubr.bf16.mxu0 0
      %392 = vmatmul.mubr.bf16.gmra.mxu0 %v269
      %v393 = vpop.f32.mrf.mxu0
      %v394 = vadd.f32 %v204, %v393
      %v395 = vpop.f32.mrf.mxu0
      %v396 = vpop.f32.mrf.mxu0
      %v397 = vadd.f32 %v204, %v396
      %v398 = vpop.f32.mrf.mxu0
      %399 = vdwg.mxu0
      %v400 = vpack.c.bf16 %v341, %v338
      %v401 = vpack.c.bf16 %v349, %v346
      %v402 = vpack.c.bf16 %v357, %v354
      %v403 = vpack.c.bf16 %v365, %v362
      %v404 = vpack.c.bf16 %v373, %v370
      %v405 = vpack.c.bf16 %v381, %v378
      %v406 = vpack.c.bf16 %v389, %v386
      %v407 = vpack.c.bf16 %v397, %v394
      %v416 = vunpack.c.l.b16 %v400
      %v417 = vunpack.c.h.b16 %v400
      %v418 = vunpack.c.l.b16 %v401
      %v419 = vunpack.c.h.b16 %v401
      %v420 = vunpack.c.l.b16 %v402
      %v421 = vunpack.c.h.b16 %v402
      %v422 = vunpack.c.l.b16 %v403
      %v423 = vunpack.c.h.b16 %v403
      %v424 = vunpack.c.l.b16 %v404
      %v425 = vunpack.c.h.b16 %v404
      %v426 = vunpack.c.l.b16 %v405
      %v427 = vunpack.c.h.b16 %v405
      %v428 = vunpack.c.l.b16 %v406
      %v429 = vunpack.c.h.b16 %v406
      %v430 = vunpack.c.l.b16 %v407
      %v431 = vunpack.c.h.b16 %v407
      %v432 = vpack.c.b16 %v416, %v416
      %v433 = vpack.c.b16 %v417, %v417
      %v434 = vpack.c.b16 %v418, %v418
      %v435 = vpack.c.b16 %v419, %v419
      %v436 = vpack.c.b16 %v420, %v420
      %v437 = vpack.c.b16 %v421, %v421
      %v438 = vpack.c.b16 %v422, %v422
      %v439 = vpack.c.b16 %v423, %v423
      %v440 = vpack.c.b16 %v424, %v424
      %v441 = vpack.c.b16 %v425, %v425
      %v442 = vpack.c.b16 %v426, %v426
      %v443 = vpack.c.b16 %v427, %v427
      %v444 = vpack.c.b16 %v428, %v428
      %v445 = vpack.c.b16 %v429, %v429
      %v446 = vpack.c.b16 %v430, %v430
      %v447 = vpack.c.b16 %v431, %v431
      %464 = vst [vmem:[%s172] sm:$0xf] %v432
      %465 = vst [vmem:[%s172 + $0x4] sm:$0xf] %v433
      %466 = vst [vmem:[%s172 + $0x8] sm:$0xf] %v434
      %467 = vst [vmem:[%s172 + $0xc] sm:$0xf] %v435
      %468 = vst [vmem:[%s172 + $0x10] sm:$0xf] %v436
      %469 = vst [vmem:[%s172 + $0x14] sm:$0xf] %v437
      %470 = vst [vmem:[%s172 + $0x18] sm:$0xf] %v438
      %471 = vst [vmem:[%s172 + $0x1c] sm:$0xf] %v439
      %472 = vst [vmem:[%s172 + $0x20] sm:$0xf] %v440
      %473 = vst [vmem:[%s172 + $0x24] sm:$0xf] %v441
      %474 = vst [vmem:[%s172 + $0x28] sm:$0xf] %v442
      %475 = vst [vmem:[%s172 + $0x2c] sm:$0xf] %v443
      %476 = vst [vmem:[%s172 + $0x30] sm:$0xf] %v444
      %477 = vst [vmem:[%s172 + $0x34] sm:$0xf] %v445
      %478 = vst [vmem:[%s172 + $0x38] sm:$0xf] %v446
      %479 = vst [vmem:[%s172 + $0x3c] sm:$0xf] %v447
      %s480 = smul.u32 16, %s14
      %p481 = scmp.lt.s32.totalorder %s480, 31
      %s482 = scalar_select %p481, %s480, 31
      %s483 = smul.addr %s482, 4
      %s484 = scalar_lea.vmem %s3, %s483
      // Predicated region
      $region33: #{dasi_forward.7} parent=31 // pred_check
        %p485 = pneg %p100
      $region34: #{dasi_forward.7} parent=31 // pred_check_branch
        %487 = sbr.rel (%p485) target = $region36
      $region35: #{dasi_forward.7} parent=31 // pred_region
        %s488 = smul.u32 16, %s14
      $region36: #{dasi_forward.7} parent=31 // pred_fallthru
        _
    $region32: #{dasi_forward.7} parent=5 // pred_fallthru
      _
    %p489 = scmp.le.s32.totalorder 2, %s9
    // Predicated region
    $region37: #{dasi_forward.7} parent=5 // pred_check
      %p490 = pneg %p489
    $region38: #{dasi_forward.7} parent=5 // pred_check_branch
      %492 = sbr.rel (%p490) target = $region40
    $region39: #{dasi_forward.7} parent=5 // pred_region
      %s493 = ssub.s32 %s9, 2
      // Predicated region
      $region41: #{dasi_forward.7} parent=39 // pred_check
        %p494 = pneg %p106
      $region42: #{dasi_forward.7} parent=39 // pred_check_branch
        %496 = sbr.rel (%p494) target = $region44
      $region43: #{dasi_forward.7} parent=39 // pred_region
        %s497 = smul.u32 16, %s15
        %p498 = scmp.lt.s32.totalorder %s497, 31
        %s499 = scalar_select %p498, %s497, 31
        %s500 = smul.addr %s499, 4
        %s501 = scalar_lea.vmem %s3, %s500
      $region44: #{dasi_forward.7} parent=39 // pred_fallthru
        _
    $region40: #{dasi_forward.7} parent=5 // pred_fallthru
      _
  $region6: #{dasi_forward.7} parent=0 // loop_footer
    %s13 = sadd.s32 1, %s9
  $region7: #{dasi_forward.7} parent=0 // loop_footer_branch
    %8 = sbr.rel target = $region3
  $region8: #{dasi_forward.7} parent=0 // loop_exit
    _

// kernel: dasi_forward.8
$region0: #{dasi_forward.8}
  #allocation0 [shape = 'u32[]', space=smem, size = 0x4, offset = 0x4, fixed_abs, tag = 'smem constant byte address 0x4 - core index']
  #allocation1 [shape = 'u32[144,128]{1,0:T(1,128)}', space=vmem, size = 0x12000, scoped, tag = 'internal scratch']
  %s0 = inlined_call_operand.vmem [shape: bf16[2,16,1024], index: 0, kind: input, shape index: {}]
  %s1 = inlined_call_operand.vmem [shape: f32[32,16], index: 1, kind: input, shape index: {}]
  %s2 = inlined_call_operand.vmem [shape: bf16[2,32,1024], index: 2, kind: output, shape index: {}]
  %s3 = sld [smem:[#allocation0]]
  $region83: #{dasi_forward.8} parent=0
    _
  %s5 = ssub.s32 1, %s3
  %s6 = scalar_select 0, %s5, %s3
  $region1: #{dasi_forward.8} parent=0
    #allocation2 [shape = 'u8[32768]{0}', space=vmem, size = 0x8000, scoped, tag = 'input window, operand 0']
    #allocation3 [shape = 'u8[65536]{0}', space=vmem, size = 0x10000, scoped, tag = 'output window, operand 0']
    loop: start=0, step=1, limit=6
    $region2: #{dasi_forward.8} parent=1 // loop_pre_header
      _
    $region3: #{dasi_forward.8} parent=1 // loop_header
      %s8 = sphi 0, %s12
      %p9 = scmp.ge.s32.totalorder %s8, 6
      %s15 = sphi 0, %s27
      %s16 = sphi 0, %s23
      %s17 = sphi 0, %s15
      %s18 = sphi 0, %s16
      %s19 = sphi 0, %s17
      %s20 = sphi 0, %s18
      %s32 = sphi 0, %s34
      %s35 = sphi 0, %s32
      %s36 = sphi 0, %s35
      %s52 = sphi 0, %s36
      %s56 = sphi 0, %s56
      %s58 = sphi 0, %s56
      %s59 = sphi 0, %s58
      %s73 = sphi 0, %s59
      %s81 = sphi 0, %s83
      %s84 = sphi 0, %s81
      %s85 = sphi 0, %s84
      %s101 = sphi 0, %s85
    $region4: #{dasi_forward.8} parent=1 // loop_header_branch
      %11 = sbr.rel (%p9) target = $region8
    $region5: #{dasi_forward.8} parent=1 // loop_body
      %s13 = ssub.s32 %s8, 1
      %s14 = ssub.s32 %s8, 2
      %s21 = sadd.s32 1, %s16
      %p22 = scmp.ge.s32.totalorder %s21, 2
      %s23 = scalar_select %p22, 0, %s21
      %s24 = sadd.s32 1, %s15
      %s25 = scalar_select %p22, %s24, %s15
      %p26 = scmp.ge.s32.totalorder %s25, 2
      %s27 = scalar_select %p26, 0, %s25
      %s28 = ssub.s32 %s15, %s27
      %s29 = ssub.s32 %s16, %s23
      %s30 = sor.u32 %s28, %s29
      %p31 = scmp.eq.s32.totalorder %s30, 0
      %s33 = sadd.s32 %s32, 1
      %s34 = scalar_select %p31, %s32, %s33
      %p37 = pneg %p31
      %p38 = scmp.eq.s32.totalorder %s8, 3
      %p39 = por %p37, %p38
      %p40 = scmp.ne.s32.totalorder %s32, %s35
      %p41 = scmp.eq.s32.totalorder %s8, 0
      %p42 = por %p40, %p41
      %p43 = scmp.ne.s32.totalorder %s32, %s35
      %p44 = scmp.eq.s32.totalorder %s13, 3
      %p45 = por %p43, %p44
      %p46 = scmp.ne.s32.totalorder %s35, %s36
      %p47 = scmp.eq.s32.totalorder %s13, 0
      %p48 = por %p46, %p47
      %p49 = scmp.ne.s32.totalorder %s35, %s36
      %p50 = scmp.eq.s32.totalorder %s14, 3
      %p51 = por %p49, %p50
      %p53 = scmp.ne.s32.totalorder %s36, %s52
      %p54 = scmp.eq.s32.totalorder %s14, 0
      %p55 = por %p53, %p54
      %s57 = sadd.s32 %s56, 1
      %p60 = scmp.eq.s32.totalorder %s8, 3
      %p61 = scmp.ne.s32.totalorder %s56, %s58
      %p62 = scmp.eq.s32.totalorder %s8, 0
      %p63 = por %p61, %p62
      %p64 = scmp.ne.s32.totalorder %s56, %s58
      %p65 = scmp.eq.s32.totalorder %s13, 3
      %p66 = por %p64, %p65
      %p67 = scmp.ne.s32.totalorder %s58, %s59
      %p68 = scmp.eq.s32.totalorder %s13, 0
      %p69 = por %p67, %p68
      %p70 = scmp.ne.s32.totalorder %s58, %s59
      %p71 = scmp.eq.s32.totalorder %s14, 3
      %p72 = por %p70, %p71
      %p74 = scmp.ne.s32.totalorder %s59, %s73
      %p75 = scmp.eq.s32.totalorder %s14, 0
      %p76 = por %p74, %p75
      %s77 = ssub.s32 %s15, %s27
      %s78 = ssub.s32 %s16, %s23
      %s79 = sor.u32 %s77, %s78
      %p80 = scmp.eq.s32.totalorder %s79, 0
      %s82 = sadd.s32 %s81, 1
      %s83 = scalar_select %p80, %s81, %s82
      %p86 = pneg %p80
      %p87 = scmp.eq.s32.totalorder %s8, 3
      %p88 = por %p86, %p87
      %p89 = scmp.ne.s32.totalorder %s81, %s84
      %p90 = scmp.eq.s32.totalorder %s8, 0
      %p91 = por %p89, %p90
      %p92 = scmp.ne.s32.totalorder %s81, %s84
      %p93 = scmp.eq.s32.totalorder %s13, 3
      %p94 = por %p92, %p93
      %p95 = scmp.ne.s32.totalorder %s84, %s85
      %p96 = scmp.eq.s32.totalorder %s13, 0
      %p97 = por %p95, %p96
      %p98 = scmp.ne.s32.totalorder %s84, %s85
      %p99 = scmp.eq.s32.totalorder %s14, 3
      %p100 = por %p98, %p99
      %p102 = scmp.ne.s32.totalorder %s85, %s101
      %p103 = scmp.eq.s32.totalorder %s14, 0
      %p104 = por %p102, %p103
      %p105 = scmp.le.s32.totalorder 1, %s8
      %p106 = scmp.lt.s32.totalorder %s8, 5
      %p107 = pnand %p105, %p106
      %p108 = pneg %p107
      // Predicated region
      $region9: #{dasi_forward.8} parent=5 // pred_check
        _
      $region10: #{dasi_forward.8} parent=5 // pred_check_branch
        %110 = sbr.rel (%p107) target = $region12
      $region11: #{dasi_forward.8} parent=5 // pred_region
        %s111 = ssub.s32 %s8, 1
        // Predicated region
        $region13: #{dasi_forward.8} parent=11 // pred_check
          %p112 = pneg %p69
        $region14: #{dasi_forward.8} parent=11 // pred_check_branch
          %114 = sbr.rel (%p112) target = $region16
        $region15: #{dasi_forward.8} parent=11 // pred_region
          _
        $region16: #{dasi_forward.8} parent=11 // pred_fallthru
          _
      $region12: #{dasi_forward.8} parent=5 // pred_fallthru
        _
      %p115 = scmp.lt.s32.totalorder %s8, 4
      // Predicated region
      $region17: #{dasi_forward.8} parent=5 // pred_check
        %p116 = pneg %p115
      $region18: #{dasi_forward.8} parent=5 // pred_check_branch
        %118 = sbr.rel (%p116) target = $region20
      $region19: #{dasi_forward.8} parent=5 // pred_region
        // Predicated region
        $region21: #{dasi_forward.8} parent=19 // pred_check
          %p119 = pneg %p42
        $region22: #{dasi_forward.8} parent=19 // pred_check_branch
          %121 = sbr.rel (%p119) target = $region24
        $region23: #{dasi_forward.8} parent=19 // pred_region
          %s122 = sand.u32 %s32, 1
          %s123 = sand.u32 %s32, 1
          %s124 = smul.addr %s123, 32
          %s125 = scalar_lea.vmem [#allocation2], %s124
          %s126 = smul.u32 4, %s16
          %s127 = smul.addr %s15, 16
          %s128 = sadd.s32 %s126, %s127
          %s129 = smul.addr %s128, 4
          %s130 = scalar_lea.vmem %s0, %s129
          // Predicated region
          $region25: #{dasi_forward.8} parent=23 // pred_check
            _
          $region26: #{dasi_forward.8} parent=23 // pred_check_branch
            %132 = sbr.rel (0) target = $region28
          $region27: #{dasi_forward.8} parent=23 // pred_region
            // Predicated region
            $region29: #{dasi_forward.8} parent=27 // pred_check
              _
            $region30: #{dasi_forward.8} parent=27 // pred_check_branch
              %134 = sbr.rel (0) target = $region32
            $region31: #{dasi_forward.8} parent=27 // pred_region
              loop: start=0, step=1, limit=1
              $region33: #{dasi_forward.8} parent=31 // loop_pre_header
                _
              $region34: #{dasi_forward.8} parent=31 // loop_header
                %s136 = sphi 0, %s140
                %p137 = scmp.ge.s32.totalorder %s136, 1
                %s141 = sphi %s130, %s130
                %s142 = sphi %s125, %s125
              $region35: #{dasi_forward.8} parent=31 // loop_header_branch
                %139 = sbr.rel (%p137) target = $region39
              $region36: #{dasi_forward.8} parent=31 // loop_body
                %v143 = vld [vmem:[%s141] sm:$0xff]
                %144 = vst [vmem:[%s142] sm:$0xff] %v143
                %v145 = vld [vmem:[%s141 + $0x8] sm:$0xff]
                %146 = vst [vmem:[%s142 + $0x8] sm:$0xff] %v145
                %v147 = vld [vmem:[%s141 + $0x20] sm:$0xff]
                %148 = vst [vmem:[%s142 + $0x10] sm:$0xff] %v147
                %v149 = vld [vmem:[%s141 + $0x28] sm:$0xff]
                %150 = vst [vmem:[%s142 + $0x18] sm:$0xff] %v149
              $region37: #{dasi_forward.8} parent=31 // loop_footer
                %s140 = sadd.s32 1, %s136
              $region38: #{dasi_forward.8} parent=31 // loop_footer_branch
                %135 = sbr.rel target = $region34
              $region39: #{dasi_forward.8} parent=31 // loop_exit
                _
            $region32: #{dasi_forward.8} parent=27 // pred_fallthru
              _
            // Predicated region
            $region40: #{dasi_forward.8} parent=27 // pred_check
              _
            $region41: #{dasi_forward.8} parent=27 // pred_check_branch
              %152 = sbr.rel target = $region43
            $region42: #{dasi_forward.8} parent=27 // pred_region
              _
            $region43: #{dasi_forward.8} parent=27 // pred_fallthru
              _
          $region28: #{dasi_forward.8} parent=23 // pred_fallthru
            _
          %153 = vnop
        $region24: #{dasi_forward.8} parent=19 // pred_fallthru
          _
      $region20: #{dasi_forward.8} parent=5 // pred_fallthru
        _
      %p154 = scmp.le.s32.totalorder 1, %s8
      %p155 = scmp.lt.s32.totalorder %s8, 5
      %p156 = pnand %p154, %p155
      %p157 = pneg %p156
      // Predicated region
      $region44: #{dasi_forward.8} parent=5 // pred_check
        _
      $region45: #{dasi_forward.8} parent=5 // pred_check_branch
        %159 = sbr.rel (%p156) target = $region47
      $region46: #{dasi_forward.8} parent=5 // pred_region
        %s160 = ssub.s32 %s8, 1
        %s161 = sand.u32 %s35, 1
        %s162 = sand.u32 %s35, 1
        %s163 = smul.addr %s162, 32
        %s164 = scalar_lea.vmem [#allocation2], %s163
        // Predicated region
        $region48: #{dasi_forward.8} parent=46 // pred_check
          %p165 = pneg %p48
        $region49: #{dasi_forward.8} parent=46 // pred_check_branch
          %167 = sbr.rel (%p165) target = $region51
        $region50: #{dasi_forward.8} parent=46 // pred_region
          _
        $region51: #{dasi_forward.8} parent=46 // pred_fallthru
          _
        %s168 = sand.u32 %s35, 1
        %s169 = sand.u32 %s35, 1
        %s170 = smul.addr %s169, 32
        %s171 = scalar_lea.vmem [#allocation2], %s170
        %p172 = pneg %p48
        %p173 = pneg %p45
        %p174 = pneg %p69
        %p175 = pneg %p66
        %p176 = pneg %p97
        %p177 = pneg %p94
        %s178 = sand.u32 %s84, 1
        %s179 = sand.u32 %s84, 1
        %s180 = smul.addr %s179, 64
        %s181 = scalar_lea.vmem [#allocation3], %s180
        %s182 = smul.u32 4, %s18
        %s183 = smul.u32 4, %s18
        %v184 = vld [vmem:[%s1] sm:$0xff]
        %v185 = vld [vmem:[%s1 + $0x8] sm:$0xff]
        %v186 = vld [vmem:[%s1 + $0x10] sm:$0xff]
        %v187 = vld [vmem:[%s1 + $0x18] sm:$0xff]
        %v188 = vld [vmem:[%s164] sm:$0xff]
        %v189 = vld [vmem:[%s164 + $0x8] sm:$0xff]
        %v190 = vld [vmem:[%s164 + $0x10] sm:$0xff]
        %v191 = vld [vmem:[%s164 + $0x18] sm:$0xff]
        %v192 = vunpack.c.l.bf16 %v188
        %v193 = vunpack.c.h.bf16 %v188
        %v194 = vunpack.c.l.bf16 %v189
        %v195 = vunpack.c.h.bf16 %v189
        %v196 = vunpack.c.l.bf16 %v190
        %v197 = vunpack.c.h.bf16 %v190
        %v198 = vunpack.c.l.bf16 %v191
        %v199 = vunpack.c.h.bf16 %v191
        %vm200 = vcmask 130048
        %v202 = vsel %vm200, %v184, 0
        %v205 = vsel %vm200, %v185, 0
        %v208 = vsel %vm200, %v186, 0
        %v211 = vsel %vm200, %v187, 0
        %213 = vmatprep.subr.mxu0 0.0
        %214 = vmatpush1.msra.mxu0 0.0
        %215 = vmatprep.subr.mxu0 0.0
        %216 = vmatpush1.msra.mxu0 0.0
        %217 = vmatprep.subr.mxu0 0.0
        %218 = vmatpush1.msra.mxu0 0.0
        %219 = vmatprep.subr.mxu0 0.0
        %220 = vmatpush1.msra.mxu0 0.0
        %221 = vmatprep.subr.mxu0 0.0
        %222 = vmatpush1.msra.mxu0 0.0
        %223 = vmatprep.subr.mxu0 0.0
        %224 = vmatpush1.msra.mxu0 0.0
        %225 = vmatprep.subr.mxu0 0.0
        %226 = vmatpush1.msra.mxu0 0.0
        %227 = vmatprep.subr.mxu0 0.0
        %228 = vmatpush1.msra.mxu0 0.0
        %229 = vmatprep.subr.mxu0 0.0
        %230 = vmatpush1.msra.mxu0 0.0
        %231 = vmatprep.subr.mxu0 0.0
        %232 = vmatpush1.msra.mxu0 0.0
        %233 = vmatprep.subr.mxu0 0.0
        %234 = vmatpush1.msra.mxu0 0.0
        %235 = vmatprep.subr.mxu0 0.0
        %236 = vmatpush1.msra.mxu0 0.0
        %237 = vmatprep.subr.mxu0 0.0
        %238 = vmatpush1.msra.mxu0 0.0
        %239 = vmatprep.subr.mxu0 0.0
        %240 = vmatpush1.msra.mxu0 0.0
        %241 = vmatprep.subr.mxu0 %v197
        %242 = vmatpush1.msra.mxu0 %v196
        %243 = vmatprep.subr.mxu0 %v193
        %244 = vmatpush1.msra.mxu0 %v192
        %245 = vmatprep.subr.mxu0 0.0
        %246 = vmatpush2.msra.mxu0 0.0
        %247 = vmatprep.subr.mxu0 0.0
        %248 = vmatpush2.msra.mxu0 0.0
        %249 = vmatprep.subr.mxu0 0.0
        %250 = vmatpush2.msra.mxu0 0.0
        %251 = vmatprep.subr.mxu0 0.0
        %252 = vmatpush2.msra.mxu0 0.0
        %253 = vmatprep.subr.mxu0 0.0
        %254 = vmatpush2.msra.mxu0 0.0
        %255 = vmatprep.subr.mxu0 0.0
        %256 = vmatpush2.msra.mxu0 0.0
        %257 = vmatprep.subr.mxu0 0.0
        %258 = vmatpush2.msra.mxu0 0.0
        %259 = vmatprep.subr.mxu0 0.0
        %260 = vmatpush2.msra.mxu0 0.0
        %261 = vmatprep.subr.mxu0 0.0
        %262 = vmatpush2.msra.mxu0 0.0
        %263 = vmatprep.subr.mxu0 0.0
        %264 = vmatpush2.msra.mxu0 0.0
        %265 = vmatprep.subr.mxu0 0.0
        %266 = vmatpush2.msra.mxu0 0.0
        %267 = vmatprep.subr.mxu0 0.0
        %268 = vmatpush2.msra.mxu0 0.0
        %269 = vmatprep.subr.mxu0 0.0
        %270 = vmatpush2.msra.mxu0 0.0
        %271 = vmatprep.subr.mxu0 0.0
        %272 = vmatpush2.msra.mxu0 0.0
        %273 = vmatprep.subr.mxu0 0.0
        %274 = vmatpush2.msra.mxu0 0.0
        %275 = vmatprep.subr.mxu0 0.0
        %276 = vmatpush2.msra.mxu0 0.0
        %277 = vmatprep.mubr.f32.mxu0 0.0
        %278 = vmatmul.mubr.f32.gmra.mxu0 %v202
        %v279 = vpop.f32.mrf.mxu0
        %v280 = vadd.f32 0.0, %v279
        %v281 = vpop.f32.mrf.mxu0
        %v282 = vadd.f32 0.0, %v281
        %283 = vmatprep.mubr.f32.mxu0 0.0
        %284 = vmatmul.mubr.f32.gmra.mxu0 %v205
        %v285 = vpop.f32.mrf.mxu0
        %v286 = vadd.f32 0.0, %v285
        %v287 = vpop.f32.mrf.mxu0
        %v288 = vadd.f32 0.0, %v287
        %289 = vmatprep.mubr.f32.mxu0 0.0
        %290 = vmatmul.mubr.f32.gmra.mxu0 %v208
        %v291 = vpop.f32.mrf.mxu0
        %v292 = vadd.f32 0.0, %v291
        %v293 = vpop.f32.mrf.mxu0
        %v294 = vadd.f32 0.0, %v293
        %295 = vmatprep.mubr.f32.mxu0 0.0
        %296 = vmatmul.mubr.f32.gmra.mxu0 %v211
        %v297 = vpop.f32.mrf.mxu0
        %v298 = vadd.f32 0.0, %v297
        %v299 = vpop.f32.mrf.mxu0
        %v300 = vadd.f32 0.0, %v299
        %301 = vdwg.mxu0
        %302 = vmatprep.subr.mxu0 0.0
        %303 = vmatpush1.msra.mxu0 0.0
        %304 = vmatprep.subr.mxu0 0.0
        %305 = vmatpush1.msra.mxu0 0.0
        %306 = vmatprep.subr.mxu0 0.0
        %307 = vmatpush1.msra.mxu0 0.0
        %308 = vmatprep.subr.mxu0 0.0
        %309 = vmatpush1.msra.mxu0 0.0
        %310 = vmatprep.subr.mxu0 0.0
        %311 = vmatpush1.msra.mxu0 0.0
        %312 = vmatprep.subr.mxu0 0.0
        %313 = vmatpush1.msra.mxu0 0.0
        %314 = vmatprep.subr.mxu0 0.0
        %315 = vmatpush1.msra.mxu0 0.0
        %316 = vmatprep.subr.mxu0 0.0
        %317 = vmatpush1.msra.mxu0 0.0
        %318 = vmatprep.subr.mxu0 0.0
        %319 = vmatpush1.msra.mxu0 0.0
        %320 = vmatprep.subr.mxu0 0.0
        %321 = vmatpush1.msra.mxu0 0.0
        %322 = vmatprep.subr.mxu0 0.0
        %323 = vmatpush1.msra.mxu0 0.0
        %324 = vmatprep.subr.mxu0 0.0
        %325 = vmatpush1.msra.mxu0 0.0
        %326 = vmatprep.subr.mxu0 0.0
        %327 = vmatpush1.msra.mxu0 0.0
        %328 = vmatprep.subr.mxu0 0.0
        %329 = vmatpush1.msra.mxu0 0.0
        %330 = vmatprep.subr.mxu0 %v199
        %331 = vmatpush1.msra.mxu0 %v198
        %332 = vmatprep.subr.mxu0 %v195
        %333 = vmatpush1.msra.mxu0 %v194
        %334 = vmatprep.subr.mxu0 0.0
        %335 = vmatpush2.msra.mxu0 0.0
        %336 = vmatprep.subr.mxu0 0.0
        %337 = vmatpush2.msra.mxu0 0.0
        %338 = vmatprep.subr.mxu0 0.0
        %339 = vmatpush2.msra.mxu0 0.0
        %340 = vmatprep.subr.mxu0 0.0
        %341 = vmatpush2.msra.mxu0 0.0
        %342 = vmatprep.subr.mxu0 0.0
        %343 = vmatpush2.msra.mxu0 0.0
        %344 = vmatprep.subr.mxu0 0.0
        %345 = vmatpush2.msra.mxu0 0.0
        %346 = vmatprep.subr.mxu0 0.0
        %347 = vmatpush2.msra.mxu0 0.0
        %348 = vmatprep.subr.mxu0 0.0
        %349 = vmatpush2.msra.mxu0 0.0
        %350 = vmatprep.subr.mxu0 0.0
        %351 = vmatpush2.msra.mxu0 0.0
        %352 = vmatprep.subr.mxu0 0.0
        %353 = vmatpush2.msra.mxu0 0.0
        %354 = vmatprep.subr.mxu0 0.0
        %355 = vmatpush2.msra.mxu0 0.0
        %356 = vmatprep.subr.mxu0 0.0
        %357 = vmatpush2.msra.mxu0 0.0
        %358 = vmatprep.subr.mxu0 0.0
        %359 = vmatpush2.msra.mxu0 0.0
        %360 = vmatprep.subr.mxu0 0.0
        %361 = vmatpush2.msra.mxu0 0.0
        %362 = vmatprep.subr.mxu0 0.0
        %363 = vmatpush2.msra.mxu0 0.0
        %364 = vmatprep.subr.mxu0 0.0
        %365 = vmatpush2.msra.mxu0 0.0
        %366 = vmatprep.mubr.f32.mxu0 0.0
        %367 = vmatmul.mubr.f32.gmra.mxu0 %v202
        %v368 = vpop.f32.mrf.mxu0
        %v369 = vadd.f32 0.0, %v368
        %v370 = vpop.f32.mrf.mxu0
        %v371 = vadd.f32 0.0, %v370
        %372 = vmatprep.mubr.f32.mxu0 0.0
        %373 = vmatmul.mubr.f32.gmra.mxu0 %v205
        %v374 = vpop.f32.mrf.mxu0
        %v375 = vadd.f32 0.0, %v374
        %v376 = vpop.f32.mrf.mxu0
        %v377 = vadd.f32 0.0, %v376
        %378 = vmatprep.mubr.f32.mxu0 0.0
        %379 = vmatmul.mubr.f32.gmra.mxu0 %v208
        %v380 = vpop.f32.mrf.mxu0
        %v381 = vadd.f32 0.0, %v380
        %v382 = vpop.f32.mrf.mxu0
        %v383 = vadd.f32 0.0, %v382
        %384 = vmatprep.mubr.f32.mxu0 0.0
        %385 = vmatmul.mubr.f32.gmra.mxu0 %v211
        %v386 = vpop.f32.mrf.mxu0
        %v387 = vadd.f32 0.0, %v386
        %v388 = vpop.f32.mrf.mxu0
        %v389 = vadd.f32 0.0, %v388
        %390 = vdwg.mxu0
        %v391 = vpack.c.bf16 %v286, %v280
        %v392 = vpack.c.bf16 %v288, %v282
        %v393 = vpack.c.bf16 %v375, %v369
        %v394 = vpack.c.bf16 %v377, %v371
        %v395 = vpack.c.bf16 %v298, %v292
        %v396 = vpack.c.bf16 %v300, %v294
        %v397 = vpack.c.bf16 %v387, %v381
        %v398 = vpack.c.bf16 %v389, %v383
        %v407 = vunpack.c.l.b16 %v391
        %v408 = vunpack.c.l.b16 %v392
        %v409 = vunpack.c.l.b16 %v393
        %v410 = vunpack.c.l.b16 %v394
        %v411 = vunpack.c.h.b16 %v391
        %v412 = vunpack.c.h.b16 %v392
        %v413 = vunpack.c.h.b16 %v393
        %v414 = vunpack.c.h.b16 %v394
        %v415 = vunpack.c.l.b16 %v395
        %v416 = vunpack.c.l.b16 %v396
        %v417 = vunpack.c.l.b16 %v397
        %v418 = vunpack.c.l.b16 %v398
        %v419 = vunpack.c.h.b16 %v395
        %v420 = vunpack.c.h.b16 %v396
        %v421 = vunpack.c.h.b16 %v397
        %v422 = vunpack.c.h.b16 %v398
        %v423 = vpack.c.b16 %v408, %v407
        %v424 = vpack.c.b16 %v410, %v409
        %v425 = vpack.c.b16 %v412, %v411
        %v426 = vpack.c.b16 %v414, %v413
        %v427 = vpack.c.b16 %v416, %v415
        %v428 = vpack.c.b16 %v418, %v417
        %v429 = vpack.c.b16 %v420, %v419
        %v430 = vpack.c.b16 %v422, %v421
        %439 = vst [vmem:[%s181] sm:$0xff] %v423
        %440 = vst [vmem:[%s181 + $0x8] sm:$0xff] %v424
        %441 = vst [vmem:[%s181 + $0x10] sm:$0xff] %v425
        %442 = vst [vmem:[%s181 + $0x18] sm:$0xff] %v426
        %443 = vst [vmem:[%s181 + $0x20] sm:$0xff] %v427
        %444 = vst [vmem:[%s181 + $0x28] sm:$0xff] %v428
        %445 = vst [vmem:[%s181 + $0x30] sm:$0xff] %v429
        %446 = vst [vmem:[%s181 + $0x38] sm:$0xff] %v430
        %s447 = sand.u32 %s84, 1
        %s448 = sand.u32 %s84, 1
        %s449 = smul.addr %s448, 64
        %s450 = scalar_lea.vmem [#allocation3], %s449
        // Predicated region
        $region52: #{dasi_forward.8} parent=46 // pred_check
          %p451 = pneg %p94
        $region53: #{dasi_forward.8} parent=46 // pred_check_branch
          %453 = sbr.rel (%p451) target = $region55
        $region54: #{dasi_forward.8} parent=46 // pred_region
          %s454 = smul.u32 4, %s18
          %s455 = smul.addr %s17, 32
          %s456 = sadd.s32 %s454, %s455
          %s457 = smul.addr %s456, 4
          %s458 = scalar_lea.vmem %s2, %s457
          // Predicated region
          $region56: #{dasi_forward.8} parent=54 // pred_check
            _
          $region57: #{dasi_forward.8} parent=54 // pred_check_branch
            %460 = sbr.rel (0) target = $region59
          $region58: #{dasi_forward.8} parent=54 // pred_region
            // Predicated region
            $region60: #{dasi_forward.8} parent=58 // pred_check
              _
            $region61: #{dasi_forward.8} parent=58 // pred_check_branch
              %462 = sbr.rel (0) target = $region63
            $region62: #{dasi_forward.8} parent=58 // pred_region
              loop: start=0, step=1, limit=1
              $region64: #{dasi_forward.8} parent=62 // loop_pre_header
                _
              $region65: #{dasi_forward.8} parent=62 // loop_header
                %s464 = sphi 0, %s468
                %p465 = scmp.ge.s32.totalorder %s464, 1
                %s469 = sphi %s450, %s450
                %s470 = sphi %s458, %s458
              $region66: #{dasi_forward.8} parent=62 // loop_header_branch
                %467 = sbr.rel (%p465) target = $region70
              $region67: #{dasi_forward.8} parent=62 // loop_body
                %v471 = vld [vmem:[%s469] sm:$0xff]
                %472 = vst [vmem:[%s470] sm:$0xff] %v471
                %v473 = vld [vmem:[%s469 + $0x8] sm:$0xff]
                %474 = vst [vmem:[%s470 + $0x8] sm:$0xff] %v473
                %v475 = vld [vmem:[%s469 + $0x10] sm:$0xff]
                %476 = vst [vmem:[%s470 + $0x20] sm:$0xff] %v475
                %v477 = vld [vmem:[%s469 + $0x18] sm:$0xff]
                %478 = vst [vmem:[%s470 + $0x28] sm:$0xff] %v477
                %v479 = vld [vmem:[%s469 + $0x20] sm:$0xff]
                %480 = vst [vmem:[%s470 + $0x40] sm:$0xff] %v479
                %v481 = vld [vmem:[%s469 + $0x28] sm:$0xff]
                %482 = vst [vmem:[%s470 + $0x48] sm:$0xff] %v481
                %v483 = vld [vmem:[%s469 + $0x30] sm:$0xff]
                %484 = vst [vmem:[%s470 + $0x60] sm:$0xff] %v483
                %v485 = vld [vmem:[%s469 + $0x38] sm:$0xff]
                %486 = vst [vmem:[%s470 + $0x68] sm:$0xff] %v485
              $region68: #{dasi_forward.8} parent=62 // loop_footer
                %s468 = sadd.s32 1, %s464
              $region69: #{dasi_forward.8} parent=62 // loop_footer_branch
                %463 = sbr.rel target = $region65
              $region70: #{dasi_forward.8} parent=62 // loop_exit
                _
            $region63: #{dasi_forward.8} parent=58 // pred_fallthru
              _
            // Predicated region
            $region71: #{dasi_forward.8} parent=58 // pred_check
              _
            $region72: #{dasi_forward.8} parent=58 // pred_check_branch
              %488 = sbr.rel target = $region74
            $region73: #{dasi_forward.8} parent=58 // pred_region
              _
            $region74: #{dasi_forward.8} parent=58 // pred_fallthru
              _
          $region59: #{dasi_forward.8} parent=54 // pred_fallthru
            _
          %489 = vnop
        $region55: #{dasi_forward.8} parent=46 // pred_fallthru
          _
      $region47: #{dasi_forward.8} parent=5 // pred_fallthru
        _
      %p490 = scmp.le.s32.totalorder 2, %s8
      // Predicated region
      $region75: #{dasi_forward.8} parent=5 // pred_check
        %p491 = pneg %p490
      $region76: #{dasi_forward.8} parent=5 // pred_check_branch
        %493 = sbr.rel (%p491) target = $region78
      $region77: #{dasi_forward.8} parent=5 // pred_region
        %s494 = ssub.s32 %s8, 2
        // Predicated region
        $region79: #{dasi_forward.8} parent=77 // pred_check
          %p495 = pneg %p100
        $region80: #{dasi_forward.8} parent=77 // pred_check_branch
          %497 = sbr.rel (%p495) target = $region82
        $region81: #{dasi_forward.8} parent=77 // pred_region
          %s498 = sand.u32 %s85, 1
          %s499 = sand.u32 %s85, 1
          %s500 = smul.addr %s499, 64
          %s501 = scalar_lea.vmem [#allocation3], %s500
        $region82: #{dasi_forward.8} parent=77 // pred_fallthru
          _
      $region78: #{dasi_forward.8} parent=5 // pred_fallthru
        _
    $region6: #{dasi_forward.8} parent=1 // loop_footer
      %s12 = sadd.s32 1, %s8
    $region7: #{dasi_forward.8} parent=1 // loop_footer_branch
      %7 = sbr.rel target = $region3
    $region8: #{dasi_forward.8} parent=1 // loop_exit
      _

// kernel: dasi_forward.9
$region0: #{dasi_forward.9}
  #allocation0 [shape = 'u32[]', space=smem, size = 0x4, offset = 0x4, fixed_abs, tag = 'smem constant byte address 0x4 - core index']
  #allocation1 [shape = 'u32[144,128]{1,0:T(1,128)}', space=vmem, size = 0x12000, scoped, tag = 'internal scratch']
  %s0 = inlined_call_operand.vmem [shape: bf16[512,128], index: 0, kind: input, shape index: {}]
  %s1 = inlined_call_operand.vmem [shape: bf16[512,128], index: 1, kind: input, shape index: {}]
  %s2 = inlined_call_operand.vmem [shape: bf16[512,128], index: 2, kind: input, shape index: {}]
  %s3 = inlined_call_operand.vmem [shape: bf16[128,128], index: 3, kind: input, shape index: {}]
  %s4 = inlined_call_operand.vmem [shape: f32[1,128], index: 4, kind: input, shape index: {}]
  %s5 = inlined_call_operand.vmem [shape: bf16[128,128], index: 5, kind: input, shape index: {}]
  %s6 = inlined_call_operand.vmem [shape: f32[1,128], index: 6, kind: input, shape index: {}]
  %s7 = inlined_call_operand.vmem [shape: f32[1,128], index: 7, kind: input, shape index: {}]
  %s8 = inlined_call_operand.vmem [shape: f32[1,128], index: 8, kind: input, shape index: {}]
  %s9 = inlined_call_operand.vmem [shape: bf16[512,128], index: 9, kind: output, shape index: {}]
  %s10 = sld [smem:[#allocation0]]
  $region69: #{dasi_forward.9} parent=0
    _
  %s12 = ssub.s32 1, %s10
  %s13 = scalar_select 0, %s12, %s10
  loop: start=0, step=1, limit=4
  $region2: #{dasi_forward.9} parent=0 // loop_pre_header
    _
  $region3: #{dasi_forward.9} parent=0 // loop_header
    %s15 = sphi 0, %s19
    %p16 = scmp.ge.s32.totalorder %s15, 4
    %s25 = sphi 0, %s27
    %s28 = sphi 0, %s25
    %s29 = sphi 0, %s28
    %s45 = sphi 0, %s29
    %s51 = sphi 0, %s53
    %s54 = sphi 0, %s51
    %s55 = sphi 0, %s54
    %s71 = sphi 0, %s55
    %s77 = sphi 0, %s79
    %s80 = sphi 0, %s77
    %s81 = sphi 0, %s80
    %s97 = sphi 0, %s81
    %s101 = sphi 0, %s101
    %s103 = sphi 0, %s101
    %s104 = sphi 0, %s103
    %s118 = sphi 0, %s104
    %s122 = sphi 0, %s122
    %s124 = sphi 0, %s122
    %s125 = sphi 0, %s124
    %s139 = sphi 0, %s125
    %s143 = sphi 0, %s143
    %s145 = sphi 0, %s143
    %s146 = sphi 0, %s145
    %s160 = sphi 0, %s146
    %s164 = sphi 0, %s164
    %s166 = sphi 0, %s164
    %s167 = sphi 0, %s166
    %s181 = sphi 0, %s167
    %s185 = sphi 0, %s185
    %s187 = sphi 0, %s185
    %s188 = sphi 0, %s187
    %s202 = sphi 0, %s188
    %s206 = sphi 0, %s206
    %s208 = sphi 0, %s206
    %s209 = sphi 0, %s208
    %s223 = sphi 0, %s209
    %s229 = sphi 0, %s231
    %s232 = sphi 0, %s229
    %s233 = sphi 0, %s232
    %s249 = sphi 0, %s233
  $region4: #{dasi_forward.9} parent=0 // loop_header_branch
    %18 = sbr.rel (%p16) target = $region8
  $region5: #{dasi_forward.9} parent=0 // loop_body
    %s20 = ssub.s32 %s15, 1
    %s21 = ssub.s32 %s15, 2
    %s22 = sadd.s32 %s15, 1
    %s23 = ssub.s32 %s15, %s22
    %p24 = scmp.eq.s32.totalorder %s23, 0
    %s26 = sadd.s32 %s25, 1
    %s27 = scalar_select %p24, %s25, %s26
    %p30 = pneg %p24
    %p31 = scmp.eq.s32.totalorder %s15, 1
    %p32 = por %p30, %p31
    %p33 = scmp.ne.s32.totalorder %s25, %s28
    %p34 = scmp.eq.s32.totalorder %s15, 0
    %p35 = por %p33, %p34
    %p36 = scmp.ne.s32.totalorder %s25, %s28
    %p37 = scmp.eq.s32.totalorder %s20, 1
    %p38 = por %p36, %p37
    %p39 = scmp.ne.s32.totalorder %s28, %s29
    %p40 = scmp.eq.s32.totalorder %s20, 0
    %p41 = por %p39, %p40
    %p42 = scmp.ne.s32.totalorder %s28, %s29
    %p43 = scmp.eq.s32.totalorder %s21, 1
    %p44 = por %p42, %p43
    %p46 = scmp.ne.s32.totalorder %s29, %s45
    %p47 = scmp.eq.s32.totalorder %s21, 0
    %p48 = por %p46, %p47
    %s49 = ssub.s32 %s15, %s22
    %p50 = scmp.eq.s32.totalorder %s49, 0
    %s52 = sadd.s32 %s51, 1
    %s53 = scalar_select %p50, %s51, %s52
    %p56 = pneg %p50
    %p57 = scmp.eq.s32.totalorder %s15, 1
    %p58 = por %p56, %p57
    %p59 = scmp.ne.s32.totalorder %s51, %s54
    %p60 = scmp.eq.s32.totalorder %s15, 0
    %p61 = por %p59, %p60
    %p62 = scmp.ne.s32.totalorder %s51, %s54
    %p63 = scmp.eq.s32.totalorder %s20, 1
    %p64 = por %p62, %p63
    %p65 = scmp.ne.s32.totalorder %s54, %s55
    %p66 = scmp.eq.s32.totalorder %s20, 0
    %p67 = por %p65, %p66
    %p68 = scmp.ne.s32.totalorder %s54, %s55
    %p69 = scmp.eq.s32.totalorder %s21, 1
    %p70 = por %p68, %p69
    %p72 = scmp.ne.s32.totalorder %s55, %s71
    %p73 = scmp.eq.s32.totalorder %s21, 0
    %p74 = por %p72, %p73
    %s75 = ssub.s32 %s15, %s22
    %p76 = scmp.eq.s32.totalorder %s75, 0
    %s78 = sadd.s32 %s77, 1
    %s79 = scalar_select %p76, %s77, %s78
    %p82 = pneg %p76
    %p83 = scmp.eq.s32.totalorder %s15, 1
    %p84 = por %p82, %p83
    %p85 = scmp.ne.s32.totalorder %s77, %s80
    %p86 = scmp.eq.s32.totalorder %s15, 0
    %p87 = por %p85, %p86
    %p88 = scmp.ne.s32.totalorder %s77, %s80
    %p89 = scmp.eq.s32.totalorder %s20, 1
    %p90 = por %p88, %p89
    %p91 = scmp.ne.s32.totalorder %s80, %s81
    %p92 = scmp.eq.s32.totalorder %s20, 0
    %p93 = por %p91, %p92
    %p94 = scmp.ne.s32.totalorder %s80, %s81
    %p95 = scmp.eq.s32.totalorder %s21, 1
    %p96 = por %p94, %p95
    %p98 = scmp.ne.s32.totalorder %s81, %s97
    %p99 = scmp.eq.s32.totalorder %s21, 0
    %p100 = por %p98, %p99
    %s102 = sadd.s32 %s101, 1
    %p105 = scmp.eq.s32.totalorder %s15, 1
    %p106 = scmp.ne.s32.totalorder %s101, %s103
    %p107 = scmp.eq.s32.totalorder %s15, 0
    %p108 = por %p106, %p107
    %p109 = scmp.ne.s32.totalorder %s101, %s103
    %p110 = scmp.eq.s32.totalorder %s20, 1
    %p111 = por %p109, %p110
    %p112 = scmp.ne.s32.totalorder %s103, %s104
    %p113 = scmp.eq.s32.totalorder %s20, 0
    %p114 = por %p112, %p113
    %p115 = scmp.ne.s32.totalorder %s103, %s104
    %p116 = scmp.eq.s32.totalorder %s21, 1
    %p117 = por %p115, %p116
    %p119 = scmp.ne.s32.totalorder %s104, %s118
    %p120 = scmp.eq.s32.totalorder %s21, 0
    %p121 = por %p119, %p120
    %s123 = sadd.s32 %s122, 1
    %p126 = scmp.eq.s32.totalorder %s15, 1
    %p127 = scmp.ne.s32.totalorder %s122, %s124
    %p128 = scmp.eq.s32.totalorder %s15, 0
    %p129 = por %p127, %p128
    %p130 = scmp.ne.s32.totalorder %s122, %s124
    %p131 = scmp.eq.s32.totalorder %s20, 1
    %p132 = por %p130, %p131
    %p133 = scmp.ne.s32.totalorder %s124, %s125
    %p134 = scmp.eq.s32.totalorder %s20, 0
    %p135 = por %p133, %p134
    %p136 = scmp.ne.s32.totalorder %s124, %s125
    %p137 = scmp.eq.s32.totalorder %s21, 1
    %p138 = por %p136, %p137
    %p140 = scmp.ne.s32.totalorder %s125, %s139
    %p141 = scmp.eq.s32.totalorder %s21, 0
    %p142 = por %p140, %p141
    %s144 = sadd.s32 %s143, 1
    %p147 = scmp.eq.s32.totalorder %s15, 1
    %p148 = scmp.ne.s32.totalorder %s143, %s145
    %p149 = scmp.eq.s32.totalorder %s15, 0
    %p150 = por %p148, %p149
    %p151 = scmp.ne.s32.totalorder %s143, %s145
    %p152 = scmp.eq.s32.totalorder %s20, 1
    %p153 = por %p151, %p152
    %p154 = scmp.ne.s32.totalorder %s145, %s146
    %p155 = scmp.eq.s32.totalorder %s20, 0
    %p156 = por %p154, %p155
    %p157 = scmp.ne.s32.totalorder %s145, %s146
    %p158 = scmp.eq.s32.totalorder %s21, 1
    %p159 = por %p157, %p158
    %p161 = scmp.ne.s32.totalorder %s146, %s160
    %p162 = scmp.eq.s32.totalorder %s21, 0
    %p163 = por %p161, %p162
    %s165 = sadd.s32 %s164, 1
    %p168 = scmp.eq.s32.totalorder %s15, 1
    %p169 = scmp.ne.s32.totalorder %s164, %s166
    %p170 = scmp.eq.s32.totalorder %s15, 0
    %p171 = por %p169, %p170
    %p172 = scmp.ne.s32.totalorder %s164, %s166
    %p173 = scmp.eq.s32.totalorder %s20, 1
    %p174 = por %p172, %p173
    %p175 = scmp.ne.s32.totalorder %s166, %s167
    %p176 = scmp.eq.s32.totalorder %s20, 0
    %p177 = por %p175, %p176
    %p178 = scmp.ne.s32.totalorder %s166, %s167
    %p179 = scmp.eq.s32.totalorder %s21, 1
    %p180 = por %p178, %p179
    %p182 = scmp.ne.s32.totalorder %s167, %s181
    %p183 = scmp.eq.s32.totalorder %s21, 0
    %p184 = por %p182, %p183
    %s186 = sadd.s32 %s185, 1
    %p189 = scmp.eq.s32.totalorder %s15, 1
    %p190 = scmp.ne.s32.totalorder %s185, %s187
    %p191 = scmp.eq.s32.totalorder %s15, 0
    %p192 = por %p190, %p191
    %p193 = scmp.ne.s32.totalorder %s185, %s187
    %p194 = scmp.eq.s32.totalorder %s20, 1
    %p195 = por %p193, %p194
    %p196 = scmp.ne.s32.totalorder %s187, %s188
    %p197 = scmp.eq.s32.totalorder %s20, 0
    %p198 = por %p196, %p197
    %p199 = scmp.ne.s32.totalorder %s187, %s188
    %p200 = scmp.eq.s32.totalorder %s21, 1
    %p201 = por %p199, %p200
    %p203 = scmp.ne.s32.totalorder %s188, %s202
    %p204 = scmp.eq.s32.totalorder %s21, 0
    %p205 = por %p203, %p204
    %s207 = sadd.s32 %s206, 1
    %p210 = scmp.eq.s32.totalorder %s15, 1
    %p211 = scmp.ne.s32.totalorder %s206, %s208
    %p212 = scmp.eq.s32.totalorder %s15, 0
    %p213 = por %p211, %p212
    %p214 = scmp.ne.s32.totalorder %s206, %s208
    %p215 = scmp.eq.s32.totalorder %s20, 1
    %p216 = por %p214, %p215
    %p217 = scmp.ne.s32.totalorder %s208, %s209
    %p218 = scmp.eq.s32.totalorder %s20, 0
    %p219 = por %p217, %p218
    %p220 = scmp.ne.s32.totalorder %s208, %s209
    %p221 = scmp.eq.s32.totalorder %s21, 1
    %p222 = por %p220, %p221
    %p224 = scmp.ne.s32.totalorder %s209, %s223
    %p225 = scmp.eq.s32.totalorder %s21, 0
    %p226 = por %p224, %p225
    %s227 = ssub.s32 %s15, %s22
    %p228 = scmp.eq.s32.totalorder %s227, 0
    %s230 = sadd.s32 %s229, 1
    %s231 = scalar_select %p228, %s229, %s230
    %p234 = pneg %p228
    %p235 = scmp.eq.s32.totalorder %s15, 1
    %p236 = por %p234, %p235
    %p237 = scmp.ne.s32.totalorder %s229, %s232
    %p238 = scmp.eq.s32.totalorder %s15, 0
    %p239 = por %p237, %p238
    %p240 = scmp.ne.s32.totalorder %s229, %s232
    %p241 = scmp.eq.s32.totalorder %s20, 1
    %p242 = por %p240, %p241
    %p243 = scmp.ne.s32.totalorder %s232, %s233
    %p244 = scmp.eq.s32.totalorder %s20, 0
    %p245 = por %p243, %p244
    %p246 = scmp.ne.s32.totalorder %s232, %s233
    %p247 = scmp.eq.s32.totalorder %s21, 1
    %p248 = por %p246, %p247
    %p250 = scmp.ne.s32.totalorder %s233, %s249
    %p251 = scmp.eq.s32.totalorder %s21, 0
    %p252 = por %p250, %p251
    %p253 = scmp.le.s32.totalorder 1, %s15
    %p254 = scmp.lt.s32.totalorder %s15, 3
    %p255 = pnand %p253, %p254
    %p256 = pneg %p255
    // Predicated region
    $region9: #{dasi_forward.9} parent=5 // pred_check
      _
    $region10: #{dasi_forward.9} parent=5 // pred_check_branch
      %258 = sbr.rel (%p255) target = $region12
    $region11: #{dasi_forward.9} parent=5 // pred_region
      %s259 = ssub.s32 %s15, 1
      // Predicated region
      $region13: #{dasi_forward.9} parent=11 // pred_check
        %p260 = pneg %p114
      $region14: #{dasi_forward.9} parent=11 // pred_check_branch
        %262 = sbr.rel (%p260) target = $region16
      $region15: #{dasi_forward.9} parent=11 // pred_region
        _
      $region16: #{dasi_forward.9} parent=11 // pred_fallthru
        _
      // Predicated region
      $region17: #{dasi_forward.9} parent=11 // pred_check
        %p263 = pneg %p135
      $region18: #{dasi_forward.9} parent=11 // pred_check_branch
        %265 = sbr.rel (%p263) target = $region20
      $region19: #{dasi_forward.9} parent=11 // pred_region
        _
      $region20: #{dasi_forward.9} parent=11 // pred_fallthru
        _
      // Predicated region
      $region21: #{dasi_forward.9} parent=11 // pred_check
        %p266 = pneg %p156
      $region22: #{dasi_forward.9} parent=11 // pred_check_branch
        %268 = sbr.rel (%p266) target = $region24
      $region23: #{dasi_forward.9} parent=11 // pred_region
        _
      $region24: #{dasi_forward.9} parent=11 // pred_fallthru
        _
      // Predicated region
      $region25: #{dasi_forward.9} parent=11 // pred_check
        %p269 = pneg %p177
      $region26: #{dasi_forward.9} parent=11 // pred_check_branch
        %271 = sbr.rel (%p269) target = $region28
      $region27: #{dasi_forward.9} parent=11 // pred_region
        _
      $region28: #{dasi_forward.9} parent=11 // pred_fallthru
        _
      // Predicated region
      $region29: #{dasi_forward.9} parent=11 // pred_check
        %p272 = pneg %p198
      $region30: #{dasi_forward.9} parent=11 // pred_check_branch
        %274 = sbr.rel (%p272) target = $region32
      $region31: #{dasi_forward.9} parent=11 // pred_region
        _
      $region32: #{dasi_forward.9} parent=11 // pred_fallthru
        _
      // Predicated region
      $region33: #{dasi_forward.9} parent=11 // pred_check
        %p275 = pneg %p219
      $region34: #{dasi_forward.9} parent=11 // pred_check_branch
        %277 = sbr.rel (%p275) target = $region36
      $region35: #{dasi_forward.9} parent=11 // pred_region
        _
      $region36: #{dasi_forward.9} parent=11 // pred_fallthru
        _
    $region12: #{dasi_forward.9} parent=5 // pred_fallthru
      _
    %p278 = scmp.lt.s32.totalorder %s15, 2
    // Predicated region
    $region37: #{dasi_forward.9} parent=5 // pred_check
      %p279 = pneg %p278
    $region38: #{dasi_forward.9} parent=5 // pred_check_branch
      %281 = sbr.rel (%p279) target = $region40
    $region39: #{dasi_forward.9} parent=5 // pred_region
      // Predicated region
      $region41: #{dasi_forward.9} parent=39 // pred_check
        %p282 = pneg %p35
      $region42: #{dasi_forward.9} parent=39 // pred_check_branch
        %284 = sbr.rel (%p282) target = $region44
      $region43: #{dasi_forward.9} parent=39 // pred_region
        %s285 = smul.u32 32, %s15
        %p286 = scmp.lt.s32.totalorder %s285, 63
        %s287 = scalar_select %p286, %s285, 63
        %s288 = smul.addr %s287, 4
        %s289 = scalar_lea.vmem %s0, %s288
        %s290 = smul.u32 32, %s15
      $region44: #{dasi_forward.9} parent=39 // pred_fallthru
        _
      // Predicated region
      $region45: #{dasi_forward.9} parent=39 // pred_check
        %p291 = pneg %p61
      $region46: #{dasi_forward.9} parent=39 // pred_check_branch
        %293 = sbr.rel (%p291) target = $region48
      $region47: #{dasi_forward.9} parent=39 // pred_region
        %s294 = smul.u32 32, %s15
        %p295 = scmp.lt.s32.totalorder %s294, 63
        %s296 = scalar_select %p295, %s294, 63
        %s297 = smul.addr %s296, 4
        %s298 = scalar_lea.vmem %s1, %s297
        %s299 = smul.u32 32, %s15
      $region48: #{dasi_forward.9} parent=39 // pred_fallthru
        _
      // Predicated region
      $region49: #{dasi_forward.9} parent=39 // pred_check
        %p300 = pneg %p87
      $region50: #{dasi_forward.9} parent=39 // pred_check_branch
        %302 = sbr.rel (%p300) target = $region52
      $region51: #{dasi_forward.9} parent=39 // pred_region
        %s303 = smul.u32 32, %s15
        %p304 = scmp.lt.s32.totalorder %s303, 63
        %s305 = scalar_select %p304, %s303, 63
        %s306 = smul.addr %s305, 4
        %s307 = scalar_lea.vmem %s2, %s306
        %s308 = smul.u32 32, %s15
      $region52: #{dasi_forward.9} parent=39 // pred_fallthru
        _
    $region40: #{dasi_forward.9} parent=5 // pred_fallthru
      _
    %p309 = scmp.le.s32.totalorder 1, %s15
    %p310 = scmp.lt.s32.totalorder %s15, 3
    %p311 = pnand %p309, %p310
    %p312 = pneg %p311
    // Predicated region
    $region53: #{dasi_forward.9} parent=5 // pred_check
      _
    $region54: #{dasi_forward.9} parent=5 // pred_check_branch
      %314 = sbr.rel (%p311) target = $region56
    $region55: #{dasi_forward.9} parent=5 // pred_region
      %s315 = ssub.s32 %s15, 1
      %s316 = smul.u32 32, %s20
      %p317 = scmp.lt.s32.totalorder %s316, 63
      %s318 = scalar_select %p317, %s316, 63
      %s319 = smul.addr %s318, 4
      %s320 = scalar_lea.vmem %s0, %s319
      %p321 = pneg %p41
      %p322 = pneg %p38
      %s323 = smul.u32 32, %s20
      %p324 = scmp.lt.s32.totalorder %s323, 63
      %s325 = scalar_select %p324, %s323, 63
      %s326 = smul.addr %s325, 4
      %s327 = scalar_lea.vmem %s1, %s326
      %p328 = pneg %p67
      %p329 = pneg %p64
      %s330 = smul.u32 32, %s20
      %p331 = scmp.lt.s32.totalorder %s330, 63
      %s332 = scalar_select %p331, %s330, 63
      %s333 = smul.addr %s332, 4
      %s334 = scalar_lea.vmem %s2, %s333
      %p335 = pneg %p93
      %p336 = pneg %p90
      %p337 = pneg %p114
      %p338 = pneg %p111
      %p339 = pneg %p135
      %p340 = pneg %p132
      %p341 = pneg %p156
      %p342 = pneg %p153
      %p343 = pneg %p177
      %p344 = pneg %p174
      %p345 = pneg %p198
      %p346 = pneg %p195
      %p347 = pneg %p219
      %p348 = pneg %p216
      %p349 = pneg %p245
      %p350 = pneg %p242
      %s351 = smul.u32 32, %s20
      %p352 = scmp.lt.s32.totalorder %s351, 63
      %s353 = scalar_select %p352, %s351, 63
      %s354 = smul.addr %s353, 4
      %s355 = scalar_lea.vmem %s9, %s354
      %s356 = smul.u32 32, %s20
      %p357 = scmp.lt.s32.totalorder %s356, 63
      %s358 = scalar_select %p357, %s356, 63
      %s359 = smul.addr %s358, 4
      %s360 = scalar_lea.vmem %s0, %s359
      %s361 = smul.u32 32, %s20
      %s362 = smul.u32 32, %s20
      %p363 = scmp.lt.s32.totalorder %s362, 63
      %s364 = scalar_select %p363, %s362, 63
      %s365 = smul.addr %s364, 4
      %s366 = scalar_lea.vmem %s1, %s365
      %s367 = smul.u32 32, %s20
      %s368 = smul.u32 32, %s20
      %p369 = scmp.lt.s32.totalorder %s368, 63
      %s370 = scalar_select %p369, %s368, 63
      %s371 = smul.addr %s370, 4
      %s372 = scalar_lea.vmem %s2, %s371
      %s373 = smul.u32 32, %s20
      %s374 = smul.u32 32, %s20
      %p375 = scmp.lt.s32.totalorder %s374, 63
      %s376 = scalar_select %p375, %s374, 63
      %s377 = smul.addr %s376, 4
      %s378 = scalar_lea.vmem %s9, %s377
      %s379 = smul.u32 32, %s20
      %v381 = vld [vmem:[%s360] sm:$0xf]
      %v382 = vld [vmem:[%s360 + $0x4] sm:$0xf]
      %v383 = vld [vmem:[%s360 + $0x8] sm:$0xf]
      %v384 = vld [vmem:[%s360 + $0xc] sm:$0xf]
      %v385 = vld [vmem:[%s360 + $0x10] sm:$0xf]
      %v386 = vld [vmem:[%s360 + $0x14] sm:$0xf]
      %v387 = vld [vmem:[%s360 + $0x18] sm:$0xf]
      %v388 = vld [vmem:[%s360 + $0x1c] sm:$0xf]
      %v389 = vld [vmem:[%s360 + $0x20] sm:$0xf]
      %v390 = vld [vmem:[%s360 + $0x24] sm:$0xf]
      %v391 = vld [vmem:[%s360 + $0x28] sm:$0xf]
      %v392 = vld [vmem:[%s360 + $0x2c] sm:$0xf]
      %v393 = vld [vmem:[%s360 + $0x30] sm:$0xf]
      %v394 = vld [vmem:[%s360 + $0x34] sm:$0xf]
      %v395 = vld [vmem:[%s360 + $0x38] sm:$0xf]
      %v396 = vld [vmem:[%s360 + $0x3c] sm:$0xf]
      %v397 = vld [vmem:[%s360 + $0x40] sm:$0xf]
      %v398 = vld [vmem:[%s360 + $0x44] sm:$0xf]
      %v399 = vld [vmem:[%s360 + $0x48] sm:$0xf]
      %v400 = vld [vmem:[%s360 + $0x4c] sm:$0xf]
      %v401 = vld [vmem:[%s360 + $0x50] sm:$0xf]
      %v402 = vld [vmem:[%s360 + $0x54] sm:$0xf]
      %v403 = vld [vmem:[%s360 + $0x58] sm:$0xf]
      %v404 = vld [vmem:[%s360 + $0x5c] sm:$0xf]
      %v405 = vld [vmem:[%s360 + $0x60] sm:$0xf]
      %v406 = vld [vmem:[%s360 + $0x64] sm:$0xf]
      %v407 = vld [vmem:[%s360 + $0x68] sm:$0xf]
      %v408 = vld [vmem:[%s360 + $0x6c] sm:$0xf]
      %v409 = vld [vmem:[%s360 + $0x70] sm:$0xf]
      %v410 = vld [vmem:[%s360 + $0x74] sm:$0xf]
      %v411 = vld [vmem:[%s360 + $0x78] sm:$0xf]
      %v412 = vld [vmem:[%s360 + $0x7c] sm:$0xf]
      %v413 = vld [vmem:[%s3] sm:$0xf]
      %v414 = vld [vmem:[%s3 + $0x4] sm:$0xf]
      %v415 = vld [vmem:[%s3 + $0x8] sm:$0xf]
      %v416 = vld [vmem:[%s3 + $0xc] sm:$0xf]
      %v417 = vld [vmem:[%s3 + $0x10] sm:$0xf]
      %v418 = vld [vmem:[%s3 + $0x14] sm:$0xf]
      %v419 = vld [vmem:[%s3 + $0x18] sm:$0xf]
      %v420 = vld [vmem:[%s3 + $0x1c] sm:$0xf]
      %v421 = vld [vmem:[%s3 + $0x20] sm:$0xf]
      %v422 = vld [vmem:[%s3 + $0x24] sm:$0xf]
      %v423 = vld [vmem:[%s3 + $0x28] sm:$0xf]
      %v424 = vld [vmem:[%s3 + $0x2c] sm:$0xf]
      %v425 = vld [vmem:[%s3 + $0x30] sm:$0xf]
      %v426 = vld [vmem:[%s3 + $0x34] sm:$0xf]
      %v427 = vld [vmem:[%s3 + $0x38] sm:$0xf]
      %v428 = vld [vmem:[%s3 + $0x3c] sm:$0xf]
      %v429 = vld [vmem:[%s4] sm:$0x1]
      %v431 = vlaneseq
      %v432 = vshrl.u32 %v431, 7
      %v433 = vsub.s32 0, %v432
      %v434 = vrot.slane %v429, %v433
      %v468 = vunpack.c.l.b16 %v381
      %v469 = vunpack.c.l.b16 %v382
      %v470 = vunpack.c.l.b16 %v383
      %v471 = vunpack.c.l.b16 %v384
      %v472 = vunpack.c.l.b16 %v385
      %v473 = vunpack.c.l.b16 %v386
      %v474 = vunpack.c.l.b16 %v387
      %v475 = vunpack.c.l.b16 %v388
      %v476 = vunpack.c.l.b16 %v389
      %v477 = vunpack.c.l.b16 %v390
      %v478 = vunpack.c.l.b16 %v391
      %v479 = vunpack.c.l.b16 %v392
      %v480 = vunpack.c.l.b16 %v393
      %v481 = vunpack.c.l.b16 %v394
      %v482 = vunpack.c.l.b16 %v395
      %v483 = vunpack.c.l.b16 %v396
      %v484 = vunpack.c.l.b16 %v397
      %v485 = vunpack.c.l.b16 %v398
      %v486 = vunpack.c.l.b16 %v399
      %v487 = vunpack.c.l.b16 %v400
      %v488 = vunpack.c.l.b16 %v401
      %v489 = vunpack.c.l.b16 %v402
      %v490 = vunpack.c.l.b16 %v403
      %v491 = vunpack.c.l.b16 %v404
      %v492 = vunpack.c.l.b16 %v405
      %v493 = vunpack.c.l.b16 %v406
      %v494 = vunpack.c.l.b16 %v407
      %v495 = vunpack.c.l.b16 %v408
      %v496 = vunpack.c.l.b16 %v409
      %v497 = vunpack.c.l.b16 %v410
      %v498 = vunpack.c.l.b16 %v411
      %v499 = vunpack.c.l.b16 %v412
      %v500 = vpack.c.b16 %v469, %v468
      %v501 = vpack.c.b16 %v471, %v470
      %v502 = vpack.c.b16 %v473, %v472
      %v503 = vpack.c.b16 %v475, %v474
      %v504 = vpack.c.b16 %v477, %v476
      %v505 = vpack.c.b16 %v479, %v478
      %v506 = vpack.c.b16 %v481, %v480
      %v507 = vpack.c.b16 %v483, %v482
      %v508 = vpack.c.b16 %v485, %v484
      %v509 = vpack.c.b16 %v487, %v486
      %v510 = vpack.c.b16 %v489, %v488
      %v511 = vpack.c.b16 %v491, %v490
      %v512 = vpack.c.b16 %v493, %v492
      %v513 = vpack.c.b16 %v495, %v494
      %v514 = vpack.c.b16 %v497, %v496
      %v515 = vpack.c.b16 %v499, %v498
      %v548 = vunpack.c.l.b16 %v413
      %v549 = vunpack.c.l.b16 %v414
      %v550 = vunpack.c.l.b16 %v415
      %v551 = vunpack.c.l.b16 %v416
      %v552 = vunpack.c.l.b16 %v417
      %v553 = vunpack.c.l.b16 %v418
      %v554 = vunpack.c.l.b16 %v419
      %v555 = vunpack.c.l.b16 %v420
      %v556 = vunpack.c.l.b16 %v421
      %v557 = vunpack.c.l.b16 %v422
      %v558 = vunpack.c.l.b16 %v423
      %v559 = vunpack.c.l.b16 %v424
      %v560 = vunpack.c.l.b16 %v425
      %v561 = vunpack.c.l.b16 %v426
      %v562 = vunpack.c.l.b16 %v427
      %v563 = vunpack.c.l.b16 %v428
      %v564 = vpack.c.b16 %v549, %v548
      %v565 = vpack.c.b16 %v551, %v550
      %v566 = vpack.c.b16 %v553, %v552
      %v567 = vpack.c.b16 %v555, %v554
      %v568 = vpack.c.b16 %v557, %v556
      %v569 = vpack.c.b16 %v559, %v558
      %v570 = vpack.c.b16 %v561, %v560
      %v571 = vpack.c.b16 %v563, %v562
      %580 = vmatprep.subr.bf16.mxu0 0
      %581 = vmatpush1.bf16.msra.mxu0 %v571
      %582 = vmatprep.subr.bf16.mxu0 0
      %583 = vmatpush1.bf16.msra.mxu0 %v570
      %584 = vmatprep.subr.bf16.mxu0 0
      %585 = vmatpush1.bf16.msra.mxu0 %v569
      %586 = vmatprep.subr.bf16.mxu0 0
      %587 = vmatpush1.bf16.msra.mxu0 %v568
      %588 = vmatprep.subr.bf16.mxu0 0
      %589 = vmatpush1.bf16.msra.mxu0 %v567
      %590 = vmatprep.subr.bf16.mxu0 0
      %591 = vmatpush1.bf16.msra.mxu0 %v566
      %592 = vmatprep.subr.bf16.mxu0 0
      %593 = vmatpush1.bf16.msra.mxu0 %v565
      %594 = vmatprep.subr.bf16.mxu0 0
      %595 = vmatpush1.bf16.msra.mxu0 %v564
      %596 = vmatprep.subr.bf16.mxu0 0
      %597 = vmatpush2.bf16.msra.mxu0 0
      %598 = vmatprep.subr.bf16.mxu0 0
      %599 = vmatpush2.bf16.msra.mxu0 0
      %600 = vmatprep.subr.bf16.mxu0 0
      %601 = vmatpush2.bf16.msra.mxu0 0
      %602 = vmatprep.subr.bf16.mxu0 0
      %603 = vmatpush2.bf16.msra.mxu0 0
      %604 = vmatprep.subr.bf16.mxu0 0
      %605 = vmatpush2.bf16.msra.mxu0 0
      %606 = vmatprep.subr.bf16.mxu0 0
      %607 = vmatpush2.bf16.msra.mxu0 0
      %608 = vmatprep.subr.bf16.mxu0 0
      %609 = vmatpush2.bf16.msra.mxu0 0
      %610 = vmatprep.subr.bf16.mxu0 0
      %611 = vmatpush2.bf16.msra.mxu0 0
      %612 = vmatprep.mubr.bf16.mxu0 0
      %613 = vmatmul.mubr.bf16.gmra.mxu0 %v500
      %v614 = vpop.f32.mrf.mxu0
      %v615 = vadd.f32 %v434, %v614
      %v616 = vpop.f32.mrf.mxu0
      %v617 = vpop.f32.mrf.mxu0
      %v618 = vadd.f32 %v434, %v617
      %v619 = vpop.f32.mrf.mxu0
      %620 = vmatprep.mubr.bf16.mxu0 0
      %621 = vmatmul.mubr.bf16.gmra.mxu0 %v501
      %v622 = vpop.f32.mrf.mxu0
      %v623 = vadd.f32 %v434, %v622
      %v624 = vpop.f32.mrf.mxu0
      %v625 = vpop.f32.mrf.mxu0
      %v626 = vadd.f32 %v434, %v625
      %v627 = vpop.f32.mrf.mxu0
      %628 = vmatprep.mubr.bf16.mxu0 0
      %629 = vmatmul.mubr.bf16.gmra.mxu0 %v502
      %v630 = vpop.f32.mrf.mxu0
      %v631 = vadd.f32 %v434, %v630
      %v632 = vpop.f32.mrf.mxu0
      %v633 = vpop.f32.mrf.mxu0
      %v634 = vadd.f32 %v434, %v633
      %v635 = vpop.f32.mrf.mxu0
      %636 = vmatprep.mubr.bf16.mxu0 0
      %637 = vmatmul.mubr.bf16.gmra.mxu0 %v503
      %v638 = vpop.f32.mrf.mxu0
      %v639 = vadd.f32 %v434, %v638
      %v640 = vpop.f32.mrf.mxu0
      %v641 = vpop.f32.mrf.mxu0
      %v642 = vadd.f32 %v434, %v641
      %v643 = vpop.f32.mrf.mxu0
      %644 = vmatprep.mubr.bf16.mxu0 0
      %645 = vmatmul.mubr.bf16.gmra.mxu0 %v504
      %v646 = vpop.f32.mrf.mxu0
      %v647 = vadd.f32 %v434, %v646
      %v648 = vpop.f32.mrf.mxu0
      %v649 = vpop.f32.mrf.mxu0
      %v650 = vadd.f32 %v434, %v649
      %v651 = vpop.f32.mrf.mxu0
      %652 = vmatprep.mubr.bf16.mxu0 0
      %653 = vmatmul.mubr.bf16.gmra.mxu0 %v505
      %v654 = vpop.f32.mrf.mxu0
      %v655 = vadd.f32 %v434, %v654
      %v656 = vpop.f32.mrf.mxu0
      %v657 = vpop.f32.mrf.mxu0
      %v658 = vadd.f32 %v434, %v657
      %v659 = vpop.f32.mrf.mxu0
      %660 = vmatprep.mubr.bf16.mxu0 0
      %661 = vmatmul.mubr.bf16.gmra.mxu0 %v506
      %v662 = vpop.f32.mrf.mxu0
      %v663 = vadd.f32 %v434, %v662
      %v664 = vpop.f32.mrf.mxu0
      %v665 = vpop.f32.mrf.mxu0
      %v666 = vadd.f32 %v434, %v665
      %v667 = vpop.f32.mrf.mxu0
      %668 = vmatprep.mubr.bf16.mxu0 0
      %669 = vmatmul.mubr.bf16.gmra.mxu0 %v507
      %v670 = vpop.f32.mrf.mxu0
      %v671 = vadd.f32 %v434, %v670
      %v672 = vpop.f32.mrf.mxu0
      %v673 = vpop.f32.mrf.mxu0
      %v674 = vadd.f32 %v434, %v673
      %v675 = vpop.f32.mrf.mxu0
      %676 = vmatprep.mubr.bf16.mxu0 0
      %677 = vmatmul.mubr.bf16.gmra.mxu0 %v508
      %v678 = vpop.f32.mrf.mxu0
      %v679 = vadd.f32 %v434, %v678
      %v680 = vpop.f32.mrf.mxu0
      %v681 = vpop.f32.mrf.mxu0
      %v682 = vadd.f32 %v434, %v681
      %v683 = vpop.f32.mrf.mxu0
      %684 = vmatprep.mubr.bf16.mxu0 0
      %685 = vmatmul.mubr.bf16.gmra.mxu0 %v509
      %v686 = vpop.f32.mrf.mxu0
      %v687 = vadd.f32 %v434, %v686
      %v688 = vpop.f32.mrf.mxu0
      %v689 = vpop.f32.mrf.mxu0
      %v690 = vadd.f32 %v434, %v689
      %v691 = vpop.f32.mrf.mxu0
      %692 = vmatprep.mubr.bf16.mxu0 0
      %693 = vmatmul.mubr.bf16.gmra.mxu0 %v510
      %v694 = vpop.f32.mrf.mxu0
      %v695 = vadd.f32 %v434, %v694
      %v696 = vpop.f32.mrf.mxu0
      %v697 = vpop.f32.mrf.mxu0
      %v698 = vadd.f32 %v434, %v697
      %v699 = vpop.f32.mrf.mxu0
      %700 = vmatprep.mubr.bf16.mxu0 0
      %701 = vmatmul.mubr.bf16.gmra.mxu0 %v511
      %v702 = vpop.f32.mrf.mxu0
      %v703 = vadd.f32 %v434, %v702
      %v704 = vpop.f32.mrf.mxu0
      %v705 = vpop.f32.mrf.mxu0
      %v706 = vadd.f32 %v434, %v705
      %v707 = vpop.f32.mrf.mxu0
      %708 = vmatprep.mubr.bf16.mxu0 0
      %709 = vmatmul.mubr.bf16.gmra.mxu0 %v512
      %v710 = vpop.f32.mrf.mxu0
      %v711 = vadd.f32 %v434, %v710
      %v712 = vpop.f32.mrf.mxu0
      %v713 = vpop.f32.mrf.mxu0
      %v714 = vadd.f32 %v434, %v713
      %v715 = vpop.f32.mrf.mxu0
      %716 = vmatprep.mubr.bf16.mxu0 0
      %717 = vmatmul.mubr.bf16.gmra.mxu0 %v513
      %v718 = vpop.f32.mrf.mxu0
      %v719 = vadd.f32 %v434, %v718
      %v720 = vpop.f32.mrf.mxu0
      %v721 = vpop.f32.mrf.mxu0
      %v722 = vadd.f32 %v434, %v721
      %v723 = vpop.f32.mrf.mxu0
      %724 = vmatprep.mubr.bf16.mxu0 0
      %725 = vmatmul.mubr.bf16.gmra.mxu0 %v514
      %v726 = vpop.f32.mrf.mxu0
      %v727 = vadd.f32 %v434, %v726
      %v728 = vpop.f32.mrf.mxu0
      %v729 = vpop.f32.mrf.mxu0
      %v730 = vadd.f32 %v434, %v729
      %v731 = vpop.f32.mrf.mxu0
      %732 = vmatprep.mubr.bf16.mxu0 0
      %733 = vmatmul.mubr.bf16.gmra.mxu0 %v515
      %v734 = vpop.f32.mrf.mxu0
      %v735 = vadd.f32 %v434, %v734
      %v736 = vpop.f32.mrf.mxu0
      %v737 = vpop.f32.mrf.mxu0
      %v738 = vadd.f32 %v434, %v737
      %v739 = vpop.f32.mrf.mxu0
      %740 = vdwg.mxu0
      %v741 = vxor.u32 %v615, 2147483648
      %v742 = vxor.u32 %v618, 2147483648
      %v743 = vxor.u32 %v623, 2147483648
      %v744 = vxor.u32 %v626, 2147483648
      %v745 = vxor.u32 %v631, 2147483648
      %v746 = vxor.u32 %v634, 2147483648
      %v747 = vxor.u32 %v639, 2147483648
      %v748 = vxor.u32 %v642, 2147483648
      %v749 = vxor.u32 %v647, 2147483648
      %v750 = vxor.u32 %v650, 2147483648
      %v751 = vxor.u32 %v655, 2147483648
      %v752 = vxor.u32 %v658, 2147483648
      %v753 = vxor.u32 %v663, 2147483648
      %v754 = vxor.u32 %v666, 2147483648
      %v755 = vxor.u32 %v671, 2147483648
      %v756 = vxor.u32 %v674, 2147483648
      %v757 = vxor.u32 %v679, 2147483648
      %v758 = vxor.u32 %v682, 2147483648
      %v759 = vxor.u32 %v687, 2147483648
      %v760 = vxor.u32 %v690, 2147483648
      %v761 = vxor.u32 %v695, 2147483648
      %v762 = vxor.u32 %v698, 2147483648
      %v763 = vxor.u32 %v703, 2147483648
      %v764 = vxor.u32 %v706, 2147483648
      %v765 = vxor.u32 %v711, 2147483648
      %v766 = vxor.u32 %v714, 2147483648
      %v767 = vxor.u32 %v719, 2147483648
      %v768 = vxor.u32 %v722, 2147483648
      %v769 = vxor.u32 %v727, 2147483648
      %v770 = vxor.u32 %v730, 2147483648
      %v771 = vxor.u32 %v735, 2147483648
      %v772 = vxor.u32 %v738, 2147483648
      %v773 = vmul.f32 %v741, 1.442695
      %v774 = vpow.pop %v773
      %v775 = vmul.f32 %v742, 1.442695
      %v776 = vpow.pop %v775
      %v777 = vmul.f32 %v743, 1.442695
      %v778 = vpow.pop %v777
      %v779 = vmul.f32 %v744, 1.442695
      %v780 = vpow.pop %v779
      %v781 = vmul.f32 %v745, 1.442695
      %v782 = vpow.pop %v781
      %v783 = vmul.f32 %v746, 1.442695
      %v784 = vpow.pop %v783
      %v785 = vmul.f32 %v747, 1.442695
      %v786 = vpow.pop %v785
      %v787 = vmul.f32 %v748, 1.442695
      %v788 = vpow.pop %v787
      %v789 = vmul.f32 %v749, 1.442695
      %v790 = vpow.pop %v789
      %v791 = vmul.f32 %v750, 1.442695
      %v792 = vpow.pop %v791
      %v793 = vmul.f32 %v751, 1.442695
      %v794 = vpow.pop %v793
      %v795 = vmul.f32 %v752, 1.442695
      %v796 = vpow.pop %v795
      %v797 = vmul.f32 %v753, 1.442695
      %v798 = vpow.pop %v797
      %v799 = vmul.f32 %v754, 1.442695
      %v800 = vpow.pop %v799
      %v801 = vmul.f32 %v755, 1.442695
      %v802 = vpow.pop %v801
      %v803 = vmul.f32 %v756, 1.442695
      %v804 = vpow.pop %v803
      %v805 = vmul.f32 %v757, 1.442695
      %v806 = vpow.pop %v805
      %v807 = vmul.f32 %v758, 1.442695
      %v808 = vpow.pop %v807
      %v809 = vmul.f32 %v759, 1.442695
      %v810 = vpow.pop %v809
      %v811 = vmul.f32 %v760, 1.442695
      %v812 = vpow.pop %v811
      %v813 = vmul.f32 %v761, 1.442695
      %v814 = vpow.pop %v813
      %v815 = vmul.f32 %v762, 1.442695
      %v816 = vpow.pop %v815
      %v817 = vmul.f32 %v763, 1.442695
      %v818 = vpow.pop %v817
      %v819 = vmul.f32 %v764, 1.442695
      %v820 = vpow.pop %v819
      %v821 = vmul.f32 %v765, 1.442695
      %v822 = vpow.pop %v821
      %v823 = vmul.f32 %v766, 1.442695
      %v824 = vpow.pop %v823
      %v825 = vmul.f32 %v767, 1.442695
      %v826 = vpow.pop %v825
      %v827 = vmul.f32 %v768, 1.442695
      %v828 = vpow.pop %v827
      %v829 = vmul.f32 %v769, 1.442695
      %v830 = vpow.pop %v829
      %v831 = vmul.f32 %v770, 1.442695
      %v832 = vpow.pop %v831
      %v833 = vmul.f32 %v771, 1.442695
      %v834 = vpow.pop %v833
      %v835 = vmul.f32 %v772, 1.442695
      %v836 = vpow.pop %v835
      %v837 = vadd.f32 %v774, 1.0
      %v838 = vadd.f32 %v776, 1.0
      %v839 = vadd.f32 %v778, 1.0
      %v840 = vadd.f32 %v780, 1.0
      %v841 = vadd.f32 %v782, 1.0
      %v842 = vadd.f32 %v784, 1.0
      %v843 = vadd.f32 %v786, 1.0
      %v844 = vadd.f32 %v788, 1.0
      %v845 = vadd.f32 %v790, 1.0
      %v846 = vadd.f32 %v792, 1.0
      %v847 = vadd.f32 %v794, 1.0
      %v848 = vadd.f32 %v796, 1.0
      %v849 = vadd.f32 %v798, 1.0
      %v850 = vadd.f32 %v800, 1.0
      %v851 = vadd.f32 %v802, 1.0
      %v852 = vadd.f32 %v804, 1.0
      %v853 = vadd.f32 %v806, 1.0
      %v854 = vadd.f32 %v808, 1.0
      %v855 = vadd.f32 %v810, 1.0
      %v856 = vadd.f32 %v812, 1.0
      %v857 = vadd.f32 %v814, 1.0
      %v858 = vadd.f32 %v816, 1.0
      %v859 = vadd.f32 %v818, 1.0
      %v860 = vadd.f32 %v820, 1.0
      %v861 = vadd.f32 %v822, 1.0
      %v862 = vadd.f32 %v824, 1.0
      %v863 = vadd.f32 %v826, 1.0
      %v864 = vadd.f32 %v828, 1.0
      %v865 = vadd.f32 %v830, 1.0
      %v866 = vadd.f32 %v832, 1.0
      %v867 = vadd.f32 %v834, 1.0
      %v868 = vadd.f32 %v836, 1.0
      %v869 = vrcp.pop %v837
      %v870 = vmul.f32 1.0, %v869
      %v871 = vrcp.pop %v838
      %v872 = vmul.f32 1.0, %v871
      %v873 = vrcp.pop %v839
      %v874 = vmul.f32 1.0, %v873
      %v875 = vrcp.pop %v840
      %v876 = vmul.f32 1.0, %v875
      %v877 = vrcp.pop %v841
      %v878 = vmul.f32 1.0, %v877
      %v879 = vrcp.pop %v842
      %v880 = vmul.f32 1.0, %v879
      %v881 = vrcp.pop %v843
      %v882 = vmul.f32 1.0, %v881
      %v883 = vrcp.pop %v844
      %v884 = vmul.f32 1.0, %v883
      %v885 = vrcp.pop %v845
      %v886 = vmul.f32 1.0, %v885
      %v887 = vrcp.pop %v846
      %v888 = vmul.f32 1.0, %v887
      %v889 = vrcp.pop %v847
      %v890 = vmul.f32 1.0, %v889
      %v891 = vrcp.pop %v848
      %v892 = vmul.f32 1.0, %v891
      %v893 = vrcp.pop %v849
      %v894 = vmul.f32 1.0, %v893
      %v895 = vrcp.pop %v850
      %v896 = vmul.f32 1.0, %v895
      %v897 = vrcp.pop %v851
      %v898 = vmul.f32 1.0, %v897
      %v899 = vrcp.pop %v852
      %v900 = vmul.f32 1.0, %v899
      %v901 = vrcp.pop %v853
      %v902 = vmul.f32 1.0, %v901
      %v903 = vrcp.pop %v854
      %v904 = vmul.f32 1.0, %v903
      %v905 = vrcp.pop %v855
      %v906 = vmul.f32 1.0, %v905
      %v907 = vrcp.pop %v856
      %v908 = vmul.f32 1.0, %v907
      %v909 = vrcp.pop %v857
      %v910 = vmul.f32 1.0, %v909
      %v911 = vrcp.pop %v858
      %v912 = vmul.f32 1.0, %v911
      %v913 = vrcp.pop %v859
      %v914 = vmul.f32 1.0, %v913
      %v915 = vrcp.pop %v860
      %v916 = vmul.f32 1.0, %v915
      %v917 = vrcp.pop %v861
      %v918 = vmul.f32 1.0, %v917
      %v919 = vrcp.pop %v862
      %v920 = vmul.f32 1.0, %v919
      %v921 = vrcp.pop %v863
      %v922 = vmul.f32 1.0, %v921
      %v923 = vrcp.pop %v864
      %v924 = vmul.f32 1.0, %v923
      %v925 = vrcp.pop %v865
      %v926 = vmul.f32 1.0, %v925
      %v927 = vrcp.pop %v866
      %v928 = vmul.f32 1.0, %v927
      %v929 = vrcp.pop %v867
      %v930 = vmul.f32 1.0, %v929
      %v931 = vrcp.pop %v868
      %v932 = vmul.f32 1.0, %v931
      %v933 = vld [vmem:[%s366] sm:$0xf]
      %v934 = vld [vmem:[%s366 + $0x4] sm:$0xf]
      %v935 = vld [vmem:[%s366 + $0x8] sm:$0xf]
      %v936 = vld [vmem:[%s366 + $0xc] sm:$0xf]
      %v937 = vld [vmem:[%s366 + $0x10] sm:$0xf]
      %v938 = vld [vmem:[%s366 + $0x14] sm:$0xf]
      %v939 = vld [vmem:[%s366 + $0x18] sm:$0xf]
      %v940 = vld [vmem:[%s366 + $0x1c] sm:$0xf]
      %v941 = vld [vmem:[%s366 + $0x20] sm:$0xf]
      %v942 = vld [vmem:[%s366 + $0x24] sm:$0xf]
      %v943 = vld [vmem:[%s366 + $0x28] sm:$0xf]
      %v944 = vld [vmem:[%s366 + $0x2c] sm:$0xf]
      %v945 = vld [vmem:[%s366 + $0x30] sm:$0xf]
      %v946 = vld [vmem:[%s366 + $0x34] sm:$0xf]
      %v947 = vld [vmem:[%s366 + $0x38] sm:$0xf]
      %v948 = vld [vmem:[%s366 + $0x3c] sm:$0xf]
      %v949 = vld [vmem:[%s366 + $0x40] sm:$0xf]
      %v950 = vld [vmem:[%s366 + $0x44] sm:$0xf]
      %v951 = vld [vmem:[%s366 + $0x48] sm:$0xf]
      %v952 = vld [vmem:[%s366 + $0x4c] sm:$0xf]
      %v953 = vld [vmem:[%s366 + $0x50] sm:$0xf]
      %v954 = vld [vmem:[%s366 + $0x54] sm:$0xf]
      %v955 = vld [vmem:[%s366 + $0x58] sm:$0xf]
      %v956 = vld [vmem:[%s366 + $0x5c] sm:$0xf]
      %v957 = vld [vmem:[%s366 + $0x60] sm:$0xf]
      %v958 = vld [vmem:[%s366 + $0x64] sm:$0xf]
      %v959 = vld [vmem:[%s366 + $0x68] sm:$0xf]
      %v960 = vld [vmem:[%s366 + $0x6c] sm:$0xf]
      %v961 = vld [vmem:[%s366 + $0x70] sm:$0xf]
      %v962 = vld [vmem:[%s366 + $0x74] sm:$0xf]
      %v963 = vld [vmem:[%s366 + $0x78] sm:$0xf]
      %v964 = vld [vmem:[%s366 + $0x7c] sm:$0xf]
      %v965 = vunpack.c.l.bf16 %v933
      %v966 = vunpack.c.l.bf16 %v934
      %v967 = vunpack.c.l.bf16 %v935
      %v968 = vunpack.c.l.bf16 %v936
      %v969 = vunpack.c.l.bf16 %v937
      %v970 = vunpack.c.l.bf16 %v938
      %v971 = vunpack.c.l.bf16 %v939
      %v972 = vunpack.c.l.bf16 %v940
      %v973 = vunpack.c.l.bf16 %v941
      %v974 = vunpack.c.l.bf16 %v942
      %v975 = vunpack.c.l.bf16 %v943
      %v976 = vunpack.c.l.bf16 %v944
      %v977 = vunpack.c.l.bf16 %v945
      %v978 = vunpack.c.l.bf16 %v946
      %v979 = vunpack.c.l.bf16 %v947
      %v980 = vunpack.c.l.bf16 %v948
      %v981 = vunpack.c.l.bf16 %v949
      %v982 = vunpack.c.l.bf16 %v950
      %v983 = vunpack.c.l.bf16 %v951
      %v984 = vunpack.c.l.bf16 %v952
      %v985 = vunpack.c.l.bf16 %v953
      %v986 = vunpack.c.l.bf16 %v954
      %v987 = vunpack.c.l.bf16 %v955
      %v988 = vunpack.c.l.bf16 %v956
      %v989 = vunpack.c.l.bf16 %v957
      %v990 = vunpack.c.l.bf16 %v958
      %v991 = vunpack.c.l.bf16 %v959
      %v992 = vunpack.c.l.bf16 %v960
      %v993 = vunpack.c.l.bf16 %v961
      %v994 = vunpack.c.l.bf16 %v962
      %v995 = vunpack.c.l.bf16 %v963
      %v996 = vunpack.c.l.bf16 %v964
      %v997 = vmul.f32 %v870, %v965
      %v998 = vmul.f32 %v872, %v966
      %v999 = vmul.f32 %v874, %v967
      %v1000 = vmul.f32 %v876, %v968
      %v1001 = vmul.f32 %v878, %v969
      %v1002 = vmul.f32 %v880, %v970
      %v1003 = vmul.f32 %v882, %v971
      %v1004 = vmul.f32 %v884, %v972
      %v1005 = vmul.f32 %v886, %v973
      %v1006 = vmul.f32 %v888, %v974
      %v1007 = vmul.f32 %v890, %v975
      %v1008 = vmul.f32 %v892, %v976
      %v1009 = vmul.f32 %v894, %v977
      %v1010 = vmul.f32 %v896, %v978
      %v1011 = vmul.f32 %v898, %v979
      %v1012 = vmul.f32 %v900, %v980
      %v1013 = vmul.f32 %v902, %v981
      %v1014 = vmul.f32 %v904, %v982
      %v1015 = vmul.f32 %v906, %v983
      %v1016 = vmul.f32 %v908, %v984
      %v1017 = vmul.f32 %v910, %v985
      %v1018 = vmul.f32 %v912, %v986
      %v1019 = vmul.f32 %v914, %v987
      %v1020 = vmul.f32 %v916, %v988
      %v1021 = vmul.f32 %v918, %v989
      %v1022 = vmul.f32 %v920, %v990
      %v1023 = vmul.f32 %v922, %v991
      %v1024 = vmul.f32 %v924, %v992
      %v1025 = vmul.f32 %v926, %v993
      %v1026 = vmul.f32 %v928, %v994
      %v1027 = vmul.f32 %v930, %v995
      %v1028 = vmul.f32 %v932, %v996
      %v1029 = vsub.f32 1.0, %v870
      %v1030 = vsub.f32 1.0, %v872
      %v1031 = vsub.f32 1.0, %v874
      %v1032 = vsub.f32 1.0, %v876
      %v1033 = vsub.f32 1.0, %v878
      %v1034 = vsub.f32 1.0, %v880
      %v1035 = vsub.f32 1.0, %v882
      %v1036 = vsub.f32 1.0, %v884
      %v1037 = vsub.f32 1.0, %v886
      %v1038 = vsub.f32 1.0, %v888
      %v1039 = vsub.f32 1.0, %v890
      %v1040 = vsub.f32 1.0, %v892
      %v1041 = vsub.f32 1.0, %v894
      %v1042 = vsub.f32 1.0, %v896
      %v1043 = vsub.f32 1.0, %v898
      %v1044 = vsub.f32 1.0, %v900
      %v1045 = vsub.f32 1.0, %v902
      %v1046 = vsub.f32 1.0, %v904
      %v1047 = vsub.f32 1.0, %v906
      %v1048 = vsub.f32 1.0, %v908
      %v1049 = vsub.f32 1.0, %v910
      %v1050 = vsub.f32 1.0, %v912
      %v1051 = vsub.f32 1.0, %v914
      %v1052 = vsub.f32 1.0, %v916
      %v1053 = vsub.f32 1.0, %v918
      %v1054 = vsub.f32 1.0, %v920
      %v1055 = vsub.f32 1.0, %v922
      %v1056 = vsub.f32 1.0, %v924
      %v1057 = vsub.f32 1.0, %v926
      %v1058 = vsub.f32 1.0, %v928
      %v1059 = vsub.f32 1.0, %v930
      %v1060 = vsub.f32 1.0, %v932
      %v1061 = vld [vmem:[%s372] sm:$0xf]
      %v1062 = vld [vmem:[%s372 + $0x4] sm:$0xf]
      %v1063 = vld [vmem:[%s372 + $0x8] sm:$0xf]
      %v1064 = vld [vmem:[%s372 + $0xc] sm:$0xf]
      %v1065 = vld [vmem:[%s372 + $0x10] sm:$0xf]
      %v1066 = vld [vmem:[%s372 + $0x14] sm:$0xf]
      %v1067 = vld [vmem:[%s372 + $0x18] sm:$0xf]
      %v1068 = vld [vmem:[%s372 + $0x1c] sm:$0xf]
      %v1069 = vld [vmem:[%s372 + $0x20] sm:$0xf]
      %v1070 = vld [vmem:[%s372 + $0x24] sm:$0xf]
      %v1071 = vld [vmem:[%s372 + $0x28] sm:$0xf]
      %v1072 = vld [vmem:[%s372 + $0x2c] sm:$0xf]
      %v1073 = vld [vmem:[%s372 + $0x30] sm:$0xf]
      %v1074 = vld [vmem:[%s372 + $0x34] sm:$0xf]
      %v1075 = vld [vmem:[%s372 + $0x38] sm:$0xf]
      %v1076 = vld [vmem:[%s372 + $0x3c] sm:$0xf]
      %v1077 = vld [vmem:[%s372 + $0x40] sm:$0xf]
      %v1078 = vld [vmem:[%s372 + $0x44] sm:$0xf]
      %v1079 = vld [vmem:[%s372 + $0x48] sm:$0xf]
      %v1080 = vld [vmem:[%s372 + $0x4c] sm:$0xf]
      %v1081 = vld [vmem:[%s372 + $0x50] sm:$0xf]
      %v1082 = vld [vmem:[%s372 + $0x54] sm:$0xf]
      %v1083 = vld [vmem:[%s372 + $0x58] sm:$0xf]
      %v1084 = vld [vmem:[%s372 + $0x5c] sm:$0xf]
      %v1085 = vld [vmem:[%s372 + $0x60] sm:$0xf]
      %v1086 = vld [vmem:[%s372 + $0x64] sm:$0xf]
      %v1087 = vld [vmem:[%s372 + $0x68] sm:$0xf]
      %v1088 = vld [vmem:[%s372 + $0x6c] sm:$0xf]
      %v1089 = vld [vmem:[%s372 + $0x70] sm:$0xf]
      %v1090 = vld [vmem:[%s372 + $0x74] sm:$0xf]
      %v1091 = vld [vmem:[%s372 + $0x78] sm:$0xf]
      %v1092 = vld [vmem:[%s372 + $0x7c] sm:$0xf]
      %v1093 = vunpack.c.l.bf16 %v1061
      %v1094 = vunpack.c.l.bf16 %v1062
      %v1095 = vunpack.c.l.bf16 %v1063
      %v1096 = vunpack.c.l.bf16 %v1064
      %v1097 = vunpack.c.l.bf16 %v1065
      %v1098 = vunpack.c.l.bf16 %v1066
      %v1099 = vunpack.c.l.bf16 %v1067
      %v1100 = vunpack.c.l.bf16 %v1068
      %v1101 = vunpack.c.l.bf16 %v1069
      %v1102 = vunpack.c.l.bf16 %v1070
      %v1103 = vunpack.c.l.bf16 %v1071
      %v1104 = vunpack.c.l.bf16 %v1072
      %v1105 = vunpack.c.l.bf16 %v1073
      %v1106 = vunpack.c.l.bf16 %v1074
      %v1107 = vunpack.c.l.bf16 %v1075
      %v1108 = vunpack.c.l.bf16 %v1076
      %v1109 = vunpack.c.l.bf16 %v1077
      %v1110 = vunpack.c.l.bf16 %v1078
      %v1111 = vunpack.c.l.bf16 %v1079
      %v1112 = vunpack.c.l.bf16 %v1080
      %v1113 = vunpack.c.l.bf16 %v1081
      %v1114 = vunpack.c.l.bf16 %v1082
      %v1115 = vunpack.c.l.bf16 %v1083
      %v1116 = vunpack.c.l.bf16 %v1084
      %v1117 = vunpack.c.l.bf16 %v1085
      %v1118 = vunpack.c.l.bf16 %v1086
      %v1119 = vunpack.c.l.bf16 %v1087
      %v1120 = vunpack.c.l.bf16 %v1088
      %v1121 = vunpack.c.l.bf16 %v1089
      %v1122 = vunpack.c.l.bf16 %v1090
      %v1123 = vunpack.c.l.bf16 %v1091
      %v1124 = vunpack.c.l.bf16 %v1092
      %v1125 = vmul.f32 %v1029, %v1093
      %v1126 = vmul.f32 %v1030, %v1094
      %v1127 = vmul.f32 %v1031, %v1095
      %v1128 = vmul.f32 %v1032, %v1096
      %v1129 = vmul.f32 %v1033, %v1097
      %v1130 = vmul.f32 %v1034, %v1098
      %v1131 = vmul.f32 %v1035, %v1099
      %v1132 = vmul.f32 %v1036, %v1100
      %v1133 = vmul.f32 %v1037, %v1101
      %v1134 = vmul.f32 %v1038, %v1102
      %v1135 = vmul.f32 %v1039, %v1103
      %v1136 = vmul.f32 %v1040, %v1104
      %v1137 = vmul.f32 %v1041, %v1105
      %v1138 = vmul.f32 %v1042, %v1106
      %v1139 = vmul.f32 %v1043, %v1107
      %v1140 = vmul.f32 %v1044, %v1108
      %v1141 = vmul.f32 %v1045, %v1109
      %v1142 = vmul.f32 %v1046, %v1110
      %v1143 = vmul.f32 %v1047, %v1111
      %v1144 = vmul.f32 %v1048, %v1112
      %v1145 = vmul.f32 %v1049, %v1113
      %v1146 = vmul.f32 %v1050, %v1114
      %v1147 = vmul.f32 %v1051, %v1115
      %v1148 = vmul.f32 %v1052, %v1116
      %v1149 = vmul.f32 %v1053, %v1117
      %v1150 = vmul.f32 %v1054, %v1118
      %v1151 = vmul.f32 %v1055, %v1119
      %v1152 = vmul.f32 %v1056, %v1120
      %v1153 = vmul.f32 %v1057, %v1121
      %v1154 = vmul.f32 %v1058, %v1122
      %v1155 = vmul.f32 %v1059, %v1123
      %v1156 = vmul.f32 %v1060, %v1124
      %v1157 = vadd.f32 %v997, %v1125
      %v1158 = vadd.f32 %v998, %v1126
      %v1159 = vadd.f32 %v999, %v1127
      %v1160 = vadd.f32 %v1000, %v1128
      %v1161 = vadd.f32 %v1001, %v1129
      %v1162 = vadd.f32 %v1002, %v1130
      %v1163 = vadd.f32 %v1003, %v1131
      %v1164 = vadd.f32 %v1004, %v1132
      %v1165 = vadd.f32 %v1005, %v1133
      %v1166 = vadd.f32 %v1006, %v1134
      %v1167 = vadd.f32 %v1007, %v1135
      %v1168 = vadd.f32 %v1008, %v1136
      %v1169 = vadd.f32 %v1009, %v1137
      %v1170 = vadd.f32 %v1010, %v1138
      %v1171 = vadd.f32 %v1011, %v1139
      %v1172 = vadd.f32 %v1012, %v1140
      %v1173 = vadd.f32 %v1013, %v1141
      %v1174 = vadd.f32 %v1014, %v1142
      %v1175 = vadd.f32 %v1015, %v1143
      %v1176 = vadd.f32 %v1016, %v1144
      %v1177 = vadd.f32 %v1017, %v1145
      %v1178 = vadd.f32 %v1018, %v1146
      %v1179 = vadd.f32 %v1019, %v1147
      %v1180 = vadd.f32 %v1020, %v1148
      %v1181 = vadd.f32 %v1021, %v1149
      %v1182 = vadd.f32 %v1022, %v1150
      %v1183 = vadd.f32 %v1023, %v1151
      %v1184 = vadd.f32 %v1024, %v1152
      %v1185 = vadd.f32 %v1025, %v1153
      %v1186 = vadd.f32 %v1026, %v1154
      %v1187 = vadd.f32 %v1027, %v1155
      %v1188 = vadd.f32 %v1028, %v1156
      %v1189 = vpack.c.bf16 %v1158, %v1157
      %v1190 = vpack.c.bf16 %v1160, %v1159
      %v1191 = vpack.c.bf16 %v1162, %v1161
      %v1192 = vpack.c.bf16 %v1164, %v1163
      %v1193 = vpack.c.bf16 %v1166, %v1165
      %v1194 = vpack.c.bf16 %v1168, %v1167
      %v1195 = vpack.c.bf16 %v1170, %v1169
      %v1196 = vpack.c.bf16 %v1172, %v1171
      %v1197 = vpack.c.bf16 %v1174, %v1173
      %v1198 = vpack.c.bf16 %v1176, %v1175
      %v1199 = vpack.c.bf16 %v1178, %v1177
      %v1200 = vpack.c.bf16 %v1180, %v1179
      %v1201 = vpack.c.bf16 %v1182, %v1181
      %v1202 = vpack.c.bf16 %v1184, %v1183
      %v1203 = vpack.c.bf16 %v1186, %v1185
      %v1204 = vpack.c.bf16 %v1188, %v1187
      %v1205 = vld [vmem:[%s5] sm:$0xf]
      %v1206 = vld [vmem:[%s5 + $0x4] sm:$0xf]
      %v1207 = vld [vmem:[%s5 + $0x8] sm:$0xf]
      %v1208 = vld [vmem:[%s5 + $0xc] sm:$0xf]
      %v1209 = vld [vmem:[%s5 + $0x10] sm:$0xf]
      %v1210 = vld [vmem:[%s5 + $0x14] sm:$0xf]
      %v1211 = vld [vmem:[%s5 + $0x18] sm:$0xf]
      %v1212 = vld [vmem:[%s5 + $0x1c] sm:$0xf]
      %v1213 = vld [vmem:[%s5 + $0x20] sm:$0xf]
      %v1214 = vld [vmem:[%s5 + $0x24] sm:$0xf]
      %v1215 = vld [vmem:[%s5 + $0x28] sm:$0xf]
      %v1216 = vld [vmem:[%s5 + $0x2c] sm:$0xf]
      %v1217 = vld [vmem:[%s5 + $0x30] sm:$0xf]
      %v1218 = vld [vmem:[%s5 + $0x34] sm:$0xf]
      %v1219 = vld [vmem:[%s5 + $0x38] sm:$0xf]
      %v1220 = vld [vmem:[%s5 + $0x3c] sm:$0xf]
      %v1221 = vld [vmem:[%s6] sm:$0x1]
      %v1223 = vlaneseq
      %v1224 = vshrl.u32 %v1223, 7
      %v1225 = vsub.s32 0, %v1224
      %v1226 = vrot.slane %v1221, %v1225
      %v1244 = vunpack.c.l.b16 %v1205
      %v1245 = vunpack.c.l.b16 %v1206
      %v1246 = vunpack.c.l.b16 %v1207
      %v1247 = vunpack.c.l.b16 %v1208
      %v1248 = vunpack.c.l.b16 %v1209
      %v1249 = vunpack.c.l.b16 %v1210
      %v1250 = vunpack.c.l.b16 %v1211
      %v1251 = vunpack.c.l.b16 %v1212
      %v1252 = vunpack.c.l.b16 %v1213
      %v1253 = vunpack.c.l.b16 %v1214
      %v1254 = vunpack.c.l.b16 %v1215
      %v1255 = vunpack.c.l.b16 %v1216
      %v1256 = vunpack.c.l.b16 %v1217
      %v1257 = vunpack.c.l.b16 %v1218
      %v1258 = vunpack.c.l.b16 %v1219
      %v1259 = vunpack.c.l.b16 %v1220
      %v1260 = vpack.c.b16 %v1245, %v1244
      %v1261 = vpack.c.b16 %v1247, %v1246
      %v1262 = vpack.c.b16 %v1249, %v1248
      %v1263 = vpack.c.b16 %v1251, %v1250
      %v1264 = vpack.c.b16 %v1253, %v1252
      %v1265 = vpack.c.b16 %v1255, %v1254
      %v1266 = vpack.c.b16 %v1257, %v1256
      %v1267 = vpack.c.b16 %v1259, %v1258
      %1276 = vmatprep.subr.bf16.mxu0 0
      %1277 = vmatpush1.bf16.msra.mxu0 %v1267
      %1278 = vmatprep.subr.bf16.mxu0 0
      %1279 = vmatpush1.bf16.msra.mxu0 %v1266
      %1280 = vmatprep.subr.bf16.mxu0 0
      %1281 = vmatpush1.bf16.msra.mxu0 %v1265
      %1282 = vmatprep.subr.bf16.mxu0 0
      %1283 = vmatpush1.bf16.msra.mxu0 %v1264
      %1284 = vmatprep.subr.bf16.mxu0 0
      %1285 = vmatpush1.bf16.msra.mxu0 %v1263
      %1286 = vmatprep.subr.bf16.mxu0 0
      %1287 = vmatpush1.bf16.msra.mxu0 %v1262
      %1288 = vmatprep.subr.bf16.mxu0 0
      %1289 = vmatpush1.bf16.msra.mxu0 %v1261
      %1290 = vmatprep.subr.bf16.mxu0 0
      %1291 = vmatpush1.bf16.msra.mxu0 %v1260
      %1292 = vmatprep.subr.bf16.mxu0 0
      %1293 = vmatpush2.bf16.msra.mxu0 0
      %1294 = vmatprep.subr.bf16.mxu0 0
      %1295 = vmatpush2.bf16.msra.mxu0 0
      %1296 = vmatprep.subr.bf16.mxu0 0
      %1297 = vmatpush2.bf16.msra.mxu0 0
      %1298 = vmatprep.subr.bf16.mxu0 0
      %1299 = vmatpush2.bf16.msra.mxu0 0
      %1300 = vmatprep.subr.bf16.mxu0 0
      %1301 = vmatpush2.bf16.msra.mxu0 0
      %1302 = vmatprep.subr.bf16.mxu0 0
      %1303 = vmatpush2.bf16.msra.mxu0 0
      %1304 = vmatprep.subr.bf16.mxu0 0
      %1305 = vmatpush2.bf16.msra.mxu0 0
      %1306 = vmatprep.subr.bf16.mxu0 0
      %1307 = vmatpush2.bf16.msra.mxu0 0
      %1308 = vmatprep.mubr.bf16.mxu0 0
      %1309 = vmatmul.mubr.bf16.gmra.mxu0 %v1189
      %v1310 = vpop.f32.mrf.mxu0
      %v1311 = vadd.f32 %v1226, %v1310
      %v1312 = vpop.f32.mrf.mxu0
      %v1313 = vpop.f32.mrf.mxu0
      %v1314 = vadd.f32 %v1226, %v1313
      %v1315 = vpop.f32.mrf.mxu0
      %1316 = vmatprep.mubr.bf16.mxu0 0
      %1317 = vmatmul.mubr.bf16.gmra.mxu0 %v1190
      %v1318 = vpop.f32.mrf.mxu0
      %v1319 = vadd.f32 %v1226, %v1318
      %v1320 = vpop.f32.mrf.mxu0
      %v1321 = vpop.f32.mrf.mxu0
      %v1322 = vadd.f32 %v1226, %v1321
      %v1323 = vpop.f32.mrf.mxu0
      %1324 = vmatprep.mubr.bf16.mxu0 0
      %1325 = vmatmul.mubr.bf16.gmra.mxu0 %v1191
      %v1326 = vpop.f32.mrf.mxu0
      %v1327 = vadd.f32 %v1226, %v1326
      %v1328 = vpop.f32.mrf.mxu0
      %v1329 = vpop.f32.mrf.mxu0
      %v1330 = vadd.f32 %v1226, %v1329
      %v1331 = vpop.f32.mrf.mxu0
      %1332 = vmatprep.mubr.bf16.mxu0 0
      %1333 = vmatmul.mubr.bf16.gmra.mxu0 %v1192
      %v1334 = vpop.f32.mrf.mxu0
      %v1335 = vadd.f32 %v1226, %v1334
      %v1336 = vpop.f32.mrf.mxu0
      %v1337 = vpop.f32.mrf.mxu0
      %v1338 = vadd.f32 %v1226, %v1337
      %v1339 = vpop.f32.mrf.mxu0
      %1340 = vmatprep.mubr.bf16.mxu0 0
      %1341 = vmatmul.mubr.bf16.gmra.mxu0 %v1193
      %v1342 = vpop.f32.mrf.mxu0
      %v1343 = vadd.f32 %v1226, %v1342
      %v1344 = vpop.f32.mrf.mxu0
      %v1345 = vpop.f32.mrf.mxu0
      %v1346 = vadd.f32 %v1226, %v1345
      %v1347 = vpop.f32.mrf.mxu0
      %1348 = vmatprep.mubr.bf16.mxu0 0
      %1349 = vmatmul.mubr.bf16.gmra.mxu0 %v1194
      %v1350 = vpop.f32.mrf.mxu0
      %v1351 = vadd.f32 %v1226, %v1350
      %v1352 = vpop.f32.mrf.mxu0
      %v1353 = vpop.f32.mrf.mxu0
      %v1354 = vadd.f32 %v1226, %v1353
      %v1355 = vpop.f32.mrf.mxu0
      %1356 = vmatprep.mubr.bf16.mxu0 0
      %1357 = vmatmul.mubr.bf16.gmra.mxu0 %v1195
      %v1358 = vpop.f32.mrf.mxu0
      %v1359 = vadd.f32 %v1226, %v1358
      %v1360 = vpop.f32.mrf.mxu0
      %v1361 = vpop.f32.mrf.mxu0
      %v1362 = vadd.f32 %v1226, %v1361
      %v1363 = vpop.f32.mrf.mxu0
      %1364 = vmatprep.mubr.bf16.mxu0 0
      %1365 = vmatmul.mubr.bf16.gmra.mxu0 %v1196
      %v1366 = vpop.f32.mrf.mxu0
      %v1367 = vadd.f32 %v1226, %v1366
      %v1368 = vpop.f32.mrf.mxu0
      %v1369 = vpop.f32.mrf.mxu0
      %v1370 = vadd.f32 %v1226, %v1369
      %v1371 = vpop.f32.mrf.mxu0
      %1372 = vmatprep.mubr.bf16.mxu0 0
      %1373 = vmatmul.mubr.bf16.gmra.mxu0 %v1197
      %v1374 = vpop.f32.mrf.mxu0
      %v1375 = vadd.f32 %v1226, %v1374
      %v1376 = vpop.f32.mrf.mxu0
      %v1377 = vpop.f32.mrf.mxu0
      %v1378 = vadd.f32 %v1226, %v1377
      %v1379 = vpop.f32.mrf.mxu0
      %1380 = vmatprep.mubr.bf16.mxu0 0
      %1381 = vmatmul.mubr.bf16.gmra.mxu0 %v1198
      %v1382 = vpop.f32.mrf.mxu0
      %v1383 = vadd.f32 %v1226, %v1382
      %v1384 = vpop.f32.mrf.mxu0
      %v1385 = vpop.f32.mrf.mxu0
      %v1386 = vadd.f32 %v1226, %v1385
      %v1387 = vpop.f32.mrf.mxu0
      %1388 = vmatprep.mubr.bf16.mxu0 0
      %1389 = vmatmul.mubr.bf16.gmra.mxu0 %v1199
      %v1390 = vpop.f32.mrf.mxu0
      %v1391 = vadd.f32 %v1226, %v1390
      %v1392 = vpop.f32.mrf.mxu0
      %v1393 = vpop.f32.mrf.mxu0
      %v1394 = vadd.f32 %v1226, %v1393
      %v1395 = vpop.f32.mrf.mxu0
      %1396 = vmatprep.mubr.bf16.mxu0 0
      %1397 = vmatmul.mubr.bf16.gmra.mxu0 %v1200
      %v1398 = vpop.f32.mrf.mxu0
      %v1399 = vadd.f32 %v1226, %v1398
      %v1400 = vpop.f32.mrf.mxu0
      %v1401 = vpop.f32.mrf.mxu0
      %v1402 = vadd.f32 %v1226, %v1401
      %v1403 = vpop.f32.mrf.mxu0
      %1404 = vmatprep.mubr.bf16.mxu0 0
      %1405 = vmatmul.mubr.bf16.gmra.mxu0 %v1201
      %v1406 = vpop.f32.mrf.mxu0
      %v1407 = vadd.f32 %v1226, %v1406
      %v1408 = vpop.f32.mrf.mxu0
      %v1409 = vpop.f32.mrf.mxu0
      %v1410 = vadd.f32 %v1226, %v1409
      %v1411 = vpop.f32.mrf.mxu0
      %1412 = vmatprep.mubr.bf16.mxu0 0
      %1413 = vmatmul.mubr.bf16.gmra.mxu0 %v1202
      %v1414 = vpop.f32.mrf.mxu0
      %v1415 = vadd.f32 %v1226, %v1414
      %v1416 = vpop.f32.mrf.mxu0
      %v1417 = vpop.f32.mrf.mxu0
      %v1418 = vadd.f32 %v1226, %v1417
      %v1419 = vpop.f32.mrf.mxu0
      %1420 = vmatprep.mubr.bf16.mxu0 0
      %1421 = vmatmul.mubr.bf16.gmra.mxu0 %v1203
      %v1422 = vpop.f32.mrf.mxu0
      %v1423 = vadd.f32 %v1226, %v1422
      %v1424 = vpop.f32.mrf.mxu0
      %v1425 = vpop.f32.mrf.mxu0
      %v1426 = vadd.f32 %v1226, %v1425
      %v1427 = vpop.f32.mrf.mxu0
      %1428 = vmatprep.mubr.bf16.mxu0 0
      %1429 = vmatmul.mubr.bf16.gmra.mxu0 %v1204
      %v1430 = vpop.f32.mrf.mxu0
      %v1431 = vadd.f32 %v1226, %v1430
      %v1432 = vpop.f32.mrf.mxu0
      %v1433 = vpop.f32.mrf.mxu0
      %v1434 = vadd.f32 %v1226, %v1433
      %v1435 = vpop.f32.mrf.mxu0
      %1436 = vdwg.mxu0
      %v1437 = vadd.f32 %v1311, %v615
      %v1438 = vadd.f32 %v1314, %v618
      %v1439 = vadd.f32 %v1319, %v623
      %v1440 = vadd.f32 %v1322, %v626
      %v1441 = vadd.f32 %v1327, %v631
      %v1442 = vadd.f32 %v1330, %v634
      %v1443 = vadd.f32 %v1335, %v639
      %v1444 = vadd.f32 %v1338, %v642
      %v1445 = vadd.f32 %v1343, %v647
      %v1446 = vadd.f32 %v1346, %v650
      %v1447 = vadd.f32 %v1351, %v655
      %v1448 = vadd.f32 %v1354, %v658
      %v1449 = vadd.f32 %v1359, %v663
      %v1450 = vadd.f32 %v1362, %v666
      %v1451 = vadd.f32 %v1367, %v671
      %v1452 = vadd.f32 %v1370, %v674
      %v1453 = vadd.f32 %v1375, %v679
      %v1454 = vadd.f32 %v1378, %v682
      %v1455 = vadd.f32 %v1383, %v687
      %v1456 = vadd.f32 %v1386, %v690
      %v1457 = vadd.f32 %v1391, %v695
      %v1458 = vadd.f32 %v1394, %v698
      %v1459 = vadd.f32 %v1399, %v703
      %v1460 = vadd.f32 %v1402, %v706
      %v1461 = vadd.f32 %v1407, %v711
      %v1462 = vadd.f32 %v1410, %v714
      %v1463 = vadd.f32 %v1415, %v719
      %v1464 = vadd.f32 %v1418, %v722
      %v1465 = vadd.f32 %v1423, %v727
      %v1466 = vadd.f32 %v1426, %v730
      %v1467 = vadd.f32 %v1431, %v735
      %v1468 = vadd.f32 %v1434, %v738
      %v1469 = vld [vmem:[%s7] sm:$0x1]
      %v1471 = vlaneseq
      %v1472 = vshrl.u32 %v1471, 7
      %v1473 = vsub.s32 0, %v1472
      %v1474 = vrot.slane %v1469, %v1473
      %v1476 = vmul.f32 %v1437, %v1474
      %v1477 = vmul.f32 %v1438, %v1474
      %v1478 = vmul.f32 %v1439, %v1474
      %v1479 = vmul.f32 %v1440, %v1474
      %v1480 = vmul.f32 %v1441, %v1474
      %v1481 = vmul.f32 %v1442, %v1474
      %v1482 = vmul.f32 %v1443, %v1474
      %v1483 = vmul.f32 %v1444, %v1474
      %v1484 = vmul.f32 %v1445, %v1474
      %v1485 = vmul.f32 %v1446, %v1474
      %v1486 = vmul.f32 %v1447, %v1474
      %v1487 = vmul.f32 %v1448, %v1474
      %v1488 = vmul.f32 %v1449, %v1474
      %v1489 = vmul.f32 %v1450, %v1474
      %v1490 = vmul.f32 %v1451, %v1474
      %v1491 = vmul.f32 %v1452, %v1474
      %v1492 = vmul.f32 %v1453, %v1474
      %v1493 = vmul.f32 %v1454, %v1474
      %v1494 = vmul.f32 %v1455, %v1474
      %v1495 = vmul.f32 %v1456, %v1474
      %v1496 = vmul.f32 %v1457, %v1474
      %v1497 = vmul.f32 %v1458, %v1474
      %v1498 = vmul.f32 %v1459, %v1474
      %v1499 = vmul.f32 %v1460, %v1474
      %v1500 = vmul.f32 %v1461, %v1474
      %v1501 = vmul.f32 %v1462, %v1474
      %v1502 = vmul.f32 %v1463, %v1474
      %v1503 = vmul.f32 %v1464, %v1474
      %v1504 = vmul.f32 %v1465, %v1474
      %v1505 = vmul.f32 %v1466, %v1474
      %v1506 = vmul.f32 %v1467, %v1474
      %v1507 = vmul.f32 %v1468, %v1474
      %v1508 = vld [vmem:[%s8] sm:$0x1]
      %v1510 = vlaneseq
      %v1511 = vshrl.u32 %v1510, 7
      %v1512 = vsub.s32 0, %v1511
      %v1513 = vrot.slane %v1508, %v1512
      %v1515 = vadd.f32 %v1476, %v1513
      %v1516 = vadd.f32 %v1477, %v1513
      %v1517 = vadd.f32 %v1478, %v1513
      %v1518 = vadd.f32 %v1479, %v1513
      %v1519 = vadd.f32 %v1480, %v1513
      %v1520 = vadd.f32 %v1481, %v1513
      %v1521 = vadd.f32 %v1482, %v1513
      %v1522 = vadd.f32 %v1483, %v1513
      %v1523 = vadd.f32 %v1484, %v1513
      %v1524 = vadd.f32 %v1485, %v1513
      %v1525 = vadd.f32 %v1486, %v1513
      %v1526 = vadd.f32 %v1487, %v1513
      %v1527 = vadd.f32 %v1488, %v1513
      %v1528 = vadd.f32 %v1489, %v1513
      %v1529 = vadd.f32 %v1490, %v1513
      %v1530 = vadd.f32 %v1491, %v1513
      %v1531 = vadd.f32 %v1492, %v1513
      %v1532 = vadd.f32 %v1493, %v1513
      %v1533 = vadd.f32 %v1494, %v1513
      %v1534 = vadd.f32 %v1495, %v1513
      %v1535 = vadd.f32 %v1496, %v1513
      %v1536 = vadd.f32 %v1497, %v1513
      %v1537 = vadd.f32 %v1498, %v1513
      %v1538 = vadd.f32 %v1499, %v1513
      %v1539 = vadd.f32 %v1500, %v1513
      %v1540 = vadd.f32 %v1501, %v1513
      %v1541 = vadd.f32 %v1502, %v1513
      %v1542 = vadd.f32 %v1503, %v1513
      %v1543 = vadd.f32 %v1504, %v1513
      %v1544 = vadd.f32 %v1505, %v1513
      %v1545 = vadd.f32 %v1506, %v1513
      %v1546 = vadd.f32 %v1507, %v1513
      %v1547 = vmax.f32 %v1515, 0.0
      %v1548 = vmax.f32 %v1516, 0.0
      %v1549 = vmax.f32 %v1517, 0.0
      %v1550 = vmax.f32 %v1518, 0.0
      %v1551 = vmax.f32 %v1519, 0.0
      %v1552 = vmax.f32 %v1520, 0.0
      %v1553 = vmax.f32 %v1521, 0.0
      %v1554 = vmax.f32 %v1522, 0.0
      %v1555 = vmax.f32 %v1523, 0.0
      %v1556 = vmax.f32 %v1524, 0.0
      %v1557 = vmax.f32 %v1525, 0.0
      %v1558 = vmax.f32 %v1526, 0.0
      %v1559 = vmax.f32 %v1527, 0.0
      %v1560 = vmax.f32 %v1528, 0.0
      %v1561 = vmax.f32 %v1529, 0.0
      %v1562 = vmax.f32 %v1530, 0.0
      %v1563 = vmax.f32 %v1531, 0.0
      %v1564 = vmax.f32 %v1532, 0.0
      %v1565 = vmax.f32 %v1533, 0.0
      %v1566 = vmax.f32 %v1534, 0.0
      %v1567 = vmax.f32 %v1535, 0.0
      %v1568 = vmax.f32 %v1536, 0.0
      %v1569 = vmax.f32 %v1537, 0.0
      %v1570 = vmax.f32 %v1538, 0.0
      %v1571 = vmax.f32 %v1539, 0.0
      %v1572 = vmax.f32 %v1540, 0.0
      %v1573 = vmax.f32 %v1541, 0.0
      %v1574 = vmax.f32 %v1542, 0.0
      %v1575 = vmax.f32 %v1543, 0.0
      %v1576 = vmax.f32 %v1544, 0.0
      %v1577 = vmax.f32 %v1545, 0.0
      %v1578 = vmax.f32 %v1546, 0.0
      %v1579 = vpack.c.bf16 %v1548, %v1547
      %v1580 = vpack.c.bf16 %v1550, %v1549
      %v1581 = vpack.c.bf16 %v1552, %v1551
      %v1582 = vpack.c.bf16 %v1554, %v1553
      %v1583 = vpack.c.bf16 %v1556, %v1555
      %v1584 = vpack.c.bf16 %v1558, %v1557
      %v1585 = vpack.c.bf16 %v1560, %v1559
      %v1586 = vpack.c.bf16 %v1562, %v1561
      %v1587 = vpack.c.bf16 %v1564, %v1563
      %v1588 = vpack.c.bf16 %v1566, %v1565
      %v1589 = vpack.c.bf16 %v1568, %v1567
      %v1590 = vpack.c.bf16 %v1570, %v1569
      %v1591 = vpack.c.bf16 %v1572, %v1571
      %v1592 = vpack.c.bf16 %v1574, %v1573
      %v1593 = vpack.c.bf16 %v1576, %v1575
      %v1594 = vpack.c.bf16 %v1578, %v1577
      %v1611 = vunpack.c.l.b16 %v1579
      %v1612 = vunpack.c.h.b16 %v1579
      %v1613 = vunpack.c.l.b16 %v1580
      %v1614 = vunpack.c.h.b16 %v1580
      %v1615 = vunpack.c.l.b16 %v1581
      %v1616 = vunpack.c.h.b16 %v1581
      %v1617 = vunpack.c.l.b16 %v1582
      %v1618 = vunpack.c.h.b16 %v1582
      %v1619 = vunpack.c.l.b16 %v1583
      %v1620 = vunpack.c.h.b16 %v1583
      %v1621 = vunpack.c.l.b16 %v1584
      %v1622 = vunpack.c.h.b16 %v1584
      %v1623 = vunpack.c.l.b16 %v1585
      %v1624 = vunpack.c.h.b16 %v1585
      %v1625 = vunpack.c.l.b16 %v1586
      %v1626 = vunpack.c.h.b16 %v1586
      %v1627 = vunpack.c.l.b16 %v1587
      %v1628 = vunpack.c.h.b16 %v1587
      %v1629 = vunpack.c.l.b16 %v1588
      %v1630 = vunpack.c.h.b16 %v1588
      %v1631 = vunpack.c.l.b16 %v1589
      %v1632 = vunpack.c.h.b16 %v1589
      %v1633 = vunpack.c.l.b16 %v1590
      %v1634 = vunpack.c.h.b16 %v1590
      %v1635 = vunpack.c.l.b16 %v1591
      %v1636 = vunpack.c.h.b16 %v1591
      %v1637 = vunpack.c.l.b16 %v1592
      %v1638 = vunpack.c.h.b16 %v1592
      %v1639 = vunpack.c.l.b16 %v1593
      %v1640 = vunpack.c.h.b16 %v1593
      %v1641 = vunpack.c.l.b16 %v1594
      %v1642 = vunpack.c.h.b16 %v1594
      %v1643 = vpack.c.b16 %v1611, %v1611
      %v1644 = vpack.c.b16 %v1612, %v1612
      %v1645 = vpack.c.b16 %v1613, %v1613
      %v1646 = vpack.c.b16 %v1614, %v1614
      %v1647 = vpack.c.b16 %v1615, %v1615
      %v1648 = vpack.c.b16 %v1616, %v1616
      %v1649 = vpack.c.b16 %v1617, %v1617
      %v1650 = vpack.c.b16 %v1618, %v1618
      %v1651 = vpack.c.b16 %v1619, %v1619
      %v1652 = vpack.c.b16 %v1620, %v1620
      %v1653 = vpack.c.b16 %v1621, %v1621
      %v1654 = vpack.c.b16 %v1622, %v1622
      %v1655 = vpack.c.b16 %v1623, %v1623
      %v1656 = vpack.c.b16 %v1624, %v1624
      %v1657 = vpack.c.b16 %v1625, %v1625
      %v1658 = vpack.c.b16 %v1626, %v1626
      %v1659 = vpack.c.b16 %v1627, %v1627
      %v1660 = vpack.c.b16 %v1628, %v1628
      %v1661 = vpack.c.b16 %v1629, %v1629
      %v1662 = vpack.c.b16 %v1630, %v1630
      %v1663 = vpack.c.b16 %v1631, %v1631
      %v1664 = vpack.c.b16 %v1632, %v1632
      %v1665 = vpack.c.b16 %v1633, %v1633
      %v1666 = vpack.c.b16 %v1634, %v1634
      %v1667 = vpack.c.b16 %v1635, %v1635
      %v1668 = vpack.c.b16 %v1636, %v1636
      %v1669 = vpack.c.b16 %v1637, %v1637
      %v1670 = vpack.c.b16 %v1638, %v1638
      %v1671 = vpack.c.b16 %v1639, %v1639
      %v1672 = vpack.c.b16 %v1640, %v1640
      %v1673 = vpack.c.b16 %v1641, %v1641
      %v1674 = vpack.c.b16 %v1642, %v1642
      %1707 = vst [vmem:[%s378] sm:$0xf] %v1643
      %1708 = vst [vmem:[%s378 + $0x4] sm:$0xf] %v1644
      %1709 = vst [vmem:[%s378 + $0x8] sm:$0xf] %v1645
      %1710 = vst [vmem:[%s378 + $0xc] sm:$0xf] %v1646
      %1711 = vst [vmem:[%s378 + $0x10] sm:$0xf] %v1647
      %1712 = vst [vmem:[%s378 + $0x14] sm:$0xf] %v1648
      %1713 = vst [vmem:[%s378 + $0x18] sm:$0xf] %v1649
      %1714 = vst [vmem:[%s378 + $0x1c] sm:$0xf] %v1650
      %1715 = vst [vmem:[%s378 + $0x20] sm:$0xf] %v1651
      %1716 = vst [vmem:[%s378 + $0x24] sm:$0xf] %v1652
      %1717 = vst [vmem:[%s378 + $0x28] sm:$0xf] %v1653
      %1718 = vst [vmem:[%s378 + $0x2c] sm:$0xf] %v1654
      %1719 = vst [vmem:[%s378 + $0x30] sm:$0xf] %v1655
      %1720 = vst [vmem:[%s378 + $0x34] sm:$0xf] %v1656
      %1721 = vst [vmem:[%s378 + $0x38] sm:$0xf] %v1657
      %1722 = vst [vmem:[%s378 + $0x3c] sm:$0xf] %v1658
      %1723 = vst [vmem:[%s378 + $0x40] sm:$0xf] %v1659
      %1724 = vst [vmem:[%s378 + $0x44] sm:$0xf] %v1660
      %1725 = vst [vmem:[%s378 + $0x48] sm:$0xf] %v1661
      %1726 = vst [vmem:[%s378 + $0x4c] sm:$0xf] %v1662
      %1727 = vst [vmem:[%s378 + $0x50] sm:$0xf] %v1663
      %1728 = vst [vmem:[%s378 + $0x54] sm:$0xf] %v1664
      %1729 = vst [vmem:[%s378 + $0x58] sm:$0xf] %v1665
      %1730 = vst [vmem:[%s378 + $0x5c] sm:$0xf] %v1666
      %1731 = vst [vmem:[%s378 + $0x60] sm:$0xf] %v1667
      %1732 = vst [vmem:[%s378 + $0x64] sm:$0xf] %v1668
      %1733 = vst [vmem:[%s378 + $0x68] sm:$0xf] %v1669
      %1734 = vst [vmem:[%s378 + $0x6c] sm:$0xf] %v1670
      %1735 = vst [vmem:[%s378 + $0x70] sm:$0xf] %v1671
      %1736 = vst [vmem:[%s378 + $0x74] sm:$0xf] %v1672
      %1737 = vst [vmem:[%s378 + $0x78] sm:$0xf] %v1673
      %1738 = vst [vmem:[%s378 + $0x7c] sm:$0xf] %v1674
      %s1739 = smul.u32 32, %s20
      %p1740 = scmp.lt.s32.totalorder %s1739, 63
      %s1741 = scalar_select %p1740, %s1739, 63
      %s1742 = smul.addr %s1741, 4
      %s1743 = scalar_lea.vmem %s9, %s1742
      // Predicated region
      $region57: #{dasi_forward.9} parent=55 // pred_check
        %p1744 = pneg %p242
      $region58: #{dasi_forward.9} parent=55 // pred_check_branch
        %1746 = sbr.rel (%p1744) target = $region60
      $region59: #{dasi_forward.9} parent=55 // pred_region
        %s1747 = smul.u32 32, %s20
      $region60: #{dasi_forward.9} parent=55 // pred_fallthru
        _
    $region56: #{dasi_forward.9} parent=5 // pred_fallthru
      _
    %p1748 = scmp.le.s32.totalorder 2, %s15
    // Predicated region
    $region61: #{dasi_forward.9} parent=5 // pred_check
      %p1749 = pneg %p1748
    $region62: #{dasi_forward.9} parent=5 // pred_check_branch
      %1751 = sbr.rel (%p1749) target = $region64
    $region63: #{dasi_forward.9} parent=5 // pred_region
      %s1752 = ssub.s32 %s15, 2
      // Predicated region
      $region65: #{dasi_forward.9} parent=63 // pred_check
        %p1753 = pneg %p248
      $region66: #{dasi_forward.9} parent=63 // pred_check_branch
        %1755 = sbr.rel (%p1753) target = $region68
      $region67: #{dasi_forward.9} parent=63 // pred_region
        %s1756 = smul.u32 32, %s21
        %p1757 = scmp.lt.s32.totalorder %s1756, 63
        %s1758 = scalar_select %p1757, %s1756, 63
        %s1759 = smul.addr %s1758, 4
        %s1760 = scalar_lea.vmem %s9, %s1759
      $region68: #{dasi_forward.9} parent=63 // pred_fallthru
        _
    $region64: #{dasi_forward.9} parent=5 // pred_fallthru
      _
  $region6: #{dasi_forward.9} parent=0 // loop_footer
    %s19 = sadd.s32 1, %s15
  $region7: #{dasi_forward.9} parent=0 // loop_footer_branch
    %14 = sbr.rel target = $region3
  $region8: #{dasi_forward.9} parent=0 // loop_exit
    _

</llo_original>
